<compile_context>
chip_gen: v7x
topology: tpu7x:2x2x1
jax: 0.10.0
libtpu: 0.0.40
codegen_flags: <defaults>
</compile_context>

<pallas_src>
import numpy as np
import jax
import jax.numpy as jnp
from jax.experimental import pallas as pl
from jax.experimental.pallas import tpu as pltpu

LEAKY_SLOPE = 0.01   # nn.LeakyReLU() default
BN_EPS = 1e-5        # nn.BatchNorm2d default
LANE = 128           # lane width used for conv2's padded output (tile-aligned transpose)


# --------------------------------------------------------------------------------------
# align_corners=True bilinear interpolation matrix (exact nn.Upsample equivalent)
def _align_corners_matrix(out_size, in_size):
    if in_size == 1:
        return np.ones((out_size, 1), np.float64)
    src = np.arange(out_size, dtype=np.float64) * (in_size - 1) / (out_size - 1)
    lo = np.clip(np.floor(src).astype(np.int64), 0, in_size - 2)
    frac = src - lo
    m = np.zeros((out_size, in_size), np.float64)
    m[np.arange(out_size), lo] = 1.0 - frac
    m[np.arange(out_size), lo + 1] += frac
    return m


# --------------------------------------------------------------------------------------
# Fused kernel: conv1x1 -> bilinear x2 upsample -> [concat packed into one lane block]
#               -> conv3x3 + BN + LeakyReLU -> conv3x3 + BN + LeakyReLU
def _make_upblock_kernel(H1, W1, H, W, C1, C2, COUT):
    C2P = 2 * C2      # packed concat width (x2 channels | upsampled channels)
    HW = H * W

    def kernel(x1_ref, x2_ref, w1_ref, b1_ref, up_ref,
               wc1_ref, s1_ref, sh1_ref, wc2_ref, s2_ref, sh2_ref,
               o_ref, padA, padB):
        f32, bf16 = jnp.float32, jnp.bfloat16

        # ---- stage 1: 1x1 conv (pointwise matmul); outputs land in concat lanes
        #      C2..2*C2-1 of the C2P-wide row (w1/b1 packed that way wrapper-side).
        x1 = x1_ref[0].astype(bf16)                                        # (H1*W1, C1)
        y = jnp.dot(x1, w1_ref[...], preferred_element_type=f32) + b1_ref[...]

        # ---- stage 2: bilinear x2 upsample (align_corners=True) over flattened spatial.
        # TODO(synk): separable Mh/Mw form for large resolutions (kron matrix is O((HW)^2/4)).
        yup = jnp.dot(up_ref[...], y.astype(bf16), preferred_element_type=f32)  # (HW, C2P)

        # ---- stage 3: packed concat buffer in bf16 VMEM; border-only halo zeroing -----
        zrow = jnp.zeros((1, W + 2, C2P), bf16)
        zcol = jnp.zeros((H, 1, C2P), bf16)
        padA[0:1, :, :] = zrow
        padA[H + 1:H + 2, :, :] = zrow
        padA[1:H + 1, 0:1, :] = zcol
        padA[1:H + 1, W + 1:W + 2, :] = zcol
        # interior: upsampled conv1x1 output first (lanes 0..C2-1 are zero by packing),
        # then the x2 skip connection overwrites lanes 0..C2-1  (= torch.cat order).
        padA[1:H + 1, 1:W + 1, :] = yup.reshape(H, W, C2P).astype(bf16)
        padA[1:H + 1, 1:W + 1, 0:C2] = x2_ref[0].astype(bf16)

        # ---- stage 4: conv3x3 #1 + BN + LeakyReLU as 9 shifted K=C2P MXU matmuls ------
        h1 = None
        for dy in range(3):
            for dx in range(3):
                t = dy * 3 + dx
                tap = padA[dy:dy + H, dx:dx + W, :].reshape(HW, C2P)
                d = jnp.dot(tap, wc1_ref[t * C2P:(t + 1) * C2P, :],
                            preferred_element_type=f32)
                h1 = d if h1 is None else h1 + d
        z1 = h1 * s1_ref[...] + sh1_ref[...]            # folded BN (eval) + conv bias
        a1 = jnp.where(z1 >= 0, z1, LEAKY_SLOPE * z1)   # LeakyReLU; Dropout = identity

        # ---- stage 5: conv3x3 #2 + BN + LeakyReLU (output lanes padded to 128 so the
        #      final transpose is fully tile-aligned) ----------------------------------
        zrowB = jnp.zeros((1, W + 2, COUT), bf16)
        zcolB = jnp.zeros((H, 1, COUT), bf16)
        padB[0:1, :, :] = zrowB
        padB[H + 1:H + 2, :, :] = zrowB
        padB[1:H + 1, 0:1, :] = zcolB
        padB[1:H + 1, W + 1:W + 2, :] = zcolB
        padB[1:H + 1, 1:W + 1, :] = a1.reshape(H, W, COUT).astype(bf16)

        h2 = None
        for dy in range(3):
            for dx in range(3):
                t = dy * 3 + dx
                tap = padB[dy:dy + H, dx:dx + W, :].reshape(HW, COUT)
                d = jnp.dot(tap, wc2_ref[t * COUT:(t + 1) * COUT, :],
                            preferred_element_type=f32)
                h2 = d if h2 is None else h2 + d
        z2 = h2 * s2_ref[...] + sh2_ref[...]            # (HW, 128)
        a2 = jnp.where(z2 >= 0, z2, LEAKY_SLOPE * z2)

        # ---- lane-dense output store: (COUT, H*W), every lane real data ---------------
        a2t = jnp.transpose(a2)                          # (128, HW), tile-aligned xpose
        o_ref[...] = a2t[:COUT, :].reshape(1, COUT, HW)

    return kernel


# --------------------------------------------------------------------------------------
def upblock_fba_forward(x1_nchw, x2_nchw, params):
    # NCHW <-> channels-minor transposes kept only to preserve the PyTorch interface.
    x1 = jnp.transpose(x1_nchw, (0, 2, 3, 1)).astype(jnp.float32)
    x2 = jnp.transpose(x2_nchw, (0, 2, 3, 1)).astype(jnp.float32)
    n, h1, w1sp, c1 = x1.shape
    _, h, w, c2 = x2.shape
    cout = params['scale1'].shape[0]
    c2p = 2 * c2
    assert (h, w) == (2 * h1, 2 * w1sp)

    bf16, f32 = jnp.bfloat16, jnp.float32

    # flattened-spatial view of x1 (free reshape on the HBM array)
    x1f = x1.reshape(n, h1 * w1sp, c1)

    # ---------------- wrapper-side parameter packing (tiny, one-time) ----------------
    # 1x1 conv: output channels placed at concat lanes c2..2*c2-1
    w1p = jnp.zeros((c1, c2p), f32).at[:, c2:].set(params['w1x1']).astype(bf16)
    b1p = jnp.zeros((1, c2p), f32).at[0, c2:].set(params['b1x1'])
    # bilinear-x2 align_corners interpolation matrix over flattened spatial
    up = jnp.asarray(np.kron(_align_corners_matrix(h, h1),
                             _align_corners_matrix(w, w1sp)), bf16)
    # conv1 weights: (3,3,2*c2,cout) -> rows = tap*c2p + cin  (no zero-K padding)
    wc1p = params['wc1'].reshape(9 * c2p, cout).astype(bf16)
    # conv2 weights: (3,3,cout,cout) -> rows = tap*cout + cin, output lanes padded to 128
    wc2p = jnp.pad(params['wc2'].reshape(9 * cout, cout),
                   ((0, 0), (0, LANE - cout))).astype(bf16)
    s1p = params['scale1'].reshape(1, cout)
    sh1p = params['shift1'].reshape(1, cout)
    s2p = jnp.pad(params['scale2'].reshape(1, cout), ((0, 0), (0, LANE - cout)))
    sh2p = jnp.pad(params['shift2'].reshape(1, cout), ((0, 0), (0, LANE - cout)))

    kernel = _make_upblock_kernel(h1, w1sp, h, w, c1, c2, cout)
    out = pl.pallas_call(
        kernel,
        out_shape=jax.ShapeDtypeStruct((n, cout, h * w), f32),
        grid=(n,),
        in_specs=[
            pl.BlockSpec((1, h1 * w1sp, c1), lambda i: (i, 0, 0)),     # x1 (flattened)
            pl.BlockSpec((1, h, w, c2), lambda i: (i, 0, 0, 0)),       # x2, TRUE width
            pl.BlockSpec((c1, c2p), lambda i: (0, 0)),                 # w1x1 (packed)
            pl.BlockSpec((1, c2p), lambda i: (0, 0)),                  # b1x1 (packed)
            pl.BlockSpec((h * w, h1 * w1sp), lambda i: (0, 0)),        # upsample matrix
            pl.BlockSpec((9 * c2p, cout), lambda i: (0, 0)),           # conv1 weights
            pl.BlockSpec((1, cout), lambda i: (0, 0)),                 # scale1
            pl.BlockSpec((1, cout), lambda i: (0, 0)),                 # shift1
            pl.BlockSpec((9 * cout, LANE), lambda i: (0, 0)),          # conv2 weights
            pl.BlockSpec((1, LANE), lambda i: (0, 0)),                 # scale2
            pl.BlockSpec((1, LANE), lambda i: (0, 0)),                 # shift2
        ],
        out_specs=pl.BlockSpec((1, cout, h * w), lambda i: (i, 0, 0)),
        scratch_shapes=[
            pltpu.VMEM((h + 2, w + 2, c2p), bf16),    # padded packed-concat buffer
            pltpu.VMEM((h + 2, w + 2, cout), bf16),   # padded conv1 activation
        ],
        compiler_params=pltpu.CompilerParams(dimension_semantics=("parallel",)),
    )(x1f, x2, w1p, b1p, up, wc1p, s1p, sh1p, wc2p, s2p, sh2p)

    return out.reshape(n, cout, h, w)                  # already NCHW, just a free reshape


# --------------------------------------------------------------------------------------
def make_params(key, c_in1, c_in2, c_out):
    ks = jax.random.split(key, 14)

    def uni(k, shape, lim):
        return jax.random.uniform(k, shape, jnp.float32, -lim, lim)

    p = {}
    lim1 = 1.0 / np.sqrt(c_in1)
    p['w1x1'] = uni(ks[0], (c_in1, c_in2), lim1)
    p['b1x1'] = uni(ks[1], (c_in2,), lim1)

    def conv_bn(kw, kb, kg, kbe, km, kv, cin, cout):
        lim = 1.0 / np.sqrt(9 * cin)
        w = uni(kw, (3, 3, cin, cout), lim)          # HWIO
        b = uni(kb, (cout,), lim)
        gamma = 1.0 + 0.1 * uni(kg, (cout,), 1.0)
        beta = 0.1 * uni(kbe, (cout,), 1.0)
        rmean = 0.1 * uni(km, (cout,), 1.0)
        rvar = 1.0 + 0.2 * jax.random.uniform(kv, (cout,), jnp.float32)
        scale = gamma / jnp.sqrt(rvar + BN_EPS)
        shift = beta + (b - rmean) * scale           # folds conv bias + BN (eval)
        return w, scale, shift

    p['wc1'], p['scale1'], p['shift1'] = conv_bn(*ks[2:8], 2 * c_in2, c_out)
    p['wc2'], p['scale2'], p['shift2'] = conv_bn(*ks[8:14], c_out, c_out)
    return p


# ----------------------- pure-JAX f32 reference (for verification) ---------------------
def reference_forward(x1_nchw, x2_nchw, p):
    hi = jax.lax.Precision.HIGHEST
    x1 = jnp.transpose(x1_nchw, (0, 2, 3, 1))
    x2 = jnp.transpose(x2_nchw, (0, 2, 3, 1))
    y = jnp.einsum('nhwc,cd->nhwd', x1, p['w1x1'], precision=hi) + p['b1x1']
    _, h1, w1, _ = y.shape
    mh = jnp.asarray(_align_corners_matrix(2 * h1, h1), jnp.float32)
    mw = jnp.asarray(_align_corners_matrix(2 * w1, w1), jnp.float32)
    t = jnp.einsum('ih,nhwc->niwc', mh, y, precision=hi)
    yup = jnp.einsum('jw,niwc->nijc', mw, t, precision=hi)
    x = jnp.concatenate([x2, yup], axis=-1)
    for wk, sk, bk in (('wc1', 'scale1', 'shift1'), ('wc2', 'scale2', 'shift2')):
        z = jax.lax.conv_general_dilated(
            x, p[wk], (1, 1), 'SAME',
            dimension_numbers=('NHWC', 'HWIO', 'NHWC'), precision=hi)
        z = z * p[sk] + p[bk]
        x = jnp.where(z >= 0, z, LEAKY_SLOPE * z)
    return jnp.transpose(x, (0, 3, 1, 2))


if __name__ == "__main__":
    key = jax.random.PRNGKey(0)
    k1, k2, kp = jax.random.split(key, 3)

    N, C_IN1, C_IN2, C_OUT = 2, 16, 8, 16
    H1 = W1 = 8                      # x1 spatial; x2 is 2x that (decoder skip)
    x1 = jax.random.normal(k1, (N, C_IN1, H1, W1), jnp.float32)
    x2 = jax.random.normal(k2, (N, C_IN2, 2 * H1, 2 * W1), jnp.float32)
    params = make_params(kp, C_IN1, C_IN2, C_OUT)

    fwd = jax.jit(upblock_fba_forward)
    out = jax.block_until_ready(fwd(x1, x2, params))
    assert out.shape == (N, C_OUT, 2 * H1, 2 * W1), out.shape

    ref = jax.block_until_ready(reference_forward(x1, x2, params))
    # Kernel uses bf16 MXU inputs with f32 accumulation (per perf review); the
    # reference is full f32, hence the relaxed tolerance.
    np.testing.assert_allclose(np.asarray(out), np.asarray(ref), atol=2e-2, rtol=2e-2)

    print("KERNEL_OK")
</pallas_src>

<mosaic_0001>
module attributes {stable_mosaic.version = 11 : i64} {
  func.func @kernel(%arg0: i32, %arg1: memref<1x64x16xf32, #tpu.memory_space<vmem>>, %arg2: memref<1x16x16x8xf32, #tpu.memory_space<vmem>>, %arg3: memref<16x16xbf16, #tpu.memory_space<vmem>>, %arg4: memref<1x16xf32, #tpu.memory_space<vmem>>, %arg5: memref<256x64xbf16, #tpu.memory_space<vmem>>, %arg6: memref<144x16xbf16, #tpu.memory_space<vmem>>, %arg7: memref<1x16xf32, #tpu.memory_space<vmem>>, %arg8: memref<1x16xf32, #tpu.memory_space<vmem>>, %arg9: memref<144x128xbf16, #tpu.memory_space<vmem>>, %arg10: memref<1x128xf32, #tpu.memory_space<vmem>>, %arg11: memref<1x128xf32, #tpu.memory_space<vmem>>, %arg12: memref<1x16x256xf32, #tpu.memory_space<vmem>>, %arg13: memref<18x18x16xbf16, #tpu.memory_space<vmem>>, %arg14: memref<18x18x16xbf16, #tpu.memory_space<vmem>>) attributes {dimension_semantics = [#tpu.dimension_semantics<parallel>], iteration_bounds = array<i64: 2>, scalar_prefetch = 0 : i64, scratch_operands = 2 : i64, tpu.core_type = #tpu.core_type<tc>, window_params = [{transform_indices = @transform_0, window_bounds = array<i64: 1, 64, 16>}, {transform_indices = @transform_1, window_bounds = array<i64: 1, 16, 16, 8>}, {pipeline_mode = #tpu.pipeline_mode<synchronous>, transform_indices = @transform_2, window_bounds = array<i64: 16, 16>}, {pipeline_mode = #tpu.pipeline_mode<synchronous>, transform_indices = @transform_3, window_bounds = array<i64: 1, 16>}, {pipeline_mode = #tpu.pipeline_mode<synchronous>, transform_indices = @transform_4, window_bounds = array<i64: 256, 64>}, {pipeline_mode = #tpu.pipeline_mode<synchronous>, transform_indices = @transform_5, window_bounds = array<i64: 144, 16>}, {pipeline_mode = #tpu.pipeline_mode<synchronous>, transform_indices = @transform_6, window_bounds = array<i64: 1, 16>}, {pipeline_mode = #tpu.pipeline_mode<synchronous>, transform_indices = @transform_7, window_bounds = array<i64: 1, 16>}, {pipeline_mode = #tpu.pipeline_mode<synchronous>, transform_indices = @transform_8, window_bounds = array<i64: 144, 128>}, {pipeline_mode = #tpu.pipeline_mode<synchronous>, transform_indices = @transform_9, window_bounds = array<i64: 1, 128>}, {pipeline_mode = #tpu.pipeline_mode<synchronous>, transform_indices = @transform_10, window_bounds = array<i64: 1, 128>}, {transform_indices = @transform_11, window_bounds = array<i64: 1, 16, 256>}]} {
    %c0 = arith.constant 0 : index
    %c0_0 = arith.constant 0 : index
    %c0_1 = arith.constant 0 : index
    %0 = vector.load %arg1[%c0, %c0_0, %c0_1] : memref<1x64x16xf32, #tpu.memory_space<vmem>>, vector<1x64x16xf32>
    %1 = vector.shape_cast %0 : vector<1x64x16xf32> to vector<64x16xf32>
    %2 = arith.truncf %1 : vector<64x16xf32> to vector<64x16xbf16>
    %c0_2 = arith.constant 0 : index
    %c0_3 = arith.constant 0 : index
    %3 = vector.load %arg3[%c0_2, %c0_3] : memref<16x16xbf16, #tpu.memory_space<vmem>>, vector<16x16xbf16>
    %cst = arith.constant dense<0.000000e+00> : vector<64x16xf32>
    %4 = tpu.matmul %2, %3, %cst {dimension_numbers = #tpu.dot_dimension_numbers<[1], [0], [0], [1], [0, 0, 1, 1], [], []>} : vector<64x16xbf16>, vector<16x16xbf16>, vector<64x16xf32> -> vector<64x16xf32>
    %c0_4 = arith.constant 0 : index
    %c0_5 = arith.constant 0 : index
    %5 = vector.load %arg4[%c0_4, %c0_5] : memref<1x16xf32, #tpu.memory_space<vmem>>, vector<1x16xf32>
    %6 = vector.broadcast %5 : vector<1x16xf32> to vector<64x16xf32>
    %7 = arith.addf %4, %6 : vector<64x16xf32>
    %c0_6 = arith.constant 0 : index
    %c0_7 = arith.constant 0 : index
    %8 = vector.load %arg5[%c0_6, %c0_7] : memref<256x64xbf16, #tpu.memory_space<vmem>>, vector<256x64xbf16>
    %9 = arith.truncf %7 : vector<64x16xf32> to vector<64x16xbf16>
    %cst_8 = arith.constant dense<0.000000e+00> : vector<256x16xf32>
    %10 = tpu.matmul %8, %9, %cst_8 {dimension_numbers = #tpu.dot_dimension_numbers<[1], [0], [0], [1], [0, 0, 1, 1], [], []>} : vector<256x64xbf16>, vector<64x16xbf16>, vector<256x16xf32> -> vector<256x16xf32>
    %cst_9 = arith.constant 0.000000e+00 : bf16
    %11 = vector.broadcast %cst_9 : bf16 to vector<1x18x16xbf16>
    %cst_10 = arith.constant 0.000000e+00 : bf16
    %12 = vector.broadcast %cst_10 : bf16 to vector<16x1x16xbf16>
    %c0_11 = arith.constant 0 : index
    %c0_12 = arith.constant 0 : index
    %c0_13 = arith.constant 0 : index
    %13 = vector.load %arg13[%c0_11, %c0_12, %c0_13] : memref<18x18x16xbf16, #tpu.memory_space<vmem>>, vector<1x18x16xbf16>
    tpu.vector_store %arg13[%c0_11, %c0_12, %c0_13], %11 {strides = array<i32>} : memref<18x18x16xbf16, #tpu.memory_space<vmem>>, vector<1x18x16xbf16>,
    %c17 = arith.constant 17 : index
    %c0_14 = arith.constant 0 : index
    %c0_15 = arith.constant 0 : index
    %14 = vector.load %arg13[%c17, %c0_14, %c0_15] : memref<18x18x16xbf16, #tpu.memory_space<vmem>>, vector<1x18x16xbf16>
    tpu.vector_store %arg13[%c17, %c0_14, %c0_15], %11 {strides = array<i32>} : memref<18x18x16xbf16, #tpu.memory_space<vmem>>, vector<1x18x16xbf16>,
    %c1 = arith.constant 1 : index
    %c0_16 = arith.constant 0 : index
    %c0_17 = arith.constant 0 : index
    %15 = vector.load %arg13[%c1, %c0_16, %c0_17] : memref<18x18x16xbf16, #tpu.memory_space<vmem>>, vector<16x1x16xbf16>
    tpu.vector_store %arg13[%c1, %c0_16, %c0_17], %12 {strides = array<i32>} : memref<18x18x16xbf16, #tpu.memory_space<vmem>>, vector<16x1x16xbf16>,
    %c1_18 = arith.constant 1 : index
    %c17_19 = arith.constant 17 : index
    %c0_20 = arith.constant 0 : index
    %16 = vector.load %arg13[%c1_18, %c17_19, %c0_20] : memref<18x18x16xbf16, #tpu.memory_space<vmem>>, vector<16x1x16xbf16>
    tpu.vector_store %arg13[%c1_18, %c17_19, %c0_20], %12 {strides = array<i32>} : memref<18x18x16xbf16, #tpu.memory_space<vmem>>, vector<16x1x16xbf16>,
    %17 = vector.shape_cast %10 : vector<256x16xf32> to vector<16x16x16xf32>
    %18 = arith.truncf %17 : vector<16x16x16xf32> to vector<16x16x16xbf16>
    %c1_21 = arith.constant 1 : index
    %c1_22 = arith.constant 1 : index
    %c0_23 = arith.constant 0 : index
    %19 = vector.load %arg13[%c1_21, %c1_22, %c0_23] : memref<18x18x16xbf16, #tpu.memory_space<vmem>>, vector<16x16x16xbf16>
    tpu.vector_store %arg13[%c1_21, %c1_22, %c0_23], %18 {strides = array<i32>} : memref<18x18x16xbf16, #tpu.memory_space<vmem>>, vector<16x16x16xbf16>,
    %c0_24 = arith.constant 0 : index
    %c0_25 = arith.constant 0 : index
    %c0_26 = arith.constant 0 : index
    %c0_27 = arith.constant 0 : index
    %20 = vector.load %arg2[%c0_24, %c0_25, %c0_26, %c0_27] : memref<1x16x16x8xf32, #tpu.memory_space<vmem>>, vector<1x16x16x8xf32>
    %21 = vector.shape_cast %20 : vector<1x16x16x8xf32> to vector<16x16x8xf32>
    %22 = arith.truncf %21 : vector<16x16x8xf32> to vector<16x16x8xbf16>
    %c1_28 = arith.constant 1 : index
    %c1_29 = arith.constant 1 : index
    %c0_30 = arith.constant 0 : index
    %23 = vector.load %arg13[%c1_28, %c1_29, %c0_30] : memref<18x18x16xbf16, #tpu.memory_space<vmem>>, vector<16x16x8xbf16>
    tpu.vector_store %arg13[%c1_28, %c1_29, %c0_30], %22 {strides = array<i32>} : memref<18x18x16xbf16, #tpu.memory_space<vmem>>, vector<16x16x8xbf16>,
    %c0_31 = arith.constant 0 : index
    %c0_32 = arith.constant 0 : index
    %c0_33 = arith.constant 0 : index
    %24 = vector.load %arg13[%c0_31, %c0_32, %c0_33] : memref<18x18x16xbf16, #tpu.memory_space<vmem>>, vector<16x16x16xbf16>
    %25 = vector.shape_cast %24 : vector<16x16x16xbf16> to vector<256x16xbf16>
    %c0_34 = arith.constant 0 : index
    %c0_35 = arith.constant 0 : index
    %26 = vector.load %arg6[%c0_34, %c0_35] : memref<144x16xbf16, #tpu.memory_space<vmem>>, vector<16x16xbf16>
    %cst_36 = arith.constant dense<0.000000e+00> : vector<256x16xf32>
    %27 = tpu.matmul %25, %26, %cst_36 {dimension_numbers = #tpu.dot_dimension_numbers<[1], [0], [0], [1], [0, 0, 1, 1], [], []>} : vector<256x16xbf16>, vector<16x16xbf16>, vector<256x16xf32> -> vector<256x16xf32>
    %c0_37 = arith.constant 0 : index
    %c1_38 = arith.constant 1 : index
    %c0_39 = arith.constant 0 : index
    %28 = vector.load %arg13[%c0_37, %c1_38, %c0_39] : memref<18x18x16xbf16, #tpu.memory_space<vmem>>, vector<16x16x16xbf16>
    %29 = vector.shape_cast %28 : vector<16x16x16xbf16> to vector<256x16xbf16>
    %c16 = arith.constant 16 : index
    %c0_40 = arith.constant 0 : index
    %30 = vector.load %arg6[%c16, %c0_40] : memref<144x16xbf16, #tpu.memory_space<vmem>>, vector<16x16xbf16>
    %cst_41 = arith.constant dense<0.000000e+00> : vector<256x16xf32>
    %31 = tpu.matmul %29, %30, %cst_41 {dimension_numbers = #tpu.dot_dimension_numbers<[1], [0], [0], [1], [0, 0, 1, 1], [], []>} : vector<256x16xbf16>, vector<16x16xbf16>, vector<256x16xf32> -> vector<256x16xf32>
    %32 = arith.addf %27, %31 : vector<256x16xf32>
    %c0_42 = arith.constant 0 : index
    %c2 = arith.constant 2 : index
    %c0_43 = arith.constant 0 : index
    %33 = vector.load %arg13[%c0_42, %c2, %c0_43] : memref<18x18x16xbf16, #tpu.memory_space<vmem>>, vector<16x16x16xbf16>
    %34 = vector.shape_cast %33 : vector<16x16x16xbf16> to vector<256x16xbf16>
    %c32 = arith.constant 32 : index
    %c0_44 = arith.constant 0 : index
    %35 = vector.load %arg6[%c32, %c0_44] : memref<144x16xbf16, #tpu.memory_space<vmem>>, vector<16x16xbf16>
    %cst_45 = arith.constant dense<0.000000e+00> : vector<256x16xf32>
    %36 = tpu.matmul %34, %35, %cst_45 {dimension_numbers = #tpu.dot_dimension_numbers<[1], [0], [0], [1], [0, 0, 1, 1], [], []>} : vector<256x16xbf16>, vector<16x16xbf16>, vector<256x16xf32> -> vector<256x16xf32>
    %37 = arith.addf %32, %36 : vector<256x16xf32>
    %c1_46 = arith.constant 1 : index
    %c0_47 = arith.constant 0 : index
    %c0_48 = arith.constant 0 : index
    %38 = vector.load %arg13[%c1_46, %c0_47, %c0_48] : memref<18x18x16xbf16, #tpu.memory_space<vmem>>, vector<16x16x16xbf16>
    %39 = vector.shape_cast %38 : vector<16x16x16xbf16> to vector<256x16xbf16>
    %c48 = arith.constant 48 : index
    %c0_49 = arith.constant 0 : index
    %40 = vector.load %arg6[%c48, %c0_49] : memref<144x16xbf16, #tpu.memory_space<vmem>>, vector<16x16xbf16>
    %cst_50 = arith.constant dense<0.000000e+00> : vector<256x16xf32>
    %41 = tpu.matmul %39, %40, %cst_50 {dimension_numbers = #tpu.dot_dimension_numbers<[1], [0], [0], [1], [0, 0, 1, 1], [], []>} : vector<256x16xbf16>, vector<16x16xbf16>, vector<256x16xf32> -> vector<256x16xf32>
    %42 = arith.addf %37, %41 : vector<256x16xf32>
    %c1_51 = arith.constant 1 : index
    %c1_52 = arith.constant 1 : index
    %c0_53 = arith.constant 0 : index
    %43 = vector.load %arg13[%c1_51, %c1_52, %c0_53] : memref<18x18x16xbf16, #tpu.memory_space<vmem>>, vector<16x16x16xbf16>
    %44 = vector.shape_cast %43 : vector<16x16x16xbf16> to vector<256x16xbf16>
    %c64 = arith.constant 64 : index
    %c0_54 = arith.constant 0 : index
    %45 = vector.load %arg6[%c64, %c0_54] : memref<144x16xbf16, #tpu.memory_space<vmem>>, vector<16x16xbf16>
    %cst_55 = arith.constant dense<0.000000e+00> : vector<256x16xf32>
    %46 = tpu.matmul %44, %45, %cst_55 {dimension_numbers = #tpu.dot_dimension_numbers<[1], [0], [0], [1], [0, 0, 1, 1], [], []>} : vector<256x16xbf16>, vector<16x16xbf16>, vector<256x16xf32> -> vector<256x16xf32>
    %47 = arith.addf %42, %46 : vector<256x16xf32>
    %c1_56 = arith.constant 1 : index
    %c2_57 = arith.constant 2 : index
    %c0_58 = arith.constant 0 : index
    %48 = vector.load %arg13[%c1_56, %c2_57, %c0_58] : memref<18x18x16xbf16, #tpu.memory_space<vmem>>, vector<16x16x16xbf16>
    %49 = vector.shape_cast %48 : vector<16x16x16xbf16> to vector<256x16xbf16>
    %c80 = arith.constant 80 : index
    %c0_59 = arith.constant 0 : index
    %50 = vector.load %arg6[%c80, %c0_59] : memref<144x16xbf16, #tpu.memory_space<vmem>>, vector<16x16xbf16>
    %cst_60 = arith.constant dense<0.000000e+00> : vector<256x16xf32>
    %51 = tpu.matmul %49, %50, %cst_60 {dimension_numbers = #tpu.dot_dimension_numbers<[1], [0], [0], [1], [0, 0, 1, 1], [], []>} : vector<256x16xbf16>, vector<16x16xbf16>, vector<256x16xf32> -> vector<256x16xf32>
    %52 = arith.addf %47, %51 : vector<256x16xf32>
    %c2_61 = arith.constant 2 : index
    %c0_62 = arith.constant 0 : index
    %c0_63 = arith.constant 0 : index
    %53 = vector.load %arg13[%c2_61, %c0_62, %c0_63] : memref<18x18x16xbf16, #tpu.memory_space<vmem>>, vector<16x16x16xbf16>
    %54 = vector.shape_cast %53 : vector<16x16x16xbf16> to vector<256x16xbf16>
    %c96 = arith.constant 96 : index
    %c0_64 = arith.constant 0 : index
    %55 = vector.load %arg6[%c96, %c0_64] : memref<144x16xbf16, #tpu.memory_space<vmem>>, vector<16x16xbf16>
    %cst_65 = arith.constant dense<0.000000e+00> : vector<256x16xf32>
    %56 = tpu.matmul %54, %55, %cst_65 {dimension_numbers = #tpu.dot_dimension_numbers<[1], [0], [0], [1], [0, 0, 1, 1], [], []>} : vector<256x16xbf16>, vector<16x16xbf16>, vector<256x16xf32> -> vector<256x16xf32>
    %57 = arith.addf %52, %56 : vector<256x16xf32>
    %c2_66 = arith.constant 2 : index
    %c1_67 = arith.constant 1 : index
    %c0_68 = arith.constant 0 : index
    %58 = vector.load %arg13[%c2_66, %c1_67, %c0_68] : memref<18x18x16xbf16, #tpu.memory_space<vmem>>, vector<16x16x16xbf16>
    %59 = vector.shape_cast %58 : vector<16x16x16xbf16> to vector<256x16xbf16>
    %c112 = arith.constant 112 : index
    %c0_69 = arith.constant 0 : index
    %60 = vector.load %arg6[%c112, %c0_69] : memref<144x16xbf16, #tpu.memory_space<vmem>>, vector<16x16xbf16>
    %cst_70 = arith.constant dense<0.000000e+00> : vector<256x16xf32>
    %61 = tpu.matmul %59, %60, %cst_70 {dimension_numbers = #tpu.dot_dimension_numbers<[1], [0], [0], [1], [0, 0, 1, 1], [], []>} : vector<256x16xbf16>, vector<16x16xbf16>, vector<256x16xf32> -> vector<256x16xf32>
    %62 = arith.addf %57, %61 : vector<256x16xf32>
    %c2_71 = arith.constant 2 : index
    %c2_72 = arith.constant 2 : index
    %c0_73 = arith.constant 0 : index
    %63 = vector.load %arg13[%c2_71, %c2_72, %c0_73] : memref<18x18x16xbf16, #tpu.memory_space<vmem>>, vector<16x16x16xbf16>
    %64 = vector.shape_cast %63 : vector<16x16x16xbf16> to vector<256x16xbf16>
    %c128 = arith.constant 128 : index
    %c0_74 = arith.constant 0 : index
    %65 = vector.load %arg6[%c128, %c0_74] : memref<144x16xbf16, #tpu.memory_space<vmem>>, vector<16x16xbf16>
    %cst_75 = arith.constant dense<0.000000e+00> : vector<256x16xf32>
    %66 = tpu.matmul %64, %65, %cst_75 {dimension_numbers = #tpu.dot_dimension_numbers<[1], [0], [0], [1], [0, 0, 1, 1], [], []>} : vector<256x16xbf16>, vector<16x16xbf16>, vector<256x16xf32> -> vector<256x16xf32>
    %67 = arith.addf %62, %66 : vector<256x16xf32>
    %c0_76 = arith.constant 0 : index
    %c0_77 = arith.constant 0 : index
    %68 = vector.load %arg7[%c0_76, %c0_77] : memref<1x16xf32, #tpu.memory_space<vmem>>, vector<1x16xf32>
    %69 = vector.broadcast %68 : vector<1x16xf32> to vector<256x16xf32>
    %70 = arith.mulf %67, %69 : vector<256x16xf32>
    %c0_78 = arith.constant 0 : index
    %c0_79 = arith.constant 0 : index
    %71 = vector.load %arg8[%c0_78, %c0_79] : memref<1x16xf32, #tpu.memory_space<vmem>>, vector<1x16xf32>
    %72 = vector.broadcast %71 : vector<1x16xf32> to vector<256x16xf32>
    %73 = arith.addf %70, %72 : vector<256x16xf32>
    %cst_80 = arith.constant 0.000000e+00 : f32
    %74 = vector.broadcast %cst_80 : f32 to vector<256x16xf32>
    %75 = arith.cmpf oge, %73, %74 : vector<256x16xf32>
    %cst_81 = arith.constant 0.00999999977 : f32
    %76 = vector.broadcast %cst_81 : f32 to vector<256x16xf32>
    %77 = arith.mulf %76, %73 : vector<256x16xf32>
    %78 = arith.select %75, %73, %77 : vector<256x16xi1>, vector<256x16xf32>
    %cst_82 = arith.constant 0.000000e+00 : bf16
    %79 = vector.broadcast %cst_82 : bf16 to vector<1x18x16xbf16>
    %cst_83 = arith.constant 0.000000e+00 : bf16
    %80 = vector.broadcast %cst_83 : bf16 to vector<16x1x16xbf16>
    %c0_84 = arith.constant 0 : index
    %c0_85 = arith.constant 0 : index
    %c0_86 = arith.constant 0 : index
    %81 = vector.load %arg14[%c0_84, %c0_85, %c0_86] : memref<18x18x16xbf16, #tpu.memory_space<vmem>>, vector<1x18x16xbf16>
    tpu.vector_store %arg14[%c0_84, %c0_85, %c0_86], %79 {strides = array<i32>} : memref<18x18x16xbf16, #tpu.memory_space<vmem>>, vector<1x18x16xbf16>,
    %c17_87 = arith.constant 17 : index
    %c0_88 = arith.constant 0 : index
    %c0_89 = arith.constant 0 : index
    %82 = vector.load %arg14[%c17_87, %c0_88, %c0_89] : memref<18x18x16xbf16, #tpu.memory_space<vmem>>, vector<1x18x16xbf16>
    tpu.vector_store %arg14[%c17_87, %c0_88, %c0_89], %79 {strides = array<i32>} : memref<18x18x16xbf16, #tpu.memory_space<vmem>>, vector<1x18x16xbf16>,
    %c1_90 = arith.constant 1 : index
    %c0_91 = arith.constant 0 : index
    %c0_92 = arith.constant 0 : index
    %83 = vector.load %arg14[%c1_90, %c0_91, %c0_92] : memref<18x18x16xbf16, #tpu.memory_space<vmem>>, vector<16x1x16xbf16>
    tpu.vector_store %arg14[%c1_90, %c0_91, %c0_92], %80 {strides = array<i32>} : memref<18x18x16xbf16, #tpu.memory_space<vmem>>, vector<16x1x16xbf16>,
    %c1_93 = arith.constant 1 : index
    %c17_94 = arith.constant 17 : index
    %c0_95 = arith.constant 0 : index
    %84 = vector.load %arg14[%c1_93, %c17_94, %c0_95] : memref<18x18x16xbf16, #tpu.memory_space<vmem>>, vector<16x1x16xbf16>
    tpu.vector_store %arg14[%c1_93, %c17_94, %c0_95], %80 {strides = array<i32>} : memref<18x18x16xbf16, #tpu.memory_space<vmem>>, vector<16x1x16xbf16>,
    %85 = vector.shape_cast %78 : vector<256x16xf32> to vector<16x16x16xf32>
    %86 = arith.truncf %85 : vector<16x16x16xf32> to vector<16x16x16xbf16>
    %c1_96 = arith.constant 1 : index
    %c1_97 = arith.constant 1 : index
    %c0_98 = arith.constant 0 : index
    %87 = vector.load %arg14[%c1_96, %c1_97, %c0_98] : memref<18x18x16xbf16, #tpu.memory_space<vmem>>, vector<16x16x16xbf16>
    tpu.vector_store %arg14[%c1_96, %c1_97, %c0_98], %86 {strides = array<i32>} : memref<18x18x16xbf16, #tpu.memory_space<vmem>>, vector<16x16x16xbf16>,
    %c0_99 = arith.constant 0 : index
    %c0_100 = arith.constant 0 : index
    %c0_101 = arith.constant 0 : index
    %88 = vector.load %arg14[%c0_99, %c0_100, %c0_101] : memref<18x18x16xbf16, #tpu.memory_space<vmem>>, vector<16x16x16xbf16>
    %89 = vector.shape_cast %88 : vector<16x16x16xbf16> to vector<256x16xbf16>
    %c0_102 = arith.constant 0 : index
    %c0_103 = arith.constant 0 : index
    %90 = vector.load %arg9[%c0_102, %c0_103] : memref<144x128xbf16, #tpu.memory_space<vmem>>, vector<16x128xbf16>
    %cst_104 = arith.constant dense<0.000000e+00> : vector<256x128xf32>
    %91 = tpu.matmul %89, %90, %cst_104 {dimension_numbers = #tpu.dot_dimension_numbers<[1], [0], [0], [1], [0, 0, 1, 1], [], []>} : vector<256x16xbf16>, vector<16x128xbf16>, vector<256x128xf32> -> vector<256x128xf32>
    %c0_105 = arith.constant 0 : index
    %c1_106 = arith.constant 1 : index
    %c0_107 = arith.constant 0 : index
    %92 = vector.load %arg14[%c0_105, %c1_106, %c0_107] : memref<18x18x16xbf16, #tpu.memory_space<vmem>>, vector<16x16x16xbf16>
    %93 = vector.shape_cast %92 : vector<16x16x16xbf16> to vector<256x16xbf16>
    %c16_108 = arith.constant 16 : index
    %c0_109 = arith.constant 0 : index
    %94 = vector.load %arg9[%c16_108, %c0_109] : memref<144x128xbf16, #tpu.memory_space<vmem>>, vector<16x128xbf16>
    %cst_110 = arith.constant dense<0.000000e+00> : vector<256x128xf32>
    %95 = tpu.matmul %93, %94, %cst_110 {dimension_numbers = #tpu.dot_dimension_numbers<[1], [0], [0], [1], [0, 0, 1, 1], [], []>} : vector<256x16xbf16>, vector<16x128xbf16>, vector<256x128xf32> -> vector<256x128xf32>
    %96 = arith.addf %91, %95 : vector<256x128xf32>
    %c0_111 = arith.constant 0 : index
    %c2_112 = arith.constant 2 : index
    %c0_113 = arith.constant 0 : index
    %97 = vector.load %arg14[%c0_111, %c2_112, %c0_113] : memref<18x18x16xbf16, #tpu.memory_space<vmem>>, vector<16x16x16xbf16>
    %98 = vector.shape_cast %97 : vector<16x16x16xbf16> to vector<256x16xbf16>
    %c32_114 = arith.constant 32 : index
    %c0_115 = arith.constant 0 : index
    %99 = vector.load %arg9[%c32_114, %c0_115] : memref<144x128xbf16, #tpu.memory_space<vmem>>, vector<16x128xbf16>
    %cst_116 = arith.constant dense<0.000000e+00> : vector<256x128xf32>
    %100 = tpu.matmul %98, %99, %cst_116 {dimension_numbers = #tpu.dot_dimension_numbers<[1], [0], [0], [1], [0, 0, 1, 1], [], []>} : vector<256x16xbf16>, vector<16x128xbf16>, vector<256x128xf32> -> vector<256x128xf32>
    %101 = arith.addf %96, %100 : vector<256x128xf32>
    %c1_117 = arith.constant 1 : index
    %c0_118 = arith.constant 0 : index
    %c0_119 = arith.constant 0 : index
    %102 = vector.load %arg14[%c1_117, %c0_118, %c0_119] : memref<18x18x16xbf16, #tpu.memory_space<vmem>>, vector<16x16x16xbf16>
    %103 = vector.shape_cast %102 : vector<16x16x16xbf16> to vector<256x16xbf16>
    %c48_120 = arith.constant 48 : index
    %c0_121 = arith.constant 0 : index
    %104 = vector.load %arg9[%c48_120, %c0_121] : memref<144x128xbf16, #tpu.memory_space<vmem>>, vector<16x128xbf16>
    %cst_122 = arith.constant dense<0.000000e+00> : vector<256x128xf32>
    %105 = tpu.matmul %103, %104, %cst_122 {dimension_numbers = #tpu.dot_dimension_numbers<[1], [0], [0], [1], [0, 0, 1, 1], [], []>} : vector<256x16xbf16>, vector<16x128xbf16>, vector<256x128xf32> -> vector<256x128xf32>
    %106 = arith.addf %101, %105 : vector<256x128xf32>
    %c1_123 = arith.constant 1 : index
    %c1_124 = arith.constant 1 : index
    %c0_125 = arith.constant 0 : index
    %107 = vector.load %arg14[%c1_123, %c1_124, %c0_125] : memref<18x18x16xbf16, #tpu.memory_space<vmem>>, vector<16x16x16xbf16>
    %108 = vector.shape_cast %107 : vector<16x16x16xbf16> to vector<256x16xbf16>
    %c64_126 = arith.constant 64 : index
    %c0_127 = arith.constant 0 : index
    %109 = vector.load %arg9[%c64_126, %c0_127] : memref<144x128xbf16, #tpu.memory_space<vmem>>, vector<16x128xbf16>
    %cst_128 = arith.constant dense<0.000000e+00> : vector<256x128xf32>
    %110 = tpu.matmul %108, %109, %cst_128 {dimension_numbers = #tpu.dot_dimension_numbers<[1], [0], [0], [1], [0, 0, 1, 1], [], []>} : vector<256x16xbf16>, vector<16x128xbf16>, vector<256x128xf32> -> vector<256x128xf32>
    %111 = arith.addf %106, %110 : vector<256x128xf32>
    %c1_129 = arith.constant 1 : index
    %c2_130 = arith.constant 2 : index
    %c0_131 = arith.constant 0 : index
    %112 = vector.load %arg14[%c1_129, %c2_130, %c0_131] : memref<18x18x16xbf16, #tpu.memory_space<vmem>>, vector<16x16x16xbf16>
    %113 = vector.shape_cast %112 : vector<16x16x16xbf16> to vector<256x16xbf16>
    %c80_132 = arith.constant 80 : index
    %c0_133 = arith.constant 0 : index
    %114 = vector.load %arg9[%c80_132, %c0_133] : memref<144x128xbf16, #tpu.memory_space<vmem>>, vector<16x128xbf16>
    %cst_134 = arith.constant dense<0.000000e+00> : vector<256x128xf32>
    %115 = tpu.matmul %113, %114, %cst_134 {dimension_numbers = #tpu.dot_dimension_numbers<[1], [0], [0], [1], [0, 0, 1, 1], [], []>} : vector<256x16xbf16>, vector<16x128xbf16>, vector<256x128xf32> -> vector<256x128xf32>
    %116 = arith.addf %111, %115 : vector<256x128xf32>
    %c2_135 = arith.constant 2 : index
    %c0_136 = arith.constant 0 : index
    %c0_137 = arith.constant 0 : index
    %117 = vector.load %arg14[%c2_135, %c0_136, %c0_137] : memref<18x18x16xbf16, #tpu.memory_space<vmem>>, vector<16x16x16xbf16>
    %118 = vector.shape_cast %117 : vector<16x16x16xbf16> to vector<256x16xbf16>
    %c96_138 = arith.constant 96 : index
    %c0_139 = arith.constant 0 : index
    %119 = vector.load %arg9[%c96_138, %c0_139] : memref<144x128xbf16, #tpu.memory_space<vmem>>, vector<16x128xbf16>
    %cst_140 = arith.constant dense<0.000000e+00> : vector<256x128xf32>
    %120 = tpu.matmul %118, %119, %cst_140 {dimension_numbers = #tpu.dot_dimension_numbers<[1], [0], [0], [1], [0, 0, 1, 1], [], []>} : vector<256x16xbf16>, vector<16x128xbf16>, vector<256x128xf32> -> vector<256x128xf32>
    %121 = arith.addf %116, %120 : vector<256x128xf32>
    %c2_141 = arith.constant 2 : index
    %c1_142 = arith.constant 1 : index
    %c0_143 = arith.constant 0 : index
    %122 = vector.load %arg14[%c2_141, %c1_142, %c0_143] : memref<18x18x16xbf16, #tpu.memory_space<vmem>>, vector<16x16x16xbf16>
    %123 = vector.shape_cast %122 : vector<16x16x16xbf16> to vector<256x16xbf16>
    %c112_144 = arith.constant 112 : index
    %c0_145 = arith.constant 0 : index
    %124 = vector.load %arg9[%c112_144, %c0_145] : memref<144x128xbf16, #tpu.memory_space<vmem>>, vector<16x128xbf16>
    %cst_146 = arith.constant dense<0.000000e+00> : vector<256x128xf32>
    %125 = tpu.matmul %123, %124, %cst_146 {dimension_numbers = #tpu.dot_dimension_numbers<[1], [0], [0], [1], [0, 0, 1, 1], [], []>} : vector<256x16xbf16>, vector<16x128xbf16>, vector<256x128xf32> -> vector<256x128xf32>
    %126 = arith.addf %121, %125 : vector<256x128xf32>
    %c2_147 = arith.constant 2 : index
    %c2_148 = arith.constant 2 : index
    %c0_149 = arith.constant 0 : index
    %127 = vector.load %arg14[%c2_147, %c2_148, %c0_149] : memref<18x18x16xbf16, #tpu.memory_space<vmem>>, vector<16x16x16xbf16>
    %128 = vector.shape_cast %127 : vector<16x16x16xbf16> to vector<256x16xbf16>
    %c128_150 = arith.constant 128 : index
    %c0_151 = arith.constant 0 : index
    %129 = vector.load %arg9[%c128_150, %c0_151] : memref<144x128xbf16, #tpu.memory_space<vmem>>, vector<16x128xbf16>
    %cst_152 = arith.constant dense<0.000000e+00> : vector<256x128xf32>
    %130 = tpu.matmul %128, %129, %cst_152 {dimension_numbers = #tpu.dot_dimension_numbers<[1], [0], [0], [1], [0, 0, 1, 1], [], []>} : vector<256x16xbf16>, vector<16x128xbf16>, vector<256x128xf32> -> vector<256x128xf32>
    %131 = arith.addf %126, %130 : vector<256x128xf32>
    %c0_153 = arith.constant 0 : index
    %c0_154 = arith.constant 0 : index
    %132 = vector.load %arg10[%c0_153, %c0_154] : memref<1x128xf32, #tpu.memory_space<vmem>>, vector<1x128xf32>
    %133 = vector.broadcast %132 : vector<1x128xf32> to vector<256x128xf32>
    %134 = arith.mulf %131, %133 : vector<256x128xf32>
    %c0_155 = arith.constant 0 : index
    %c0_156 = arith.constant 0 : index
    %135 = vector.load %arg11[%c0_155, %c0_156] : memref<1x128xf32, #tpu.memory_space<vmem>>, vector<1x128xf32>
    %136 = vector.broadcast %135 : vector<1x128xf32> to vector<256x128xf32>
    %137 = arith.addf %134, %136 : vector<256x128xf32>
    %cst_157 = arith.constant 0.000000e+00 : f32
    %138 = vector.broadcast %cst_157 : f32 to vector<256x128xf32>
    %139 = arith.cmpf oge, %137, %138 : vector<256x128xf32>
    %cst_158 = arith.constant 0.00999999977 : f32
    %140 = vector.broadcast %cst_158 : f32 to vector<256x128xf32>
    %141 = arith.mulf %140, %137 : vector<256x128xf32>
    %142 = arith.select %139, %137, %141 : vector<256x128xi1>, vector<256x128xf32>
    %143 = tpu.transpose %142, [1, 0] : vector<256x128xf32> -> vector<128x256xf32>
    %144 = vector.extract_strided_slice %143 {offsets = [0, 0], sizes = [16, 256], strides = [1, 1]} : vector<128x256xf32> to vector<16x256xf32>
    %145 = vector.shape_cast %144 : vector<16x256xf32> to vector<1x16x256xf32>
    %c0_159 = arith.constant 0 : index
    %c0_160 = arith.constant 0 : index
    %c0_161 = arith.constant 0 : index
    %146 = vector.load %arg12[%c0_159, %c0_160, %c0_161] : memref<1x16x256xf32, #tpu.memory_space<vmem>>, vector<1x16x256xf32>
    tpu.vector_store %arg12[%c0_159, %c0_160, %c0_161], %145 {strides = array<i32>} : memref<1x16x256xf32, #tpu.memory_space<vmem>>, vector<1x16x256xf32>,
    return
  }
  func.func @transform_0(%arg0: i32) -> (i32, i32, i32) {
    %c0_i32 = arith.constant 0 : i32
    %c0_i32_0 = arith.constant 0 : i32
    %c0_i32_1 = arith.constant 0 : i32
    return %arg0, %c0_i32, %c0_i32_0 : i32, i32, i32
  }
  func.func @transform_1(%arg0: i32) -> (i32, i32, i32, i32) {
    %c0_i32 = arith.constant 0 : i32
    %c0_i32_0 = arith.constant 0 : i32
    %c0_i32_1 = arith.constant 0 : i32
    %c0_i32_2 = arith.constant 0 : i32
    return %arg0, %c0_i32, %c0_i32_0, %c0_i32_1 : i32, i32, i32, i32
  }
  func.func @transform_2(%arg0: i32) -> (i32, i32) {
    %c0_i32 = arith.constant 0 : i32
    %c0_i32_0 = arith.constant 0 : i32
    %c0_i32_1 = arith.constant 0 : i32
    return %c0_i32, %c0_i32_0 : i32, i32
  }
  func.func @transform_3(%arg0: i32) -> (i32, i32) {
    %c0_i32 = arith.constant 0 : i32
    %c0_i32_0 = arith.constant 0 : i32
    %c0_i32_1 = arith.constant 0 : i32
    return %c0_i32, %c0_i32_0 : i32, i32
  }
  func.func @transform_4(%arg0: i32) -> (i32, i32) {
    %c0_i32 = arith.constant 0 : i32
    %c0_i32_0 = arith.constant 0 : i32
    %c0_i32_1 = arith.constant 0 : i32
    return %c0_i32, %c0_i32_0 : i32, i32
  }
  func.func @transform_5(%arg0: i32) -> (i32, i32) {
    %c0_i32 = arith.constant 0 : i32
    %c0_i32_0 = arith.constant 0 : i32
    %c0_i32_1 = arith.constant 0 : i32
    return %c0_i32, %c0_i32_0 : i32, i32
  }
  func.func @transform_6(%arg0: i32) -> (i32, i32) {
    %c0_i32 = arith.constant 0 : i32
    %c0_i32_0 = arith.constant 0 : i32
    %c0_i32_1 = arith.constant 0 : i32
    return %c0_i32, %c0_i32_0 : i32, i32
  }
  func.func @transform_7(%arg0: i32) -> (i32, i32) {
    %c0_i32 = arith.constant 0 : i32
    %c0_i32_0 = arith.constant 0 : i32
    %c0_i32_1 = arith.constant 0 : i32
    return %c0_i32, %c0_i32_0 : i32, i32
  }
  func.func @transform_8(%arg0: i32) -> (i32, i32) {
    %c0_i32 = arith.constant 0 : i32
    %c0_i32_0 = arith.constant 0 : i32
    %c0_i32_1 = arith.constant 0 : i32
    return %c0_i32, %c0_i32_0 : i32, i32
  }
  func.func @transform_9(%arg0: i32) -> (i32, i32) {
    %c0_i32 = arith.constant 0 : i32
    %c0_i32_0 = arith.constant 0 : i32
    %c0_i32_1 = arith.constant 0 : i32
    return %c0_i32, %c0_i32_0 : i32, i32
  }
  func.func @transform_10(%arg0: i32) -> (i32, i32) {
    %c0_i32 = arith.constant 0 : i32
    %c0_i32_0 = arith.constant 0 : i32
    %c0_i32_1 = arith.constant 0 : i32
    return %c0_i32, %c0_i32_0 : i32, i32
  }
  func.func @transform_11(%arg0: i32) -> (i32, i32, i32) {
    %c0_i32 = arith.constant 0 : i32
    %c0_i32_0 = arith.constant 0 : i32
    %c0_i32_1 = arith.constant 0 : i32
    return %arg0, %c0_i32, %c0_i32_0 : i32, i32, i32
  }
}

</mosaic_0001>

<llo_original>
// kernel: upblock_fba_forward.1
$region0: #{upblock_fba_forward.1}
  #allocation0 [shape = 'u32[]', space=smem, size = 0x4, offset = 0x4, fixed_abs, tag = 'smem constant byte address 0x4 - core index']
  #allocation1 [shape = 'u32[144,128]{1,0:T(1,128)}', space=vmem, size = 0x12000, scoped, tag = 'internal scratch']
  #allocation2 [shape = 'bf16[18,18,16]{2,1,0:T(8,128)(2,1)}', space=vmem, size = 0x1b000, scoped, tag = 'scratch operand']
  #allocation3 [shape = 'bf16[18,18,16]{2,1,0:T(8,128)(2,1)}', space=vmem, size = 0x1b000, scoped, tag = 'scratch operand']
  %s0 = inlined_call_operand.vmem [shape: f32[2,64,16], index: 0, kind: input, shape index: {}]
  %s1 = inlined_call_operand.vmem [shape: f32[2,16,16,8], index: 1, kind: input, shape index: {}]
  %s2 = inlined_call_operand.vmem [shape: bf16[16,16], index: 2, kind: input, shape index: {}]
  %s3 = inlined_call_operand.vmem [shape: f32[1,16], index: 3, kind: input, shape index: {}]
  %s4 = inlined_call_operand.vmem [shape: bf16[256,64], index: 4, kind: input, shape index: {}]
  %s5 = inlined_call_operand.vmem [shape: bf16[144,16], index: 5, kind: input, shape index: {}]
  %s6 = inlined_call_operand.vmem [shape: f32[1,16], index: 6, kind: input, shape index: {}]
  %s7 = inlined_call_operand.vmem [shape: f32[1,16], index: 7, kind: input, shape index: {}]
  %s8 = inlined_call_operand.vmem [shape: bf16[144,128], index: 8, kind: input, shape index: {}]
  %s9 = inlined_call_operand.vmem [shape: f32[1,128], index: 9, kind: input, shape index: {}]
  %s10 = inlined_call_operand.vmem [shape: f32[1,128], index: 10, kind: input, shape index: {}]
  %s11 = inlined_call_operand.vmem [shape: f32[2,16,256], index: 11, kind: output, shape index: {}]
  %s12 = sld [smem:[#allocation0]]
  $region77: #{upblock_fba_forward.1} parent=0
    _
  %s14 = ssub.s32 1, %s12
  %s15 = scalar_select 0, %s14, %s12
  loop: start=0, step=1, limit=4
  $region2: #{upblock_fba_forward.1} parent=0 // loop_pre_header
    _
  $region3: #{upblock_fba_forward.1} parent=0 // loop_header
    %s17 = sphi 0, %s21
    %p18 = scmp.ge.s32.totalorder %s17, 4
    %s27 = sphi 0, %s29
    %s30 = sphi 0, %s27
    %s31 = sphi 0, %s30
    %s47 = sphi 0, %s31
    %s53 = sphi 0, %s55
    %s56 = sphi 0, %s53
    %s57 = sphi 0, %s56
    %s73 = sphi 0, %s57
    %s77 = sphi 0, %s77
    %s79 = sphi 0, %s77
    %s80 = sphi 0, %s79
    %s94 = sphi 0, %s80
    %s98 = sphi 0, %s98
    %s100 = sphi 0, %s98
    %s101 = sphi 0, %s100
    %s115 = sphi 0, %s101
    %s119 = sphi 0, %s119
    %s121 = sphi 0, %s119
    %s122 = sphi 0, %s121
    %s136 = sphi 0, %s122
    %s140 = sphi 0, %s140
    %s142 = sphi 0, %s140
    %s143 = sphi 0, %s142
    %s157 = sphi 0, %s143
    %s161 = sphi 0, %s161
    %s163 = sphi 0, %s161
    %s164 = sphi 0, %s163
    %s178 = sphi 0, %s164
    %s182 = sphi 0, %s182
    %s184 = sphi 0, %s182
    %s185 = sphi 0, %s184
    %s199 = sphi 0, %s185
    %s203 = sphi 0, %s203
    %s205 = sphi 0, %s203
    %s206 = sphi 0, %s205
    %s220 = sphi 0, %s206
    %s224 = sphi 0, %s224
    %s226 = sphi 0, %s224
    %s227 = sphi 0, %s226
    %s241 = sphi 0, %s227
    %s245 = sphi 0, %s245
    %s247 = sphi 0, %s245
    %s248 = sphi 0, %s247
    %s262 = sphi 0, %s248
    %s268 = sphi 0, %s270
    %s271 = sphi 0, %s268
    %s272 = sphi 0, %s271
    %s288 = sphi 0, %s272
  $region4: #{upblock_fba_forward.1} parent=0 // loop_header_branch
    %20 = sbr.rel (%p18) target = $region8
  $region5: #{upblock_fba_forward.1} parent=0 // loop_body
    %s22 = ssub.s32 %s17, 1
    %s23 = ssub.s32 %s17, 2
    %s24 = sadd.s32 %s17, 1
    %s25 = ssub.s32 %s17, %s24
    %p26 = scmp.eq.s32.totalorder %s25, 0
    %s28 = sadd.s32 %s27, 1
    %s29 = scalar_select %p26, %s27, %s28
    %p32 = pneg %p26
    %p33 = scmp.eq.s32.totalorder %s17, 1
    %p34 = por %p32, %p33
    %p35 = scmp.ne.s32.totalorder %s27, %s30
    %p36 = scmp.eq.s32.totalorder %s17, 0
    %p37 = por %p35, %p36
    %p38 = scmp.ne.s32.totalorder %s27, %s30
    %p39 = scmp.eq.s32.totalorder %s22, 1
    %p40 = por %p38, %p39
    %p41 = scmp.ne.s32.totalorder %s30, %s31
    %p42 = scmp.eq.s32.totalorder %s22, 0
    %p43 = por %p41, %p42
    %p44 = scmp.ne.s32.totalorder %s30, %s31
    %p45 = scmp.eq.s32.totalorder %s23, 1
    %p46 = por %p44, %p45
    %p48 = scmp.ne.s32.totalorder %s31, %s47
    %p49 = scmp.eq.s32.totalorder %s23, 0
    %p50 = por %p48, %p49
    %s51 = ssub.s32 %s17, %s24
    %p52 = scmp.eq.s32.totalorder %s51, 0
    %s54 = sadd.s32 %s53, 1
    %s55 = scalar_select %p52, %s53, %s54
    %p58 = pneg %p52
    %p59 = scmp.eq.s32.totalorder %s17, 1
    %p60 = por %p58, %p59
    %p61 = scmp.ne.s32.totalorder %s53, %s56
    %p62 = scmp.eq.s32.totalorder %s17, 0
    %p63 = por %p61, %p62
    %p64 = scmp.ne.s32.totalorder %s53, %s56
    %p65 = scmp.eq.s32.totalorder %s22, 1
    %p66 = por %p64, %p65
    %p67 = scmp.ne.s32.totalorder %s56, %s57
    %p68 = scmp.eq.s32.totalorder %s22, 0
    %p69 = por %p67, %p68
    %p70 = scmp.ne.s32.totalorder %s56, %s57
    %p71 = scmp.eq.s32.totalorder %s23, 1
    %p72 = por %p70, %p71
    %p74 = scmp.ne.s32.totalorder %s57, %s73
    %p75 = scmp.eq.s32.totalorder %s23, 0
    %p76 = por %p74, %p75
    %s78 = sadd.s32 %s77, 1
    %p81 = scmp.eq.s32.totalorder %s17, 1
    %p82 = scmp.ne.s32.totalorder %s77, %s79
    %p83 = scmp.eq.s32.totalorder %s17, 0
    %p84 = por %p82, %p83
    %p85 = scmp.ne.s32.totalorder %s77, %s79
    %p86 = scmp.eq.s32.totalorder %s22, 1
    %p87 = por %p85, %p86
    %p88 = scmp.ne.s32.totalorder %s79, %s80
    %p89 = scmp.eq.s32.totalorder %s22, 0
    %p90 = por %p88, %p89
    %p91 = scmp.ne.s32.totalorder %s79, %s80
    %p92 = scmp.eq.s32.totalorder %s23, 1
    %p93 = por %p91, %p92
    %p95 = scmp.ne.s32.totalorder %s80, %s94
    %p96 = scmp.eq.s32.totalorder %s23, 0
    %p97 = por %p95, %p96
    %s99 = sadd.s32 %s98, 1
    %p102 = scmp.eq.s32.totalorder %s17, 1
    %p103 = scmp.ne.s32.totalorder %s98, %s100
    %p104 = scmp.eq.s32.totalorder %s17, 0
    %p105 = por %p103, %p104
    %p106 = scmp.ne.s32.totalorder %s98, %s100
    %p107 = scmp.eq.s32.totalorder %s22, 1
    %p108 = por %p106, %p107
    %p109 = scmp.ne.s32.totalorder %s100, %s101
    %p110 = scmp.eq.s32.totalorder %s22, 0
    %p111 = por %p109, %p110
    %p112 = scmp.ne.s32.totalorder %s100, %s101
    %p113 = scmp.eq.s32.totalorder %s23, 1
    %p114 = por %p112, %p113
    %p116 = scmp.ne.s32.totalorder %s101, %s115
    %p117 = scmp.eq.s32.totalorder %s23, 0
    %p118 = por %p116, %p117
    %s120 = sadd.s32 %s119, 1
    %p123 = scmp.eq.s32.totalorder %s17, 1
    %p124 = scmp.ne.s32.totalorder %s119, %s121
    %p125 = scmp.eq.s32.totalorder %s17, 0
    %p126 = por %p124, %p125
    %p127 = scmp.ne.s32.totalorder %s119, %s121
    %p128 = scmp.eq.s32.totalorder %s22, 1
    %p129 = por %p127, %p128
    %p130 = scmp.ne.s32.totalorder %s121, %s122
    %p131 = scmp.eq.s32.totalorder %s22, 0
    %p132 = por %p130, %p131
    %p133 = scmp.ne.s32.totalorder %s121, %s122
    %p134 = scmp.eq.s32.totalorder %s23, 1
    %p135 = por %p133, %p134
    %p137 = scmp.ne.s32.totalorder %s122, %s136
    %p138 = scmp.eq.s32.totalorder %s23, 0
    %p139 = por %p137, %p138
    %s141 = sadd.s32 %s140, 1
    %p144 = scmp.eq.s32.totalorder %s17, 1
    %p145 = scmp.ne.s32.totalorder %s140, %s142
    %p146 = scmp.eq.s32.totalorder %s17, 0
    %p147 = por %p145, %p146
    %p148 = scmp.ne.s32.totalorder %s140, %s142
    %p149 = scmp.eq.s32.totalorder %s22, 1
    %p150 = por %p148, %p149
    %p151 = scmp.ne.s32.totalorder %s142, %s143
    %p152 = scmp.eq.s32.totalorder %s22, 0
    %p153 = por %p151, %p152
    %p154 = scmp.ne.s32.totalorder %s142, %s143
    %p155 = scmp.eq.s32.totalorder %s23, 1
    %p156 = por %p154, %p155
    %p158 = scmp.ne.s32.totalorder %s143, %s157
    %p159 = scmp.eq.s32.totalorder %s23, 0
    %p160 = por %p158, %p159
    %s162 = sadd.s32 %s161, 1
    %p165 = scmp.eq.s32.totalorder %s17, 1
    %p166 = scmp.ne.s32.totalorder %s161, %s163
    %p167 = scmp.eq.s32.totalorder %s17, 0
    %p168 = por %p166, %p167
    %p169 = scmp.ne.s32.totalorder %s161, %s163
    %p170 = scmp.eq.s32.totalorder %s22, 1
    %p171 = por %p169, %p170
    %p172 = scmp.ne.s32.totalorder %s163, %s164
    %p173 = scmp.eq.s32.totalorder %s22, 0
    %p174 = por %p172, %p173
    %p175 = scmp.ne.s32.totalorder %s163, %s164
    %p176 = scmp.eq.s32.totalorder %s23, 1
    %p177 = por %p175, %p176
    %p179 = scmp.ne.s32.totalorder %s164, %s178
    %p180 = scmp.eq.s32.totalorder %s23, 0
    %p181 = por %p179, %p180
    %s183 = sadd.s32 %s182, 1
    %p186 = scmp.eq.s32.totalorder %s17, 1
    %p187 = scmp.ne.s32.totalorder %s182, %s184
    %p188 = scmp.eq.s32.totalorder %s17, 0
    %p189 = por %p187, %p188
    %p190 = scmp.ne.s32.totalorder %s182, %s184
    %p191 = scmp.eq.s32.totalorder %s22, 1
    %p192 = por %p190, %p191
    %p193 = scmp.ne.s32.totalorder %s184, %s185
    %p194 = scmp.eq.s32.totalorder %s22, 0
    %p195 = por %p193, %p194
    %p196 = scmp.ne.s32.totalorder %s184, %s185
    %p197 = scmp.eq.s32.totalorder %s23, 1
    %p198 = por %p196, %p197
    %p200 = scmp.ne.s32.totalorder %s185, %s199
    %p201 = scmp.eq.s32.totalorder %s23, 0
    %p202 = por %p200, %p201
    %s204 = sadd.s32 %s203, 1
    %p207 = scmp.eq.s32.totalorder %s17, 1
    %p208 = scmp.ne.s32.totalorder %s203, %s205
    %p209 = scmp.eq.s32.totalorder %s17, 0
    %p210 = por %p208, %p209
    %p211 = scmp.ne.s32.totalorder %s203, %s205
    %p212 = scmp.eq.s32.totalorder %s22, 1
    %p213 = por %p211, %p212
    %p214 = scmp.ne.s32.totalorder %s205, %s206
    %p215 = scmp.eq.s32.totalorder %s22, 0
    %p216 = por %p214, %p215
    %p217 = scmp.ne.s32.totalorder %s205, %s206
    %p218 = scmp.eq.s32.totalorder %s23, 1
    %p219 = por %p217, %p218
    %p221 = scmp.ne.s32.totalorder %s206, %s220
    %p222 = scmp.eq.s32.totalorder %s23, 0
    %p223 = por %p221, %p222
    %s225 = sadd.s32 %s224, 1
    %p228 = scmp.eq.s32.totalorder %s17, 1
    %p229 = scmp.ne.s32.totalorder %s224, %s226
    %p230 = scmp.eq.s32.totalorder %s17, 0
    %p231 = por %p229, %p230
    %p232 = scmp.ne.s32.totalorder %s224, %s226
    %p233 = scmp.eq.s32.totalorder %s22, 1
    %p234 = por %p232, %p233
    %p235 = scmp.ne.s32.totalorder %s226, %s227
    %p236 = scmp.eq.s32.totalorder %s22, 0
    %p237 = por %p235, %p236
    %p238 = scmp.ne.s32.totalorder %s226, %s227
    %p239 = scmp.eq.s32.totalorder %s23, 1
    %p240 = por %p238, %p239
    %p242 = scmp.ne.s32.totalorder %s227, %s241
    %p243 = scmp.eq.s32.totalorder %s23, 0
    %p244 = por %p242, %p243
    %s246 = sadd.s32 %s245, 1
    %p249 = scmp.eq.s32.totalorder %s17, 1
    %p250 = scmp.ne.s32.totalorder %s245, %s247
    %p251 = scmp.eq.s32.totalorder %s17, 0
    %p252 = por %p250, %p251
    %p253 = scmp.ne.s32.totalorder %s245, %s247
    %p254 = scmp.eq.s32.totalorder %s22, 1
    %p255 = por %p253, %p254
    %p256 = scmp.ne.s32.totalorder %s247, %s248
    %p257 = scmp.eq.s32.totalorder %s22, 0
    %p258 = por %p256, %p257
    %p259 = scmp.ne.s32.totalorder %s247, %s248
    %p260 = scmp.eq.s32.totalorder %s23, 1
    %p261 = por %p259, %p260
    %p263 = scmp.ne.s32.totalorder %s248, %s262
    %p264 = scmp.eq.s32.totalorder %s23, 0
    %p265 = por %p263, %p264
    %s266 = ssub.s32 %s17, %s24
    %p267 = scmp.eq.s32.totalorder %s266, 0
    %s269 = sadd.s32 %s268, 1
    %s270 = scalar_select %p267, %s268, %s269
    %p273 = pneg %p267
    %p274 = scmp.eq.s32.totalorder %s17, 1
    %p275 = por %p273, %p274
    %p276 = scmp.ne.s32.totalorder %s268, %s271
    %p277 = scmp.eq.s32.totalorder %s17, 0
    %p278 = por %p276, %p277
    %p279 = scmp.ne.s32.totalorder %s268, %s271
    %p280 = scmp.eq.s32.totalorder %s22, 1
    %p281 = por %p279, %p280
    %p282 = scmp.ne.s32.totalorder %s271, %s272
    %p283 = scmp.eq.s32.totalorder %s22, 0
    %p284 = por %p282, %p283
    %p285 = scmp.ne.s32.totalorder %s271, %s272
    %p286 = scmp.eq.s32.totalorder %s23, 1
    %p287 = por %p285, %p286
    %p289 = scmp.ne.s32.totalorder %s272, %s288
    %p290 = scmp.eq.s32.totalorder %s23, 0
    %p291 = por %p289, %p290
    %p292 = scmp.le.s32.totalorder 1, %s17
    %p293 = scmp.lt.s32.totalorder %s17, 3
    %p294 = pnand %p292, %p293
    %p295 = pneg %p294
    // Predicated region
    $region9: #{upblock_fba_forward.1} parent=5 // pred_check
      _
    $region10: #{upblock_fba_forward.1} parent=5 // pred_check_branch
      %297 = sbr.rel (%p294) target = $region12
    $region11: #{upblock_fba_forward.1} parent=5 // pred_region
      %s298 = ssub.s32 %s17, 1
      // Predicated region
      $region13: #{upblock_fba_forward.1} parent=11 // pred_check
        %p299 = pneg %p90
      $region14: #{upblock_fba_forward.1} parent=11 // pred_check_branch
        %301 = sbr.rel (%p299) target = $region16
      $region15: #{upblock_fba_forward.1} parent=11 // pred_region
        _
      $region16: #{upblock_fba_forward.1} parent=11 // pred_fallthru
        _
      // Predicated region
      $region17: #{upblock_fba_forward.1} parent=11 // pred_check
        %p302 = pneg %p111
      $region18: #{upblock_fba_forward.1} parent=11 // pred_check_branch
        %304 = sbr.rel (%p302) target = $region20
      $region19: #{upblock_fba_forward.1} parent=11 // pred_region
        _
      $region20: #{upblock_fba_forward.1} parent=11 // pred_fallthru
        _
      // Predicated region
      $region21: #{upblock_fba_forward.1} parent=11 // pred_check
        %p305 = pneg %p132
      $region22: #{upblock_fba_forward.1} parent=11 // pred_check_branch
        %307 = sbr.rel (%p305) target = $region24
      $region23: #{upblock_fba_forward.1} parent=11 // pred_region
        _
      $region24: #{upblock_fba_forward.1} parent=11 // pred_fallthru
        _
      // Predicated region
      $region25: #{upblock_fba_forward.1} parent=11 // pred_check
        %p308 = pneg %p153
      $region26: #{upblock_fba_forward.1} parent=11 // pred_check_branch
        %310 = sbr.rel (%p308) target = $region28
      $region27: #{upblock_fba_forward.1} parent=11 // pred_region
        _
      $region28: #{upblock_fba_forward.1} parent=11 // pred_fallthru
        _
      // Predicated region
      $region29: #{upblock_fba_forward.1} parent=11 // pred_check
        %p311 = pneg %p174
      $region30: #{upblock_fba_forward.1} parent=11 // pred_check_branch
        %313 = sbr.rel (%p311) target = $region32
      $region31: #{upblock_fba_forward.1} parent=11 // pred_region
        _
      $region32: #{upblock_fba_forward.1} parent=11 // pred_fallthru
        _
      // Predicated region
      $region33: #{upblock_fba_forward.1} parent=11 // pred_check
        %p314 = pneg %p195
      $region34: #{upblock_fba_forward.1} parent=11 // pred_check_branch
        %316 = sbr.rel (%p314) target = $region36
      $region35: #{upblock_fba_forward.1} parent=11 // pred_region
        _
      $region36: #{upblock_fba_forward.1} parent=11 // pred_fallthru
        _
      // Predicated region
      $region37: #{upblock_fba_forward.1} parent=11 // pred_check
        %p317 = pneg %p216
      $region38: #{upblock_fba_forward.1} parent=11 // pred_check_branch
        %319 = sbr.rel (%p317) target = $region40
      $region39: #{upblock_fba_forward.1} parent=11 // pred_region
        _
      $region40: #{upblock_fba_forward.1} parent=11 // pred_fallthru
        _
      // Predicated region
      $region41: #{upblock_fba_forward.1} parent=11 // pred_check
        %p320 = pneg %p237
      $region42: #{upblock_fba_forward.1} parent=11 // pred_check_branch
        %322 = sbr.rel (%p320) target = $region44
      $region43: #{upblock_fba_forward.1} parent=11 // pred_region
        _
      $region44: #{upblock_fba_forward.1} parent=11 // pred_fallthru
        _
      // Predicated region
      $region45: #{upblock_fba_forward.1} parent=11 // pred_check
        %p323 = pneg %p258
      $region46: #{upblock_fba_forward.1} parent=11 // pred_check_branch
        %325 = sbr.rel (%p323) target = $region48
      $region47: #{upblock_fba_forward.1} parent=11 // pred_region
        _
      $region48: #{upblock_fba_forward.1} parent=11 // pred_fallthru
        _
    $region12: #{upblock_fba_forward.1} parent=5 // pred_fallthru
      _
    %p326 = scmp.lt.s32.totalorder %s17, 2
    // Predicated region
    $region49: #{upblock_fba_forward.1} parent=5 // pred_check
      %p327 = pneg %p326
    $region50: #{upblock_fba_forward.1} parent=5 // pred_check_branch
      %329 = sbr.rel (%p327) target = $region52
    $region51: #{upblock_fba_forward.1} parent=5 // pred_region
      // Predicated region
      $region53: #{upblock_fba_forward.1} parent=51 // pred_check
        %p330 = pneg %p37
      $region54: #{upblock_fba_forward.1} parent=51 // pred_check_branch
        %332 = sbr.rel (%p330) target = $region56
      $region55: #{upblock_fba_forward.1} parent=51 // pred_region
        %p333 = scmp.lt.s32.totalorder %s17, 1
        %s334 = scalar_select %p333, %s17, 1
        %s335 = smul.addr %s334, 8
        %s336 = smul.addr %s335, 8
        %s337 = scalar_lea.vmem %s0, %s336
      $region56: #{upblock_fba_forward.1} parent=51 // pred_fallthru
        _
      // Predicated region
      $region57: #{upblock_fba_forward.1} parent=51 // pred_check
        %p338 = pneg %p63
      $region58: #{upblock_fba_forward.1} parent=51 // pred_check_branch
        %340 = sbr.rel (%p338) target = $region60
      $region59: #{upblock_fba_forward.1} parent=51 // pred_region
        %p341 = scmp.lt.s32.totalorder %s17, 1
        %s342 = scalar_select %p341, %s17, 1
        %s343 = smul.addr %s342, 32
        %s344 = smul.addr %s343, 8
        %s345 = scalar_lea.vmem %s1, %s344
      $region60: #{upblock_fba_forward.1} parent=51 // pred_fallthru
        _
    $region52: #{upblock_fba_forward.1} parent=5 // pred_fallthru
      _
    %p346 = scmp.le.s32.totalorder 1, %s17
    %p347 = scmp.lt.s32.totalorder %s17, 3
    %p348 = pnand %p346, %p347
    %p349 = pneg %p348
    // Predicated region
    $region61: #{upblock_fba_forward.1} parent=5 // pred_check
      _
    $region62: #{upblock_fba_forward.1} parent=5 // pred_check_branch
      %351 = sbr.rel (%p348) target = $region64
    $region63: #{upblock_fba_forward.1} parent=5 // pred_region
      %s352 = ssub.s32 %s17, 1
      %p353 = scmp.lt.s32.totalorder %s22, 1
      %s354 = scalar_select %p353, %s22, 1
      %s355 = smul.addr %s354, 8
      %s356 = smul.addr %s355, 8
      %s357 = scalar_lea.vmem %s0, %s356
      %p358 = pneg %p43
      %p359 = pneg %p40
      %p360 = scmp.lt.s32.totalorder %s22, 1
      %s361 = scalar_select %p360, %s22, 1
      %s362 = smul.addr %s361, 32
      %s363 = smul.addr %s362, 8
      %s364 = scalar_lea.vmem %s1, %s363
      %p365 = pneg %p69
      %p366 = pneg %p66
      %p367 = pneg %p90
      %p368 = pneg %p87
      %p369 = pneg %p111
      %p370 = pneg %p108
      %p371 = pneg %p132
      %p372 = pneg %p129
      %p373 = pneg %p153
      %p374 = pneg %p150
      %p375 = pneg %p174
      %p376 = pneg %p171
      %p377 = pneg %p195
      %p378 = pneg %p192
      %p379 = pneg %p216
      %p380 = pneg %p213
      %p381 = pneg %p237
      %p382 = pneg %p234
      %p383 = pneg %p258
      %p384 = pneg %p255
      %p385 = pneg %p284
      %p386 = pneg %p281
      %p387 = scmp.lt.s32.totalorder %s22, 1
      %s388 = scalar_select %p387, %s22, 1
      %s389 = smul.addr %s388, 4
      %s390 = smul.addr %s389, 8
      %s391 = scalar_lea.vmem %s11, %s390
      %p392 = scmp.lt.s32.totalorder %s22, 1
      %s393 = scalar_select %p392, %s22, 1
      %s394 = smul.addr %s393, 8
      %s395 = smul.addr %s394, 8
      %s396 = scalar_lea.vmem %s0, %s395
      %p397 = scmp.lt.s32.totalorder %s22, 1
      %s398 = scalar_select %p397, %s22, 1
      %s399 = smul.addr %s398, 32
      %s400 = smul.addr %s399, 8
      %s401 = scalar_lea.vmem %s1, %s400
      %p402 = scmp.lt.s32.totalorder %s22, 1
      %s403 = scalar_select %p402, %s22, 1
      %s404 = smul.addr %s403, 4
      %s405 = smul.addr %s404, 8
      %s406 = scalar_lea.vmem %s11, %s405
      %v408 = vld [vmem:[%s396] sm:$0xff]
      %v409 = vld [vmem:[%s396 + $0x8] sm:$0xff]
      %v410 = vld [vmem:[%s396 + $0x10] sm:$0xff]
      %v411 = vld [vmem:[%s396 + $0x18] sm:$0xff]
      %v412 = vld [vmem:[%s396 + $0x20] sm:$0xff]
      %v413 = vld [vmem:[%s396 + $0x28] sm:$0xff]
      %v414 = vld [vmem:[%s396 + $0x30] sm:$0xff]
      %v415 = vld [vmem:[%s396 + $0x38] sm:$0xff]
      %v416 = vpack.c.bf16 %v409, %v408
      %v417 = vpack.c.bf16 %v411, %v410
      %v418 = vpack.c.bf16 %v413, %v412
      %v419 = vpack.c.bf16 %v415, %v414
      %v420 = vld [vmem:[%s2] sm:$0xf]
      %v421 = vld [vmem:[%s2 + $0x4] sm:$0xf]
      %v422 = vld [vmem:[%s3] sm:$0x1]
      %v424 = vlaneseq
      %v425 = vshrl.u32 %v424, 7
      %v426 = vsub.s32 0, %v425
      %v427 = vrot.slane %v422, %v426
      %v431 = vunpack.c.l.b16 %v420
      %v432 = vunpack.c.l.b16 %v421
      %v433 = vpack.c.b16 %v432, %v431
      %vm435 = vcmask 130048
      %v437 = vsel %vm435, %v416, 0
      %v440 = vsel %vm435, %v417, 0
      %v443 = vsel %vm435, %v418, 0
      %v446 = vsel %vm435, %v419, 0
      %448 = vmatprep.subr.bf16.mxu0 0
      %449 = vmatpush1.bf16.msra.mxu0 %v433
      %450 = vmatprep.subr.bf16.mxu0 0
      %451 = vmatpush1.bf16.msra.mxu0 0
      %452 = vmatprep.subr.bf16.mxu0 0
      %453 = vmatpush1.bf16.msra.mxu0 0
      %454 = vmatprep.subr.bf16.mxu0 0
      %455 = vmatpush1.bf16.msra.mxu0 0
      %456 = vmatprep.subr.bf16.mxu0 0
      %457 = vmatpush1.bf16.msra.mxu0 0
      %458 = vmatprep.subr.bf16.mxu0 0
      %459 = vmatpush1.bf16.msra.mxu0 0
      %460 = vmatprep.subr.bf16.mxu0 0
      %461 = vmatpush1.bf16.msra.mxu0 0
      %462 = vmatprep.subr.bf16.mxu0 0
      %463 = vmatpush1.bf16.msra.mxu0 0
      %464 = vmatprep.subr.bf16.mxu0 0
      %465 = vmatpush1.bf16.msra.mxu0 0
      %466 = vmatprep.subr.bf16.mxu0 0
      %467 = vmatpush1.bf16.msra.mxu0 0
      %468 = vmatprep.subr.bf16.mxu0 0
      %469 = vmatpush1.bf16.msra.mxu0 0
      %470 = vmatprep.subr.bf16.mxu0 0
      %471 = vmatpush1.bf16.msra.mxu0 0
      %472 = vmatprep.subr.bf16.mxu0 0
      %473 = vmatpush1.bf16.msra.mxu0 0
      %474 = vmatprep.subr.bf16.mxu0 0
      %475 = vmatpush1.bf16.msra.mxu0 0
      %476 = vmatprep.subr.bf16.mxu0 0
      %477 = vmatpush1.bf16.msra.mxu0 0
      %478 = vmatprep.subr.bf16.mxu0 0
      %479 = vmatpush1.bf16.msra.mxu0 0
      %480 = vmatprep.mubr.bf16.mxu0 0
      %481 = vmatmul.mubr.bf16.gmra.mrb[0].mxu0 %v437
      %v482 = vpop.f32.mrb[0].mxu0
      %v483 = vadd.f32 %v427, %v482
      %v484 = vpop.f32.mrb[0].mxu0
      %v485 = vpop.f32.mrb[0].mxu0
      %v486 = vadd.f32 %v427, %v485
      %v487 = vpop.f32.mrb[0].mxu0
      %488 = vmatprep.mubr.bf16.mxu0 0
      %489 = vmatmul.mubr.bf16.gmra.mrb[0].mxu0 %v440
      %v490 = vpop.f32.mrb[0].mxu0
      %v491 = vadd.f32 %v427, %v490
      %v492 = vpop.f32.mrb[0].mxu0
      %v493 = vpop.f32.mrb[0].mxu0
      %v494 = vadd.f32 %v427, %v493
      %v495 = vpop.f32.mrb[0].mxu0
      %496 = vmatprep.mubr.bf16.mxu0 0
      %497 = vmatmul.mubr.bf16.gmra.mrb[0].mxu0 %v443
      %v498 = vpop.f32.mrb[0].mxu0
      %v499 = vadd.f32 %v427, %v498
      %v500 = vpop.f32.mrb[0].mxu0
      %v501 = vpop.f32.mrb[0].mxu0
      %v502 = vadd.f32 %v427, %v501
      %v503 = vpop.f32.mrb[0].mxu0
      %504 = vmatprep.mubr.bf16.mxu0 0
      %505 = vmatmul.mubr.bf16.gmra.mrb[0].mxu0 %v446
      %v506 = vpop.f32.mrb[0].mxu0
      %v507 = vadd.f32 %v427, %v506
      %v508 = vpop.f32.mrb[0].mxu0
      %v509 = vpop.f32.mrb[0].mxu0
      %v510 = vadd.f32 %v427, %v509
      %v511 = vpop.f32.mrb[0].mxu0
      %512 = vdwg.mxu0
      %v513 = vld [vmem:[%s4] sm:$0xf]
      %v514 = vld [vmem:[%s4 + $0x4] sm:$0xf]
      %v515 = vld [vmem:[%s4 + $0x8] sm:$0xf]
      %v516 = vld [vmem:[%s4 + $0xc] sm:$0xf]
      %v517 = vld [vmem:[%s4 + $0x10] sm:$0xf]
      %v518 = vld [vmem:[%s4 + $0x14] sm:$0xf]
      %v519 = vld [vmem:[%s4 + $0x18] sm:$0xf]
      %v520 = vld [vmem:[%s4 + $0x1c] sm:$0xf]
      %v521 = vld [vmem:[%s4 + $0x20] sm:$0xf]
      %v522 = vld [vmem:[%s4 + $0x24] sm:$0xf]
      %v523 = vld [vmem:[%s4 + $0x28] sm:$0xf]
      %v524 = vld [vmem:[%s4 + $0x2c] sm:$0xf]
      %v525 = vld [vmem:[%s4 + $0x30] sm:$0xf]
      %v526 = vld [vmem:[%s4 + $0x34] sm:$0xf]
      %v527 = vld [vmem:[%s4 + $0x38] sm:$0xf]
      %v528 = vld [vmem:[%s4 + $0x3c] sm:$0xf]
      %v529 = vld [vmem:[%s4 + $0x40] sm:$0xf]
      %v530 = vld [vmem:[%s4 + $0x44] sm:$0xf]
      %v531 = vld [vmem:[%s4 + $0x48] sm:$0xf]
      %v532 = vld [vmem:[%s4 + $0x4c] sm:$0xf]
      %v533 = vld [vmem:[%s4 + $0x50] sm:$0xf]
      %v534 = vld [vmem:[%s4 + $0x54] sm:$0xf]
      %v535 = vld [vmem:[%s4 + $0x58] sm:$0xf]
      %v536 = vld [vmem:[%s4 + $0x5c] sm:$0xf]
      %v537 = vld [vmem:[%s4 + $0x60] sm:$0xf]
      %v538 = vld [vmem:[%s4 + $0x64] sm:$0xf]
      %v539 = vld [vmem:[%s4 + $0x68] sm:$0xf]
      %v540 = vld [vmem:[%s4 + $0x6c] sm:$0xf]
      %v541 = vld [vmem:[%s4 + $0x70] sm:$0xf]
      %v542 = vld [vmem:[%s4 + $0x74] sm:$0xf]
      %v543 = vld [vmem:[%s4 + $0x78] sm:$0xf]
      %v544 = vld [vmem:[%s4 + $0x7c] sm:$0xf]
      %v545 = vpack.c.bf16 %v486, %v483
      %v546 = vpack.c.bf16 %v494, %v491
      %v547 = vpack.c.bf16 %v502, %v499
      %v548 = vpack.c.bf16 %v510, %v507
      %v581 = vunpack.c.l.b16 %v513
      %v582 = vunpack.c.l.b16 %v514
      %v583 = vunpack.c.l.b16 %v515
      %v584 = vunpack.c.l.b16 %v516
      %v585 = vunpack.c.l.b16 %v517
      %v586 = vunpack.c.l.b16 %v518
      %v587 = vunpack.c.l.b16 %v519
      %v588 = vunpack.c.l.b16 %v520
      %v589 = vunpack.c.l.b16 %v521
      %v590 = vunpack.c.l.b16 %v522
      %v591 = vunpack.c.l.b16 %v523
      %v592 = vunpack.c.l.b16 %v524
      %v593 = vunpack.c.l.b16 %v525
      %v594 = vunpack.c.l.b16 %v526
      %v595 = vunpack.c.l.b16 %v527
      %v596 = vunpack.c.l.b16 %v528
      %v597 = vunpack.c.l.b16 %v529
      %v598 = vunpack.c.l.b16 %v530
      %v599 = vunpack.c.l.b16 %v531
      %v600 = vunpack.c.l.b16 %v532
      %v601 = vunpack.c.l.b16 %v533
      %v602 = vunpack.c.l.b16 %v534
      %v603 = vunpack.c.l.b16 %v535
      %v604 = vunpack.c.l.b16 %v536
      %v605 = vunpack.c.l.b16 %v537
      %v606 = vunpack.c.l.b16 %v538
      %v607 = vunpack.c.l.b16 %v539
      %v608 = vunpack.c.l.b16 %v540
      %v609 = vunpack.c.l.b16 %v541
      %v610 = vunpack.c.l.b16 %v542
      %v611 = vunpack.c.l.b16 %v543
      %v612 = vunpack.c.l.b16 %v544
      %v613 = vpack.c.b16 %v582, %v581
      %v614 = vpack.c.b16 %v584, %v583
      %v615 = vpack.c.b16 %v586, %v585
      %v616 = vpack.c.b16 %v588, %v587
      %v617 = vpack.c.b16 %v590, %v589
      %v618 = vpack.c.b16 %v592, %v591
      %v619 = vpack.c.b16 %v594, %v593
      %v620 = vpack.c.b16 %v596, %v595
      %v621 = vpack.c.b16 %v598, %v597
      %v622 = vpack.c.b16 %v600, %v599
      %v623 = vpack.c.b16 %v602, %v601
      %v624 = vpack.c.b16 %v604, %v603
      %v625 = vpack.c.b16 %v606, %v605
      %v626 = vpack.c.b16 %v608, %v607
      %v627 = vpack.c.b16 %v610, %v609
      %v628 = vpack.c.b16 %v612, %v611
      %vm629 = vcmask 523264
      %v631 = vsel %vm629, %v613, 0
      %v634 = vsel %vm629, %v614, 0
      %v637 = vsel %vm629, %v615, 0
      %v640 = vsel %vm629, %v616, 0
      %v643 = vsel %vm629, %v617, 0
      %v646 = vsel %vm629, %v618, 0
      %v649 = vsel %vm629, %v619, 0
      %v652 = vsel %vm629, %v620, 0
      %v655 = vsel %vm629, %v621, 0
      %v658 = vsel %vm629, %v622, 0
      %v661 = vsel %vm629, %v623, 0
      %v664 = vsel %vm629, %v624, 0
      %v667 = vsel %vm629, %v625, 0
      %v670 = vsel %vm629, %v626, 0
      %v673 = vsel %vm629, %v627, 0
      %v676 = vsel %vm629, %v628, 0
      %678 = vmatprep.subr.bf16.mxu0 0
      %679 = vmatpush1.bf16.msra.mxu0 %v545
      %680 = vmatprep.subr.bf16.mxu0 0
      %681 = vmatpush1.bf16.msra.mxu0 %v546
      %682 = vmatprep.subr.bf16.mxu0 0
      %683 = vmatpush1.bf16.msra.mxu0 %v547
      %684 = vmatprep.subr.bf16.mxu0 0
      %685 = vmatpush1.bf16.msra.mxu0 %v548
      %686 = vmatprep.subr.bf16.mxu0 0
      %687 = vmatpush1.bf16.msra.mxu0 0
      %688 = vmatprep.subr.bf16.mxu0 0
      %689 = vmatpush1.bf16.msra.mxu0 0
      %690 = vmatprep.subr.bf16.mxu0 0
      %691 = vmatpush1.bf16.msra.mxu0 0
      %692 = vmatprep.subr.bf16.mxu0 0
      %693 = vmatpush1.bf16.msra.mxu0 0
      %694 = vmatprep.subr.bf16.mxu0 0
      %695 = vmatpush1.bf16.msra.mxu0 0
      %696 = vmatprep.subr.bf16.mxu0 0
      %697 = vmatpush1.bf16.msra.mxu0 0
      %698 = vmatprep.subr.bf16.mxu0 0
      %699 = vmatpush1.bf16.msra.mxu0 0
      %700 = vmatprep.subr.bf16.mxu0 0
      %701 = vmatpush1.bf16.msra.mxu0 0
      %702 = vmatprep.subr.bf16.mxu0 0
      %703 = vmatpush1.bf16.msra.mxu0 0
      %704 = vmatprep.subr.bf16.mxu0 0
      %705 = vmatpush1.bf16.msra.mxu0 0
      %706 = vmatprep.subr.bf16.mxu0 0
      %707 = vmatpush1.bf16.msra.mxu0 0
      %708 = vmatprep.subr.bf16.mxu0 0
      %709 = vmatpush1.bf16.msra.mxu0 0
      %710 = vmatprep.mubr.bf16.mxu0 0
      %711 = vmatmul.mubr.bf16.gmra.mrb[0].mxu0 %v631
      %v712 = vpop.f32.mrb[0].mxu0
      %v713 = vadd.f32 0.0, %v712
      %v714 = vpop.f32.mrb[0].mxu0
      %v715 = vpop.f32.mrb[0].mxu0
      %v716 = vadd.f32 0.0, %v715
      %v717 = vpop.f32.mrb[0].mxu0
      %718 = vmatprep.mubr.bf16.mxu0 0
      %719 = vmatmul.mubr.bf16.gmra.mrb[0].mxu0 %v634
      %v720 = vpop.f32.mrb[0].mxu0
      %v721 = vadd.f32 0.0, %v720
      %v722 = vpop.f32.mrb[0].mxu0
      %v723 = vpop.f32.mrb[0].mxu0
      %v724 = vadd.f32 0.0, %v723
      %v725 = vpop.f32.mrb[0].mxu0
      %726 = vmatprep.mubr.bf16.mxu0 0
      %727 = vmatmul.mubr.bf16.gmra.mrb[0].mxu0 %v637
      %v728 = vpop.f32.mrb[0].mxu0
      %v729 = vadd.f32 0.0, %v728
      %v730 = vpop.f32.mrb[0].mxu0
      %v731 = vpop.f32.mrb[0].mxu0
      %v732 = vadd.f32 0.0, %v731
      %v733 = vpop.f32.mrb[0].mxu0
      %734 = vmatprep.mubr.bf16.mxu0 0
      %735 = vmatmul.mubr.bf16.gmra.mrb[0].mxu0 %v640
      %v736 = vpop.f32.mrb[0].mxu0
      %v737 = vadd.f32 0.0, %v736
      %v738 = vpop.f32.mrb[0].mxu0
      %v739 = vpop.f32.mrb[0].mxu0
      %v740 = vadd.f32 0.0, %v739
      %v741 = vpop.f32.mrb[0].mxu0
      %742 = vmatprep.mubr.bf16.mxu0 0
      %743 = vmatmul.mubr.bf16.gmra.mrb[0].mxu0 %v643
      %v744 = vpop.f32.mrb[0].mxu0
      %v745 = vadd.f32 0.0, %v744
      %v746 = vpop.f32.mrb[0].mxu0
      %v747 = vpop.f32.mrb[0].mxu0
      %v748 = vadd.f32 0.0, %v747
      %v749 = vpop.f32.mrb[0].mxu0
      %750 = vmatprep.mubr.bf16.mxu0 0
      %751 = vmatmul.mubr.bf16.gmra.mrb[0].mxu0 %v646
      %v752 = vpop.f32.mrb[0].mxu0
      %v753 = vadd.f32 0.0, %v752
      %v754 = vpop.f32.mrb[0].mxu0
      %v755 = vpop.f32.mrb[0].mxu0
      %v756 = vadd.f32 0.0, %v755
      %v757 = vpop.f32.mrb[0].mxu0
      %758 = vmatprep.mubr.bf16.mxu0 0
      %759 = vmatmul.mubr.bf16.gmra.mrb[0].mxu0 %v649
      %v760 = vpop.f32.mrb[0].mxu0
      %v761 = vadd.f32 0.0, %v760
      %v762 = vpop.f32.mrb[0].mxu0
      %v763 = vpop.f32.mrb[0].mxu0
      %v764 = vadd.f32 0.0, %v763
      %v765 = vpop.f32.mrb[0].mxu0
      %766 = vmatprep.mubr.bf16.mxu0 0
      %767 = vmatmul.mubr.bf16.gmra.mrb[0].mxu0 %v652
      %v768 = vpop.f32.mrb[0].mxu0
      %v769 = vadd.f32 0.0, %v768
      %v770 = vpop.f32.mrb[0].mxu0
      %v771 = vpop.f32.mrb[0].mxu0
      %v772 = vadd.f32 0.0, %v771
      %v773 = vpop.f32.mrb[0].mxu0
      %774 = vmatprep.mubr.bf16.mxu0 0
      %775 = vmatmul.mubr.bf16.gmra.mrb[0].mxu0 %v655
      %v776 = vpop.f32.mrb[0].mxu0
      %v777 = vadd.f32 0.0, %v776
      %v778 = vpop.f32.mrb[0].mxu0
      %v779 = vpop.f32.mrb[0].mxu0
      %v780 = vadd.f32 0.0, %v779
      %v781 = vpop.f32.mrb[0].mxu0
      %782 = vmatprep.mubr.bf16.mxu0 0
      %783 = vmatmul.mubr.bf16.gmra.mrb[0].mxu0 %v658
      %v784 = vpop.f32.mrb[0].mxu0
      %v785 = vadd.f32 0.0, %v784
      %v786 = vpop.f32.mrb[0].mxu0
      %v787 = vpop.f32.mrb[0].mxu0
      %v788 = vadd.f32 0.0, %v787
      %v789 = vpop.f32.mrb[0].mxu0
      %790 = vmatprep.mubr.bf16.mxu0 0
      %791 = vmatmul.mubr.bf16.gmra.mrb[0].mxu0 %v661
      %v792 = vpop.f32.mrb[0].mxu0
      %v793 = vadd.f32 0.0, %v792
      %v794 = vpop.f32.mrb[0].mxu0
      %v795 = vpop.f32.mrb[0].mxu0
      %v796 = vadd.f32 0.0, %v795
      %v797 = vpop.f32.mrb[0].mxu0
      %798 = vmatprep.mubr.bf16.mxu0 0
      %799 = vmatmul.mubr.bf16.gmra.mrb[0].mxu0 %v664
      %v800 = vpop.f32.mrb[0].mxu0
      %v801 = vadd.f32 0.0, %v800
      %v802 = vpop.f32.mrb[0].mxu0
      %v803 = vpop.f32.mrb[0].mxu0
      %v804 = vadd.f32 0.0, %v803
      %v805 = vpop.f32.mrb[0].mxu0
      %806 = vmatprep.mubr.bf16.mxu0 0
      %807 = vmatmul.mubr.bf16.gmra.mrb[0].mxu0 %v667
      %v808 = vpop.f32.mrb[0].mxu0
      %v809 = vadd.f32 0.0, %v808
      %v810 = vpop.f32.mrb[0].mxu0
      %v811 = vpop.f32.mrb[0].mxu0
      %v812 = vadd.f32 0.0, %v811
      %v813 = vpop.f32.mrb[0].mxu0
      %814 = vmatprep.mubr.bf16.mxu0 0
      %815 = vmatmul.mubr.bf16.gmra.mrb[0].mxu0 %v670
      %v816 = vpop.f32.mrb[0].mxu0
      %v817 = vadd.f32 0.0, %v816
      %v818 = vpop.f32.mrb[0].mxu0
      %v819 = vpop.f32.mrb[0].mxu0
      %v820 = vadd.f32 0.0, %v819
      %v821 = vpop.f32.mrb[0].mxu0
      %822 = vmatprep.mubr.bf16.mxu0 0
      %823 = vmatmul.mubr.bf16.gmra.mrb[0].mxu0 %v673
      %v824 = vpop.f32.mrb[0].mxu0
      %v825 = vadd.f32 0.0, %v824
      %v826 = vpop.f32.mrb[0].mxu0
      %v827 = vpop.f32.mrb[0].mxu0
      %v828 = vadd.f32 0.0, %v827
      %v829 = vpop.f32.mrb[0].mxu0
      %830 = vmatprep.mubr.bf16.mxu0 0
      %831 = vmatmul.mubr.bf16.gmra.mrb[0].mxu0 %v676
      %v832 = vpop.f32.mrb[0].mxu0
      %v833 = vadd.f32 0.0, %v832
      %v834 = vpop.f32.mrb[0].mxu0
      %v835 = vpop.f32.mrb[0].mxu0
      %v836 = vadd.f32 0.0, %v835
      %v837 = vpop.f32.mrb[0].mxu0
      %838 = vdwg.mxu0
      %vm839 = vcmask 125952
      %840 = vst.msk [vmem:[#allocation2] sm:$0xf] %vm839, 0
      %841 = vst.msk [vmem:[#allocation2 + $0x4] sm:$0xf] %vm839, 0
      %vm842 = vcmask 122880
      %843 = vst.msk [vmem:[#allocation2 + $0x8] sm:$0x1] %vm842, 0
      %s844 = scalar_lea.vmem [#allocation2], 204
      %845 = vst.msk [vmem:[%s844] sm:$0xf] %vm839, 0
      %846 = vst.msk [vmem:[%s844 + $0x4] sm:$0xf] %vm839, 0
      %847 = vst.msk [vmem:[%s844 + $0x8] sm:$0x1] %vm842, 0
      %s848 = scalar_lea.vmem [#allocation2], 12
      %vm849 = vcmask 122880
      %vm850 = vsmask.f32 256
      %vm851 = vmand %vm849, %vm850
      %v852 = vld [vmem:[%s848] sm:$0x1]
      %v853 = vsel %vm851, 0, %v852
      %854 = vst [vmem:[%s848] sm:$0x1] %v853
      %v855 = vld [vmem:[%s848 + $0xc] sm:$0x1]
      %v856 = vsel %vm851, 0, %v855
      %857 = vst [vmem:[%s848 + $0xc] sm:$0x1] %v856
      %v858 = vld [vmem:[%s848 + $0x18] sm:$0x1]
      %v859 = vsel %vm851, 0, %v858
      %860 = vst [vmem:[%s848 + $0x18] sm:$0x1] %v859
      %v861 = vld [vmem:[%s848 + $0x24] sm:$0x1]
      %v862 = vsel %vm851, 0, %v861
      %863 = vst [vmem:[%s848 + $0x24] sm:$0x1] %v862
      %v864 = vld [vmem:[%s848 + $0x30] sm:$0x1]
      %v865 = vsel %vm851, 0, %v864
      %866 = vst [vmem:[%s848 + $0x30] sm:$0x1] %v865
      %v867 = vld [vmem:[%s848 + $0x3c] sm:$0x1]
      %v868 = vsel %vm851, 0, %v867
      %869 = vst [vmem:[%s848 + $0x3c] sm:$0x1] %v868
      %v870 = vld [vmem:[%s848 + $0x48] sm:$0x1]
      %v871 = vsel %vm851, 0, %v870
      %872 = vst [vmem:[%s848 + $0x48] sm:$0x1] %v871
      %v873 = vld [vmem:[%s848 + $0x54] sm:$0x1]
      %v874 = vsel %vm851, 0, %v873
      %875 = vst [vmem:[%s848 + $0x54] sm:$0x1] %v874
      %v876 = vld [vmem:[%s848 + $0x60] sm:$0x1]
      %v877 = vsel %vm851, 0, %v876
      %878 = vst [vmem:[%s848 + $0x60] sm:$0x1] %v877
      %v879 = vld [vmem:[%s848 + $0x6c] sm:$0x1]
      %v880 = vsel %vm851, 0, %v879
      %881 = vst [vmem:[%s848 + $0x6c] sm:$0x1] %v880
      %v882 = vld [vmem:[%s848 + $0x78] sm:$0x1]
      %v883 = vsel %vm851, 0, %v882
      %884 = vst [vmem:[%s848 + $0x78] sm:$0x1] %v883
      %v885 = vld [vmem:[%s848 + $0x84] sm:$0x1]
      %v886 = vsel %vm851, 0, %v885
      %887 = vst [vmem:[%s848 + $0x84] sm:$0x1] %v886
      %v888 = vld [vmem:[%s848 + $0x90] sm:$0x1]
      %v889 = vsel %vm851, 0, %v888
      %890 = vst [vmem:[%s848 + $0x90] sm:$0x1] %v889
      %v891 = vld [vmem:[%s848 + $0x9c] sm:$0x1]
      %v892 = vsel %vm851, 0, %v891
      %893 = vst [vmem:[%s848 + $0x9c] sm:$0x1] %v892
      %v894 = vld [vmem:[%s848 + $0xa8] sm:$0x1]
      %v895 = vsel %vm851, 0, %v894
      %896 = vst [vmem:[%s848 + $0xa8] sm:$0x1] %v895
      %v897 = vld [vmem:[%s848 + $0xb4] sm:$0x1]
      %v898 = vsel %vm851, 0, %v897
      %899 = vst [vmem:[%s848 + $0xb4] sm:$0x1] %v898
      %vm900 = vsmask.f32 7938
      %vm901 = vmand %vm849, %vm900
      %v902 = vld [vmem:[%s848 + $0x8] sm:$0x1]
      %v903 = vsel %vm901, 0, %v902
      %904 = vst [vmem:[%s848 + $0x8] sm:$0x1] %v903
      %v905 = vld [vmem:[%s848 + $0x14] sm:$0x1]
      %v906 = vsel %vm901, 0, %v905
      %907 = vst [vmem:[%s848 + $0x14] sm:$0x1] %v906
      %v908 = vld [vmem:[%s848 + $0x20] sm:$0x1]
      %v909 = vsel %vm901, 0, %v908
      %910 = vst [vmem:[%s848 + $0x20] sm:$0x1] %v909
      %v911 = vld [vmem:[%s848 + $0x2c] sm:$0x1]
      %v912 = vsel %vm901, 0, %v911
      %913 = vst [vmem:[%s848 + $0x2c] sm:$0x1] %v912
      %v914 = vld [vmem:[%s848 + $0x38] sm:$0x1]
      %v915 = vsel %vm901, 0, %v914
      %916 = vst [vmem:[%s848 + $0x38] sm:$0x1] %v915
      %v917 = vld [vmem:[%s848 + $0x44] sm:$0x1]
      %v918 = vsel %vm901, 0, %v917
      %919 = vst [vmem:[%s848 + $0x44] sm:$0x1] %v918
      %v920 = vld [vmem:[%s848 + $0x50] sm:$0x1]
      %v921 = vsel %vm901, 0, %v920
      %922 = vst [vmem:[%s848 + $0x50] sm:$0x1] %v921
      %v923 = vld [vmem:[%s848 + $0x5c] sm:$0x1]
      %v924 = vsel %vm901, 0, %v923
      %925 = vst [vmem:[%s848 + $0x5c] sm:$0x1] %v924
      %v926 = vld [vmem:[%s848 + $0x68] sm:$0x1]
      %v927 = vsel %vm901, 0, %v926
      %928 = vst [vmem:[%s848 + $0x68] sm:$0x1] %v927
      %v929 = vld [vmem:[%s848 + $0x74] sm:$0x1]
      %v930 = vsel %vm901, 0, %v929
      %931 = vst [vmem:[%s848 + $0x74] sm:$0x1] %v930
      %v932 = vld [vmem:[%s848 + $0x80] sm:$0x1]
      %v933 = vsel %vm901, 0, %v932
      %934 = vst [vmem:[%s848 + $0x80] sm:$0x1] %v933
      %v935 = vld [vmem:[%s848 + $0x8c] sm:$0x1]
      %v936 = vsel %vm901, 0, %v935
      %937 = vst [vmem:[%s848 + $0x8c] sm:$0x1] %v936
      %v938 = vld [vmem:[%s848 + $0x98] sm:$0x1]
      %v939 = vsel %vm901, 0, %v938
      %940 = vst [vmem:[%s848 + $0x98] sm:$0x1] %v939
      %v941 = vld [vmem:[%s848 + $0xa4] sm:$0x1]
      %v942 = vsel %vm901, 0, %v941
      %943 = vst [vmem:[%s848 + $0xa4] sm:$0x1] %v942
      %v944 = vld [vmem:[%s848 + $0xb0] sm:$0x1]
      %v945 = vsel %vm901, 0, %v944
      %946 = vst [vmem:[%s848 + $0xb0] sm:$0x1] %v945
      %v947 = vld [vmem:[%s848 + $0xbc] sm:$0x1]
      %v948 = vsel %vm901, 0, %v947
      %949 = vst [vmem:[%s848 + $0xbc] sm:$0x1] %v948
      %v950 = vpack.c.bf16 %v716, %v713
      %v951 = vpack.c.bf16 %v724, %v721
      %v952 = vpack.c.bf16 %v732, %v729
      %v953 = vpack.c.bf16 %v740, %v737
      %v954 = vpack.c.bf16 %v748, %v745
      %v955 = vpack.c.bf16 %v756, %v753
      %v956 = vpack.c.bf16 %v764, %v761
      %v957 = vpack.c.bf16 %v772, %v769
      %v958 = vpack.c.bf16 %v780, %v777
      %v959 = vpack.c.bf16 %v788, %v785
      %v960 = vpack.c.bf16 %v796, %v793
      %v961 = vpack.c.bf16 %v804, %v801
      %v962 = vpack.c.bf16 %v812, %v809
      %v963 = vpack.c.bf16 %v820, %v817
      %v964 = vpack.c.bf16 %v828, %v825
      %v965 = vpack.c.bf16 %v836, %v833
      %v982 = vunpack.c.l.b16 %v950
      %v983 = vunpack.c.h.b16 %v950
      %v984 = vunpack.c.l.b16 %v951
      %v985 = vunpack.c.h.b16 %v951
      %v986 = vunpack.c.l.b16 %v952
      %v987 = vunpack.c.h.b16 %v952
      %v988 = vunpack.c.l.b16 %v953
      %v989 = vunpack.c.h.b16 %v953
      %v990 = vunpack.c.l.b16 %v954
      %v991 = vunpack.c.h.b16 %v954
      %v992 = vunpack.c.l.b16 %v955
      %v993 = vunpack.c.h.b16 %v955
      %v994 = vunpack.c.l.b16 %v956
      %v995 = vunpack.c.h.b16 %v956
      %v996 = vunpack.c.l.b16 %v957
      %v997 = vunpack.c.h.b16 %v957
      %v998 = vunpack.c.l.b16 %v958
      %v999 = vunpack.c.h.b16 %v958
      %v1000 = vunpack.c.l.b16 %v959
      %v1001 = vunpack.c.h.b16 %v959
      %v1002 = vunpack.c.l.b16 %v960
      %v1003 = vunpack.c.h.b16 %v960
      %v1004 = vunpack.c.l.b16 %v961
      %v1005 = vunpack.c.h.b16 %v961
      %v1006 = vunpack.c.l.b16 %v962
      %v1007 = vunpack.c.h.b16 %v962
      %v1008 = vunpack.c.l.b16 %v963
      %v1009 = vunpack.c.h.b16 %v963
      %v1010 = vunpack.c.l.b16 %v964
      %v1011 = vunpack.c.h.b16 %v964
      %v1012 = vunpack.c.l.b16 %v965
      %v1013 = vunpack.c.h.b16 %v965
      %v1014 = vpack.c.b16 %v982, %v982
      %v1015 = vpack.c.b16 %v983, %v983
      %v1016 = vpack.c.b16 %v984, %v984
      %v1017 = vpack.c.b16 %v985, %v985
      %v1018 = vpack.c.b16 %v986, %v986
      %v1019 = vpack.c.b16 %v987, %v987
      %v1020 = vpack.c.b16 %v988, %v988
      %v1021 = vpack.c.b16 %v989, %v989
      %v1022 = vpack.c.b16 %v990, %v990
      %v1023 = vpack.c.b16 %v991, %v991
      %v1024 = vpack.c.b16 %v992, %v992
      %v1025 = vpack.c.b16 %v993, %v993
      %v1026 = vpack.c.b16 %v994, %v994
      %v1027 = vpack.c.b16 %v995, %v995
      %v1028 = vpack.c.b16 %v996, %v996
      %v1029 = vpack.c.b16 %v997, %v997
      %v1030 = vpack.c.b16 %v998, %v998
      %v1031 = vpack.c.b16 %v999, %v999
      %v1032 = vpack.c.b16 %v1000, %v1000
      %v1033 = vpack.c.b16 %v1001, %v1001
      %v1034 = vpack.c.b16 %v1002, %v1002
      %v1035 = vpack.c.b16 %v1003, %v1003
      %v1036 = vpack.c.b16 %v1004, %v1004
      %v1037 = vpack.c.b16 %v1005, %v1005
      %v1038 = vpack.c.b16 %v1006, %v1006
      %v1039 = vpack.c.b16 %v1007, %v1007
      %v1040 = vpack.c.b16 %v1008, %v1008
      %v1041 = vpack.c.b16 %v1009, %v1009
      %v1042 = vpack.c.b16 %v1010, %v1010
      %v1043 = vpack.c.b16 %v1011, %v1011
      %v1044 = vpack.c.b16 %v1012, %v1012
      %v1045 = vpack.c.b16 %v1013, %v1013
      %vm1046 = vsmask.f32 4368
      %vm1047 = vmor %vm850, %vm1046
      %v1049 = vshrl.u32 %v1014, 16
      %v1051 = vrot.slane %v1049, 7
      %v1052 = vshll.u32 %v1014, 16
      %v1054 = vor.u32 %v1051, %v1052
      %v1055 = vrot.slane %v1051, 4
      %v1057 = vshrl.u32 %v1015, 16
      %v1059 = vrot.slane %v1057, 7
      %v1060 = vshll.u32 %v1015, 16
      %v1062 = vor.u32 %v1059, %v1060
      %v1063 = vsel %vm1047, %v1055, %v1062
      %v1064 = vrot.slane %v1059, 4
      %v1066 = vshrl.u32 %v1016, 16
      %v1068 = vrot.slane %v1066, 7
      %v1069 = vshll.u32 %v1016, 16
      %v1071 = vor.u32 %v1068, %v1069
      %v1072 = vrot.slane %v1068, 4
      %v1074 = vshrl.u32 %v1017, 16
      %v1076 = vrot.slane %v1074, 7
      %v1077 = vshll.u32 %v1017, 16
      %v1079 = vor.u32 %v1076, %v1077
      %v1080 = vsel %vm1047, %v1072, %v1079
      %v1081 = vrot.slane %v1076, 4
      %v1083 = vshrl.u32 %v1018, 16
      %v1085 = vrot.slane %v1083, 7
      %v1086 = vshll.u32 %v1018, 16
      %v1088 = vor.u32 %v1085, %v1086
      %v1089 = vrot.slane %v1085, 4
      %v1091 = vshrl.u32 %v1019, 16
      %v1093 = vrot.slane %v1091, 7
      %v1094 = vshll.u32 %v1019, 16
      %v1096 = vor.u32 %v1093, %v1094
      %v1097 = vsel %vm1047, %v1089, %v1096
      %v1098 = vrot.slane %v1093, 4
      %v1100 = vshrl.u32 %v1020, 16
      %v1102 = vrot.slane %v1100, 7
      %v1103 = vshll.u32 %v1020, 16
      %v1105 = vor.u32 %v1102, %v1103
      %v1106 = vrot.slane %v1102, 4
      %v1108 = vshrl.u32 %v1021, 16
      %v1110 = vrot.slane %v1108, 7
      %v1111 = vshll.u32 %v1021, 16
      %v1113 = vor.u32 %v1110, %v1111
      %v1114 = vsel %vm1047, %v1106, %v1113
      %v1115 = vrot.slane %v1110, 4
      %v1117 = vshrl.u32 %v1022, 16
      %v1119 = vrot.slane %v1117, 7
      %v1120 = vshll.u32 %v1022, 16
      %v1122 = vor.u32 %v1119, %v1120
      %v1123 = vrot.slane %v1119, 4
      %v1125 = vshrl.u32 %v1023, 16
      %v1127 = vrot.slane %v1125, 7
      %v1128 = vshll.u32 %v1023, 16
      %v1130 = vor.u32 %v1127, %v1128
      %v1131 = vsel %vm1047, %v1123, %v1130
      %v1132 = vrot.slane %v1127, 4
      %v1134 = vshrl.u32 %v1024, 16
      %v1136 = vrot.slane %v1134, 7
      %v1137 = vshll.u32 %v1024, 16
      %v1139 = vor.u32 %v1136, %v1137
      %v1140 = vrot.slane %v1136, 4
      %v1142 = vshrl.u32 %v1025, 16
      %v1144 = vrot.slane %v1142, 7
      %v1145 = vshll.u32 %v1025, 16
      %v1147 = vor.u32 %v1144, %v1145
      %v1148 = vsel %vm1047, %v1140, %v1147
      %v1149 = vrot.slane %v1144, 4
      %v1151 = vshrl.u32 %v1026, 16
      %v1153 = vrot.slane %v1151, 7
      %v1154 = vshll.u32 %v1026, 16
      %v1156 = vor.u32 %v1153, %v1154
      %v1157 = vrot.slane %v1153, 4
      %v1159 = vshrl.u32 %v1027, 16
      %v1161 = vrot.slane %v1159, 7
      %v1162 = vshll.u32 %v1027, 16
      %v1164 = vor.u32 %v1161, %v1162
      %v1165 = vsel %vm1047, %v1157, %v1164
      %v1166 = vrot.slane %v1161, 4
      %v1168 = vshrl.u32 %v1028, 16
      %v1170 = vrot.slane %v1168, 7
      %v1171 = vshll.u32 %v1028, 16
      %v1173 = vor.u32 %v1170, %v1171
      %v1174 = vrot.slane %v1170, 4
      %v1176 = vshrl.u32 %v1029, 16
      %v1178 = vrot.slane %v1176, 7
      %v1179 = vshll.u32 %v1029, 16
      %v1181 = vor.u32 %v1178, %v1179
      %v1182 = vsel %vm1047, %v1174, %v1181
      %v1183 = vrot.slane %v1178, 4
      %v1185 = vshrl.u32 %v1030, 16
      %v1187 = vrot.slane %v1185, 7
      %v1188 = vshll.u32 %v1030, 16
      %v1190 = vor.u32 %v1187, %v1188
      %v1191 = vrot.slane %v1187, 4
      %v1193 = vshrl.u32 %v1031, 16
      %v1195 = vrot.slane %v1193, 7
      %v1196 = vshll.u32 %v1031, 16
      %v1198 = vor.u32 %v1195, %v1196
      %v1199 = vsel %vm1047, %v1191, %v1198
      %v1200 = vrot.slane %v1195, 4
      %v1202 = vshrl.u32 %v1032, 16
      %v1204 = vrot.slane %v1202, 7
      %v1205 = vshll.u32 %v1032, 16
      %v1207 = vor.u32 %v1204, %v1205
      %v1208 = vrot.slane %v1204, 4
      %v1210 = vshrl.u32 %v1033, 16
      %v1212 = vrot.slane %v1210, 7
      %v1213 = vshll.u32 %v1033, 16
      %v1215 = vor.u32 %v1212, %v1213
      %v1216 = vsel %vm1047, %v1208, %v1215
      %v1217 = vrot.slane %v1212, 4
      %v1219 = vshrl.u32 %v1034, 16
      %v1221 = vrot.slane %v1219, 7
      %v1222 = vshll.u32 %v1034, 16
      %v1224 = vor.u32 %v1221, %v1222
      %v1225 = vrot.slane %v1221, 4
      %v1227 = vshrl.u32 %v1035, 16
      %v1229 = vrot.slane %v1227, 7
      %v1230 = vshll.u32 %v1035, 16
      %v1232 = vor.u32 %v1229, %v1230
      %v1233 = vsel %vm1047, %v1225, %v1232
      %v1234 = vrot.slane %v1229, 4
      %v1236 = vshrl.u32 %v1036, 16
      %v1238 = vrot.slane %v1236, 7
      %v1239 = vshll.u32 %v1036, 16
      %v1241 = vor.u32 %v1238, %v1239
      %v1242 = vrot.slane %v1238, 4
      %v1244 = vshrl.u32 %v1037, 16
      %v1246 = vrot.slane %v1244, 7
      %v1247 = vshll.u32 %v1037, 16
      %v1249 = vor.u32 %v1246, %v1247
      %v1250 = vsel %vm1047, %v1242, %v1249
      %v1251 = vrot.slane %v1246, 4
      %v1253 = vshrl.u32 %v1038, 16
      %v1255 = vrot.slane %v1253, 7
      %v1256 = vshll.u32 %v1038, 16
      %v1258 = vor.u32 %v1255, %v1256
      %v1259 = vrot.slane %v1255, 4
      %v1261 = vshrl.u32 %v1039, 16
      %v1263 = vrot.slane %v1261, 7
      %v1264 = vshll.u32 %v1039, 16
      %v1266 = vor.u32 %v1263, %v1264
      %v1267 = vsel %vm1047, %v1259, %v1266
      %v1268 = vrot.slane %v1263, 4
      %v1270 = vshrl.u32 %v1040, 16
      %v1272 = vrot.slane %v1270, 7
      %v1273 = vshll.u32 %v1040, 16
      %v1275 = vor.u32 %v1272, %v1273
      %v1276 = vrot.slane %v1272, 4
      %v1278 = vshrl.u32 %v1041, 16
      %v1280 = vrot.slane %v1278, 7
      %v1281 = vshll.u32 %v1041, 16
      %v1283 = vor.u32 %v1280, %v1281
      %v1284 = vsel %vm1047, %v1276, %v1283
      %v1285 = vrot.slane %v1280, 4
      %v1287 = vshrl.u32 %v1042, 16
      %v1289 = vrot.slane %v1287, 7
      %v1290 = vshll.u32 %v1042, 16
      %v1292 = vor.u32 %v1289, %v1290
      %v1293 = vrot.slane %v1289, 4
      %v1295 = vshrl.u32 %v1043, 16
      %v1297 = vrot.slane %v1295, 7
      %v1298 = vshll.u32 %v1043, 16
      %v1300 = vor.u32 %v1297, %v1298
      %v1301 = vsel %vm1047, %v1293, %v1300
      %v1302 = vrot.slane %v1297, 4
      %v1304 = vshrl.u32 %v1044, 16
      %v1306 = vrot.slane %v1304, 7
      %v1307 = vshll.u32 %v1044, 16
      %v1309 = vor.u32 %v1306, %v1307
      %v1310 = vrot.slane %v1306, 4
      %v1312 = vshrl.u32 %v1045, 16
      %v1314 = vrot.slane %v1312, 7
      %v1315 = vshll.u32 %v1045, 16
      %v1317 = vor.u32 %v1314, %v1315
      %v1318 = vsel %vm1047, %v1310, %v1317
      %v1319 = vrot.slane %v1314, 4
      %vm1368 = vcmask 125952
      %vm1369 = vmand %vm1368, %vm900
      %v1370 = vld [vmem:[%s848] sm:$0xf]
      %v1371 = vsel %vm1369, %v1054, %v1370
      %1372 = vst [vmem:[%s848] sm:$0xf] %v1371
      %1373 = vst.msk [vmem:[%s848 + $0x4] sm:$0xf] %vm839, %v1063
      %v1374 = vld [vmem:[%s848 + $0x8] sm:$0x1]
      %v1375 = vsel %vm851, %v1064, %v1374
      %1376 = vst [vmem:[%s848 + $0x8] sm:$0x1] %v1375
      %v1377 = vld [vmem:[%s848 + $0xc] sm:$0xf]
      %v1378 = vsel %vm1369, %v1071, %v1377
      %1379 = vst [vmem:[%s848 + $0xc] sm:$0xf] %v1378
      %1380 = vst.msk [vmem:[%s848 + $0x10] sm:$0xf] %vm839, %v1080
      %v1381 = vld [vmem:[%s848 + $0x14] sm:$0x1]
      %v1382 = vsel %vm851, %v1081, %v1381
      %1383 = vst [vmem:[%s848 + $0x14] sm:$0x1] %v1382
      %v1384 = vld [vmem:[%s848 + $0x18] sm:$0xf]
      %v1385 = vsel %vm1369, %v1088, %v1384
      %1386 = vst [vmem:[%s848 + $0x18] sm:$0xf] %v1385
      %1387 = vst.msk [vmem:[%s848 + $0x1c] sm:$0xf] %vm839, %v1097
      %v1388 = vld [vmem:[%s848 + $0x20] sm:$0x1]
      %v1389 = vsel %vm851, %v1098, %v1388
      %1390 = vst [vmem:[%s848 + $0x20] sm:$0x1] %v1389
      %v1391 = vld [vmem:[%s848 + $0x24] sm:$0xf]
      %v1392 = vsel %vm1369, %v1105, %v1391
      %1393 = vst [vmem:[%s848 + $0x24] sm:$0xf] %v1392
      %1394 = vst.msk [vmem:[%s848 + $0x28] sm:$0xf] %vm839, %v1114
      %v1395 = vld [vmem:[%s848 + $0x2c] sm:$0x1]
      %v1396 = vsel %vm851, %v1115, %v1395
      %1397 = vst [vmem:[%s848 + $0x2c] sm:$0x1] %v1396
      %v1398 = vld [vmem:[%s848 + $0x30] sm:$0xf]
      %v1399 = vsel %vm1369, %v1122, %v1398
      %1400 = vst [vmem:[%s848 + $0x30] sm:$0xf] %v1399
      %1401 = vst.msk [vmem:[%s848 + $0x34] sm:$0xf] %vm839, %v1131
      %v1402 = vld [vmem:[%s848 + $0x38] sm:$0x1]
      %v1403 = vsel %vm851, %v1132, %v1402
      %1404 = vst [vmem:[%s848 + $0x38] sm:$0x1] %v1403
      %v1405 = vld [vmem:[%s848 + $0x3c] sm:$0xf]
      %v1406 = vsel %vm1369, %v1139, %v1405
      %1407 = vst [vmem:[%s848 + $0x3c] sm:$0xf] %v1406
      %1408 = vst.msk [vmem:[%s848 + $0x40] sm:$0xf] %vm839, %v1148
      %v1409 = vld [vmem:[%s848 + $0x44] sm:$0x1]
      %v1410 = vsel %vm851, %v1149, %v1409
      %1411 = vst [vmem:[%s848 + $0x44] sm:$0x1] %v1410
      %v1412 = vld [vmem:[%s848 + $0x48] sm:$0xf]
      %v1413 = vsel %vm1369, %v1156, %v1412
      %1414 = vst [vmem:[%s848 + $0x48] sm:$0xf] %v1413
      %1415 = vst.msk [vmem:[%s848 + $0x4c] sm:$0xf] %vm839, %v1165
      %v1416 = vld [vmem:[%s848 + $0x50] sm:$0x1]
      %v1417 = vsel %vm851, %v1166, %v1416
      %1418 = vst [vmem:[%s848 + $0x50] sm:$0x1] %v1417
      %v1419 = vld [vmem:[%s848 + $0x54] sm:$0xf]
      %v1420 = vsel %vm1369, %v1173, %v1419
      %1421 = vst [vmem:[%s848 + $0x54] sm:$0xf] %v1420
      %1422 = vst.msk [vmem:[%s848 + $0x58] sm:$0xf] %vm839, %v1182
      %v1423 = vld [vmem:[%s848 + $0x5c] sm:$0x1]
      %v1424 = vsel %vm851, %v1183, %v1423
      %1425 = vst [vmem:[%s848 + $0x5c] sm:$0x1] %v1424
      %v1426 = vld [vmem:[%s848 + $0x60] sm:$0xf]
      %v1427 = vsel %vm1369, %v1190, %v1426
      %1428 = vst [vmem:[%s848 + $0x60] sm:$0xf] %v1427
      %1429 = vst.msk [vmem:[%s848 + $0x64] sm:$0xf] %vm839, %v1199
      %v1430 = vld [vmem:[%s848 + $0x68] sm:$0x1]
      %v1431 = vsel %vm851, %v1200, %v1430
      %1432 = vst [vmem:[%s848 + $0x68] sm:$0x1] %v1431
      %v1433 = vld [vmem:[%s848 + $0x6c] sm:$0xf]
      %v1434 = vsel %vm1369, %v1207, %v1433
      %1435 = vst [vmem:[%s848 + $0x6c] sm:$0xf] %v1434
      %1436 = vst.msk [vmem:[%s848 + $0x70] sm:$0xf] %vm839, %v1216
      %v1437 = vld [vmem:[%s848 + $0x74] sm:$0x1]
      %v1438 = vsel %vm851, %v1217, %v1437
      %1439 = vst [vmem:[%s848 + $0x74] sm:$0x1] %v1438
      %v1440 = vld [vmem:[%s848 + $0x78] sm:$0xf]
      %v1441 = vsel %vm1369, %v1224, %v1440
      %1442 = vst [vmem:[%s848 + $0x78] sm:$0xf] %v1441
      %1443 = vst.msk [vmem:[%s848 + $0x7c] sm:$0xf] %vm839, %v1233
      %v1444 = vld [vmem:[%s848 + $0x80] sm:$0x1]
      %v1445 = vsel %vm851, %v1234, %v1444
      %1446 = vst [vmem:[%s848 + $0x80] sm:$0x1] %v1445
      %v1447 = vld [vmem:[%s848 + $0x84] sm:$0xf]
      %v1448 = vsel %vm1369, %v1241, %v1447
      %1449 = vst [vmem:[%s848 + $0x84] sm:$0xf] %v1448
      %1450 = vst.msk [vmem:[%s848 + $0x88] sm:$0xf] %vm839, %v1250
      %v1451 = vld [vmem:[%s848 + $0x8c] sm:$0x1]
      %v1452 = vsel %vm851, %v1251, %v1451
      %1453 = vst [vmem:[%s848 + $0x8c] sm:$0x1] %v1452
      %v1454 = vld [vmem:[%s848 + $0x90] sm:$0xf]
      %v1455 = vsel %vm1369, %v1258, %v1454
      %1456 = vst [vmem:[%s848 + $0x90] sm:$0xf] %v1455
      %1457 = vst.msk [vmem:[%s848 + $0x94] sm:$0xf] %vm839, %v1267
      %v1458 = vld [vmem:[%s848 + $0x98] sm:$0x1]
      %v1459 = vsel %vm851, %v1268, %v1458
      %1460 = vst [vmem:[%s848 + $0x98] sm:$0x1] %v1459
      %v1461 = vld [vmem:[%s848 + $0x9c] sm:$0xf]
      %v1462 = vsel %vm1369, %v1275, %v1461
      %1463 = vst [vmem:[%s848 + $0x9c] sm:$0xf] %v1462
      %1464 = vst.msk [vmem:[%s848 + $0xa0] sm:$0xf] %vm839, %v1284
      %v1465 = vld [vmem:[%s848 + $0xa4] sm:$0x1]
      %v1466 = vsel %vm851, %v1285, %v1465
      %1467 = vst [vmem:[%s848 + $0xa4] sm:$0x1] %v1466
      %v1468 = vld [vmem:[%s848 + $0xa8] sm:$0xf]
      %v1469 = vsel %vm1369, %v1292, %v1468
      %1470 = vst [vmem:[%s848 + $0xa8] sm:$0xf] %v1469
      %1471 = vst.msk [vmem:[%s848 + $0xac] sm:$0xf] %vm839, %v1301
      %v1472 = vld [vmem:[%s848 + $0xb0] sm:$0x1]
      %v1473 = vsel %vm851, %v1302, %v1472
      %1474 = vst [vmem:[%s848 + $0xb0] sm:$0x1] %v1473
      %v1475 = vld [vmem:[%s848 + $0xb4] sm:$0xf]
      %v1476 = vsel %vm1369, %v1309, %v1475
      %1477 = vst [vmem:[%s848 + $0xb4] sm:$0xf] %v1476
      %1478 = vst.msk [vmem:[%s848 + $0xb8] sm:$0xf] %vm839, %v1318
      %v1479 = vld [vmem:[%s848 + $0xbc] sm:$0x1]
      %v1480 = vsel %vm851, %v1319, %v1479
      %1481 = vst [vmem:[%s848 + $0xbc] sm:$0x1] %v1480
      %v1482 = vld [vmem:[%s401] sm:$0xff]
      %v1483 = vld [vmem:[%s401 + $0x8] sm:$0xff]
      %v1484 = vld [vmem:[%s401 + $0x10] sm:$0xff]
      %v1485 = vld [vmem:[%s401 + $0x18] sm:$0xff]
      %v1486 = vld [vmem:[%s401 + $0x20] sm:$0xff]
      %v1487 = vld [vmem:[%s401 + $0x28] sm:$0xff]
      %v1488 = vld [vmem:[%s401 + $0x30] sm:$0xff]
      %v1489 = vld [vmem:[%s401 + $0x38] sm:$0xff]
      %v1490 = vld [vmem:[%s401 + $0x40] sm:$0xff]
      %v1491 = vld [vmem:[%s401 + $0x48] sm:$0xff]
      %v1492 = vld [vmem:[%s401 + $0x50] sm:$0xff]
      %v1493 = vld [vmem:[%s401 + $0x58] sm:$0xff]
      %v1494 = vld [vmem:[%s401 + $0x60] sm:$0xff]
      %v1495 = vld [vmem:[%s401 + $0x68] sm:$0xff]
      %v1496 = vld [vmem:[%s401 + $0x70] sm:$0xff]
      %v1497 = vld [vmem:[%s401 + $0x78] sm:$0xff]
      %v1498 = vld [vmem:[%s401 + $0x80] sm:$0xff]
      %v1499 = vld [vmem:[%s401 + $0x88] sm:$0xff]
      %v1500 = vld [vmem:[%s401 + $0x90] sm:$0xff]
      %v1501 = vld [vmem:[%s401 + $0x98] sm:$0xff]
      %v1502 = vld [vmem:[%s401 + $0xa0] sm:$0xff]
      %v1503 = vld [vmem:[%s401 + $0xa8] sm:$0xff]
      %v1504 = vld [vmem:[%s401 + $0xb0] sm:$0xff]
      %v1505 = vld [vmem:[%s401 + $0xb8] sm:$0xff]
      %v1506 = vld [vmem:[%s401 + $0xc0] sm:$0xff]
      %v1507 = vld [vmem:[%s401 + $0xc8] sm:$0xff]
      %v1508 = vld [vmem:[%s401 + $0xd0] sm:$0xff]
      %v1509 = vld [vmem:[%s401 + $0xd8] sm:$0xff]
      %v1510 = vld [vmem:[%s401 + $0xe0] sm:$0xff]
      %v1511 = vld [vmem:[%s401 + $0xe8] sm:$0xff]
      %v1512 = vld [vmem:[%s401 + $0xf0] sm:$0xff]
      %v1513 = vld [vmem:[%s401 + $0xf8] sm:$0xff]
      %v1514 = vpack.c.bf16 %v1483, %v1482
      %v1515 = vpack.c.bf16 %v1485, %v1484
      %v1516 = vpack.c.bf16 %v1487, %v1486
      %v1517 = vpack.c.bf16 %v1489, %v1488
      %v1518 = vpack.c.bf16 %v1491, %v1490
      %v1519 = vpack.c.bf16 %v1493, %v1492
      %v1520 = vpack.c.bf16 %v1495, %v1494
      %v1521 = vpack.c.bf16 %v1497, %v1496
      %v1522 = vpack.c.bf16 %v1499, %v1498
      %v1523 = vpack.c.bf16 %v1501, %v1500
      %v1524 = vpack.c.bf16 %v1503, %v1502
      %v1525 = vpack.c.bf16 %v1505, %v1504
      %v1526 = vpack.c.bf16 %v1507, %v1506
      %v1527 = vpack.c.bf16 %v1509, %v1508
      %v1528 = vpack.c.bf16 %v1511, %v1510
      %v1529 = vpack.c.bf16 %v1513, %v1512
      %v1546 = vunpack.c.l.b16 %v1514
      %v1547 = vunpack.c.h.b16 %v1514
      %v1548 = vunpack.c.l.b16 %v1515
      %v1549 = vunpack.c.h.b16 %v1515
      %v1550 = vunpack.c.l.b16 %v1516
      %v1551 = vunpack.c.h.b16 %v1516
      %v1552 = vunpack.c.l.b16 %v1517
      %v1553 = vunpack.c.h.b16 %v1517
      %v1554 = vunpack.c.l.b16 %v1518
      %v1555 = vunpack.c.h.b16 %v1518
      %v1556 = vunpack.c.l.b16 %v1519
      %v1557 = vunpack.c.h.b16 %v1519
      %v1558 = vunpack.c.l.b16 %v1520
      %v1559 = vunpack.c.h.b16 %v1520
      %v1560 = vunpack.c.l.b16 %v1521
      %v1561 = vunpack.c.h.b16 %v1521
      %v1562 = vunpack.c.l.b16 %v1522
      %v1563 = vunpack.c.h.b16 %v1522
      %v1564 = vunpack.c.l.b16 %v1523
      %v1565 = vunpack.c.h.b16 %v1523
      %v1566 = vunpack.c.l.b16 %v1524
      %v1567 = vunpack.c.h.b16 %v1524
      %v1568 = vunpack.c.l.b16 %v1525
      %v1569 = vunpack.c.h.b16 %v1525
      %v1570 = vunpack.c.l.b16 %v1526
      %v1571 = vunpack.c.h.b16 %v1526
      %v1572 = vunpack.c.l.b16 %v1527
      %v1573 = vunpack.c.h.b16 %v1527
      %v1574 = vunpack.c.l.b16 %v1528
      %v1575 = vunpack.c.h.b16 %v1528
      %v1576 = vunpack.c.l.b16 %v1529
      %v1577 = vunpack.c.h.b16 %v1529
      %v1578 = vpack.c.b16 %v1546, %v1546
      %v1579 = vpack.c.b16 %v1547, %v1547
      %v1580 = vpack.c.b16 %v1548, %v1548
      %v1581 = vpack.c.b16 %v1549, %v1549
      %v1582 = vpack.c.b16 %v1550, %v1550
      %v1583 = vpack.c.b16 %v1551, %v1551
      %v1584 = vpack.c.b16 %v1552, %v1552
      %v1585 = vpack.c.b16 %v1553, %v1553
      %v1586 = vpack.c.b16 %v1554, %v1554
      %v1587 = vpack.c.b16 %v1555, %v1555
      %v1588 = vpack.c.b16 %v1556, %v1556
      %v1589 = vpack.c.b16 %v1557, %v1557
      %v1590 = vpack.c.b16 %v1558, %v1558
      %v1591 = vpack.c.b16 %v1559, %v1559
      %v1592 = vpack.c.b16 %v1560, %v1560
      %v1593 = vpack.c.b16 %v1561, %v1561
      %v1594 = vpack.c.b16 %v1562, %v1562
      %v1595 = vpack.c.b16 %v1563, %v1563
      %v1596 = vpack.c.b16 %v1564, %v1564
      %v1597 = vpack.c.b16 %v1565, %v1565
      %v1598 = vpack.c.b16 %v1566, %v1566
      %v1599 = vpack.c.b16 %v1567, %v1567
      %v1600 = vpack.c.b16 %v1568, %v1568
      %v1601 = vpack.c.b16 %v1569, %v1569
      %v1602 = vpack.c.b16 %v1570, %v1570
      %v1603 = vpack.c.b16 %v1571, %v1571
      %v1604 = vpack.c.b16 %v1572, %v1572
      %v1605 = vpack.c.b16 %v1573, %v1573
      %v1606 = vpack.c.b16 %v1574, %v1574
      %v1607 = vpack.c.b16 %v1575, %v1575
      %v1608 = vpack.c.b16 %v1576, %v1576
      %v1609 = vpack.c.b16 %v1577, %v1577
      %v1611 = vshrl.u32 %v1578, 16
      %v1613 = vrot.slane %v1611, 7
      %v1614 = vshll.u32 %v1578, 16
      %v1616 = vor.u32 %v1613, %v1614
      %v1617 = vrot.slane %v1613, 4
      %v1619 = vshrl.u32 %v1579, 16
      %v1621 = vrot.slane %v1619, 7
      %v1622 = vshll.u32 %v1579, 16
      %v1624 = vor.u32 %v1621, %v1622
      %v1625 = vsel %vm1047, %v1617, %v1624
      %v1626 = vrot.slane %v1621, 4
      %v1628 = vshrl.u32 %v1580, 16
      %v1630 = vrot.slane %v1628, 7
      %v1631 = vshll.u32 %v1580, 16
      %v1633 = vor.u32 %v1630, %v1631
      %v1634 = vrot.slane %v1630, 4
      %v1636 = vshrl.u32 %v1581, 16
      %v1638 = vrot.slane %v1636, 7
      %v1639 = vshll.u32 %v1581, 16
      %v1641 = vor.u32 %v1638, %v1639
      %v1642 = vsel %vm1047, %v1634, %v1641
      %v1643 = vrot.slane %v1638, 4
      %v1645 = vshrl.u32 %v1582, 16
      %v1647 = vrot.slane %v1645, 7
      %v1648 = vshll.u32 %v1582, 16
      %v1650 = vor.u32 %v1647, %v1648
      %v1651 = vrot.slane %v1647, 4
      %v1653 = vshrl.u32 %v1583, 16
      %v1655 = vrot.slane %v1653, 7
      %v1656 = vshll.u32 %v1583, 16
      %v1658 = vor.u32 %v1655, %v1656
      %v1659 = vsel %vm1047, %v1651, %v1658
      %v1660 = vrot.slane %v1655, 4
      %v1662 = vshrl.u32 %v1584, 16
      %v1664 = vrot.slane %v1662, 7
      %v1665 = vshll.u32 %v1584, 16
      %v1667 = vor.u32 %v1664, %v1665
      %v1668 = vrot.slane %v1664, 4
      %v1670 = vshrl.u32 %v1585, 16
      %v1672 = vrot.slane %v1670, 7
      %v1673 = vshll.u32 %v1585, 16
      %v1675 = vor.u32 %v1672, %v1673
      %v1676 = vsel %vm1047, %v1668, %v1675
      %v1677 = vrot.slane %v1672, 4
      %v1679 = vshrl.u32 %v1586, 16
      %v1681 = vrot.slane %v1679, 7
      %v1682 = vshll.u32 %v1586, 16
      %v1684 = vor.u32 %v1681, %v1682
      %v1685 = vrot.slane %v1681, 4
      %v1687 = vshrl.u32 %v1587, 16
      %v1689 = vrot.slane %v1687, 7
      %v1690 = vshll.u32 %v1587, 16
      %v1692 = vor.u32 %v1689, %v1690
      %v1693 = vsel %vm1047, %v1685, %v1692
      %v1694 = vrot.slane %v1689, 4
      %v1696 = vshrl.u32 %v1588, 16
      %v1698 = vrot.slane %v1696, 7
      %v1699 = vshll.u32 %v1588, 16
      %v1701 = vor.u32 %v1698, %v1699
      %v1702 = vrot.slane %v1698, 4
      %v1704 = vshrl.u32 %v1589, 16
      %v1706 = vrot.slane %v1704, 7
      %v1707 = vshll.u32 %v1589, 16
      %v1709 = vor.u32 %v1706, %v1707
      %v1710 = vsel %vm1047, %v1702, %v1709
      %v1711 = vrot.slane %v1706, 4
      %v1713 = vshrl.u32 %v1590, 16
      %v1715 = vrot.slane %v1713, 7
      %v1716 = vshll.u32 %v1590, 16
      %v1718 = vor.u32 %v1715, %v1716
      %v1719 = vrot.slane %v1715, 4
      %v1721 = vshrl.u32 %v1591, 16
      %v1723 = vrot.slane %v1721, 7
      %v1724 = vshll.u32 %v1591, 16
      %v1726 = vor.u32 %v1723, %v1724
      %v1727 = vsel %vm1047, %v1719, %v1726
      %v1728 = vrot.slane %v1723, 4
      %v1730 = vshrl.u32 %v1592, 16
      %v1732 = vrot.slane %v1730, 7
      %v1733 = vshll.u32 %v1592, 16
      %v1735 = vor.u32 %v1732, %v1733
      %v1736 = vrot.slane %v1732, 4
      %v1738 = vshrl.u32 %v1593, 16
      %v1740 = vrot.slane %v1738, 7
      %v1741 = vshll.u32 %v1593, 16
      %v1743 = vor.u32 %v1740, %v1741
      %v1744 = vsel %vm1047, %v1736, %v1743
      %v1745 = vrot.slane %v1740, 4
      %v1747 = vshrl.u32 %v1594, 16
      %v1749 = vrot.slane %v1747, 7
      %v1750 = vshll.u32 %v1594, 16
      %v1752 = vor.u32 %v1749, %v1750
      %v1753 = vrot.slane %v1749, 4
      %v1755 = vshrl.u32 %v1595, 16
      %v1757 = vrot.slane %v1755, 7
      %v1758 = vshll.u32 %v1595, 16
      %v1760 = vor.u32 %v1757, %v1758
      %v1761 = vsel %vm1047, %v1753, %v1760
      %v1762 = vrot.slane %v1757, 4
      %v1764 = vshrl.u32 %v1596, 16
      %v1766 = vrot.slane %v1764, 7
      %v1767 = vshll.u32 %v1596, 16
      %v1769 = vor.u32 %v1766, %v1767
      %v1770 = vrot.slane %v1766, 4
      %v1772 = vshrl.u32 %v1597, 16
      %v1774 = vrot.slane %v1772, 7
      %v1775 = vshll.u32 %v1597, 16
      %v1777 = vor.u32 %v1774, %v1775
      %v1778 = vsel %vm1047, %v1770, %v1777
      %v1779 = vrot.slane %v1774, 4
      %v1781 = vshrl.u32 %v1598, 16
      %v1783 = vrot.slane %v1781, 7
      %v1784 = vshll.u32 %v1598, 16
      %v1786 = vor.u32 %v1783, %v1784
      %v1787 = vrot.slane %v1783, 4
      %v1789 = vshrl.u32 %v1599, 16
      %v1791 = vrot.slane %v1789, 7
      %v1792 = vshll.u32 %v1599, 16
      %v1794 = vor.u32 %v1791, %v1792
      %v1795 = vsel %vm1047, %v1787, %v1794
      %v1796 = vrot.slane %v1791, 4
      %v1798 = vshrl.u32 %v1600, 16
      %v1800 = vrot.slane %v1798, 7
      %v1801 = vshll.u32 %v1600, 16
      %v1803 = vor.u32 %v1800, %v1801
      %v1804 = vrot.slane %v1800, 4
      %v1806 = vshrl.u32 %v1601, 16
      %v1808 = vrot.slane %v1806, 7
      %v1809 = vshll.u32 %v1601, 16
      %v1811 = vor.u32 %v1808, %v1809
      %v1812 = vsel %vm1047, %v1804, %v1811
      %v1813 = vrot.slane %v1808, 4
      %v1815 = vshrl.u32 %v1602, 16
      %v1817 = vrot.slane %v1815, 7
      %v1818 = vshll.u32 %v1602, 16
      %v1820 = vor.u32 %v1817, %v1818
      %v1821 = vrot.slane %v1817, 4
      %v1823 = vshrl.u32 %v1603, 16
      %v1825 = vrot.slane %v1823, 7
      %v1826 = vshll.u32 %v1603, 16
      %v1828 = vor.u32 %v1825, %v1826
      %v1829 = vsel %vm1047, %v1821, %v1828
      %v1830 = vrot.slane %v1825, 4
      %v1832 = vshrl.u32 %v1604, 16
      %v1834 = vrot.slane %v1832, 7
      %v1835 = vshll.u32 %v1604, 16
      %v1837 = vor.u32 %v1834, %v1835
      %v1838 = vrot.slane %v1834, 4
      %v1840 = vshrl.u32 %v1605, 16
      %v1842 = vrot.slane %v1840, 7
      %v1843 = vshll.u32 %v1605, 16
      %v1845 = vor.u32 %v1842, %v1843
      %v1846 = vsel %vm1047, %v1838, %v1845
      %v1847 = vrot.slane %v1842, 4
      %v1849 = vshrl.u32 %v1606, 16
      %v1851 = vrot.slane %v1849, 7
      %v1852 = vshll.u32 %v1606, 16
      %v1854 = vor.u32 %v1851, %v1852
      %v1855 = vrot.slane %v1851, 4
      %v1857 = vshrl.u32 %v1607, 16
      %v1859 = vrot.slane %v1857, 7
      %v1860 = vshll.u32 %v1607, 16
      %v1862 = vor.u32 %v1859, %v1860
      %v1863 = vsel %vm1047, %v1855, %v1862
      %v1864 = vrot.slane %v1859, 4
      %v1866 = vshrl.u32 %v1608, 16
      %v1868 = vrot.slane %v1866, 7
      %v1869 = vshll.u32 %v1608, 16
      %v1871 = vor.u32 %v1868, %v1869
      %v1872 = vrot.slane %v1868, 4
      %v1874 = vshrl.u32 %v1609, 16
      %v1876 = vrot.slane %v1874, 7
      %v1877 = vshll.u32 %v1609, 16
      %v1879 = vor.u32 %v1876, %v1877
      %v1880 = vsel %vm1047, %v1872, %v1879
      %v1881 = vrot.slane %v1876, 4
      %vm1930 = vcmask 60416
      %vm1931 = vmand %vm1930, %vm900
      %v1932 = vld [vmem:[%s848] sm:$0xf]
      %v1933 = vsel %vm1931, %v1616, %v1932
      %1934 = vst [vmem:[%s848] sm:$0xf] %v1933
      %vm1935 = vcmask 60416
      %1936 = vst.msk [vmem:[%s848 + $0x4] sm:$0xf] %vm1935, %v1625
      %vm1937 = vcmask 57344
      %vm1938 = vmand %vm1937, %vm850
      %v1939 = vld [vmem:[%s848 + $0x8] sm:$0x1]
      %v1940 = vsel %vm1938, %v1626, %v1939
      %1941 = vst [vmem:[%s848 + $0x8] sm:$0x1] %v1940
      %v1942 = vld [vmem:[%s848 + $0xc] sm:$0xf]
      %v1943 = vsel %vm1931, %v1633, %v1942
      %1944 = vst [vmem:[%s848 + $0xc] sm:$0xf] %v1943
      %1945 = vst.msk [vmem:[%s848 + $0x10] sm:$0xf] %vm1935, %v1642
      %v1946 = vld [vmem:[%s848 + $0x14] sm:$0x1]
      %v1947 = vsel %vm1938, %v1643, %v1946
      %1948 = vst [vmem:[%s848 + $0x14] sm:$0x1] %v1947
      %v1949 = vld [vmem:[%s848 + $0x18] sm:$0xf]
      %v1950 = vsel %vm1931, %v1650, %v1949
      %1951 = vst [vmem:[%s848 + $0x18] sm:$0xf] %v1950
      %1952 = vst.msk [vmem:[%s848 + $0x1c] sm:$0xf] %vm1935, %v1659
      %v1953 = vld [vmem:[%s848 + $0x20] sm:$0x1]
      %v1954 = vsel %vm1938, %v1660, %v1953
      %1955 = vst [vmem:[%s848 + $0x20] sm:$0x1] %v1954
      %v1956 = vld [vmem:[%s848 + $0x24] sm:$0xf]
      %v1957 = vsel %vm1931, %v1667, %v1956
      %1958 = vst [vmem:[%s848 + $0x24] sm:$0xf] %v1957
      %1959 = vst.msk [vmem:[%s848 + $0x28] sm:$0xf] %vm1935, %v1676
      %v1960 = vld [vmem:[%s848 + $0x2c] sm:$0x1]
      %v1961 = vsel %vm1938, %v1677, %v1960
      %1962 = vst [vmem:[%s848 + $0x2c] sm:$0x1] %v1961
      %v1963 = vld [vmem:[%s848 + $0x30] sm:$0xf]
      %v1964 = vsel %vm1931, %v1684, %v1963
      %1965 = vst [vmem:[%s848 + $0x30] sm:$0xf] %v1964
      %1966 = vst.msk [vmem:[%s848 + $0x34] sm:$0xf] %vm1935, %v1693
      %v1967 = vld [vmem:[%s848 + $0x38] sm:$0x1]
      %v1968 = vsel %vm1938, %v1694, %v1967
      %1969 = vst [vmem:[%s848 + $0x38] sm:$0x1] %v1968
      %v1970 = vld [vmem:[%s848 + $0x3c] sm:$0xf]
      %v1971 = vsel %vm1931, %v1701, %v1970
      %1972 = vst [vmem:[%s848 + $0x3c] sm:$0xf] %v1971
      %1973 = vst.msk [vmem:[%s848 + $0x40] sm:$0xf] %vm1935, %v1710
      %v1974 = vld [vmem:[%s848 + $0x44] sm:$0x1]
      %v1975 = vsel %vm1938, %v1711, %v1974
      %1976 = vst [vmem:[%s848 + $0x44] sm:$0x1] %v1975
      %v1977 = vld [vmem:[%s848 + $0x48] sm:$0xf]
      %v1978 = vsel %vm1931, %v1718, %v1977
      %1979 = vst [vmem:[%s848 + $0x48] sm:$0xf] %v1978
      %1980 = vst.msk [vmem:[%s848 + $0x4c] sm:$0xf] %vm1935, %v1727
      %v1981 = vld [vmem:[%s848 + $0x50] sm:$0x1]
      %v1982 = vsel %vm1938, %v1728, %v1981
      %1983 = vst [vmem:[%s848 + $0x50] sm:$0x1] %v1982
      %v1984 = vld [vmem:[%s848 + $0x54] sm:$0xf]
      %v1985 = vsel %vm1931, %v1735, %v1984
      %1986 = vst [vmem:[%s848 + $0x54] sm:$0xf] %v1985
      %1987 = vst.msk [vmem:[%s848 + $0x58] sm:$0xf] %vm1935, %v1744
      %v1988 = vld [vmem:[%s848 + $0x5c] sm:$0x1]
      %v1989 = vsel %vm1938, %v1745, %v1988
      %1990 = vst [vmem:[%s848 + $0x5c] sm:$0x1] %v1989
      %v1991 = vld [vmem:[%s848 + $0x60] sm:$0xf]
      %v1992 = vsel %vm1931, %v1752, %v1991
      %1993 = vst [vmem:[%s848 + $0x60] sm:$0xf] %v1992
      %1994 = vst.msk [vmem:[%s848 + $0x64] sm:$0xf] %vm1935, %v1761
      %v1995 = vld [vmem:[%s848 + $0x68] sm:$0x1]
      %v1996 = vsel %vm1938, %v1762, %v1995
      %1997 = vst [vmem:[%s848 + $0x68] sm:$0x1] %v1996
      %v1998 = vld [vmem:[%s848 + $0x6c] sm:$0xf]
      %v1999 = vsel %vm1931, %v1769, %v1998
      %2000 = vst [vmem:[%s848 + $0x6c] sm:$0xf] %v1999
      %2001 = vst.msk [vmem:[%s848 + $0x70] sm:$0xf] %vm1935, %v1778
      %v2002 = vld [vmem:[%s848 + $0x74] sm:$0x1]
      %v2003 = vsel %vm1938, %v1779, %v2002
      %2004 = vst [vmem:[%s848 + $0x74] sm:$0x1] %v2003
      %v2005 = vld [vmem:[%s848 + $0x78] sm:$0xf]
      %v2006 = vsel %vm1931, %v1786, %v2005
      %2007 = vst [vmem:[%s848 + $0x78] sm:$0xf] %v2006
      %2008 = vst.msk [vmem:[%s848 + $0x7c] sm:$0xf] %vm1935, %v1795
      %v2009 = vld [vmem:[%s848 + $0x80] sm:$0x1]
      %v2010 = vsel %vm1938, %v1796, %v2009
      %2011 = vst [vmem:[%s848 + $0x80] sm:$0x1] %v2010
      %v2012 = vld [vmem:[%s848 + $0x84] sm:$0xf]
      %v2013 = vsel %vm1931, %v1803, %v2012
      %2014 = vst [vmem:[%s848 + $0x84] sm:$0xf] %v2013
      %2015 = vst.msk [vmem:[%s848 + $0x88] sm:$0xf] %vm1935, %v1812
      %v2016 = vld [vmem:[%s848 + $0x8c] sm:$0x1]
      %v2017 = vsel %vm1938, %v1813, %v2016
      %2018 = vst [vmem:[%s848 + $0x8c] sm:$0x1] %v2017
      %v2019 = vld [vmem:[%s848 + $0x90] sm:$0xf]
      %v2020 = vsel %vm1931, %v1820, %v2019
      %2021 = vst [vmem:[%s848 + $0x90] sm:$0xf] %v2020
      %2022 = vst.msk [vmem:[%s848 + $0x94] sm:$0xf] %vm1935, %v1829
      %v2023 = vld [vmem:[%s848 + $0x98] sm:$0x1]
      %v2024 = vsel %vm1938, %v1830, %v2023
      %2025 = vst [vmem:[%s848 + $0x98] sm:$0x1] %v2024
      %v2026 = vld [vmem:[%s848 + $0x9c] sm:$0xf]
      %v2027 = vsel %vm1931, %v1837, %v2026
      %2028 = vst [vmem:[%s848 + $0x9c] sm:$0xf] %v2027
      %2029 = vst.msk [vmem:[%s848 + $0xa0] sm:$0xf] %vm1935, %v1846
      %v2030 = vld [vmem:[%s848 + $0xa4] sm:$0x1]
      %v2031 = vsel %vm1938, %v1847, %v2030
      %2032 = vst [vmem:[%s848 + $0xa4] sm:$0x1] %v2031
      %v2033 = vld [vmem:[%s848 + $0xa8] sm:$0xf]
      %v2034 = vsel %vm1931, %v1854, %v2033
      %2035 = vst [vmem:[%s848 + $0xa8] sm:$0xf] %v2034
      %2036 = vst.msk [vmem:[%s848 + $0xac] sm:$0xf] %vm1935, %v1863
      %v2037 = vld [vmem:[%s848 + $0xb0] sm:$0x1]
      %v2038 = vsel %vm1938, %v1864, %v2037
      %2039 = vst [vmem:[%s848 + $0xb0] sm:$0x1] %v2038
      %v2040 = vld [vmem:[%s848 + $0xb4] sm:$0xf]
      %v2041 = vsel %vm1931, %v1871, %v2040
      %2042 = vst [vmem:[%s848 + $0xb4] sm:$0xf] %v2041
      %2043 = vst.msk [vmem:[%s848 + $0xb8] sm:$0xf] %vm1935, %v1880
      %v2044 = vld [vmem:[%s848 + $0xbc] sm:$0x1]
      %v2045 = vsel %vm1938, %v1881, %v2044
      %2046 = vst [vmem:[%s848 + $0xbc] sm:$0x1] %v2045
      %v2047 = vld [vmem:[#allocation2] sm:$0xf]
      %v2048 = vld [vmem:[#allocation2 + $0x4] sm:$0xf]
      %v2049 = vld [vmem:[#allocation2 + $0xc] sm:$0xf]
      %v2050 = vld [vmem:[#allocation2 + $0x10] sm:$0xf]
      %v2051 = vld [vmem:[#allocation2 + $0x18] sm:$0xf]
      %v2052 = vld [vmem:[#allocation2 + $0x1c] sm:$0xf]
      %v2053 = vld [vmem:[#allocation2 + $0x24] sm:$0xf]
      %v2054 = vld [vmem:[#allocation2 + $0x28] sm:$0xf]
      %v2055 = vld [vmem:[#allocation2 + $0x30] sm:$0xf]
      %v2056 = vld [vmem:[#allocation2 + $0x34] sm:$0xf]
      %v2057 = vld [vmem:[#allocation2 + $0x3c] sm:$0xf]
      %v2058 = vld [vmem:[#allocation2 + $0x40] sm:$0xf]
      %v2059 = vld [vmem:[#allocation2 + $0x48] sm:$0xf]
      %v2060 = vld [vmem:[#allocation2 + $0x4c] sm:$0xf]
      %v2061 = vld [vmem:[#allocation2 + $0x54] sm:$0xf]
      %v2062 = vld [vmem:[#allocation2 + $0x58] sm:$0xf]
      %v2063 = vld [vmem:[#allocation2 + $0x60] sm:$0xf]
      %v2064 = vld [vmem:[#allocation2 + $0x64] sm:$0xf]
      %v2065 = vld [vmem:[#allocation2 + $0x6c] sm:$0xf]
      %v2066 = vld [vmem:[#allocation2 + $0x70] sm:$0xf]
      %v2067 = vld [vmem:[#allocation2 + $0x78] sm:$0xf]
      %v2068 = vld [vmem:[#allocation2 + $0x7c] sm:$0xf]
      %v2069 = vld [vmem:[#allocation2 + $0x84] sm:$0xf]
      %v2070 = vld [vmem:[#allocation2 + $0x88] sm:$0xf]
      %v2071 = vld [vmem:[#allocation2 + $0x90] sm:$0xf]
      %v2072 = vld [vmem:[#allocation2 + $0x94] sm:$0xf]
      %v2073 = vld [vmem:[#allocation2 + $0x9c] sm:$0xf]
      %v2074 = vld [vmem:[#allocation2 + $0xa0] sm:$0xf]
      %v2075 = vld [vmem:[#allocation2 + $0xa8] sm:$0xf]
      %v2076 = vld [vmem:[#allocation2 + $0xac] sm:$0xf]
      %v2077 = vld [vmem:[#allocation2 + $0xb4] sm:$0xf]
      %v2078 = vld [vmem:[#allocation2 + $0xb8] sm:$0xf]
      %v2079 = vld [vmem:[%s5] sm:$0xf]
      %v2080 = vld [vmem:[%s5 + $0x4] sm:$0xf]
      %v2081 = vld [vmem:[#allocation2 + $0x8] sm:$0x1]
      %v2082 = vld [vmem:[#allocation2 + $0x14] sm:$0x1]
      %v2083 = vld [vmem:[#allocation2 + $0x20] sm:$0x1]
      %v2084 = vld [vmem:[#allocation2 + $0x2c] sm:$0x1]
      %v2085 = vld [vmem:[#allocation2 + $0x38] sm:$0x1]
      %v2086 = vld [vmem:[#allocation2 + $0x44] sm:$0x1]
      %v2087 = vld [vmem:[#allocation2 + $0x50] sm:$0x1]
      %v2088 = vld [vmem:[#allocation2 + $0x5c] sm:$0x1]
      %v2089 = vld [vmem:[#allocation2 + $0x68] sm:$0x1]
      %v2090 = vld [vmem:[#allocation2 + $0x74] sm:$0x1]
      %v2091 = vld [vmem:[#allocation2 + $0x80] sm:$0x1]
      %v2092 = vld [vmem:[#allocation2 + $0x8c] sm:$0x1]
      %v2093 = vld [vmem:[#allocation2 + $0x98] sm:$0x1]
      %v2094 = vld [vmem:[#allocation2 + $0xa4] sm:$0x1]
      %v2095 = vld [vmem:[#allocation2 + $0xb0] sm:$0x1]
      %v2096 = vld [vmem:[#allocation2 + $0xbc] sm:$0x1]
      %vm2097 = vsmask.f32 3328
      %vm2098 = vsmask.f32 7440
      %vm2099 = vmor %vm2097, %vm2098
      %v2101 = vshrl.u32 %v2047, 16
      %v2103 = vrot.slane %v2101, 4
      %v2104 = vshll.u32 %v2047, 16
      %v2106 = vrot.slane %v2104, 5
      %v2107 = vor.u32 %v2103, %v2106
      %v2108 = vrot.slane %v2107, 4
      %v2110 = vshll.u32 %v2048, 16
      %v2112 = vrot.slane %v2110, 5
      %v2113 = vsel %vm2099, %v2108, %v2112
      %v2114 = vshrl.u32 %v2048, 16
      %v2116 = vrot.slane %v2114, 4
      %v2117 = vor.u32 %v2116, %v2112
      %v2118 = vrot.slane %v2117, 4
      %v2120 = vshll.u32 %v2081, 16
      %v2122 = vrot.slane %v2120, 5
      %v2123 = vsel %vm2099, %v2118, %v2122
      %v2125 = vshrl.u32 %v2049, 16
      %v2127 = vrot.slane %v2125, 4
      %v2128 = vshll.u32 %v2049, 16
      %v2130 = vrot.slane %v2128, 5
      %v2131 = vor.u32 %v2127, %v2130
      %v2132 = vrot.slane %v2131, 4
      %v2134 = vshll.u32 %v2050, 16
      %v2136 = vrot.slane %v2134, 5
      %v2137 = vsel %vm2099, %v2132, %v2136
      %v2138 = vshrl.u32 %v2050, 16
      %v2140 = vrot.slane %v2138, 4
      %v2141 = vor.u32 %v2140, %v2136
      %v2142 = vrot.slane %v2141, 4
      %v2144 = vshll.u32 %v2082, 16
      %v2146 = vrot.slane %v2144, 5
      %v2147 = vsel %vm2099, %v2142, %v2146
      %v2149 = vshrl.u32 %v2051, 16
      %v2151 = vrot.slane %v2149, 4
      %v2152 = vshll.u32 %v2051, 16
      %v2154 = vrot.slane %v2152, 5
      %v2155 = vor.u32 %v2151, %v2154
      %v2156 = vrot.slane %v2155, 4
      %v2158 = vshll.u32 %v2052, 16
      %v2160 = vrot.slane %v2158, 5
      %v2161 = vsel %vm2099, %v2156, %v2160
      %v2162 = vshrl.u32 %v2052, 16
      %v2164 = vrot.slane %v2162, 4
      %v2165 = vor.u32 %v2164, %v2160
      %v2166 = vrot.slane %v2165, 4
      %v2168 = vshll.u32 %v2083, 16
      %v2170 = vrot.slane %v2168, 5
      %v2171 = vsel %vm2099, %v2166, %v2170
      %v2173 = vshrl.u32 %v2053, 16
      %v2175 = vrot.slane %v2173, 4
      %v2176 = vshll.u32 %v2053, 16
      %v2178 = vrot.slane %v2176, 5
      %v2179 = vor.u32 %v2175, %v2178
      %v2180 = vrot.slane %v2179, 4
      %v2182 = vshll.u32 %v2054, 16
      %v2184 = vrot.slane %v2182, 5
      %v2185 = vsel %vm2099, %v2180, %v2184
      %v2186 = vshrl.u32 %v2054, 16
      %v2188 = vrot.slane %v2186, 4
      %v2189 = vor.u32 %v2188, %v2184
      %v2190 = vrot.slane %v2189, 4
      %v2192 = vshll.u32 %v2084, 16
      %v2194 = vrot.slane %v2192, 5
      %v2195 = vsel %vm2099, %v2190, %v2194
      %v2197 = vshrl.u32 %v2055, 16
      %v2199 = vrot.slane %v2197, 4
      %v2200 = vshll.u32 %v2055, 16
      %v2202 = vrot.slane %v2200, 5
      %v2203 = vor.u32 %v2199, %v2202
      %v2204 = vrot.slane %v2203, 4
      %v2206 = vshll.u32 %v2056, 16
      %v2208 = vrot.slane %v2206, 5
      %v2209 = vsel %vm2099, %v2204, %v2208
      %v2210 = vshrl.u32 %v2056, 16
      %v2212 = vrot.slane %v2210, 4
      %v2213 = vor.u32 %v2212, %v2208
      %v2214 = vrot.slane %v2213, 4
      %v2216 = vshll.u32 %v2085, 16
      %v2218 = vrot.slane %v2216, 5
      %v2219 = vsel %vm2099, %v2214, %v2218
      %v2221 = vshrl.u32 %v2057, 16
      %v2223 = vrot.slane %v2221, 4
      %v2224 = vshll.u32 %v2057, 16
      %v2226 = vrot.slane %v2224, 5
      %v2227 = vor.u32 %v2223, %v2226
      %v2228 = vrot.slane %v2227, 4
      %v2230 = vshll.u32 %v2058, 16
      %v2232 = vrot.slane %v2230, 5
      %v2233 = vsel %vm2099, %v2228, %v2232
      %v2234 = vshrl.u32 %v2058, 16
      %v2236 = vrot.slane %v2234, 4
      %v2237 = vor.u32 %v2236, %v2232
      %v2238 = vrot.slane %v2237, 4
      %v2240 = vshll.u32 %v2086, 16
      %v2242 = vrot.slane %v2240, 5
      %v2243 = vsel %vm2099, %v2238, %v2242
      %v2245 = vshrl.u32 %v2059, 16
      %v2247 = vrot.slane %v2245, 4
      %v2248 = vshll.u32 %v2059, 16
      %v2250 = vrot.slane %v2248, 5
      %v2251 = vor.u32 %v2247, %v2250
      %v2252 = vrot.slane %v2251, 4
      %v2254 = vshll.u32 %v2060, 16
      %v2256 = vrot.slane %v2254, 5
      %v2257 = vsel %vm2099, %v2252, %v2256
      %v2258 = vshrl.u32 %v2060, 16
      %v2260 = vrot.slane %v2258, 4
      %v2261 = vor.u32 %v2260, %v2256
      %v2262 = vrot.slane %v2261, 4
      %v2264 = vshll.u32 %v2087, 16
      %v2266 = vrot.slane %v2264, 5
      %v2267 = vsel %vm2099, %v2262, %v2266
      %v2269 = vshrl.u32 %v2061, 16
      %v2271 = vrot.slane %v2269, 4
      %v2272 = vshll.u32 %v2061, 16
      %v2274 = vrot.slane %v2272, 5
      %v2275 = vor.u32 %v2271, %v2274
      %v2276 = vrot.slane %v2275, 4
      %v2278 = vshll.u32 %v2062, 16
      %v2280 = vrot.slane %v2278, 5
      %v2281 = vsel %vm2099, %v2276, %v2280
      %v2282 = vshrl.u32 %v2062, 16
      %v2284 = vrot.slane %v2282, 4
      %v2285 = vor.u32 %v2284, %v2280
      %v2286 = vrot.slane %v2285, 4
      %v2288 = vshll.u32 %v2088, 16
      %v2290 = vrot.slane %v2288, 5
      %v2291 = vsel %vm2099, %v2286, %v2290
      %v2293 = vshrl.u32 %v2063, 16
      %v2295 = vrot.slane %v2293, 4
      %v2296 = vshll.u32 %v2063, 16
      %v2298 = vrot.slane %v2296, 5
      %v2299 = vor.u32 %v2295, %v2298
      %v2300 = vrot.slane %v2299, 4
      %v2302 = vshll.u32 %v2064, 16
      %v2304 = vrot.slane %v2302, 5
      %v2305 = vsel %vm2099, %v2300, %v2304
      %v2306 = vshrl.u32 %v2064, 16
      %v2308 = vrot.slane %v2306, 4
      %v2309 = vor.u32 %v2308, %v2304
      %v2310 = vrot.slane %v2309, 4
      %v2312 = vshll.u32 %v2089, 16
      %v2314 = vrot.slane %v2312, 5
      %v2315 = vsel %vm2099, %v2310, %v2314
      %v2317 = vshrl.u32 %v2065, 16
      %v2319 = vrot.slane %v2317, 4
      %v2320 = vshll.u32 %v2065, 16
      %v2322 = vrot.slane %v2320, 5
      %v2323 = vor.u32 %v2319, %v2322
      %v2324 = vrot.slane %v2323, 4
      %v2326 = vshll.u32 %v2066, 16
      %v2328 = vrot.slane %v2326, 5
      %v2329 = vsel %vm2099, %v2324, %v2328
      %v2330 = vshrl.u32 %v2066, 16
      %v2332 = vrot.slane %v2330, 4
      %v2333 = vor.u32 %v2332, %v2328
      %v2334 = vrot.slane %v2333, 4
      %v2336 = vshll.u32 %v2090, 16
      %v2338 = vrot.slane %v2336, 5
      %v2339 = vsel %vm2099, %v2334, %v2338
      %v2341 = vshrl.u32 %v2067, 16
      %v2343 = vrot.slane %v2341, 4
      %v2344 = vshll.u32 %v2067, 16
      %v2346 = vrot.slane %v2344, 5
      %v2347 = vor.u32 %v2343, %v2346
      %v2348 = vrot.slane %v2347, 4
      %v2350 = vshll.u32 %v2068, 16
      %v2352 = vrot.slane %v2350, 5
      %v2353 = vsel %vm2099, %v2348, %v2352
      %v2354 = vshrl.u32 %v2068, 16
      %v2356 = vrot.slane %v2354, 4
      %v2357 = vor.u32 %v2356, %v2352
      %v2358 = vrot.slane %v2357, 4
      %v2360 = vshll.u32 %v2091, 16
      %v2362 = vrot.slane %v2360, 5
      %v2363 = vsel %vm2099, %v2358, %v2362
      %v2365 = vshrl.u32 %v2069, 16
      %v2367 = vrot.slane %v2365, 4
      %v2368 = vshll.u32 %v2069, 16
      %v2370 = vrot.slane %v2368, 5
      %v2371 = vor.u32 %v2367, %v2370
      %v2372 = vrot.slane %v2371, 4
      %v2374 = vshll.u32 %v2070, 16
      %v2376 = vrot.slane %v2374, 5
      %v2377 = vsel %vm2099, %v2372, %v2376
      %v2378 = vshrl.u32 %v2070, 16
      %v2380 = vrot.slane %v2378, 4
      %v2381 = vor.u32 %v2380, %v2376
      %v2382 = vrot.slane %v2381, 4
      %v2384 = vshll.u32 %v2092, 16
      %v2386 = vrot.slane %v2384, 5
      %v2387 = vsel %vm2099, %v2382, %v2386
      %v2389 = vshrl.u32 %v2071, 16
      %v2391 = vrot.slane %v2389, 4
      %v2392 = vshll.u32 %v2071, 16
      %v2394 = vrot.slane %v2392, 5
      %v2395 = vor.u32 %v2391, %v2394
      %v2396 = vrot.slane %v2395, 4
      %v2398 = vshll.u32 %v2072, 16
      %v2400 = vrot.slane %v2398, 5
      %v2401 = vsel %vm2099, %v2396, %v2400
      %v2402 = vshrl.u32 %v2072, 16
      %v2404 = vrot.slane %v2402, 4
      %v2405 = vor.u32 %v2404, %v2400
      %v2406 = vrot.slane %v2405, 4
      %v2408 = vshll.u32 %v2093, 16
      %v2410 = vrot.slane %v2408, 5
      %v2411 = vsel %vm2099, %v2406, %v2410
      %v2413 = vshrl.u32 %v2073, 16
      %v2415 = vrot.slane %v2413, 4
      %v2416 = vshll.u32 %v2073, 16
      %v2418 = vrot.slane %v2416, 5
      %v2419 = vor.u32 %v2415, %v2418
      %v2420 = vrot.slane %v2419, 4
      %v2422 = vshll.u32 %v2074, 16
      %v2424 = vrot.slane %v2422, 5
      %v2425 = vsel %vm2099, %v2420, %v2424
      %v2426 = vshrl.u32 %v2074, 16
      %v2428 = vrot.slane %v2426, 4
      %v2429 = vor.u32 %v2428, %v2424
      %v2430 = vrot.slane %v2429, 4
      %v2432 = vshll.u32 %v2094, 16
      %v2434 = vrot.slane %v2432, 5
      %v2435 = vsel %vm2099, %v2430, %v2434
      %v2437 = vshrl.u32 %v2075, 16
      %v2439 = vrot.slane %v2437, 4
      %v2440 = vshll.u32 %v2075, 16
      %v2442 = vrot.slane %v2440, 5
      %v2443 = vor.u32 %v2439, %v2442
      %v2444 = vrot.slane %v2443, 4
      %v2446 = vshll.u32 %v2076, 16
      %v2448 = vrot.slane %v2446, 5
      %v2449 = vsel %vm2099, %v2444, %v2448
      %v2450 = vshrl.u32 %v2076, 16
      %v2452 = vrot.slane %v2450, 4
      %v2453 = vor.u32 %v2452, %v2448
      %v2454 = vrot.slane %v2453, 4
      %v2456 = vshll.u32 %v2095, 16
      %v2458 = vrot.slane %v2456, 5
      %v2459 = vsel %vm2099, %v2454, %v2458
      %v2461 = vshrl.u32 %v2077, 16
      %v2463 = vrot.slane %v2461, 4
      %v2464 = vshll.u32 %v2077, 16
      %v2466 = vrot.slane %v2464, 5
      %v2467 = vor.u32 %v2463, %v2466
      %v2468 = vrot.slane %v2467, 4
      %v2470 = vshll.u32 %v2078, 16
      %v2472 = vrot.slane %v2470, 5
      %v2473 = vsel %vm2099, %v2468, %v2472
      %v2474 = vshrl.u32 %v2078, 16
      %v2476 = vrot.slane %v2474, 4
      %v2477 = vor.u32 %v2476, %v2472
      %v2478 = vrot.slane %v2477, 4
      %v2480 = vshll.u32 %v2096, 16
      %v2482 = vrot.slane %v2480, 5
      %v2483 = vsel %vm2099, %v2478, %v2482
      %v2484 = vld [vmem:[%s5 + $0x8] sm:$0xf]
      %v2485 = vld [vmem:[%s5 + $0xc] sm:$0xf]
      %v2486 = vunpack.c.l.b16 %v2113
      %v2487 = vunpack.c.l.b16 %v2123
      %v2488 = vunpack.c.l.b16 %v2137
      %v2489 = vunpack.c.l.b16 %v2147
      %v2490 = vunpack.c.l.b16 %v2161
      %v2491 = vunpack.c.l.b16 %v2171
      %v2492 = vunpack.c.l.b16 %v2185
      %v2493 = vunpack.c.l.b16 %v2195
      %v2494 = vunpack.c.l.b16 %v2209
      %v2495 = vunpack.c.l.b16 %v2219
      %v2496 = vunpack.c.l.b16 %v2233
      %v2497 = vunpack.c.l.b16 %v2243
      %v2498 = vunpack.c.l.b16 %v2257
      %v2499 = vunpack.c.l.b16 %v2267
      %v2500 = vunpack.c.l.b16 %v2281
      %v2501 = vunpack.c.l.b16 %v2291
      %v2502 = vunpack.c.l.b16 %v2305
      %v2503 = vunpack.c.l.b16 %v2315
      %v2504 = vunpack.c.l.b16 %v2329
      %v2505 = vunpack.c.l.b16 %v2339
      %v2506 = vunpack.c.l.b16 %v2353
      %v2507 = vunpack.c.l.b16 %v2363
      %v2508 = vunpack.c.l.b16 %v2377
      %v2509 = vunpack.c.l.b16 %v2387
      %v2510 = vunpack.c.l.b16 %v2401
      %v2511 = vunpack.c.l.b16 %v2411
      %v2512 = vunpack.c.l.b16 %v2425
      %v2513 = vunpack.c.l.b16 %v2435
      %v2514 = vunpack.c.l.b16 %v2449
      %v2515 = vunpack.c.l.b16 %v2459
      %v2516 = vunpack.c.l.b16 %v2473
      %v2517 = vunpack.c.l.b16 %v2483
      %v2518 = vpack.c.b16 %v2487, %v2486
      %v2519 = vpack.c.b16 %v2489, %v2488
      %v2520 = vpack.c.b16 %v2491, %v2490
      %v2521 = vpack.c.b16 %v2493, %v2492
      %v2522 = vpack.c.b16 %v2495, %v2494
      %v2523 = vpack.c.b16 %v2497, %v2496
      %v2524 = vpack.c.b16 %v2499, %v2498
      %v2525 = vpack.c.b16 %v2501, %v2500
      %v2526 = vpack.c.b16 %v2503, %v2502
      %v2527 = vpack.c.b16 %v2505, %v2504
      %v2528 = vpack.c.b16 %v2507, %v2506
      %v2529 = vpack.c.b16 %v2509, %v2508
      %v2530 = vpack.c.b16 %v2511, %v2510
      %v2531 = vpack.c.b16 %v2513, %v2512
      %v2532 = vpack.c.b16 %v2515, %v2514
      %v2533 = vpack.c.b16 %v2517, %v2516
      %v2536 = vunpack.c.l.b16 %v2484
      %v2537 = vunpack.c.l.b16 %v2485
      %v2538 = vpack.c.b16 %v2537, %v2536
      %v2541 = vsel %vm435, %v2518, 0
      %v2544 = vsel %vm435, %v2519, 0
      %v2547 = vsel %vm435, %v2520, 0
      %v2550 = vsel %vm435, %v2521, 0
      %v2553 = vsel %vm435, %v2522, 0
      %v2556 = vsel %vm435, %v2523, 0
      %v2559 = vsel %vm435, %v2524, 0
      %v2562 = vsel %vm435, %v2525, 0
      %v2565 = vsel %vm435, %v2526, 0
      %v2568 = vsel %vm435, %v2527, 0
      %v2571 = vsel %vm435, %v2528, 0
      %v2574 = vsel %vm435, %v2529, 0
      %v2577 = vsel %vm435, %v2530, 0
      %v2580 = vsel %vm435, %v2531, 0
      %v2583 = vsel %vm435, %v2532, 0
      %v2586 = vsel %vm435, %v2533, 0
      %2588 = vmatprep.subr.bf16.mxu0 0
      %2589 = vmatpush1.bf16.msra.mxu0 %v2538
      %2590 = vmatprep.subr.bf16.mxu0 0
      %2591 = vmatpush1.bf16.msra.mxu0 0
      %2592 = vmatprep.subr.bf16.mxu0 0
      %2593 = vmatpush1.bf16.msra.mxu0 0
      %2594 = vmatprep.subr.bf16.mxu0 0
      %2595 = vmatpush1.bf16.msra.mxu0 0
      %2596 = vmatprep.subr.bf16.mxu0 0
      %2597 = vmatpush1.bf16.msra.mxu0 0
      %2598 = vmatprep.subr.bf16.mxu0 0
      %2599 = vmatpush1.bf16.msra.mxu0 0
      %2600 = vmatprep.subr.bf16.mxu0 0
      %2601 = vmatpush1.bf16.msra.mxu0 0
      %2602 = vmatprep.subr.bf16.mxu0 0
      %2603 = vmatpush1.bf16.msra.mxu0 0
      %2604 = vmatprep.subr.bf16.mxu0 0
      %2605 = vmatpush1.bf16.msra.mxu0 0
      %2606 = vmatprep.subr.bf16.mxu0 0
      %2607 = vmatpush1.bf16.msra.mxu0 0
      %2608 = vmatprep.subr.bf16.mxu0 0
      %2609 = vmatpush1.bf16.msra.mxu0 0
      %2610 = vmatprep.subr.bf16.mxu0 0
      %2611 = vmatpush1.bf16.msra.mxu0 0
      %2612 = vmatprep.subr.bf16.mxu0 0
      %2613 = vmatpush1.bf16.msra.mxu0 0
      %2614 = vmatprep.subr.bf16.mxu0 0
      %2615 = vmatpush1.bf16.msra.mxu0 0
      %2616 = vmatprep.subr.bf16.mxu0 0
      %2617 = vmatpush1.bf16.msra.mxu0 0
      %2618 = vmatprep.subr.bf16.mxu0 0
      %2619 = vmatpush1.bf16.msra.mxu0 0
      %2620 = vmatprep.mubr.bf16.mxu0 0
      %2621 = vmatmul.mubr.bf16.gmra.mrb[0].mxu0 %v2541
      %v2622 = vpop.f32.mrb[0].mxu0
      %v2623 = vadd.f32 0.0, %v2622
      %v2624 = vpop.f32.mrb[0].mxu0
      %v2625 = vpop.f32.mrb[0].mxu0
      %v2626 = vadd.f32 0.0, %v2625
      %v2627 = vpop.f32.mrb[0].mxu0
      %2628 = vmatprep.mubr.bf16.mxu0 0
      %2629 = vmatmul.mubr.bf16.gmra.mrb[0].mxu0 %v2544
      %v2630 = vpop.f32.mrb[0].mxu0
      %v2631 = vadd.f32 0.0, %v2630
      %v2632 = vpop.f32.mrb[0].mxu0
      %v2633 = vpop.f32.mrb[0].mxu0
      %v2634 = vadd.f32 0.0, %v2633
      %v2635 = vpop.f32.mrb[0].mxu0
      %2636 = vmatprep.mubr.bf16.mxu0 0
      %2637 = vmatmul.mubr.bf16.gmra.mrb[0].mxu0 %v2547
      %v2638 = vpop.f32.mrb[0].mxu0
      %v2639 = vadd.f32 0.0, %v2638
      %v2640 = vpop.f32.mrb[0].mxu0
      %v2641 = vpop.f32.mrb[0].mxu0
      %v2642 = vadd.f32 0.0, %v2641
      %v2643 = vpop.f32.mrb[0].mxu0
      %2644 = vmatprep.mubr.bf16.mxu0 0
      %2645 = vmatmul.mubr.bf16.gmra.mrb[0].mxu0 %v2550
      %v2646 = vpop.f32.mrb[0].mxu0
      %v2647 = vadd.f32 0.0, %v2646
      %v2648 = vpop.f32.mrb[0].mxu0
      %v2649 = vpop.f32.mrb[0].mxu0
      %v2650 = vadd.f32 0.0, %v2649
      %v2651 = vpop.f32.mrb[0].mxu0
      %2652 = vmatprep.mubr.bf16.mxu0 0
      %2653 = vmatmul.mubr.bf16.gmra.mrb[0].mxu0 %v2553
      %v2654 = vpop.f32.mrb[0].mxu0
      %v2655 = vadd.f32 0.0, %v2654
      %v2656 = vpop.f32.mrb[0].mxu0
      %v2657 = vpop.f32.mrb[0].mxu0
      %v2658 = vadd.f32 0.0, %v2657
      %v2659 = vpop.f32.mrb[0].mxu0
      %2660 = vmatprep.mubr.bf16.mxu0 0
      %2661 = vmatmul.mubr.bf16.gmra.mrb[0].mxu0 %v2556
      %v2662 = vpop.f32.mrb[0].mxu0
      %v2663 = vadd.f32 0.0, %v2662
      %v2664 = vpop.f32.mrb[0].mxu0
      %v2665 = vpop.f32.mrb[0].mxu0
      %v2666 = vadd.f32 0.0, %v2665
      %v2667 = vpop.f32.mrb[0].mxu0
      %2668 = vmatprep.mubr.bf16.mxu0 0
      %2669 = vmatmul.mubr.bf16.gmra.mrb[0].mxu0 %v2559
      %v2670 = vpop.f32.mrb[0].mxu0
      %v2671 = vadd.f32 0.0, %v2670
      %v2672 = vpop.f32.mrb[0].mxu0
      %v2673 = vpop.f32.mrb[0].mxu0
      %v2674 = vadd.f32 0.0, %v2673
      %v2675 = vpop.f32.mrb[0].mxu0
      %2676 = vmatprep.mubr.bf16.mxu0 0
      %2677 = vmatmul.mubr.bf16.gmra.mrb[0].mxu0 %v2562
      %v2678 = vpop.f32.mrb[0].mxu0
      %v2679 = vadd.f32 0.0, %v2678
      %v2680 = vpop.f32.mrb[0].mxu0
      %v2681 = vpop.f32.mrb[0].mxu0
      %v2682 = vadd.f32 0.0, %v2681
      %v2683 = vpop.f32.mrb[0].mxu0
      %2684 = vmatprep.mubr.bf16.mxu0 0
      %2685 = vmatmul.mubr.bf16.gmra.mrb[0].mxu0 %v2565
      %v2686 = vpop.f32.mrb[0].mxu0
      %v2687 = vadd.f32 0.0, %v2686
      %v2688 = vpop.f32.mrb[0].mxu0
      %v2689 = vpop.f32.mrb[0].mxu0
      %v2690 = vadd.f32 0.0, %v2689
      %v2691 = vpop.f32.mrb[0].mxu0
      %2692 = vmatprep.mubr.bf16.mxu0 0
      %2693 = vmatmul.mubr.bf16.gmra.mrb[0].mxu0 %v2568
      %v2694 = vpop.f32.mrb[0].mxu0
      %v2695 = vadd.f32 0.0, %v2694
      %v2696 = vpop.f32.mrb[0].mxu0
      %v2697 = vpop.f32.mrb[0].mxu0
      %v2698 = vadd.f32 0.0, %v2697
      %v2699 = vpop.f32.mrb[0].mxu0
      %2700 = vmatprep.mubr.bf16.mxu0 0
      %2701 = vmatmul.mubr.bf16.gmra.mrb[0].mxu0 %v2571
      %v2702 = vpop.f32.mrb[0].mxu0
      %v2703 = vadd.f32 0.0, %v2702
      %v2704 = vpop.f32.mrb[0].mxu0
      %v2705 = vpop.f32.mrb[0].mxu0
      %v2706 = vadd.f32 0.0, %v2705
      %v2707 = vpop.f32.mrb[0].mxu0
      %2708 = vmatprep.mubr.bf16.mxu0 0
      %2709 = vmatmul.mubr.bf16.gmra.mrb[0].mxu0 %v2574
      %v2710 = vpop.f32.mrb[0].mxu0
      %v2711 = vadd.f32 0.0, %v2710
      %v2712 = vpop.f32.mrb[0].mxu0
      %v2713 = vpop.f32.mrb[0].mxu0
      %v2714 = vadd.f32 0.0, %v2713
      %v2715 = vpop.f32.mrb[0].mxu0
      %2716 = vmatprep.mubr.bf16.mxu0 0
      %2717 = vmatmul.mubr.bf16.gmra.mrb[0].mxu0 %v2577
      %v2718 = vpop.f32.mrb[0].mxu0
      %v2719 = vadd.f32 0.0, %v2718
      %v2720 = vpop.f32.mrb[0].mxu0
      %v2721 = vpop.f32.mrb[0].mxu0
      %v2722 = vadd.f32 0.0, %v2721
      %v2723 = vpop.f32.mrb[0].mxu0
      %2724 = vmatprep.mubr.bf16.mxu0 0
      %2725 = vmatmul.mubr.bf16.gmra.mrb[0].mxu0 %v2580
      %v2726 = vpop.f32.mrb[0].mxu0
      %v2727 = vadd.f32 0.0, %v2726
      %v2728 = vpop.f32.mrb[0].mxu0
      %v2729 = vpop.f32.mrb[0].mxu0
      %v2730 = vadd.f32 0.0, %v2729
      %v2731 = vpop.f32.mrb[0].mxu0
      %2732 = vmatprep.mubr.bf16.mxu0 0
      %2733 = vmatmul.mubr.bf16.gmra.mrb[0].mxu0 %v2583
      %v2734 = vpop.f32.mrb[0].mxu0
      %v2735 = vadd.f32 0.0, %v2734
      %v2736 = vpop.f32.mrb[0].mxu0
      %v2737 = vpop.f32.mrb[0].mxu0
      %v2738 = vadd.f32 0.0, %v2737
      %v2739 = vpop.f32.mrb[0].mxu0
      %2740 = vmatprep.mubr.bf16.mxu0 0
      %2741 = vmatmul.mubr.bf16.gmra.mrb[0].mxu0 %v2586
      %v2742 = vpop.f32.mrb[0].mxu0
      %v2743 = vadd.f32 0.0, %v2742
      %v2744 = vpop.f32.mrb[0].mxu0
      %v2745 = vpop.f32.mrb[0].mxu0
      %v2746 = vadd.f32 0.0, %v2745
      %v2747 = vpop.f32.mrb[0].mxu0
      %2748 = vdwg.mxu0
      %v2781 = vunpack.c.l.b16 %v2047
      %v2782 = vunpack.c.l.b16 %v2048
      %v2783 = vunpack.c.l.b16 %v2049
      %v2784 = vunpack.c.l.b16 %v2050
      %v2785 = vunpack.c.l.b16 %v2051
      %v2786 = vunpack.c.l.b16 %v2052
      %v2787 = vunpack.c.l.b16 %v2053
      %v2788 = vunpack.c.l.b16 %v2054
      %v2789 = vunpack.c.l.b16 %v2055
      %v2790 = vunpack.c.l.b16 %v2056
      %v2791 = vunpack.c.l.b16 %v2057
      %v2792 = vunpack.c.l.b16 %v2058
      %v2793 = vunpack.c.l.b16 %v2059
      %v2794 = vunpack.c.l.b16 %v2060
      %v2795 = vunpack.c.l.b16 %v2061
      %v2796 = vunpack.c.l.b16 %v2062
      %v2797 = vunpack.c.l.b16 %v2063
      %v2798 = vunpack.c.l.b16 %v2064
      %v2799 = vunpack.c.l.b16 %v2065
      %v2800 = vunpack.c.l.b16 %v2066
      %v2801 = vunpack.c.l.b16 %v2067
      %v2802 = vunpack.c.l.b16 %v2068
      %v2803 = vunpack.c.l.b16 %v2069
      %v2804 = vunpack.c.l.b16 %v2070
      %v2805 = vunpack.c.l.b16 %v2071
      %v2806 = vunpack.c.l.b16 %v2072
      %v2807 = vunpack.c.l.b16 %v2073
      %v2808 = vunpack.c.l.b16 %v2074
      %v2809 = vunpack.c.l.b16 %v2075
      %v2810 = vunpack.c.l.b16 %v2076
      %v2811 = vunpack.c.l.b16 %v2077
      %v2812 = vunpack.c.l.b16 %v2078
      %v2813 = vpack.c.b16 %v2782, %v2781
      %v2814 = vpack.c.b16 %v2784, %v2783
      %v2815 = vpack.c.b16 %v2786, %v2785
      %v2816 = vpack.c.b16 %v2788, %v2787
      %v2817 = vpack.c.b16 %v2790, %v2789
      %v2818 = vpack.c.b16 %v2792, %v2791
      %v2819 = vpack.c.b16 %v2794, %v2793
      %v2820 = vpack.c.b16 %v2796, %v2795
      %v2821 = vpack.c.b16 %v2798, %v2797
      %v2822 = vpack.c.b16 %v2800, %v2799
      %v2823 = vpack.c.b16 %v2802, %v2801
      %v2824 = vpack.c.b16 %v2804, %v2803
      %v2825 = vpack.c.b16 %v2806, %v2805
      %v2826 = vpack.c.b16 %v2808, %v2807
      %v2827 = vpack.c.b16 %v2810, %v2809
      %v2828 = vpack.c.b16 %v2812, %v2811
      %v2831 = vunpack.c.l.b16 %v2079
      %v2832 = vunpack.c.l.b16 %v2080
      %v2833 = vpack.c.b16 %v2832, %v2831
      %v2836 = vsel %vm435, %v2813, 0
      %v2839 = vsel %vm435, %v2814, 0
      %v2842 = vsel %vm435, %v2815, 0
      %v2845 = vsel %vm435, %v2816, 0
      %v2848 = vsel %vm435, %v2817, 0
      %v2851 = vsel %vm435, %v2818, 0
      %v2854 = vsel %vm435, %v2819, 0
      %v2857 = vsel %vm435, %v2820, 0
      %v2860 = vsel %vm435, %v2821, 0
      %v2863 = vsel %vm435, %v2822, 0
      %v2866 = vsel %vm435, %v2823, 0
      %v2869 = vsel %vm435, %v2824, 0
      %v2872 = vsel %vm435, %v2825, 0
      %v2875 = vsel %vm435, %v2826, 0
      %v2878 = vsel %vm435, %v2827, 0
      %v2881 = vsel %vm435, %v2828, 0
      %2883 = vmatprep.subr.bf16.mxu0 0
      %2884 = vmatpush1.bf16.msra.mxu0 %v2833
      %2885 = vmatprep.subr.bf16.mxu0 0
      %2886 = vmatpush1.bf16.msra.mxu0 0
      %2887 = vmatprep.subr.bf16.mxu0 0
      %2888 = vmatpush1.bf16.msra.mxu0 0
      %2889 = vmatprep.subr.bf16.mxu0 0
      %2890 = vmatpush1.bf16.msra.mxu0 0
      %2891 = vmatprep.subr.bf16.mxu0 0
      %2892 = vmatpush1.bf16.msra.mxu0 0
      %2893 = vmatprep.subr.bf16.mxu0 0
      %2894 = vmatpush1.bf16.msra.mxu0 0
      %2895 = vmatprep.subr.bf16.mxu0 0
      %2896 = vmatpush1.bf16.msra.mxu0 0
      %2897 = vmatprep.subr.bf16.mxu0 0
      %2898 = vmatpush1.bf16.msra.mxu0 0
      %2899 = vmatprep.subr.bf16.mxu0 0
      %2900 = vmatpush1.bf16.msra.mxu0 0
      %2901 = vmatprep.subr.bf16.mxu0 0
      %2902 = vmatpush1.bf16.msra.mxu0 0
      %2903 = vmatprep.subr.bf16.mxu0 0
      %2904 = vmatpush1.bf16.msra.mxu0 0
      %2905 = vmatprep.subr.bf16.mxu0 0
      %2906 = vmatpush1.bf16.msra.mxu0 0
      %2907 = vmatprep.subr.bf16.mxu0 0
      %2908 = vmatpush1.bf16.msra.mxu0 0
      %2909 = vmatprep.subr.bf16.mxu0 0
      %2910 = vmatpush1.bf16.msra.mxu0 0
      %2911 = vmatprep.subr.bf16.mxu0 0
      %2912 = vmatpush1.bf16.msra.mxu0 0
      %2913 = vmatprep.subr.bf16.mxu0 0
      %2914 = vmatpush1.bf16.msra.mxu0 0
      %2915 = vmatprep.mubr.bf16.mxu0 0
      %2916 = vmatmul.mubr.bf16.gmra.mrb[0].mxu0 %v2836
      %v2917 = vpop.f32.mrb[0].mxu0
      %v2918 = vadd.f32 %v2623, %v2917
      %v2919 = vpop.f32.mrb[0].mxu0
      %v2920 = vpop.f32.mrb[0].mxu0
      %v2921 = vadd.f32 %v2626, %v2920
      %v2922 = vpop.f32.mrb[0].mxu0
      %2923 = vmatprep.mubr.bf16.mxu0 0
      %2924 = vmatmul.mubr.bf16.gmra.mrb[0].mxu0 %v2839
      %v2925 = vpop.f32.mrb[0].mxu0
      %v2926 = vadd.f32 %v2631, %v2925
      %v2927 = vpop.f32.mrb[0].mxu0
      %v2928 = vpop.f32.mrb[0].mxu0
      %v2929 = vadd.f32 %v2634, %v2928
      %v2930 = vpop.f32.mrb[0].mxu0
      %2931 = vmatprep.mubr.bf16.mxu0 0
      %2932 = vmatmul.mubr.bf16.gmra.mrb[0].mxu0 %v2842
      %v2933 = vpop.f32.mrb[0].mxu0
      %v2934 = vadd.f32 %v2639, %v2933
      %v2935 = vpop.f32.mrb[0].mxu0
      %v2936 = vpop.f32.mrb[0].mxu0
      %v2937 = vadd.f32 %v2642, %v2936
      %v2938 = vpop.f32.mrb[0].mxu0
      %2939 = vmatprep.mubr.bf16.mxu0 0
      %2940 = vmatmul.mubr.bf16.gmra.mrb[0].mxu0 %v2845
      %v2941 = vpop.f32.mrb[0].mxu0
      %v2942 = vadd.f32 %v2647, %v2941
      %v2943 = vpop.f32.mrb[0].mxu0
      %v2944 = vpop.f32.mrb[0].mxu0
      %v2945 = vadd.f32 %v2650, %v2944
      %v2946 = vpop.f32.mrb[0].mxu0
      %2947 = vmatprep.mubr.bf16.mxu0 0
      %2948 = vmatmul.mubr.bf16.gmra.mrb[0].mxu0 %v2848
      %v2949 = vpop.f32.mrb[0].mxu0
      %v2950 = vadd.f32 %v2655, %v2949
      %v2951 = vpop.f32.mrb[0].mxu0
      %v2952 = vpop.f32.mrb[0].mxu0
      %v2953 = vadd.f32 %v2658, %v2952
      %v2954 = vpop.f32.mrb[0].mxu0
      %2955 = vmatprep.mubr.bf16.mxu0 0
      %2956 = vmatmul.mubr.bf16.gmra.mrb[0].mxu0 %v2851
      %v2957 = vpop.f32.mrb[0].mxu0
      %v2958 = vadd.f32 %v2663, %v2957
      %v2959 = vpop.f32.mrb[0].mxu0
      %v2960 = vpop.f32.mrb[0].mxu0
      %v2961 = vadd.f32 %v2666, %v2960
      %v2962 = vpop.f32.mrb[0].mxu0
      %2963 = vmatprep.mubr.bf16.mxu0 0
      %2964 = vmatmul.mubr.bf16.gmra.mrb[0].mxu0 %v2854
      %v2965 = vpop.f32.mrb[0].mxu0
      %v2966 = vadd.f32 %v2671, %v2965
      %v2967 = vpop.f32.mrb[0].mxu0
      %v2968 = vpop.f32.mrb[0].mxu0
      %v2969 = vadd.f32 %v2674, %v2968
      %v2970 = vpop.f32.mrb[0].mxu0
      %2971 = vmatprep.mubr.bf16.mxu0 0
      %2972 = vmatmul.mubr.bf16.gmra.mrb[0].mxu0 %v2857
      %v2973 = vpop.f32.mrb[0].mxu0
      %v2974 = vadd.f32 %v2679, %v2973
      %v2975 = vpop.f32.mrb[0].mxu0
      %v2976 = vpop.f32.mrb[0].mxu0
      %v2977 = vadd.f32 %v2682, %v2976
      %v2978 = vpop.f32.mrb[0].mxu0
      %2979 = vmatprep.mubr.bf16.mxu0 0
      %2980 = vmatmul.mubr.bf16.gmra.mrb[0].mxu0 %v2860
      %v2981 = vpop.f32.mrb[0].mxu0
      %v2982 = vadd.f32 %v2687, %v2981
      %v2983 = vpop.f32.mrb[0].mxu0
      %v2984 = vpop.f32.mrb[0].mxu0
      %v2985 = vadd.f32 %v2690, %v2984
      %v2986 = vpop.f32.mrb[0].mxu0
      %2987 = vmatprep.mubr.bf16.mxu0 0
      %2988 = vmatmul.mubr.bf16.gmra.mrb[0].mxu0 %v2863
      %v2989 = vpop.f32.mrb[0].mxu0
      %v2990 = vadd.f32 %v2695, %v2989
      %v2991 = vpop.f32.mrb[0].mxu0
      %v2992 = vpop.f32.mrb[0].mxu0
      %v2993 = vadd.f32 %v2698, %v2992
      %v2994 = vpop.f32.mrb[0].mxu0
      %2995 = vmatprep.mubr.bf16.mxu0 0
      %2996 = vmatmul.mubr.bf16.gmra.mrb[0].mxu0 %v2866
      %v2997 = vpop.f32.mrb[0].mxu0
      %v2998 = vadd.f32 %v2703, %v2997
      %v2999 = vpop.f32.mrb[0].mxu0
      %v3000 = vpop.f32.mrb[0].mxu0
      %v3001 = vadd.f32 %v2706, %v3000
      %v3002 = vpop.f32.mrb[0].mxu0
      %3003 = vmatprep.mubr.bf16.mxu0 0
      %3004 = vmatmul.mubr.bf16.gmra.mrb[0].mxu0 %v2869
      %v3005 = vpop.f32.mrb[0].mxu0
      %v3006 = vadd.f32 %v2711, %v3005
      %v3007 = vpop.f32.mrb[0].mxu0
      %v3008 = vpop.f32.mrb[0].mxu0
      %v3009 = vadd.f32 %v2714, %v3008
      %v3010 = vpop.f32.mrb[0].mxu0
      %3011 = vmatprep.mubr.bf16.mxu0 0
      %3012 = vmatmul.mubr.bf16.gmra.mrb[0].mxu0 %v2872
      %v3013 = vpop.f32.mrb[0].mxu0
      %v3014 = vadd.f32 %v2719, %v3013
      %v3015 = vpop.f32.mrb[0].mxu0
      %v3016 = vpop.f32.mrb[0].mxu0
      %v3017 = vadd.f32 %v2722, %v3016
      %v3018 = vpop.f32.mrb[0].mxu0
      %3019 = vmatprep.mubr.bf16.mxu0 0
      %3020 = vmatmul.mubr.bf16.gmra.mrb[0].mxu0 %v2875
      %v3021 = vpop.f32.mrb[0].mxu0
      %v3022 = vadd.f32 %v2727, %v3021
      %v3023 = vpop.f32.mrb[0].mxu0
      %v3024 = vpop.f32.mrb[0].mxu0
      %v3025 = vadd.f32 %v2730, %v3024
      %v3026 = vpop.f32.mrb[0].mxu0
      %3027 = vmatprep.mubr.bf16.mxu0 0
      %3028 = vmatmul.mubr.bf16.gmra.mrb[0].mxu0 %v2878
      %v3029 = vpop.f32.mrb[0].mxu0
      %v3030 = vadd.f32 %v2735, %v3029
      %v3031 = vpop.f32.mrb[0].mxu0
      %v3032 = vpop.f32.mrb[0].mxu0
      %v3033 = vadd.f32 %v2738, %v3032
      %v3034 = vpop.f32.mrb[0].mxu0
      %3035 = vmatprep.mubr.bf16.mxu0 0
      %3036 = vmatmul.mubr.bf16.gmra.mrb[0].mxu0 %v2881
      %v3037 = vpop.f32.mrb[0].mxu0
      %v3038 = vadd.f32 %v2743, %v3037
      %v3039 = vpop.f32.mrb[0].mxu0
      %v3040 = vpop.f32.mrb[0].mxu0
      %v3041 = vadd.f32 %v2746, %v3040
      %v3042 = vpop.f32.mrb[0].mxu0
      %3043 = vdwg.mxu0
      %v3044 = vld [vmem:[#allocation2] sm:$0xe]
      %v3045 = vld [vmem:[#allocation2 + $0xc] sm:$0xe]
      %v3046 = vld [vmem:[#allocation2 + $0x18] sm:$0xe]
      %v3047 = vld [vmem:[#allocation2 + $0x24] sm:$0xe]
      %v3048 = vld [vmem:[#allocation2 + $0x30] sm:$0xe]
      %v3049 = vld [vmem:[#allocation2 + $0x3c] sm:$0xe]
      %v3050 = vld [vmem:[#allocation2 + $0x48] sm:$0xe]
      %v3051 = vld [vmem:[#allocation2 + $0x54] sm:$0xe]
      %v3052 = vld [vmem:[#allocation2 + $0x60] sm:$0xe]
      %v3053 = vld [vmem:[#allocation2 + $0x6c] sm:$0xe]
      %v3054 = vld [vmem:[#allocation2 + $0x78] sm:$0xe]
      %v3055 = vld [vmem:[#allocation2 + $0x84] sm:$0xe]
      %v3056 = vld [vmem:[#allocation2 + $0x90] sm:$0xe]
      %v3057 = vld [vmem:[#allocation2 + $0x9c] sm:$0xe]
      %v3058 = vld [vmem:[#allocation2 + $0xa8] sm:$0xe]
      %v3059 = vld [vmem:[#allocation2 + $0xb4] sm:$0xe]
      %vm3092 = vcmask 1042432
      %vm3093 = vcmask 1046532
      %vm3094 = vmor %vm3092, %vm3093
      %v3095 = vrot.slane %v3044, 5
      %v3096 = vrot.slane %v3095, 4
      %v3097 = vrot.slane %v2048, 5
      %v3098 = vsel %vm3094, %v3096, %v3097
      %v3099 = vrot.slane %v3097, 4
      %v3100 = vrot.slane %v2081, 5
      %v3101 = vsel %vm3094, %v3099, %v3100
      %v3102 = vrot.slane %v3045, 5
      %v3103 = vrot.slane %v3102, 4
      %v3104 = vrot.slane %v2050, 5
      %v3105 = vsel %vm3094, %v3103, %v3104
      %v3106 = vrot.slane %v3104, 4
      %v3107 = vrot.slane %v2082, 5
      %v3108 = vsel %vm3094, %v3106, %v3107
      %v3109 = vrot.slane %v3046, 5
      %v3110 = vrot.slane %v3109, 4
      %v3111 = vrot.slane %v2052, 5
      %v3112 = vsel %vm3094, %v3110, %v3111
      %v3113 = vrot.slane %v3111, 4
      %v3114 = vrot.slane %v2083, 5
      %v3115 = vsel %vm3094, %v3113, %v3114
      %v3116 = vrot.slane %v3047, 5
      %v3117 = vrot.slane %v3116, 4
      %v3118 = vrot.slane %v2054, 5
      %v3119 = vsel %vm3094, %v3117, %v3118
      %v3120 = vrot.slane %v3118, 4
      %v3121 = vrot.slane %v2084, 5
      %v3122 = vsel %vm3094, %v3120, %v3121
      %v3123 = vrot.slane %v3048, 5
      %v3124 = vrot.slane %v3123, 4
      %v3125 = vrot.slane %v2056, 5
      %v3126 = vsel %vm3094, %v3124, %v3125
      %v3127 = vrot.slane %v3125, 4
      %v3128 = vrot.slane %v2085, 5
      %v3129 = vsel %vm3094, %v3127, %v3128
      %v3130 = vrot.slane %v3049, 5
      %v3131 = vrot.slane %v3130, 4
      %v3132 = vrot.slane %v2058, 5
      %v3133 = vsel %vm3094, %v3131, %v3132
      %v3134 = vrot.slane %v3132, 4
      %v3135 = vrot.slane %v2086, 5
      %v3136 = vsel %vm3094, %v3134, %v3135
      %v3137 = vrot.slane %v3050, 5
      %v3138 = vrot.slane %v3137, 4
      %v3139 = vrot.slane %v2060, 5
      %v3140 = vsel %vm3094, %v3138, %v3139
      %v3141 = vrot.slane %v3139, 4
      %v3142 = vrot.slane %v2087, 5
      %v3143 = vsel %vm3094, %v3141, %v3142
      %v3144 = vrot.slane %v3051, 5
      %v3145 = vrot.slane %v3144, 4
      %v3146 = vrot.slane %v2062, 5
      %v3147 = vsel %vm3094, %v3145, %v3146
      %v3148 = vrot.slane %v3146, 4
      %v3149 = vrot.slane %v2088, 5
      %v3150 = vsel %vm3094, %v3148, %v3149
      %v3151 = vrot.slane %v3052, 5
      %v3152 = vrot.slane %v3151, 4
      %v3153 = vrot.slane %v2064, 5
      %v3154 = vsel %vm3094, %v3152, %v3153
      %v3155 = vrot.slane %v3153, 4
      %v3156 = vrot.slane %v2089, 5
      %v3157 = vsel %vm3094, %v3155, %v3156
      %v3158 = vrot.slane %v3053, 5
      %v3159 = vrot.slane %v3158, 4
      %v3160 = vrot.slane %v2066, 5
      %v3161 = vsel %vm3094, %v3159, %v3160
      %v3162 = vrot.slane %v3160, 4
      %v3163 = vrot.slane %v2090, 5
      %v3164 = vsel %vm3094, %v3162, %v3163
      %v3165 = vrot.slane %v3054, 5
      %v3166 = vrot.slane %v3165, 4
      %v3167 = vrot.slane %v2068, 5
      %v3168 = vsel %vm3094, %v3166, %v3167
      %v3169 = vrot.slane %v3167, 4
      %v3170 = vrot.slane %v2091, 5
      %v3171 = vsel %vm3094, %v3169, %v3170
      %v3172 = vrot.slane %v3055, 5
      %v3173 = vrot.slane %v3172, 4
      %v3174 = vrot.slane %v2070, 5
      %v3175 = vsel %vm3094, %v3173, %v3174
      %v3176 = vrot.slane %v3174, 4
      %v3177 = vrot.slane %v2092, 5
      %v3178 = vsel %vm3094, %v3176, %v3177
      %v3179 = vrot.slane %v3056, 5
      %v3180 = vrot.slane %v3179, 4
      %v3181 = vrot.slane %v2072, 5
      %v3182 = vsel %vm3094, %v3180, %v3181
      %v3183 = vrot.slane %v3181, 4
      %v3184 = vrot.slane %v2093, 5
      %v3185 = vsel %vm3094, %v3183, %v3184
      %v3186 = vrot.slane %v3057, 5
      %v3187 = vrot.slane %v3186, 4
      %v3188 = vrot.slane %v2074, 5
      %v3189 = vsel %vm3094, %v3187, %v3188
      %v3190 = vrot.slane %v3188, 4
      %v3191 = vrot.slane %v2094, 5
      %v3192 = vsel %vm3094, %v3190, %v3191
      %v3193 = vrot.slane %v3058, 5
      %v3194 = vrot.slane %v3193, 4
      %v3195 = vrot.slane %v2076, 5
      %v3196 = vsel %vm3094, %v3194, %v3195
      %v3197 = vrot.slane %v3195, 4
      %v3198 = vrot.slane %v2095, 5
      %v3199 = vsel %vm3094, %v3197, %v3198
      %v3200 = vrot.slane %v3059, 5
      %v3201 = vrot.slane %v3200, 4
      %v3202 = vrot.slane %v2078, 5
      %v3203 = vsel %vm3094, %v3201, %v3202
      %v3204 = vrot.slane %v3202, 4
      %v3205 = vrot.slane %v2096, 5
      %v3206 = vsel %vm3094, %v3204, %v3205
      %v3207 = vld [vmem:[%s5 + $0x10] sm:$0xf]
      %v3208 = vld [vmem:[%s5 + $0x14] sm:$0xf]
      %v3209 = vunpack.c.l.b16 %v3098
      %v3210 = vunpack.c.l.b16 %v3101
      %v3211 = vunpack.c.l.b16 %v3105
      %v3212 = vunpack.c.l.b16 %v3108
      %v3213 = vunpack.c.l.b16 %v3112
      %v3214 = vunpack.c.l.b16 %v3115
      %v3215 = vunpack.c.l.b16 %v3119
      %v3216 = vunpack.c.l.b16 %v3122
      %v3217 = vunpack.c.l.b16 %v3126
      %v3218 = vunpack.c.l.b16 %v3129
      %v3219 = vunpack.c.l.b16 %v3133
      %v3220 = vunpack.c.l.b16 %v3136
      %v3221 = vunpack.c.l.b16 %v3140
      %v3222 = vunpack.c.l.b16 %v3143
      %v3223 = vunpack.c.l.b16 %v3147
      %v3224 = vunpack.c.l.b16 %v3150
      %v3225 = vunpack.c.l.b16 %v3154
      %v3226 = vunpack.c.l.b16 %v3157
      %v3227 = vunpack.c.l.b16 %v3161
      %v3228 = vunpack.c.l.b16 %v3164
      %v3229 = vunpack.c.l.b16 %v3168
      %v3230 = vunpack.c.l.b16 %v3171
      %v3231 = vunpack.c.l.b16 %v3175
      %v3232 = vunpack.c.l.b16 %v3178
      %v3233 = vunpack.c.l.b16 %v3182
      %v3234 = vunpack.c.l.b16 %v3185
      %v3235 = vunpack.c.l.b16 %v3189
      %v3236 = vunpack.c.l.b16 %v3192
      %v3237 = vunpack.c.l.b16 %v3196
      %v3238 = vunpack.c.l.b16 %v3199
      %v3239 = vunpack.c.l.b16 %v3203
      %v3240 = vunpack.c.l.b16 %v3206
      %v3241 = vpack.c.b16 %v3210, %v3209
      %v3242 = vpack.c.b16 %v3212, %v3211
      %v3243 = vpack.c.b16 %v3214, %v3213
      %v3244 = vpack.c.b16 %v3216, %v3215
      %v3245 = vpack.c.b16 %v3218, %v3217
      %v3246 = vpack.c.b16 %v3220, %v3219
      %v3247 = vpack.c.b16 %v3222, %v3221
      %v3248 = vpack.c.b16 %v3224, %v3223
      %v3249 = vpack.c.b16 %v3226, %v3225
      %v3250 = vpack.c.b16 %v3228, %v3227
      %v3251 = vpack.c.b16 %v3230, %v3229
      %v3252 = vpack.c.b16 %v3232, %v3231
      %v3253 = vpack.c.b16 %v3234, %v3233
      %v3254 = vpack.c.b16 %v3236, %v3235
      %v3255 = vpack.c.b16 %v3238, %v3237
      %v3256 = vpack.c.b16 %v3240, %v3239
      %v3259 = vunpack.c.l.b16 %v3207
      %v3260 = vunpack.c.l.b16 %v3208
      %v3261 = vpack.c.b16 %v3260, %v3259
      %v3264 = vsel %vm435, %v3241, 0
      %v3267 = vsel %vm435, %v3242, 0
      %v3270 = vsel %vm435, %v3243, 0
      %v3273 = vsel %vm435, %v3244, 0
      %v3276 = vsel %vm435, %v3245, 0
      %v3279 = vsel %vm435, %v3246, 0
      %v3282 = vsel %vm435, %v3247, 0
      %v3285 = vsel %vm435, %v3248, 0
      %v3288 = vsel %vm435, %v3249, 0
      %v3291 = vsel %vm435, %v3250, 0
      %v3294 = vsel %vm435, %v3251, 0
      %v3297 = vsel %vm435, %v3252, 0
      %v3300 = vsel %vm435, %v3253, 0
      %v3303 = vsel %vm435, %v3254, 0
      %v3306 = vsel %vm435, %v3255, 0
      %v3309 = vsel %vm435, %v3256, 0
      %3311 = vmatprep.subr.bf16.mxu0 0
      %3312 = vmatpush1.bf16.msra.mxu0 %v3261
      %3313 = vmatprep.subr.bf16.mxu0 0
      %3314 = vmatpush1.bf16.msra.mxu0 0
      %3315 = vmatprep.subr.bf16.mxu0 0
      %3316 = vmatpush1.bf16.msra.mxu0 0
      %3317 = vmatprep.subr.bf16.mxu0 0
      %3318 = vmatpush1.bf16.msra.mxu0 0
      %3319 = vmatprep.subr.bf16.mxu0 0
      %3320 = vmatpush1.bf16.msra.mxu0 0
      %3321 = vmatprep.subr.bf16.mxu0 0
      %3322 = vmatpush1.bf16.msra.mxu0 0
      %3323 = vmatprep.subr.bf16.mxu0 0
      %3324 = vmatpush1.bf16.msra.mxu0 0
      %3325 = vmatprep.subr.bf16.mxu0 0
      %3326 = vmatpush1.bf16.msra.mxu0 0
      %3327 = vmatprep.subr.bf16.mxu0 0
      %3328 = vmatpush1.bf16.msra.mxu0 0
      %3329 = vmatprep.subr.bf16.mxu0 0
      %3330 = vmatpush1.bf16.msra.mxu0 0
      %3331 = vmatprep.subr.bf16.mxu0 0
      %3332 = vmatpush1.bf16.msra.mxu0 0
      %3333 = vmatprep.subr.bf16.mxu0 0
      %3334 = vmatpush1.bf16.msra.mxu0 0
      %3335 = vmatprep.subr.bf16.mxu0 0
      %3336 = vmatpush1.bf16.msra.mxu0 0
      %3337 = vmatprep.subr.bf16.mxu0 0
      %3338 = vmatpush1.bf16.msra.mxu0 0
      %3339 = vmatprep.subr.bf16.mxu0 0
      %3340 = vmatpush1.bf16.msra.mxu0 0
      %3341 = vmatprep.subr.bf16.mxu0 0
      %3342 = vmatpush1.bf16.msra.mxu0 0
      %3343 = vmatprep.mubr.bf16.mxu0 0
      %3344 = vmatmul.mubr.bf16.gmra.mrb[0].mxu0 %v3264
      %v3345 = vpop.f32.mrb[0].mxu0
      %v3346 = vadd.f32 0.0, %v3345
      %v3347 = vpop.f32.mrb[0].mxu0
      %v3348 = vpop.f32.mrb[0].mxu0
      %v3349 = vadd.f32 0.0, %v3348
      %v3350 = vpop.f32.mrb[0].mxu0
      %3351 = vmatprep.mubr.bf16.mxu0 0
      %3352 = vmatmul.mubr.bf16.gmra.mrb[0].mxu0 %v3267
      %v3353 = vpop.f32.mrb[0].mxu0
      %v3354 = vadd.f32 0.0, %v3353
      %v3355 = vpop.f32.mrb[0].mxu0
      %v3356 = vpop.f32.mrb[0].mxu0
      %v3357 = vadd.f32 0.0, %v3356
      %v3358 = vpop.f32.mrb[0].mxu0
      %3359 = vmatprep.mubr.bf16.mxu0 0
      %3360 = vmatmul.mubr.bf16.gmra.mrb[0].mxu0 %v3270
      %v3361 = vpop.f32.mrb[0].mxu0
      %v3362 = vadd.f32 0.0, %v3361
      %v3363 = vpop.f32.mrb[0].mxu0
      %v3364 = vpop.f32.mrb[0].mxu0
      %v3365 = vadd.f32 0.0, %v3364
      %v3366 = vpop.f32.mrb[0].mxu0
      %3367 = vmatprep.mubr.bf16.mxu0 0
      %3368 = vmatmul.mubr.bf16.gmra.mrb[0].mxu0 %v3273
      %v3369 = vpop.f32.mrb[0].mxu0
      %v3370 = vadd.f32 0.0, %v3369
      %v3371 = vpop.f32.mrb[0].mxu0
      %v3372 = vpop.f32.mrb[0].mxu0
      %v3373 = vadd.f32 0.0, %v3372
      %v3374 = vpop.f32.mrb[0].mxu0
      %3375 = vmatprep.mubr.bf16.mxu0 0
      %3376 = vmatmul.mubr.bf16.gmra.mrb[0].mxu0 %v3276
      %v3377 = vpop.f32.mrb[0].mxu0
      %v3378 = vadd.f32 0.0, %v3377
      %v3379 = vpop.f32.mrb[0].mxu0
      %v3380 = vpop.f32.mrb[0].mxu0
      %v3381 = vadd.f32 0.0, %v3380
      %v3382 = vpop.f32.mrb[0].mxu0
      %3383 = vmatprep.mubr.bf16.mxu0 0
      %3384 = vmatmul.mubr.bf16.gmra.mrb[0].mxu0 %v3279
      %v3385 = vpop.f32.mrb[0].mxu0
      %v3386 = vadd.f32 0.0, %v3385
      %v3387 = vpop.f32.mrb[0].mxu0
      %v3388 = vpop.f32.mrb[0].mxu0
      %v3389 = vadd.f32 0.0, %v3388
      %v3390 = vpop.f32.mrb[0].mxu0
      %3391 = vmatprep.mubr.bf16.mxu0 0
      %3392 = vmatmul.mubr.bf16.gmra.mrb[0].mxu0 %v3282
      %v3393 = vpop.f32.mrb[0].mxu0
      %v3394 = vadd.f32 0.0, %v3393
      %v3395 = vpop.f32.mrb[0].mxu0
      %v3396 = vpop.f32.mrb[0].mxu0
      %v3397 = vadd.f32 0.0, %v3396
      %v3398 = vpop.f32.mrb[0].mxu0
      %3399 = vmatprep.mubr.bf16.mxu0 0
      %3400 = vmatmul.mubr.bf16.gmra.mrb[0].mxu0 %v3285
      %v3401 = vpop.f32.mrb[0].mxu0
      %v3402 = vadd.f32 0.0, %v3401
      %v3403 = vpop.f32.mrb[0].mxu0
      %v3404 = vpop.f32.mrb[0].mxu0
      %v3405 = vadd.f32 0.0, %v3404
      %v3406 = vpop.f32.mrb[0].mxu0
      %3407 = vmatprep.mubr.bf16.mxu0 0
      %3408 = vmatmul.mubr.bf16.gmra.mrb[0].mxu0 %v3288
      %v3409 = vpop.f32.mrb[0].mxu0
      %v3410 = vadd.f32 0.0, %v3409
      %v3411 = vpop.f32.mrb[0].mxu0
      %v3412 = vpop.f32.mrb[0].mxu0
      %v3413 = vadd.f32 0.0, %v3412
      %v3414 = vpop.f32.mrb[0].mxu0
      %3415 = vmatprep.mubr.bf16.mxu0 0
      %3416 = vmatmul.mubr.bf16.gmra.mrb[0].mxu0 %v3291
      %v3417 = vpop.f32.mrb[0].mxu0
      %v3418 = vadd.f32 0.0, %v3417
      %v3419 = vpop.f32.mrb[0].mxu0
      %v3420 = vpop.f32.mrb[0].mxu0
      %v3421 = vadd.f32 0.0, %v3420
      %v3422 = vpop.f32.mrb[0].mxu0
      %3423 = vmatprep.mubr.bf16.mxu0 0
      %3424 = vmatmul.mubr.bf16.gmra.mrb[0].mxu0 %v3294
      %v3425 = vpop.f32.mrb[0].mxu0
      %v3426 = vadd.f32 0.0, %v3425
      %v3427 = vpop.f32.mrb[0].mxu0
      %v3428 = vpop.f32.mrb[0].mxu0
      %v3429 = vadd.f32 0.0, %v3428
      %v3430 = vpop.f32.mrb[0].mxu0
      %3431 = vmatprep.mubr.bf16.mxu0 0
      %3432 = vmatmul.mubr.bf16.gmra.mrb[0].mxu0 %v3297
      %v3433 = vpop.f32.mrb[0].mxu0
      %v3434 = vadd.f32 0.0, %v3433
      %v3435 = vpop.f32.mrb[0].mxu0
      %v3436 = vpop.f32.mrb[0].mxu0
      %v3437 = vadd.f32 0.0, %v3436
      %v3438 = vpop.f32.mrb[0].mxu0
      %3439 = vmatprep.mubr.bf16.mxu0 0
      %3440 = vmatmul.mubr.bf16.gmra.mrb[0].mxu0 %v3300
      %v3441 = vpop.f32.mrb[0].mxu0
      %v3442 = vadd.f32 0.0, %v3441
      %v3443 = vpop.f32.mrb[0].mxu0
      %v3444 = vpop.f32.mrb[0].mxu0
      %v3445 = vadd.f32 0.0, %v3444
      %v3446 = vpop.f32.mrb[0].mxu0
      %3447 = vmatprep.mubr.bf16.mxu0 0
      %3448 = vmatmul.mubr.bf16.gmra.mrb[0].mxu0 %v3303
      %v3449 = vpop.f32.mrb[0].mxu0
      %v3450 = vadd.f32 0.0, %v3449
      %v3451 = vpop.f32.mrb[0].mxu0
      %v3452 = vpop.f32.mrb[0].mxu0
      %v3453 = vadd.f32 0.0, %v3452
      %v3454 = vpop.f32.mrb[0].mxu0
      %3455 = vmatprep.mubr.bf16.mxu0 0
      %3456 = vmatmul.mubr.bf16.gmra.mrb[0].mxu0 %v3306
      %v3457 = vpop.f32.mrb[0].mxu0
      %v3458 = vadd.f32 0.0, %v3457
      %v3459 = vpop.f32.mrb[0].mxu0
      %v3460 = vpop.f32.mrb[0].mxu0
      %v3461 = vadd.f32 0.0, %v3460
      %v3462 = vpop.f32.mrb[0].mxu0
      %3463 = vmatprep.mubr.bf16.mxu0 0
      %3464 = vmatmul.mubr.bf16.gmra.mrb[0].mxu0 %v3309
      %v3465 = vpop.f32.mrb[0].mxu0
      %v3466 = vadd.f32 0.0, %v3465
      %v3467 = vpop.f32.mrb[0].mxu0
      %v3468 = vpop.f32.mrb[0].mxu0
      %v3469 = vadd.f32 0.0, %v3468
      %v3470 = vpop.f32.mrb[0].mxu0
      %3471 = vdwg.mxu0
      %v3472 = vadd.f32 %v2918, %v3346
      %v3473 = vadd.f32 %v2921, %v3349
      %v3474 = vadd.f32 %v2926, %v3354
      %v3475 = vadd.f32 %v2929, %v3357
      %v3476 = vadd.f32 %v2934, %v3362
      %v3477 = vadd.f32 %v2937, %v3365
      %v3478 = vadd.f32 %v2942, %v3370
      %v3479 = vadd.f32 %v2945, %v3373
      %v3480 = vadd.f32 %v2950, %v3378
      %v3481 = vadd.f32 %v2953, %v3381
      %v3482 = vadd.f32 %v2958, %v3386
      %v3483 = vadd.f32 %v2961, %v3389
      %v3484 = vadd.f32 %v2966, %v3394
      %v3485 = vadd.f32 %v2969, %v3397
      %v3486 = vadd.f32 %v2974, %v3402
      %v3487 = vadd.f32 %v2977, %v3405
      %v3488 = vadd.f32 %v2982, %v3410
      %v3489 = vadd.f32 %v2985, %v3413
      %v3490 = vadd.f32 %v2990, %v3418
      %v3491 = vadd.f32 %v2993, %v3421
      %v3492 = vadd.f32 %v2998, %v3426
      %v3493 = vadd.f32 %v3001, %v3429
      %v3494 = vadd.f32 %v3006, %v3434
      %v3495 = vadd.f32 %v3009, %v3437
      %v3496 = vadd.f32 %v3014, %v3442
      %v3497 = vadd.f32 %v3017, %v3445
      %v3498 = vadd.f32 %v3022, %v3450
      %v3499 = vadd.f32 %v3025, %v3453
      %v3500 = vadd.f32 %v3030, %v3458
      %v3501 = vadd.f32 %v3033, %v3461
      %v3502 = vadd.f32 %v3038, %v3466
      %v3503 = vadd.f32 %v3041, %v3469
      %v3504 = vld [vmem:[%s848] sm:$0xf]
      %v3505 = vld [vmem:[%s848 + $0x4] sm:$0xf]
      %v3506 = vld [vmem:[%s848 + $0xc] sm:$0xf]
      %v3507 = vld [vmem:[%s848 + $0x10] sm:$0xf]
      %v3508 = vld [vmem:[%s848 + $0x18] sm:$0xf]
      %v3509 = vld [vmem:[%s848 + $0x1c] sm:$0xf]
      %v3510 = vld [vmem:[%s848 + $0x24] sm:$0xf]
      %v3511 = vld [vmem:[%s848 + $0x28] sm:$0xf]
      %v3512 = vld [vmem:[%s848 + $0x30] sm:$0xf]
      %v3513 = vld [vmem:[%s848 + $0x34] sm:$0xf]
      %v3514 = vld [vmem:[%s848 + $0x3c] sm:$0xf]
      %v3515 = vld [vmem:[%s848 + $0x40] sm:$0xf]
      %v3516 = vld [vmem:[%s848 + $0x48] sm:$0xf]
      %v3517 = vld [vmem:[%s848 + $0x4c] sm:$0xf]
      %v3518 = vld [vmem:[%s848 + $0x54] sm:$0xf]
      %v3519 = vld [vmem:[%s848 + $0x58] sm:$0xf]
      %v3520 = vld [vmem:[%s848 + $0x60] sm:$0xf]
      %v3521 = vld [vmem:[%s848 + $0x64] sm:$0xf]
      %v3522 = vld [vmem:[%s848 + $0x6c] sm:$0xf]
      %v3523 = vld [vmem:[%s848 + $0x70] sm:$0xf]
      %v3524 = vld [vmem:[%s848 + $0x78] sm:$0xf]
      %v3525 = vld [vmem:[%s848 + $0x7c] sm:$0xf]
      %v3526 = vld [vmem:[%s848 + $0x84] sm:$0xf]
      %v3527 = vld [vmem:[%s848 + $0x88] sm:$0xf]
      %v3528 = vld [vmem:[%s848 + $0x90] sm:$0xf]
      %v3529 = vld [vmem:[%s848 + $0x94] sm:$0xf]
      %v3530 = vld [vmem:[%s848 + $0x9c] sm:$0xf]
      %v3531 = vld [vmem:[%s848 + $0xa0] sm:$0xf]
      %v3532 = vld [vmem:[%s848 + $0xa8] sm:$0xf]
      %v3533 = vld [vmem:[%s848 + $0xac] sm:$0xf]
      %v3534 = vld [vmem:[%s848 + $0xb4] sm:$0xf]
      %v3535 = vld [vmem:[%s848 + $0xb8] sm:$0xf]
      %v3536 = vld [vmem:[%s5 + $0x18] sm:$0xf]
      %v3537 = vld [vmem:[%s5 + $0x1c] sm:$0xf]
      %v3570 = vunpack.c.l.b16 %v3504
      %v3571 = vunpack.c.l.b16 %v3505
      %v3572 = vunpack.c.l.b16 %v3506
      %v3573 = vunpack.c.l.b16 %v3507
      %v3574 = vunpack.c.l.b16 %v3508
      %v3575 = vunpack.c.l.b16 %v3509
      %v3576 = vunpack.c.l.b16 %v3510
      %v3577 = vunpack.c.l.b16 %v3511
      %v3578 = vunpack.c.l.b16 %v3512
      %v3579 = vunpack.c.l.b16 %v3513
      %v3580 = vunpack.c.l.b16 %v3514
      %v3581 = vunpack.c.l.b16 %v3515
      %v3582 = vunpack.c.l.b16 %v3516
      %v3583 = vunpack.c.l.b16 %v3517
      %v3584 = vunpack.c.l.b16 %v3518
      %v3585 = vunpack.c.l.b16 %v3519
      %v3586 = vunpack.c.l.b16 %v3520
      %v3587 = vunpack.c.l.b16 %v3521
      %v3588 = vunpack.c.l.b16 %v3522
      %v3589 = vunpack.c.l.b16 %v3523
      %v3590 = vunpack.c.l.b16 %v3524
      %v3591 = vunpack.c.l.b16 %v3525
      %v3592 = vunpack.c.l.b16 %v3526
      %v3593 = vunpack.c.l.b16 %v3527
      %v3594 = vunpack.c.l.b16 %v3528
      %v3595 = vunpack.c.l.b16 %v3529
      %v3596 = vunpack.c.l.b16 %v3530
      %v3597 = vunpack.c.l.b16 %v3531
      %v3598 = vunpack.c.l.b16 %v3532
      %v3599 = vunpack.c.l.b16 %v3533
      %v3600 = vunpack.c.l.b16 %v3534
      %v3601 = vunpack.c.l.b16 %v3535
      %v3602 = vpack.c.b16 %v3571, %v3570
      %v3603 = vpack.c.b16 %v3573, %v3572
      %v3604 = vpack.c.b16 %v3575, %v3574
      %v3605 = vpack.c.b16 %v3577, %v3576
      %v3606 = vpack.c.b16 %v3579, %v3578
      %v3607 = vpack.c.b16 %v3581, %v3580
      %v3608 = vpack.c.b16 %v3583, %v3582
      %v3609 = vpack.c.b16 %v3585, %v3584
      %v3610 = vpack.c.b16 %v3587, %v3586
      %v3611 = vpack.c.b16 %v3589, %v3588
      %v3612 = vpack.c.b16 %v3591, %v3590
      %v3613 = vpack.c.b16 %v3593, %v3592
      %v3614 = vpack.c.b16 %v3595, %v3594
      %v3615 = vpack.c.b16 %v3597, %v3596
      %v3616 = vpack.c.b16 %v3599, %v3598
      %v3617 = vpack.c.b16 %v3601, %v3600
      %v3620 = vunpack.c.l.b16 %v3536
      %v3621 = vunpack.c.l.b16 %v3537
      %v3622 = vpack.c.b16 %v3621, %v3620
      %v3625 = vsel %vm435, %v3602, 0
      %v3628 = vsel %vm435, %v3603, 0
      %v3631 = vsel %vm435, %v3604, 0
      %v3634 = vsel %vm435, %v3605, 0
      %v3637 = vsel %vm435, %v3606, 0
      %v3640 = vsel %vm435, %v3607, 0
      %v3643 = vsel %vm435, %v3608, 0
      %v3646 = vsel %vm435, %v3609, 0
      %v3649 = vsel %vm435, %v3610, 0
      %v3652 = vsel %vm435, %v3611, 0
      %v3655 = vsel %vm435, %v3612, 0
      %v3658 = vsel %vm435, %v3613, 0
      %v3661 = vsel %vm435, %v3614, 0
      %v3664 = vsel %vm435, %v3615, 0
      %v3667 = vsel %vm435, %v3616, 0
      %v3670 = vsel %vm435, %v3617, 0
      %3672 = vmatprep.subr.bf16.mxu0 0
      %3673 = vmatpush1.bf16.msra.mxu0 %v3622
      %3674 = vmatprep.subr.bf16.mxu0 0
      %3675 = vmatpush1.bf16.msra.mxu0 0
      %3676 = vmatprep.subr.bf16.mxu0 0
      %3677 = vmatpush1.bf16.msra.mxu0 0
      %3678 = vmatprep.subr.bf16.mxu0 0
      %3679 = vmatpush1.bf16.msra.mxu0 0
      %3680 = vmatprep.subr.bf16.mxu0 0
      %3681 = vmatpush1.bf16.msra.mxu0 0
      %3682 = vmatprep.subr.bf16.mxu0 0
      %3683 = vmatpush1.bf16.msra.mxu0 0
      %3684 = vmatprep.subr.bf16.mxu0 0
      %3685 = vmatpush1.bf16.msra.mxu0 0
      %3686 = vmatprep.subr.bf16.mxu0 0
      %3687 = vmatpush1.bf16.msra.mxu0 0
      %3688 = vmatprep.subr.bf16.mxu0 0
      %3689 = vmatpush1.bf16.msra.mxu0 0
      %3690 = vmatprep.subr.bf16.mxu0 0
      %3691 = vmatpush1.bf16.msra.mxu0 0
      %3692 = vmatprep.subr.bf16.mxu0 0
      %3693 = vmatpush1.bf16.msra.mxu0 0
      %3694 = vmatprep.subr.bf16.mxu0 0
      %3695 = vmatpush1.bf16.msra.mxu0 0
      %3696 = vmatprep.subr.bf16.mxu0 0
      %3697 = vmatpush1.bf16.msra.mxu0 0
      %3698 = vmatprep.subr.bf16.mxu0 0
      %3699 = vmatpush1.bf16.msra.mxu0 0
      %3700 = vmatprep.subr.bf16.mxu0 0
      %3701 = vmatpush1.bf16.msra.mxu0 0
      %3702 = vmatprep.subr.bf16.mxu0 0
      %3703 = vmatpush1.bf16.msra.mxu0 0
      %3704 = vmatprep.mubr.bf16.mxu0 0
      %3705 = vmatmul.mubr.bf16.gmra.mrb[0].mxu0 %v3625
      %v3706 = vpop.f32.mrb[0].mxu0
      %v3707 = vadd.f32 0.0, %v3706
      %v3708 = vpop.f32.mrb[0].mxu0
      %v3709 = vpop.f32.mrb[0].mxu0
      %v3710 = vadd.f32 0.0, %v3709
      %v3711 = vpop.f32.mrb[0].mxu0
      %3712 = vmatprep.mubr.bf16.mxu0 0
      %3713 = vmatmul.mubr.bf16.gmra.mrb[0].mxu0 %v3628
      %v3714 = vpop.f32.mrb[0].mxu0
      %v3715 = vadd.f32 0.0, %v3714
      %v3716 = vpop.f32.mrb[0].mxu0
      %v3717 = vpop.f32.mrb[0].mxu0
      %v3718 = vadd.f32 0.0, %v3717
      %v3719 = vpop.f32.mrb[0].mxu0
      %3720 = vmatprep.mubr.bf16.mxu0 0
      %3721 = vmatmul.mubr.bf16.gmra.mrb[0].mxu0 %v3631
      %v3722 = vpop.f32.mrb[0].mxu0
      %v3723 = vadd.f32 0.0, %v3722
      %v3724 = vpop.f32.mrb[0].mxu0
      %v3725 = vpop.f32.mrb[0].mxu0
      %v3726 = vadd.f32 0.0, %v3725
      %v3727 = vpop.f32.mrb[0].mxu0
      %3728 = vmatprep.mubr.bf16.mxu0 0
      %3729 = vmatmul.mubr.bf16.gmra.mrb[0].mxu0 %v3634
      %v3730 = vpop.f32.mrb[0].mxu0
      %v3731 = vadd.f32 0.0, %v3730
      %v3732 = vpop.f32.mrb[0].mxu0
      %v3733 = vpop.f32.mrb[0].mxu0
      %v3734 = vadd.f32 0.0, %v3733
      %v3735 = vpop.f32.mrb[0].mxu0
      %3736 = vmatprep.mubr.bf16.mxu0 0
      %3737 = vmatmul.mubr.bf16.gmra.mrb[0].mxu0 %v3637
      %v3738 = vpop.f32.mrb[0].mxu0
      %v3739 = vadd.f32 0.0, %v3738
      %v3740 = vpop.f32.mrb[0].mxu0
      %v3741 = vpop.f32.mrb[0].mxu0
      %v3742 = vadd.f32 0.0, %v3741
      %v3743 = vpop.f32.mrb[0].mxu0
      %3744 = vmatprep.mubr.bf16.mxu0 0
      %3745 = vmatmul.mubr.bf16.gmra.mrb[0].mxu0 %v3640
      %v3746 = vpop.f32.mrb[0].mxu0
      %v3747 = vadd.f32 0.0, %v3746
      %v3748 = vpop.f32.mrb[0].mxu0
      %v3749 = vpop.f32.mrb[0].mxu0
      %v3750 = vadd.f32 0.0, %v3749
      %v3751 = vpop.f32.mrb[0].mxu0
      %3752 = vmatprep.mubr.bf16.mxu0 0
      %3753 = vmatmul.mubr.bf16.gmra.mrb[0].mxu0 %v3643
      %v3754 = vpop.f32.mrb[0].mxu0
      %v3755 = vadd.f32 0.0, %v3754
      %v3756 = vpop.f32.mrb[0].mxu0
      %v3757 = vpop.f32.mrb[0].mxu0
      %v3758 = vadd.f32 0.0, %v3757
      %v3759 = vpop.f32.mrb[0].mxu0
      %3760 = vmatprep.mubr.bf16.mxu0 0
      %3761 = vmatmul.mubr.bf16.gmra.mrb[0].mxu0 %v3646
      %v3762 = vpop.f32.mrb[0].mxu0
      %v3763 = vadd.f32 0.0, %v3762
      %v3764 = vpop.f32.mrb[0].mxu0
      %v3765 = vpop.f32.mrb[0].mxu0
      %v3766 = vadd.f32 0.0, %v3765
      %v3767 = vpop.f32.mrb[0].mxu0
      %3768 = vmatprep.mubr.bf16.mxu0 0
      %3769 = vmatmul.mubr.bf16.gmra.mrb[0].mxu0 %v3649
      %v3770 = vpop.f32.mrb[0].mxu0
      %v3771 = vadd.f32 0.0, %v3770
      %v3772 = vpop.f32.mrb[0].mxu0
      %v3773 = vpop.f32.mrb[0].mxu0
      %v3774 = vadd.f32 0.0, %v3773
      %v3775 = vpop.f32.mrb[0].mxu0
      %3776 = vmatprep.mubr.bf16.mxu0 0
      %3777 = vmatmul.mubr.bf16.gmra.mrb[0].mxu0 %v3652
      %v3778 = vpop.f32.mrb[0].mxu0
      %v3779 = vadd.f32 0.0, %v3778
      %v3780 = vpop.f32.mrb[0].mxu0
      %v3781 = vpop.f32.mrb[0].mxu0
      %v3782 = vadd.f32 0.0, %v3781
      %v3783 = vpop.f32.mrb[0].mxu0
      %3784 = vmatprep.mubr.bf16.mxu0 0
      %3785 = vmatmul.mubr.bf16.gmra.mrb[0].mxu0 %v3655
      %v3786 = vpop.f32.mrb[0].mxu0
      %v3787 = vadd.f32 0.0, %v3786
      %v3788 = vpop.f32.mrb[0].mxu0
      %v3789 = vpop.f32.mrb[0].mxu0
      %v3790 = vadd.f32 0.0, %v3789
      %v3791 = vpop.f32.mrb[0].mxu0
      %3792 = vmatprep.mubr.bf16.mxu0 0
      %3793 = vmatmul.mubr.bf16.gmra.mrb[0].mxu0 %v3658
      %v3794 = vpop.f32.mrb[0].mxu0
      %v3795 = vadd.f32 0.0, %v3794
      %v3796 = vpop.f32.mrb[0].mxu0
      %v3797 = vpop.f32.mrb[0].mxu0
      %v3798 = vadd.f32 0.0, %v3797
      %v3799 = vpop.f32.mrb[0].mxu0
      %3800 = vmatprep.mubr.bf16.mxu0 0
      %3801 = vmatmul.mubr.bf16.gmra.mrb[0].mxu0 %v3661
      %v3802 = vpop.f32.mrb[0].mxu0
      %v3803 = vadd.f32 0.0, %v3802
      %v3804 = vpop.f32.mrb[0].mxu0
      %v3805 = vpop.f32.mrb[0].mxu0
      %v3806 = vadd.f32 0.0, %v3805
      %v3807 = vpop.f32.mrb[0].mxu0
      %3808 = vmatprep.mubr.bf16.mxu0 0
      %3809 = vmatmul.mubr.bf16.gmra.mrb[0].mxu0 %v3664
      %v3810 = vpop.f32.mrb[0].mxu0
      %v3811 = vadd.f32 0.0, %v3810
      %v3812 = vpop.f32.mrb[0].mxu0
      %v3813 = vpop.f32.mrb[0].mxu0
      %v3814 = vadd.f32 0.0, %v3813
      %v3815 = vpop.f32.mrb[0].mxu0
      %3816 = vmatprep.mubr.bf16.mxu0 0
      %3817 = vmatmul.mubr.bf16.gmra.mrb[0].mxu0 %v3667
      %v3818 = vpop.f32.mrb[0].mxu0
      %v3819 = vadd.f32 0.0, %v3818
      %v3820 = vpop.f32.mrb[0].mxu0
      %v3821 = vpop.f32.mrb[0].mxu0
      %v3822 = vadd.f32 0.0, %v3821
      %v3823 = vpop.f32.mrb[0].mxu0
      %3824 = vmatprep.mubr.bf16.mxu0 0
      %3825 = vmatmul.mubr.bf16.gmra.mrb[0].mxu0 %v3670
      %v3826 = vpop.f32.mrb[0].mxu0
      %v3827 = vadd.f32 0.0, %v3826
      %v3828 = vpop.f32.mrb[0].mxu0
      %v3829 = vpop.f32.mrb[0].mxu0
      %v3830 = vadd.f32 0.0, %v3829
      %v3831 = vpop.f32.mrb[0].mxu0
      %3832 = vdwg.mxu0
      %v3833 = vadd.f32 %v3472, %v3707
      %v3834 = vadd.f32 %v3473, %v3710
      %v3835 = vadd.f32 %v3474, %v3715
      %v3836 = vadd.f32 %v3475, %v3718
      %v3837 = vadd.f32 %v3476, %v3723
      %v3838 = vadd.f32 %v3477, %v3726
      %v3839 = vadd.f32 %v3478, %v3731
      %v3840 = vadd.f32 %v3479, %v3734
      %v3841 = vadd.f32 %v3480, %v3739
      %v3842 = vadd.f32 %v3481, %v3742
      %v3843 = vadd.f32 %v3482, %v3747
      %v3844 = vadd.f32 %v3483, %v3750
      %v3845 = vadd.f32 %v3484, %v3755
      %v3846 = vadd.f32 %v3485, %v3758
      %v3847 = vadd.f32 %v3486, %v3763
      %v3848 = vadd.f32 %v3487, %v3766
      %v3849 = vadd.f32 %v3488, %v3771
      %v3850 = vadd.f32 %v3489, %v3774
      %v3851 = vadd.f32 %v3490, %v3779
      %v3852 = vadd.f32 %v3491, %v3782
      %v3853 = vadd.f32 %v3492, %v3787
      %v3854 = vadd.f32 %v3493, %v3790
      %v3855 = vadd.f32 %v3494, %v3795
      %v3856 = vadd.f32 %v3495, %v3798
      %v3857 = vadd.f32 %v3496, %v3803
      %v3858 = vadd.f32 %v3497, %v3806
      %v3859 = vadd.f32 %v3498, %v3811
      %v3860 = vadd.f32 %v3499, %v3814
      %v3861 = vadd.f32 %v3500, %v3819
      %v3862 = vadd.f32 %v3501, %v3822
      %v3863 = vadd.f32 %v3502, %v3827
      %v3864 = vadd.f32 %v3503, %v3830
      %v3865 = vld [vmem:[%s848] sm:$0xf]
      %v3866 = vld [vmem:[%s848 + $0x4] sm:$0xf]
      %v3867 = vld [vmem:[%s848 + $0x8] sm:$0x1]
      %v3868 = vld [vmem:[%s848 + $0xc] sm:$0xf]
      %v3869 = vld [vmem:[%s848 + $0x10] sm:$0xf]
      %v3870 = vld [vmem:[%s848 + $0x14] sm:$0x1]
      %v3871 = vld [vmem:[%s848 + $0x18] sm:$0xf]
      %v3872 = vld [vmem:[%s848 + $0x1c] sm:$0xf]
      %v3873 = vld [vmem:[%s848 + $0x20] sm:$0x1]
      %v3874 = vld [vmem:[%s848 + $0x24] sm:$0xf]
      %v3875 = vld [vmem:[%s848 + $0x28] sm:$0xf]
      %v3876 = vld [vmem:[%s848 + $0x2c] sm:$0x1]
      %v3877 = vld [vmem:[%s848 + $0x30] sm:$0xf]
      %v3878 = vld [vmem:[%s848 + $0x34] sm:$0xf]
      %v3879 = vld [vmem:[%s848 + $0x38] sm:$0x1]
      %v3880 = vld [vmem:[%s848 + $0x3c] sm:$0xf]
      %v3881 = vld [vmem:[%s848 + $0x40] sm:$0xf]
      %v3882 = vld [vmem:[%s848 + $0x44] sm:$0x1]
      %v3883 = vld [vmem:[%s848 + $0x48] sm:$0xf]
      %v3884 = vld [vmem:[%s848 + $0x4c] sm:$0xf]
      %v3885 = vld [vmem:[%s848 + $0x50] sm:$0x1]
      %v3886 = vld [vmem:[%s848 + $0x54] sm:$0xf]
      %v3887 = vld [vmem:[%s848 + $0x58] sm:$0xf]
      %v3888 = vld [vmem:[%s848 + $0x5c] sm:$0x1]
      %v3889 = vld [vmem:[%s848 + $0x60] sm:$0xf]
      %v3890 = vld [vmem:[%s848 + $0x64] sm:$0xf]
      %v3891 = vld [vmem:[%s848 + $0x68] sm:$0x1]
      %v3892 = vld [vmem:[%s848 + $0x6c] sm:$0xf]
      %v3893 = vld [vmem:[%s848 + $0x70] sm:$0xf]
      %v3894 = vld [vmem:[%s848 + $0x74] sm:$0x1]
      %v3895 = vld [vmem:[%s848 + $0x78] sm:$0xf]
      %v3896 = vld [vmem:[%s848 + $0x7c] sm:$0xf]
      %v3897 = vld [vmem:[%s848 + $0x80] sm:$0x1]
      %v3898 = vld [vmem:[%s848 + $0x84] sm:$0xf]
      %v3899 = vld [vmem:[%s848 + $0x88] sm:$0xf]
      %v3900 = vld [vmem:[%s848 + $0x8c] sm:$0x1]
      %v3901 = vld [vmem:[%s848 + $0x90] sm:$0xf]
      %v3902 = vld [vmem:[%s848 + $0x94] sm:$0xf]
      %v3903 = vld [vmem:[%s848 + $0x98] sm:$0x1]
      %v3904 = vld [vmem:[%s848 + $0x9c] sm:$0xf]
      %v3905 = vld [vmem:[%s848 + $0xa0] sm:$0xf]
      %v3906 = vld [vmem:[%s848 + $0xa4] sm:$0x1]
      %v3907 = vld [vmem:[%s848 + $0xa8] sm:$0xf]
      %v3908 = vld [vmem:[%s848 + $0xac] sm:$0xf]
      %v3909 = vld [vmem:[%s848 + $0xb0] sm:$0x1]
      %v3910 = vld [vmem:[%s848 + $0xb4] sm:$0xf]
      %v3911 = vld [vmem:[%s848 + $0xb8] sm:$0xf]
      %v3912 = vld [vmem:[%s848 + $0xbc] sm:$0x1]
      %v3914 = vshrl.u32 %v3865, 16
      %v3916 = vrot.slane %v3914, 4
      %v3917 = vshll.u32 %v3865, 16
      %v3919 = vrot.slane %v3917, 5
      %v3920 = vor.u32 %v3916, %v3919
      %v3921 = vrot.slane %v3920, 4
      %v3923 = vshll.u32 %v3866, 16
      %v3925 = vrot.slane %v3923, 5
      %v3926 = vsel %vm2099, %v3921, %v3925
      %v3927 = vshrl.u32 %v3866, 16
      %v3929 = vrot.slane %v3927, 4
      %v3930 = vor.u32 %v3929, %v3925
      %v3931 = vrot.slane %v3930, 4
      %v3933 = vshll.u32 %v3867, 16
      %v3935 = vrot.slane %v3933, 5
      %v3936 = vsel %vm2099, %v3931, %v3935
      %v3938 = vshrl.u32 %v3868, 16
      %v3940 = vrot.slane %v3938, 4
      %v3941 = vshll.u32 %v3868, 16
      %v3943 = vrot.slane %v3941, 5
      %v3944 = vor.u32 %v3940, %v3943
      %v3945 = vrot.slane %v3944, 4
      %v3947 = vshll.u32 %v3869, 16
      %v3949 = vrot.slane %v3947, 5
      %v3950 = vsel %vm2099, %v3945, %v3949
      %v3951 = vshrl.u32 %v3869, 16
      %v3953 = vrot.slane %v3951, 4
      %v3954 = vor.u32 %v3953, %v3949
      %v3955 = vrot.slane %v3954, 4
      %v3957 = vshll.u32 %v3870, 16
      %v3959 = vrot.slane %v3957, 5
      %v3960 = vsel %vm2099, %v3955, %v3959
      %v3962 = vshrl.u32 %v3871, 16
      %v3964 = vrot.slane %v3962, 4
      %v3965 = vshll.u32 %v3871, 16
      %v3967 = vrot.slane %v3965, 5
      %v3968 = vor.u32 %v3964, %v3967
      %v3969 = vrot.slane %v3968, 4
      %v3971 = vshll.u32 %v3872, 16
      %v3973 = vrot.slane %v3971, 5
      %v3974 = vsel %vm2099, %v3969, %v3973
      %v3975 = vshrl.u32 %v3872, 16
      %v3977 = vrot.slane %v3975, 4
      %v3978 = vor.u32 %v3977, %v3973
      %v3979 = vrot.slane %v3978, 4
      %v3981 = vshll.u32 %v3873, 16
      %v3983 = vrot.slane %v3981, 5
      %v3984 = vsel %vm2099, %v3979, %v3983
      %v3986 = vshrl.u32 %v3874, 16
      %v3988 = vrot.slane %v3986, 4
      %v3989 = vshll.u32 %v3874, 16
      %v3991 = vrot.slane %v3989, 5
      %v3992 = vor.u32 %v3988, %v3991
      %v3993 = vrot.slane %v3992, 4
      %v3995 = vshll.u32 %v3875, 16
      %v3997 = vrot.slane %v3995, 5
      %v3998 = vsel %vm2099, %v3993, %v3997
      %v3999 = vshrl.u32 %v3875, 16
      %v4001 = vrot.slane %v3999, 4
      %v4002 = vor.u32 %v4001, %v3997
      %v4003 = vrot.slane %v4002, 4
      %v4005 = vshll.u32 %v3876, 16
      %v4007 = vrot.slane %v4005, 5
      %v4008 = vsel %vm2099, %v4003, %v4007
      %v4010 = vshrl.u32 %v3877, 16
      %v4012 = vrot.slane %v4010, 4
      %v4013 = vshll.u32 %v3877, 16
      %v4015 = vrot.slane %v4013, 5
      %v4016 = vor.u32 %v4012, %v4015
      %v4017 = vrot.slane %v4016, 4
      %v4019 = vshll.u32 %v3878, 16
      %v4021 = vrot.slane %v4019, 5
      %v4022 = vsel %vm2099, %v4017, %v4021
      %v4023 = vshrl.u32 %v3878, 16
      %v4025 = vrot.slane %v4023, 4
      %v4026 = vor.u32 %v4025, %v4021
      %v4027 = vrot.slane %v4026, 4
      %v4029 = vshll.u32 %v3879, 16
      %v4031 = vrot.slane %v4029, 5
      %v4032 = vsel %vm2099, %v4027, %v4031
      %v4034 = vshrl.u32 %v3880, 16
      %v4036 = vrot.slane %v4034, 4
      %v4037 = vshll.u32 %v3880, 16
      %v4039 = vrot.slane %v4037, 5
      %v4040 = vor.u32 %v4036, %v4039
      %v4041 = vrot.slane %v4040, 4
      %v4043 = vshll.u32 %v3881, 16
      %v4045 = vrot.slane %v4043, 5
      %v4046 = vsel %vm2099, %v4041, %v4045
      %v4047 = vshrl.u32 %v3881, 16
      %v4049 = vrot.slane %v4047, 4
      %v4050 = vor.u32 %v4049, %v4045
      %v4051 = vrot.slane %v4050, 4
      %v4053 = vshll.u32 %v3882, 16
      %v4055 = vrot.slane %v4053, 5
      %v4056 = vsel %vm2099, %v4051, %v4055
      %v4058 = vshrl.u32 %v3883, 16
      %v4060 = vrot.slane %v4058, 4
      %v4061 = vshll.u32 %v3883, 16
      %v4063 = vrot.slane %v4061, 5
      %v4064 = vor.u32 %v4060, %v4063
      %v4065 = vrot.slane %v4064, 4
      %v4067 = vshll.u32 %v3884, 16
      %v4069 = vrot.slane %v4067, 5
      %v4070 = vsel %vm2099, %v4065, %v4069
      %v4071 = vshrl.u32 %v3884, 16
      %v4073 = vrot.slane %v4071, 4
      %v4074 = vor.u32 %v4073, %v4069
      %v4075 = vrot.slane %v4074, 4
      %v4077 = vshll.u32 %v3885, 16
      %v4079 = vrot.slane %v4077, 5
      %v4080 = vsel %vm2099, %v4075, %v4079
      %v4082 = vshrl.u32 %v3886, 16
      %v4084 = vrot.slane %v4082, 4
      %v4085 = vshll.u32 %v3886, 16
      %v4087 = vrot.slane %v4085, 5
      %v4088 = vor.u32 %v4084, %v4087
      %v4089 = vrot.slane %v4088, 4
      %v4091 = vshll.u32 %v3887, 16
      %v4093 = vrot.slane %v4091, 5
      %v4094 = vsel %vm2099, %v4089, %v4093
      %v4095 = vshrl.u32 %v3887, 16
      %v4097 = vrot.slane %v4095, 4
      %v4098 = vor.u32 %v4097, %v4093
      %v4099 = vrot.slane %v4098, 4
      %v4101 = vshll.u32 %v3888, 16
      %v4103 = vrot.slane %v4101, 5
      %v4104 = vsel %vm2099, %v4099, %v4103
      %v4106 = vshrl.u32 %v3889, 16
      %v4108 = vrot.slane %v4106, 4
      %v4109 = vshll.u32 %v3889, 16
      %v4111 = vrot.slane %v4109, 5
      %v4112 = vor.u32 %v4108, %v4111
      %v4113 = vrot.slane %v4112, 4
      %v4115 = vshll.u32 %v3890, 16
      %v4117 = vrot.slane %v4115, 5
      %v4118 = vsel %vm2099, %v4113, %v4117
      %v4119 = vshrl.u32 %v3890, 16
      %v4121 = vrot.slane %v4119, 4
      %v4122 = vor.u32 %v4121, %v4117
      %v4123 = vrot.slane %v4122, 4
      %v4125 = vshll.u32 %v3891, 16
      %v4127 = vrot.slane %v4125, 5
      %v4128 = vsel %vm2099, %v4123, %v4127
      %v4130 = vshrl.u32 %v3892, 16
      %v4132 = vrot.slane %v4130, 4
      %v4133 = vshll.u32 %v3892, 16
      %v4135 = vrot.slane %v4133, 5
      %v4136 = vor.u32 %v4132, %v4135
      %v4137 = vrot.slane %v4136, 4
      %v4139 = vshll.u32 %v3893, 16
      %v4141 = vrot.slane %v4139, 5
      %v4142 = vsel %vm2099, %v4137, %v4141
      %v4143 = vshrl.u32 %v3893, 16
      %v4145 = vrot.slane %v4143, 4
      %v4146 = vor.u32 %v4145, %v4141
      %v4147 = vrot.slane %v4146, 4
      %v4149 = vshll.u32 %v3894, 16
      %v4151 = vrot.slane %v4149, 5
      %v4152 = vsel %vm2099, %v4147, %v4151
      %v4154 = vshrl.u32 %v3895, 16
      %v4156 = vrot.slane %v4154, 4
      %v4157 = vshll.u32 %v3895, 16
      %v4159 = vrot.slane %v4157, 5
      %v4160 = vor.u32 %v4156, %v4159
      %v4161 = vrot.slane %v4160, 4
      %v4163 = vshll.u32 %v3896, 16
      %v4165 = vrot.slane %v4163, 5
      %v4166 = vsel %vm2099, %v4161, %v4165
      %v4167 = vshrl.u32 %v3896, 16
      %v4169 = vrot.slane %v4167, 4
      %v4170 = vor.u32 %v4169, %v4165
      %v4171 = vrot.slane %v4170, 4
      %v4173 = vshll.u32 %v3897, 16
      %v4175 = vrot.slane %v4173, 5
      %v4176 = vsel %vm2099, %v4171, %v4175
      %v4178 = vshrl.u32 %v3898, 16
      %v4180 = vrot.slane %v4178, 4
      %v4181 = vshll.u32 %v3898, 16
      %v4183 = vrot.slane %v4181, 5
      %v4184 = vor.u32 %v4180, %v4183
      %v4185 = vrot.slane %v4184, 4
      %v4187 = vshll.u32 %v3899, 16
      %v4189 = vrot.slane %v4187, 5
      %v4190 = vsel %vm2099, %v4185, %v4189
      %v4191 = vshrl.u32 %v3899, 16
      %v4193 = vrot.slane %v4191, 4
      %v4194 = vor.u32 %v4193, %v4189
      %v4195 = vrot.slane %v4194, 4
      %v4197 = vshll.u32 %v3900, 16
      %v4199 = vrot.slane %v4197, 5
      %v4200 = vsel %vm2099, %v4195, %v4199
      %v4202 = vshrl.u32 %v3901, 16
      %v4204 = vrot.slane %v4202, 4
      %v4205 = vshll.u32 %v3901, 16
      %v4207 = vrot.slane %v4205, 5
      %v4208 = vor.u32 %v4204, %v4207
      %v4209 = vrot.slane %v4208, 4
      %v4211 = vshll.u32 %v3902, 16
      %v4213 = vrot.slane %v4211, 5
      %v4214 = vsel %vm2099, %v4209, %v4213
      %v4215 = vshrl.u32 %v3902, 16
      %v4217 = vrot.slane %v4215, 4
      %v4218 = vor.u32 %v4217, %v4213
      %v4219 = vrot.slane %v4218, 4
      %v4221 = vshll.u32 %v3903, 16
      %v4223 = vrot.slane %v4221, 5
      %v4224 = vsel %vm2099, %v4219, %v4223
      %v4226 = vshrl.u32 %v3904, 16
      %v4228 = vrot.slane %v4226, 4
      %v4229 = vshll.u32 %v3904, 16
      %v4231 = vrot.slane %v4229, 5
      %v4232 = vor.u32 %v4228, %v4231
      %v4233 = vrot.slane %v4232, 4
      %v4235 = vshll.u32 %v3905, 16
      %v4237 = vrot.slane %v4235, 5
      %v4238 = vsel %vm2099, %v4233, %v4237
      %v4239 = vshrl.u32 %v3905, 16
      %v4241 = vrot.slane %v4239, 4
      %v4242 = vor.u32 %v4241, %v4237
      %v4243 = vrot.slane %v4242, 4
      %v4245 = vshll.u32 %v3906, 16
      %v4247 = vrot.slane %v4245, 5
      %v4248 = vsel %vm2099, %v4243, %v4247
      %v4250 = vshrl.u32 %v3907, 16
      %v4252 = vrot.slane %v4250, 4
      %v4253 = vshll.u32 %v3907, 16
      %v4255 = vrot.slane %v4253, 5
      %v4256 = vor.u32 %v4252, %v4255
      %v4257 = vrot.slane %v4256, 4
      %v4259 = vshll.u32 %v3908, 16
      %v4261 = vrot.slane %v4259, 5
      %v4262 = vsel %vm2099, %v4257, %v4261
      %v4263 = vshrl.u32 %v3908, 16
      %v4265 = vrot.slane %v4263, 4
      %v4266 = vor.u32 %v4265, %v4261
      %v4267 = vrot.slane %v4266, 4
      %v4269 = vshll.u32 %v3909, 16
      %v4271 = vrot.slane %v4269, 5
      %v4272 = vsel %vm2099, %v4267, %v4271
      %v4274 = vshrl.u32 %v3910, 16
      %v4276 = vrot.slane %v4274, 4
      %v4277 = vshll.u32 %v3910, 16
      %v4279 = vrot.slane %v4277, 5
      %v4280 = vor.u32 %v4276, %v4279
      %v4281 = vrot.slane %v4280, 4
      %v4283 = vshll.u32 %v3911, 16
      %v4285 = vrot.slane %v4283, 5
      %v4286 = vsel %vm2099, %v4281, %v4285
      %v4287 = vshrl.u32 %v3911, 16
      %v4289 = vrot.slane %v4287, 4
      %v4290 = vor.u32 %v4289, %v4285
      %v4291 = vrot.slane %v4290, 4
      %v4293 = vshll.u32 %v3912, 16
      %v4295 = vrot.slane %v4293, 5
      %v4296 = vsel %vm2099, %v4291, %v4295
      %v4297 = vld [vmem:[%s5 + $0x20] sm:$0xf]
      %v4298 = vld [vmem:[%s5 + $0x24] sm:$0xf]
      %v4299 = vunpack.c.l.b16 %v3926
      %v4300 = vunpack.c.l.b16 %v3936
      %v4301 = vunpack.c.l.b16 %v3950
      %v4302 = vunpack.c.l.b16 %v3960
      %v4303 = vunpack.c.l.b16 %v3974
      %v4304 = vunpack.c.l.b16 %v3984
      %v4305 = vunpack.c.l.b16 %v3998
      %v4306 = vunpack.c.l.b16 %v4008
      %v4307 = vunpack.c.l.b16 %v4022
      %v4308 = vunpack.c.l.b16 %v4032
      %v4309 = vunpack.c.l.b16 %v4046
      %v4310 = vunpack.c.l.b16 %v4056
      %v4311 = vunpack.c.l.b16 %v4070
      %v4312 = vunpack.c.l.b16 %v4080
      %v4313 = vunpack.c.l.b16 %v4094
      %v4314 = vunpack.c.l.b16 %v4104
      %v4315 = vunpack.c.l.b16 %v4118
      %v4316 = vunpack.c.l.b16 %v4128
      %v4317 = vunpack.c.l.b16 %v4142
      %v4318 = vunpack.c.l.b16 %v4152
      %v4319 = vunpack.c.l.b16 %v4166
      %v4320 = vunpack.c.l.b16 %v4176
      %v4321 = vunpack.c.l.b16 %v4190
      %v4322 = vunpack.c.l.b16 %v4200
      %v4323 = vunpack.c.l.b16 %v4214
      %v4324 = vunpack.c.l.b16 %v4224
      %v4325 = vunpack.c.l.b16 %v4238
      %v4326 = vunpack.c.l.b16 %v4248
      %v4327 = vunpack.c.l.b16 %v4262
      %v4328 = vunpack.c.l.b16 %v4272
      %v4329 = vunpack.c.l.b16 %v4286
      %v4330 = vunpack.c.l.b16 %v4296
      %v4331 = vpack.c.b16 %v4300, %v4299
      %v4332 = vpack.c.b16 %v4302, %v4301
      %v4333 = vpack.c.b16 %v4304, %v4303
      %v4334 = vpack.c.b16 %v4306, %v4305
      %v4335 = vpack.c.b16 %v4308, %v4307
      %v4336 = vpack.c.b16 %v4310, %v4309
      %v4337 = vpack.c.b16 %v4312, %v4311
      %v4338 = vpack.c.b16 %v4314, %v4313
      %v4339 = vpack.c.b16 %v4316, %v4315
      %v4340 = vpack.c.b16 %v4318, %v4317
      %v4341 = vpack.c.b16 %v4320, %v4319
      %v4342 = vpack.c.b16 %v4322, %v4321
      %v4343 = vpack.c.b16 %v4324, %v4323
      %v4344 = vpack.c.b16 %v4326, %v4325
      %v4345 = vpack.c.b16 %v4328, %v4327
      %v4346 = vpack.c.b16 %v4330, %v4329
      %v4349 = vunpack.c.l.b16 %v4297
      %v4350 = vunpack.c.l.b16 %v4298
      %v4351 = vpack.c.b16 %v4350, %v4349
      %v4354 = vsel %vm435, %v4331, 0
      %v4357 = vsel %vm435, %v4332, 0
      %v4360 = vsel %vm435, %v4333, 0
      %v4363 = vsel %vm435, %v4334, 0
      %v4366 = vsel %vm435, %v4335, 0
      %v4369 = vsel %vm435, %v4336, 0
      %v4372 = vsel %vm435, %v4337, 0
      %v4375 = vsel %vm435, %v4338, 0
      %v4378 = vsel %vm435, %v4339, 0
      %v4381 = vsel %vm435, %v4340, 0
      %v4384 = vsel %vm435, %v4341, 0
      %v4387 = vsel %vm435, %v4342, 0
      %v4390 = vsel %vm435, %v4343, 0
      %v4393 = vsel %vm435, %v4344, 0
      %v4396 = vsel %vm435, %v4345, 0
      %v4399 = vsel %vm435, %v4346, 0
      %4401 = vmatprep.subr.bf16.mxu0 0
      %4402 = vmatpush1.bf16.msra.mxu0 %v4351
      %4403 = vmatprep.subr.bf16.mxu0 0
      %4404 = vmatpush1.bf16.msra.mxu0 0
      %4405 = vmatprep.subr.bf16.mxu0 0
      %4406 = vmatpush1.bf16.msra.mxu0 0
      %4407 = vmatprep.subr.bf16.mxu0 0
      %4408 = vmatpush1.bf16.msra.mxu0 0
      %4409 = vmatprep.subr.bf16.mxu0 0
      %4410 = vmatpush1.bf16.msra.mxu0 0
      %4411 = vmatprep.subr.bf16.mxu0 0
      %4412 = vmatpush1.bf16.msra.mxu0 0
      %4413 = vmatprep.subr.bf16.mxu0 0
      %4414 = vmatpush1.bf16.msra.mxu0 0
      %4415 = vmatprep.subr.bf16.mxu0 0
      %4416 = vmatpush1.bf16.msra.mxu0 0
      %4417 = vmatprep.subr.bf16.mxu0 0
      %4418 = vmatpush1.bf16.msra.mxu0 0
      %4419 = vmatprep.subr.bf16.mxu0 0
      %4420 = vmatpush1.bf16.msra.mxu0 0
      %4421 = vmatprep.subr.bf16.mxu0 0
      %4422 = vmatpush1.bf16.msra.mxu0 0
      %4423 = vmatprep.subr.bf16.mxu0 0
      %4424 = vmatpush1.bf16.msra.mxu0 0
      %4425 = vmatprep.subr.bf16.mxu0 0
      %4426 = vmatpush1.bf16.msra.mxu0 0
      %4427 = vmatprep.subr.bf16.mxu0 0
      %4428 = vmatpush1.bf16.msra.mxu0 0
      %4429 = vmatprep.subr.bf16.mxu0 0
      %4430 = vmatpush1.bf16.msra.mxu0 0
      %4431 = vmatprep.subr.bf16.mxu0 0
      %4432 = vmatpush1.bf16.msra.mxu0 0
      %4433 = vmatprep.mubr.bf16.mxu0 0
      %4434 = vmatmul.mubr.bf16.gmra.mrb[0].mxu0 %v4354
      %v4435 = vpop.f32.mrb[0].mxu0
      %v4436 = vadd.f32 0.0, %v4435
      %v4437 = vpop.f32.mrb[0].mxu0
      %v4438 = vpop.f32.mrb[0].mxu0
      %v4439 = vadd.f32 0.0, %v4438
      %v4440 = vpop.f32.mrb[0].mxu0
      %4441 = vmatprep.mubr.bf16.mxu0 0
      %4442 = vmatmul.mubr.bf16.gmra.mrb[0].mxu0 %v4357
      %v4443 = vpop.f32.mrb[0].mxu0
      %v4444 = vadd.f32 0.0, %v4443
      %v4445 = vpop.f32.mrb[0].mxu0
      %v4446 = vpop.f32.mrb[0].mxu0
      %v4447 = vadd.f32 0.0, %v4446
      %v4448 = vpop.f32.mrb[0].mxu0
      %4449 = vmatprep.mubr.bf16.mxu0 0
      %4450 = vmatmul.mubr.bf16.gmra.mrb[0].mxu0 %v4360
      %v4451 = vpop.f32.mrb[0].mxu0
      %v4452 = vadd.f32 0.0, %v4451
      %v4453 = vpop.f32.mrb[0].mxu0
      %v4454 = vpop.f32.mrb[0].mxu0
      %v4455 = vadd.f32 0.0, %v4454
      %v4456 = vpop.f32.mrb[0].mxu0
      %4457 = vmatprep.mubr.bf16.mxu0 0
      %4458 = vmatmul.mubr.bf16.gmra.mrb[0].mxu0 %v4363
      %v4459 = vpop.f32.mrb[0].mxu0
      %v4460 = vadd.f32 0.0, %v4459
      %v4461 = vpop.f32.mrb[0].mxu0
      %v4462 = vpop.f32.mrb[0].mxu0
      %v4463 = vadd.f32 0.0, %v4462
      %v4464 = vpop.f32.mrb[0].mxu0
      %4465 = vmatprep.mubr.bf16.mxu0 0
      %4466 = vmatmul.mubr.bf16.gmra.mrb[0].mxu0 %v4366
      %v4467 = vpop.f32.mrb[0].mxu0
      %v4468 = vadd.f32 0.0, %v4467
      %v4469 = vpop.f32.mrb[0].mxu0
      %v4470 = vpop.f32.mrb[0].mxu0
      %v4471 = vadd.f32 0.0, %v4470
      %v4472 = vpop.f32.mrb[0].mxu0
      %4473 = vmatprep.mubr.bf16.mxu0 0
      %4474 = vmatmul.mubr.bf16.gmra.mrb[0].mxu0 %v4369
      %v4475 = vpop.f32.mrb[0].mxu0
      %v4476 = vadd.f32 0.0, %v4475
      %v4477 = vpop.f32.mrb[0].mxu0
      %v4478 = vpop.f32.mrb[0].mxu0
      %v4479 = vadd.f32 0.0, %v4478
      %v4480 = vpop.f32.mrb[0].mxu0
      %4481 = vmatprep.mubr.bf16.mxu0 0
      %4482 = vmatmul.mubr.bf16.gmra.mrb[0].mxu0 %v4372
      %v4483 = vpop.f32.mrb[0].mxu0
      %v4484 = vadd.f32 0.0, %v4483
      %v4485 = vpop.f32.mrb[0].mxu0
      %v4486 = vpop.f32.mrb[0].mxu0
      %v4487 = vadd.f32 0.0, %v4486
      %v4488 = vpop.f32.mrb[0].mxu0
      %4489 = vmatprep.mubr.bf16.mxu0 0
      %4490 = vmatmul.mubr.bf16.gmra.mrb[0].mxu0 %v4375
      %v4491 = vpop.f32.mrb[0].mxu0
      %v4492 = vadd.f32 0.0, %v4491
      %v4493 = vpop.f32.mrb[0].mxu0
      %v4494 = vpop.f32.mrb[0].mxu0
      %v4495 = vadd.f32 0.0, %v4494
      %v4496 = vpop.f32.mrb[0].mxu0
      %4497 = vmatprep.mubr.bf16.mxu0 0
      %4498 = vmatmul.mubr.bf16.gmra.mrb[0].mxu0 %v4378
      %v4499 = vpop.f32.mrb[0].mxu0
      %v4500 = vadd.f32 0.0, %v4499
      %v4501 = vpop.f32.mrb[0].mxu0
      %v4502 = vpop.f32.mrb[0].mxu0
      %v4503 = vadd.f32 0.0, %v4502
      %v4504 = vpop.f32.mrb[0].mxu0
      %4505 = vmatprep.mubr.bf16.mxu0 0
      %4506 = vmatmul.mubr.bf16.gmra.mrb[0].mxu0 %v4381
      %v4507 = vpop.f32.mrb[0].mxu0
      %v4508 = vadd.f32 0.0, %v4507
      %v4509 = vpop.f32.mrb[0].mxu0
      %v4510 = vpop.f32.mrb[0].mxu0
      %v4511 = vadd.f32 0.0, %v4510
      %v4512 = vpop.f32.mrb[0].mxu0
      %4513 = vmatprep.mubr.bf16.mxu0 0
      %4514 = vmatmul.mubr.bf16.gmra.mrb[0].mxu0 %v4384
      %v4515 = vpop.f32.mrb[0].mxu0
      %v4516 = vadd.f32 0.0, %v4515
      %v4517 = vpop.f32.mrb[0].mxu0
      %v4518 = vpop.f32.mrb[0].mxu0
      %v4519 = vadd.f32 0.0, %v4518
      %v4520 = vpop.f32.mrb[0].mxu0
      %4521 = vmatprep.mubr.bf16.mxu0 0
      %4522 = vmatmul.mubr.bf16.gmra.mrb[0].mxu0 %v4387
      %v4523 = vpop.f32.mrb[0].mxu0
      %v4524 = vadd.f32 0.0, %v4523
      %v4525 = vpop.f32.mrb[0].mxu0
      %v4526 = vpop.f32.mrb[0].mxu0
      %v4527 = vadd.f32 0.0, %v4526
      %v4528 = vpop.f32.mrb[0].mxu0
      %4529 = vmatprep.mubr.bf16.mxu0 0
      %4530 = vmatmul.mubr.bf16.gmra.mrb[0].mxu0 %v4390
      %v4531 = vpop.f32.mrb[0].mxu0
      %v4532 = vadd.f32 0.0, %v4531
      %v4533 = vpop.f32.mrb[0].mxu0
      %v4534 = vpop.f32.mrb[0].mxu0
      %v4535 = vadd.f32 0.0, %v4534
      %v4536 = vpop.f32.mrb[0].mxu0
      %4537 = vmatprep.mubr.bf16.mxu0 0
      %4538 = vmatmul.mubr.bf16.gmra.mrb[0].mxu0 %v4393
      %v4539 = vpop.f32.mrb[0].mxu0
      %v4540 = vadd.f32 0.0, %v4539
      %v4541 = vpop.f32.mrb[0].mxu0
      %v4542 = vpop.f32.mrb[0].mxu0
      %v4543 = vadd.f32 0.0, %v4542
      %v4544 = vpop.f32.mrb[0].mxu0
      %4545 = vmatprep.mubr.bf16.mxu0 0
      %4546 = vmatmul.mubr.bf16.gmra.mrb[0].mxu0 %v4396
      %v4547 = vpop.f32.mrb[0].mxu0
      %v4548 = vadd.f32 0.0, %v4547
      %v4549 = vpop.f32.mrb[0].mxu0
      %v4550 = vpop.f32.mrb[0].mxu0
      %v4551 = vadd.f32 0.0, %v4550
      %v4552 = vpop.f32.mrb[0].mxu0
      %4553 = vmatprep.mubr.bf16.mxu0 0
      %4554 = vmatmul.mubr.bf16.gmra.mrb[0].mxu0 %v4399
      %v4555 = vpop.f32.mrb[0].mxu0
      %v4556 = vadd.f32 0.0, %v4555
      %v4557 = vpop.f32.mrb[0].mxu0
      %v4558 = vpop.f32.mrb[0].mxu0
      %v4559 = vadd.f32 0.0, %v4558
      %v4560 = vpop.f32.mrb[0].mxu0
      %4561 = vdwg.mxu0
      %v4562 = vadd.f32 %v3833, %v4436
      %v4563 = vadd.f32 %v3834, %v4439
      %v4564 = vadd.f32 %v3835, %v4444
      %v4565 = vadd.f32 %v3836, %v4447
      %v4566 = vadd.f32 %v3837, %v4452
      %v4567 = vadd.f32 %v3838, %v4455
      %v4568 = vadd.f32 %v3839, %v4460
      %v4569 = vadd.f32 %v3840, %v4463
      %v4570 = vadd.f32 %v3841, %v4468
      %v4571 = vadd.f32 %v3842, %v4471
      %v4572 = vadd.f32 %v3843, %v4476
      %v4573 = vadd.f32 %v3844, %v4479
      %v4574 = vadd.f32 %v3845, %v4484
      %v4575 = vadd.f32 %v3846, %v4487
      %v4576 = vadd.f32 %v3847, %v4492
      %v4577 = vadd.f32 %v3848, %v4495
      %v4578 = vadd.f32 %v3849, %v4500
      %v4579 = vadd.f32 %v3850, %v4503
      %v4580 = vadd.f32 %v3851, %v4508
      %v4581 = vadd.f32 %v3852, %v4511
      %v4582 = vadd.f32 %v3853, %v4516
      %v4583 = vadd.f32 %v3854, %v4519
      %v4584 = vadd.f32 %v3855, %v4524
      %v4585 = vadd.f32 %v3856, %v4527
      %v4586 = vadd.f32 %v3857, %v4532
      %v4587 = vadd.f32 %v3858, %v4535
      %v4588 = vadd.f32 %v3859, %v4540
      %v4589 = vadd.f32 %v3860, %v4543
      %v4590 = vadd.f32 %v3861, %v4548
      %v4591 = vadd.f32 %v3862, %v4551
      %v4592 = vadd.f32 %v3863, %v4556
      %v4593 = vadd.f32 %v3864, %v4559
      %v4594 = vld [vmem:[%s848] sm:$0xe]
      %v4595 = vld [vmem:[%s848 + $0xc] sm:$0xe]
      %v4596 = vld [vmem:[%s848 + $0x18] sm:$0xe]
      %v4597 = vld [vmem:[%s848 + $0x24] sm:$0xe]
      %v4598 = vld [vmem:[%s848 + $0x30] sm:$0xe]
      %v4599 = vld [vmem:[%s848 + $0x3c] sm:$0xe]
      %v4600 = vld [vmem:[%s848 + $0x48] sm:$0xe]
      %v4601 = vld [vmem:[%s848 + $0x54] sm:$0xe]
      %v4602 = vld [vmem:[%s848 + $0x60] sm:$0xe]
      %v4603 = vld [vmem:[%s848 + $0x6c] sm:$0xe]
      %v4604 = vld [vmem:[%s848 + $0x78] sm:$0xe]
      %v4605 = vld [vmem:[%s848 + $0x84] sm:$0xe]
      %v4606 = vld [vmem:[%s848 + $0x90] sm:$0xe]
      %v4607 = vld [vmem:[%s848 + $0x9c] sm:$0xe]
      %v4608 = vld [vmem:[%s848 + $0xa8] sm:$0xe]
      %v4609 = vld [vmem:[%s848 + $0xb4] sm:$0xe]
      %v4658 = vrot.slane %v4594, 5
      %v4659 = vrot.slane %v4658, 4
      %v4660 = vrot.slane %v3866, 5
      %v4661 = vsel %vm3094, %v4659, %v4660
      %v4662 = vrot.slane %v4660, 4
      %v4663 = vrot.slane %v3867, 5
      %v4664 = vsel %vm3094, %v4662, %v4663
      %v4665 = vrot.slane %v4595, 5
      %v4666 = vrot.slane %v4665, 4
      %v4667 = vrot.slane %v3869, 5
      %v4668 = vsel %vm3094, %v4666, %v4667
      %v4669 = vrot.slane %v4667, 4
      %v4670 = vrot.slane %v3870, 5
      %v4671 = vsel %vm3094, %v4669, %v4670
      %v4672 = vrot.slane %v4596, 5
      %v4673 = vrot.slane %v4672, 4
      %v4674 = vrot.slane %v3872, 5
      %v4675 = vsel %vm3094, %v4673, %v4674
      %v4676 = vrot.slane %v4674, 4
      %v4677 = vrot.slane %v3873, 5
      %v4678 = vsel %vm3094, %v4676, %v4677
      %v4679 = vrot.slane %v4597, 5
      %v4680 = vrot.slane %v4679, 4
      %v4681 = vrot.slane %v3875, 5
      %v4682 = vsel %vm3094, %v4680, %v4681
      %v4683 = vrot.slane %v4681, 4
      %v4684 = vrot.slane %v3876, 5
      %v4685 = vsel %vm3094, %v4683, %v4684
      %v4686 = vrot.slane %v4598, 5
      %v4687 = vrot.slane %v4686, 4
      %v4688 = vrot.slane %v3878, 5
      %v4689 = vsel %vm3094, %v4687, %v4688
      %v4690 = vrot.slane %v4688, 4
      %v4691 = vrot.slane %v3879, 5
      %v4692 = vsel %vm3094, %v4690, %v4691
      %v4693 = vrot.slane %v4599, 5
      %v4694 = vrot.slane %v4693, 4
      %v4695 = vrot.slane %v3881, 5
      %v4696 = vsel %vm3094, %v4694, %v4695
      %v4697 = vrot.slane %v4695, 4
      %v4698 = vrot.slane %v3882, 5
      %v4699 = vsel %vm3094, %v4697, %v4698
      %v4700 = vrot.slane %v4600, 5
      %v4701 = vrot.slane %v4700, 4
      %v4702 = vrot.slane %v3884, 5
      %v4703 = vsel %vm3094, %v4701, %v4702
      %v4704 = vrot.slane %v4702, 4
      %v4705 = vrot.slane %v3885, 5
      %v4706 = vsel %vm3094, %v4704, %v4705
      %v4707 = vrot.slane %v4601, 5
      %v4708 = vrot.slane %v4707, 4
      %v4709 = vrot.slane %v3887, 5
      %v4710 = vsel %vm3094, %v4708, %v4709
      %v4711 = vrot.slane %v4709, 4
      %v4712 = vrot.slane %v3888, 5
      %v4713 = vsel %vm3094, %v4711, %v4712
      %v4714 = vrot.slane %v4602, 5
      %v4715 = vrot.slane %v4714, 4
      %v4716 = vrot.slane %v3890, 5
      %v4717 = vsel %vm3094, %v4715, %v4716
      %v4718 = vrot.slane %v4716, 4
      %v4719 = vrot.slane %v3891, 5
      %v4720 = vsel %vm3094, %v4718, %v4719
      %v4721 = vrot.slane %v4603, 5
      %v4722 = vrot.slane %v4721, 4
      %v4723 = vrot.slane %v3893, 5
      %v4724 = vsel %vm3094, %v4722, %v4723
      %v4725 = vrot.slane %v4723, 4
      %v4726 = vrot.slane %v3894, 5
      %v4727 = vsel %vm3094, %v4725, %v4726
      %v4728 = vrot.slane %v4604, 5
      %v4729 = vrot.slane %v4728, 4
      %v4730 = vrot.slane %v3896, 5
      %v4731 = vsel %vm3094, %v4729, %v4730
      %v4732 = vrot.slane %v4730, 4
      %v4733 = vrot.slane %v3897, 5
      %v4734 = vsel %vm3094, %v4732, %v4733
      %v4735 = vrot.slane %v4605, 5
      %v4736 = vrot.slane %v4735, 4
      %v4737 = vrot.slane %v3899, 5
      %v4738 = vsel %vm3094, %v4736, %v4737
      %v4739 = vrot.slane %v4737, 4
      %v4740 = vrot.slane %v3900, 5
      %v4741 = vsel %vm3094, %v4739, %v4740
      %v4742 = vrot.slane %v4606, 5
      %v4743 = vrot.slane %v4742, 4
      %v4744 = vrot.slane %v3902, 5
      %v4745 = vsel %vm3094, %v4743, %v4744
      %v4746 = vrot.slane %v4744, 4
      %v4747 = vrot.slane %v3903, 5
      %v4748 = vsel %vm3094, %v4746, %v4747
      %v4749 = vrot.slane %v4607, 5
      %v4750 = vrot.slane %v4749, 4
      %v4751 = vrot.slane %v3905, 5
      %v4752 = vsel %vm3094, %v4750, %v4751
      %v4753 = vrot.slane %v4751, 4
      %v4754 = vrot.slane %v3906, 5
      %v4755 = vsel %vm3094, %v4753, %v4754
      %v4756 = vrot.slane %v4608, 5
      %v4757 = vrot.slane %v4756, 4
      %v4758 = vrot.slane %v3908, 5
      %v4759 = vsel %vm3094, %v4757, %v4758
      %v4760 = vrot.slane %v4758, 4
      %v4761 = vrot.slane %v3909, 5
      %v4762 = vsel %vm3094, %v4760, %v4761
      %v4763 = vrot.slane %v4609, 5
      %v4764 = vrot.slane %v4763, 4
      %v4765 = vrot.slane %v3911, 5
      %v4766 = vsel %vm3094, %v4764, %v4765
      %v4767 = vrot.slane %v4765, 4
      %v4768 = vrot.slane %v3912, 5
      %v4769 = vsel %vm3094, %v4767, %v4768
      %v4770 = vld [vmem:[%s5 + $0x28] sm:$0xf]
      %v4771 = vld [vmem:[%s5 + $0x2c] sm:$0xf]
      %v4772 = vunpack.c.l.b16 %v4661
      %v4773 = vunpack.c.l.b16 %v4664
      %v4774 = vunpack.c.l.b16 %v4668
      %v4775 = vunpack.c.l.b16 %v4671
      %v4776 = vunpack.c.l.b16 %v4675
      %v4777 = vunpack.c.l.b16 %v4678
      %v4778 = vunpack.c.l.b16 %v4682
      %v4779 = vunpack.c.l.b16 %v4685
      %v4780 = vunpack.c.l.b16 %v4689
      %v4781 = vunpack.c.l.b16 %v4692
      %v4782 = vunpack.c.l.b16 %v4696
      %v4783 = vunpack.c.l.b16 %v4699
      %v4784 = vunpack.c.l.b16 %v4703
      %v4785 = vunpack.c.l.b16 %v4706
      %v4786 = vunpack.c.l.b16 %v4710
      %v4787 = vunpack.c.l.b16 %v4713
      %v4788 = vunpack.c.l.b16 %v4717
      %v4789 = vunpack.c.l.b16 %v4720
      %v4790 = vunpack.c.l.b16 %v4724
      %v4791 = vunpack.c.l.b16 %v4727
      %v4792 = vunpack.c.l.b16 %v4731
      %v4793 = vunpack.c.l.b16 %v4734
      %v4794 = vunpack.c.l.b16 %v4738
      %v4795 = vunpack.c.l.b16 %v4741
      %v4796 = vunpack.c.l.b16 %v4745
      %v4797 = vunpack.c.l.b16 %v4748
      %v4798 = vunpack.c.l.b16 %v4752
      %v4799 = vunpack.c.l.b16 %v4755
      %v4800 = vunpack.c.l.b16 %v4759
      %v4801 = vunpack.c.l.b16 %v4762
      %v4802 = vunpack.c.l.b16 %v4766
      %v4803 = vunpack.c.l.b16 %v4769
      %v4804 = vpack.c.b16 %v4773, %v4772
      %v4805 = vpack.c.b16 %v4775, %v4774
      %v4806 = vpack.c.b16 %v4777, %v4776
      %v4807 = vpack.c.b16 %v4779, %v4778
      %v4808 = vpack.c.b16 %v4781, %v4780
      %v4809 = vpack.c.b16 %v4783, %v4782
      %v4810 = vpack.c.b16 %v4785, %v4784
      %v4811 = vpack.c.b16 %v4787, %v4786
      %v4812 = vpack.c.b16 %v4789, %v4788
      %v4813 = vpack.c.b16 %v4791, %v4790
      %v4814 = vpack.c.b16 %v4793, %v4792
      %v4815 = vpack.c.b16 %v4795, %v4794
      %v4816 = vpack.c.b16 %v4797, %v4796
      %v4817 = vpack.c.b16 %v4799, %v4798
      %v4818 = vpack.c.b16 %v4801, %v4800
      %v4819 = vpack.c.b16 %v4803, %v4802
      %v4822 = vunpack.c.l.b16 %v4770
      %v4823 = vunpack.c.l.b16 %v4771
      %v4824 = vpack.c.b16 %v4823, %v4822
      %v4827 = vsel %vm435, %v4804, 0
      %v4830 = vsel %vm435, %v4805, 0
      %v4833 = vsel %vm435, %v4806, 0
      %v4836 = vsel %vm435, %v4807, 0
      %v4839 = vsel %vm435, %v4808, 0
      %v4842 = vsel %vm435, %v4809, 0
      %v4845 = vsel %vm435, %v4810, 0
      %v4848 = vsel %vm435, %v4811, 0
      %v4851 = vsel %vm435, %v4812, 0
      %v4854 = vsel %vm435, %v4813, 0
      %v4857 = vsel %vm435, %v4814, 0
      %v4860 = vsel %vm435, %v4815, 0
      %v4863 = vsel %vm435, %v4816, 0
      %v4866 = vsel %vm435, %v4817, 0
      %v4869 = vsel %vm435, %v4818, 0
      %v4872 = vsel %vm435, %v4819, 0
      %4874 = vmatprep.subr.bf16.mxu0 0
      %4875 = vmatpush1.bf16.msra.mxu0 %v4824
      %4876 = vmatprep.subr.bf16.mxu0 0
      %4877 = vmatpush1.bf16.msra.mxu0 0
      %4878 = vmatprep.subr.bf16.mxu0 0
      %4879 = vmatpush1.bf16.msra.mxu0 0
      %4880 = vmatprep.subr.bf16.mxu0 0
      %4881 = vmatpush1.bf16.msra.mxu0 0
      %4882 = vmatprep.subr.bf16.mxu0 0
      %4883 = vmatpush1.bf16.msra.mxu0 0
      %4884 = vmatprep.subr.bf16.mxu0 0
      %4885 = vmatpush1.bf16.msra.mxu0 0
      %4886 = vmatprep.subr.bf16.mxu0 0
      %4887 = vmatpush1.bf16.msra.mxu0 0
      %4888 = vmatprep.subr.bf16.mxu0 0
      %4889 = vmatpush1.bf16.msra.mxu0 0
      %4890 = vmatprep.subr.bf16.mxu0 0
      %4891 = vmatpush1.bf16.msra.mxu0 0
      %4892 = vmatprep.subr.bf16.mxu0 0
      %4893 = vmatpush1.bf16.msra.mxu0 0
      %4894 = vmatprep.subr.bf16.mxu0 0
      %4895 = vmatpush1.bf16.msra.mxu0 0
      %4896 = vmatprep.subr.bf16.mxu0 0
      %4897 = vmatpush1.bf16.msra.mxu0 0
      %4898 = vmatprep.subr.bf16.mxu0 0
      %4899 = vmatpush1.bf16.msra.mxu0 0
      %4900 = vmatprep.subr.bf16.mxu0 0
      %4901 = vmatpush1.bf16.msra.mxu0 0
      %4902 = vmatprep.subr.bf16.mxu0 0
      %4903 = vmatpush1.bf16.msra.mxu0 0
      %4904 = vmatprep.subr.bf16.mxu0 0
      %4905 = vmatpush1.bf16.msra.mxu0 0
      %4906 = vmatprep.mubr.bf16.mxu0 0
      %4907 = vmatmul.mubr.bf16.gmra.mrb[0].mxu0 %v4827
      %v4908 = vpop.f32.mrb[0].mxu0
      %v4909 = vadd.f32 0.0, %v4908
      %v4910 = vpop.f32.mrb[0].mxu0
      %v4911 = vpop.f32.mrb[0].mxu0
      %v4912 = vadd.f32 0.0, %v4911
      %v4913 = vpop.f32.mrb[0].mxu0
      %4914 = vmatprep.mubr.bf16.mxu0 0
      %4915 = vmatmul.mubr.bf16.gmra.mrb[0].mxu0 %v4830
      %v4916 = vpop.f32.mrb[0].mxu0
      %v4917 = vadd.f32 0.0, %v4916
      %v4918 = vpop.f32.mrb[0].mxu0
      %v4919 = vpop.f32.mrb[0].mxu0
      %v4920 = vadd.f32 0.0, %v4919
      %v4921 = vpop.f32.mrb[0].mxu0
      %4922 = vmatprep.mubr.bf16.mxu0 0
      %4923 = vmatmul.mubr.bf16.gmra.mrb[0].mxu0 %v4833
      %v4924 = vpop.f32.mrb[0].mxu0
      %v4925 = vadd.f32 0.0, %v4924
      %v4926 = vpop.f32.mrb[0].mxu0
      %v4927 = vpop.f32.mrb[0].mxu0
      %v4928 = vadd.f32 0.0, %v4927
      %v4929 = vpop.f32.mrb[0].mxu0
      %4930 = vmatprep.mubr.bf16.mxu0 0
      %4931 = vmatmul.mubr.bf16.gmra.mrb[0].mxu0 %v4836
      %v4932 = vpop.f32.mrb[0].mxu0
      %v4933 = vadd.f32 0.0, %v4932
      %v4934 = vpop.f32.mrb[0].mxu0
      %v4935 = vpop.f32.mrb[0].mxu0
      %v4936 = vadd.f32 0.0, %v4935
      %v4937 = vpop.f32.mrb[0].mxu0
      %4938 = vmatprep.mubr.bf16.mxu0 0
      %4939 = vmatmul.mubr.bf16.gmra.mrb[0].mxu0 %v4839
      %v4940 = vpop.f32.mrb[0].mxu0
      %v4941 = vadd.f32 0.0, %v4940
      %v4942 = vpop.f32.mrb[0].mxu0
      %v4943 = vpop.f32.mrb[0].mxu0
      %v4944 = vadd.f32 0.0, %v4943
      %v4945 = vpop.f32.mrb[0].mxu0
      %4946 = vmatprep.mubr.bf16.mxu0 0
      %4947 = vmatmul.mubr.bf16.gmra.mrb[0].mxu0 %v4842
      %v4948 = vpop.f32.mrb[0].mxu0
      %v4949 = vadd.f32 0.0, %v4948
      %v4950 = vpop.f32.mrb[0].mxu0
      %v4951 = vpop.f32.mrb[0].mxu0
      %v4952 = vadd.f32 0.0, %v4951
      %v4953 = vpop.f32.mrb[0].mxu0
      %4954 = vmatprep.mubr.bf16.mxu0 0
      %4955 = vmatmul.mubr.bf16.gmra.mrb[0].mxu0 %v4845
      %v4956 = vpop.f32.mrb[0].mxu0
      %v4957 = vadd.f32 0.0, %v4956
      %v4958 = vpop.f32.mrb[0].mxu0
      %v4959 = vpop.f32.mrb[0].mxu0
      %v4960 = vadd.f32 0.0, %v4959
      %v4961 = vpop.f32.mrb[0].mxu0
      %4962 = vmatprep.mubr.bf16.mxu0 0
      %4963 = vmatmul.mubr.bf16.gmra.mrb[0].mxu0 %v4848
      %v4964 = vpop.f32.mrb[0].mxu0
      %v4965 = vadd.f32 0.0, %v4964
      %v4966 = vpop.f32.mrb[0].mxu0
      %v4967 = vpop.f32.mrb[0].mxu0
      %v4968 = vadd.f32 0.0, %v4967
      %v4969 = vpop.f32.mrb[0].mxu0
      %4970 = vmatprep.mubr.bf16.mxu0 0
      %4971 = vmatmul.mubr.bf16.gmra.mrb[0].mxu0 %v4851
      %v4972 = vpop.f32.mrb[0].mxu0
      %v4973 = vadd.f32 0.0, %v4972
      %v4974 = vpop.f32.mrb[0].mxu0
      %v4975 = vpop.f32.mrb[0].mxu0
      %v4976 = vadd.f32 0.0, %v4975
      %v4977 = vpop.f32.mrb[0].mxu0
      %4978 = vmatprep.mubr.bf16.mxu0 0
      %4979 = vmatmul.mubr.bf16.gmra.mrb[0].mxu0 %v4854
      %v4980 = vpop.f32.mrb[0].mxu0
      %v4981 = vadd.f32 0.0, %v4980
      %v4982 = vpop.f32.mrb[0].mxu0
      %v4983 = vpop.f32.mrb[0].mxu0
      %v4984 = vadd.f32 0.0, %v4983
      %v4985 = vpop.f32.mrb[0].mxu0
      %4986 = vmatprep.mubr.bf16.mxu0 0
      %4987 = vmatmul.mubr.bf16.gmra.mrb[0].mxu0 %v4857
      %v4988 = vpop.f32.mrb[0].mxu0
      %v4989 = vadd.f32 0.0, %v4988
      %v4990 = vpop.f32.mrb[0].mxu0
      %v4991 = vpop.f32.mrb[0].mxu0
      %v4992 = vadd.f32 0.0, %v4991
      %v4993 = vpop.f32.mrb[0].mxu0
      %4994 = vmatprep.mubr.bf16.mxu0 0
      %4995 = vmatmul.mubr.bf16.gmra.mrb[0].mxu0 %v4860
      %v4996 = vpop.f32.mrb[0].mxu0
      %v4997 = vadd.f32 0.0, %v4996
      %v4998 = vpop.f32.mrb[0].mxu0
      %v4999 = vpop.f32.mrb[0].mxu0
      %v5000 = vadd.f32 0.0, %v4999
      %v5001 = vpop.f32.mrb[0].mxu0
      %5002 = vmatprep.mubr.bf16.mxu0 0
      %5003 = vmatmul.mubr.bf16.gmra.mrb[0].mxu0 %v4863
      %v5004 = vpop.f32.mrb[0].mxu0
      %v5005 = vadd.f32 0.0, %v5004
      %v5006 = vpop.f32.mrb[0].mxu0
      %v5007 = vpop.f32.mrb[0].mxu0
      %v5008 = vadd.f32 0.0, %v5007
      %v5009 = vpop.f32.mrb[0].mxu0
      %5010 = vmatprep.mubr.bf16.mxu0 0
      %5011 = vmatmul.mubr.bf16.gmra.mrb[0].mxu0 %v4866
      %v5012 = vpop.f32.mrb[0].mxu0
      %v5013 = vadd.f32 0.0, %v5012
      %v5014 = vpop.f32.mrb[0].mxu0
      %v5015 = vpop.f32.mrb[0].mxu0
      %v5016 = vadd.f32 0.0, %v5015
      %v5017 = vpop.f32.mrb[0].mxu0
      %5018 = vmatprep.mubr.bf16.mxu0 0
      %5019 = vmatmul.mubr.bf16.gmra.mrb[0].mxu0 %v4869
      %v5020 = vpop.f32.mrb[0].mxu0
      %v5021 = vadd.f32 0.0, %v5020
      %v5022 = vpop.f32.mrb[0].mxu0
      %v5023 = vpop.f32.mrb[0].mxu0
      %v5024 = vadd.f32 0.0, %v5023
      %v5025 = vpop.f32.mrb[0].mxu0
      %5026 = vmatprep.mubr.bf16.mxu0 0
      %5027 = vmatmul.mubr.bf16.gmra.mrb[0].mxu0 %v4872
      %v5028 = vpop.f32.mrb[0].mxu0
      %v5029 = vadd.f32 0.0, %v5028
      %v5030 = vpop.f32.mrb[0].mxu0
      %v5031 = vpop.f32.mrb[0].mxu0
      %v5032 = vadd.f32 0.0, %v5031
      %v5033 = vpop.f32.mrb[0].mxu0
      %5034 = vdwg.mxu0
      %v5035 = vadd.f32 %v4562, %v4909
      %v5036 = vadd.f32 %v4563, %v4912
      %v5037 = vadd.f32 %v4564, %v4917
      %v5038 = vadd.f32 %v4565, %v4920
      %v5039 = vadd.f32 %v4566, %v4925
      %v5040 = vadd.f32 %v4567, %v4928
      %v5041 = vadd.f32 %v4568, %v4933
      %v5042 = vadd.f32 %v4569, %v4936
      %v5043 = vadd.f32 %v4570, %v4941
      %v5044 = vadd.f32 %v4571, %v4944
      %v5045 = vadd.f32 %v4572, %v4949
      %v5046 = vadd.f32 %v4573, %v4952
      %v5047 = vadd.f32 %v4574, %v4957
      %v5048 = vadd.f32 %v4575, %v4960
      %v5049 = vadd.f32 %v4576, %v4965
      %v5050 = vadd.f32 %v4577, %v4968
      %v5051 = vadd.f32 %v4578, %v4973
      %v5052 = vadd.f32 %v4579, %v4976
      %v5053 = vadd.f32 %v4580, %v4981
      %v5054 = vadd.f32 %v4581, %v4984
      %v5055 = vadd.f32 %v4582, %v4989
      %v5056 = vadd.f32 %v4583, %v4992
      %v5057 = vadd.f32 %v4584, %v4997
      %v5058 = vadd.f32 %v4585, %v5000
      %v5059 = vadd.f32 %v4586, %v5005
      %v5060 = vadd.f32 %v4587, %v5008
      %v5061 = vadd.f32 %v4588, %v5013
      %v5062 = vadd.f32 %v4589, %v5016
      %v5063 = vadd.f32 %v4590, %v5021
      %v5064 = vadd.f32 %v4591, %v5024
      %v5065 = vadd.f32 %v4592, %v5029
      %v5066 = vadd.f32 %v4593, %v5032
      %s5067 = scalar_lea.vmem [#allocation2], 24
      %v5068 = vld [vmem:[%s5067] sm:$0xf]
      %v5069 = vld [vmem:[%s5067 + $0x4] sm:$0xf]
      %v5070 = vld [vmem:[%s5067 + $0xc] sm:$0xf]
      %v5071 = vld [vmem:[%s5067 + $0x10] sm:$0xf]
      %v5072 = vld [vmem:[%s5067 + $0x18] sm:$0xf]
      %v5073 = vld [vmem:[%s5067 + $0x1c] sm:$0xf]
      %v5074 = vld [vmem:[%s5067 + $0x24] sm:$0xf]
      %v5075 = vld [vmem:[%s5067 + $0x28] sm:$0xf]
      %v5076 = vld [vmem:[%s5067 + $0x30] sm:$0xf]
      %v5077 = vld [vmem:[%s5067 + $0x34] sm:$0xf]
      %v5078 = vld [vmem:[%s5067 + $0x3c] sm:$0xf]
      %v5079 = vld [vmem:[%s5067 + $0x40] sm:$0xf]
      %v5080 = vld [vmem:[%s5067 + $0x48] sm:$0xf]
      %v5081 = vld [vmem:[%s5067 + $0x4c] sm:$0xf]
      %v5082 = vld [vmem:[%s5067 + $0x54] sm:$0xf]
      %v5083 = vld [vmem:[%s5067 + $0x58] sm:$0xf]
      %v5084 = vld [vmem:[%s5067 + $0x60] sm:$0xf]
      %v5085 = vld [vmem:[%s5067 + $0x64] sm:$0xf]
      %v5086 = vld [vmem:[%s5067 + $0x6c] sm:$0xf]
      %v5087 = vld [vmem:[%s5067 + $0x70] sm:$0xf]
      %v5088 = vld [vmem:[%s5067 + $0x78] sm:$0xf]
      %v5089 = vld [vmem:[%s5067 + $0x7c] sm:$0xf]
      %v5090 = vld [vmem:[%s5067 + $0x84] sm:$0xf]
      %v5091 = vld [vmem:[%s5067 + $0x88] sm:$0xf]
      %v5092 = vld [vmem:[%s5067 + $0x90] sm:$0xf]
      %v5093 = vld [vmem:[%s5067 + $0x94] sm:$0xf]
      %v5094 = vld [vmem:[%s5067 + $0x9c] sm:$0xf]
      %v5095 = vld [vmem:[%s5067 + $0xa0] sm:$0xf]
      %v5096 = vld [vmem:[%s5067 + $0xa8] sm:$0xf]
      %v5097 = vld [vmem:[%s5067 + $0xac] sm:$0xf]
      %v5098 = vld [vmem:[%s5067 + $0xb4] sm:$0xf]
      %v5099 = vld [vmem:[%s5067 + $0xb8] sm:$0xf]
      %v5100 = vld [vmem:[%s5 + $0x30] sm:$0xf]
      %v5101 = vld [vmem:[%s5 + $0x34] sm:$0xf]
      %v5134 = vunpack.c.l.b16 %v5068
      %v5135 = vunpack.c.l.b16 %v5069
      %v5136 = vunpack.c.l.b16 %v5070
      %v5137 = vunpack.c.l.b16 %v5071
      %v5138 = vunpack.c.l.b16 %v5072
      %v5139 = vunpack.c.l.b16 %v5073
      %v5140 = vunpack.c.l.b16 %v5074
      %v5141 = vunpack.c.l.b16 %v5075
      %v5142 = vunpack.c.l.b16 %v5076
      %v5143 = vunpack.c.l.b16 %v5077
      %v5144 = vunpack.c.l.b16 %v5078
      %v5145 = vunpack.c.l.b16 %v5079
      %v5146 = vunpack.c.l.b16 %v5080
      %v5147 = vunpack.c.l.b16 %v5081
      %v5148 = vunpack.c.l.b16 %v5082
      %v5149 = vunpack.c.l.b16 %v5083
      %v5150 = vunpack.c.l.b16 %v5084
      %v5151 = vunpack.c.l.b16 %v5085
      %v5152 = vunpack.c.l.b16 %v5086
      %v5153 = vunpack.c.l.b16 %v5087
      %v5154 = vunpack.c.l.b16 %v5088
      %v5155 = vunpack.c.l.b16 %v5089
      %v5156 = vunpack.c.l.b16 %v5090
      %v5157 = vunpack.c.l.b16 %v5091
      %v5158 = vunpack.c.l.b16 %v5092
      %v5159 = vunpack.c.l.b16 %v5093
      %v5160 = vunpack.c.l.b16 %v5094
      %v5161 = vunpack.c.l.b16 %v5095
      %v5162 = vunpack.c.l.b16 %v5096
      %v5163 = vunpack.c.l.b16 %v5097
      %v5164 = vunpack.c.l.b16 %v5098
      %v5165 = vunpack.c.l.b16 %v5099
      %v5166 = vpack.c.b16 %v5135, %v5134
      %v5167 = vpack.c.b16 %v5137, %v5136
      %v5168 = vpack.c.b16 %v5139, %v5138
      %v5169 = vpack.c.b16 %v5141, %v5140
      %v5170 = vpack.c.b16 %v5143, %v5142
      %v5171 = vpack.c.b16 %v5145, %v5144
      %v5172 = vpack.c.b16 %v5147, %v5146
      %v5173 = vpack.c.b16 %v5149, %v5148
      %v5174 = vpack.c.b16 %v5151, %v5150
      %v5175 = vpack.c.b16 %v5153, %v5152
      %v5176 = vpack.c.b16 %v5155, %v5154
      %v5177 = vpack.c.b16 %v5157, %v5156
      %v5178 = vpack.c.b16 %v5159, %v5158
      %v5179 = vpack.c.b16 %v5161, %v5160
      %v5180 = vpack.c.b16 %v5163, %v5162
      %v5181 = vpack.c.b16 %v5165, %v5164
      %v5184 = vunpack.c.l.b16 %v5100
      %v5185 = vunpack.c.l.b16 %v5101
      %v5186 = vpack.c.b16 %v5185, %v5184
      %v5189 = vsel %vm435, %v5166, 0
      %v5192 = vsel %vm435, %v5167, 0
      %v5195 = vsel %vm435, %v5168, 0
      %v5198 = vsel %vm435, %v5169, 0
      %v5201 = vsel %vm435, %v5170, 0
      %v5204 = vsel %vm435, %v5171, 0
      %v5207 = vsel %vm435, %v5172, 0
      %v5210 = vsel %vm435, %v5173, 0
      %v5213 = vsel %vm435, %v5174, 0
      %v5216 = vsel %vm435, %v5175, 0
      %v5219 = vsel %vm435, %v5176, 0
      %v5222 = vsel %vm435, %v5177, 0
      %v5225 = vsel %vm435, %v5178, 0
      %v5228 = vsel %vm435, %v5179, 0
      %v5231 = vsel %vm435, %v5180, 0
      %v5234 = vsel %vm435, %v5181, 0
      %5236 = vmatprep.subr.bf16.mxu0 0
      %5237 = vmatpush1.bf16.msra.mxu0 %v5186
      %5238 = vmatprep.subr.bf16.mxu0 0
      %5239 = vmatpush1.bf16.msra.mxu0 0
      %5240 = vmatprep.subr.bf16.mxu0 0
      %5241 = vmatpush1.bf16.msra.mxu0 0
      %5242 = vmatprep.subr.bf16.mxu0 0
      %5243 = vmatpush1.bf16.msra.mxu0 0
      %5244 = vmatprep.subr.bf16.mxu0 0
      %5245 = vmatpush1.bf16.msra.mxu0 0
      %5246 = vmatprep.subr.bf16.mxu0 0
      %5247 = vmatpush1.bf16.msra.mxu0 0
      %5248 = vmatprep.subr.bf16.mxu0 0
      %5249 = vmatpush1.bf16.msra.mxu0 0
      %5250 = vmatprep.subr.bf16.mxu0 0
      %5251 = vmatpush1.bf16.msra.mxu0 0
      %5252 = vmatprep.subr.bf16.mxu0 0
      %5253 = vmatpush1.bf16.msra.mxu0 0
      %5254 = vmatprep.subr.bf16.mxu0 0
      %5255 = vmatpush1.bf16.msra.mxu0 0
      %5256 = vmatprep.subr.bf16.mxu0 0
      %5257 = vmatpush1.bf16.msra.mxu0 0
      %5258 = vmatprep.subr.bf16.mxu0 0
      %5259 = vmatpush1.bf16.msra.mxu0 0
      %5260 = vmatprep.subr.bf16.mxu0 0
      %5261 = vmatpush1.bf16.msra.mxu0 0
      %5262 = vmatprep.subr.bf16.mxu0 0
      %5263 = vmatpush1.bf16.msra.mxu0 0
      %5264 = vmatprep.subr.bf16.mxu0 0
      %5265 = vmatpush1.bf16.msra.mxu0 0
      %5266 = vmatprep.subr.bf16.mxu0 0
      %5267 = vmatpush1.bf16.msra.mxu0 0
      %5268 = vmatprep.mubr.bf16.mxu0 0
      %5269 = vmatmul.mubr.bf16.gmra.mrb[0].mxu0 %v5189
      %v5270 = vpop.f32.mrb[0].mxu0
      %v5271 = vadd.f32 0.0, %v5270
      %v5272 = vpop.f32.mrb[0].mxu0
      %v5273 = vpop.f32.mrb[0].mxu0
      %v5274 = vadd.f32 0.0, %v5273
      %v5275 = vpop.f32.mrb[0].mxu0
      %5276 = vmatprep.mubr.bf16.mxu0 0
      %5277 = vmatmul.mubr.bf16.gmra.mrb[0].mxu0 %v5192
      %v5278 = vpop.f32.mrb[0].mxu0
      %v5279 = vadd.f32 0.0, %v5278
      %v5280 = vpop.f32.mrb[0].mxu0
      %v5281 = vpop.f32.mrb[0].mxu0
      %v5282 = vadd.f32 0.0, %v5281
      %v5283 = vpop.f32.mrb[0].mxu0
      %5284 = vmatprep.mubr.bf16.mxu0 0
      %5285 = vmatmul.mubr.bf16.gmra.mrb[0].mxu0 %v5195
      %v5286 = vpop.f32.mrb[0].mxu0
      %v5287 = vadd.f32 0.0, %v5286
      %v5288 = vpop.f32.mrb[0].mxu0
      %v5289 = vpop.f32.mrb[0].mxu0
      %v5290 = vadd.f32 0.0, %v5289
      %v5291 = vpop.f32.mrb[0].mxu0
      %5292 = vmatprep.mubr.bf16.mxu0 0
      %5293 = vmatmul.mubr.bf16.gmra.mrb[0].mxu0 %v5198
      %v5294 = vpop.f32.mrb[0].mxu0
      %v5295 = vadd.f32 0.0, %v5294
      %v5296 = vpop.f32.mrb[0].mxu0
      %v5297 = vpop.f32.mrb[0].mxu0
      %v5298 = vadd.f32 0.0, %v5297
      %v5299 = vpop.f32.mrb[0].mxu0
      %5300 = vmatprep.mubr.bf16.mxu0 0
      %5301 = vmatmul.mubr.bf16.gmra.mrb[0].mxu0 %v5201
      %v5302 = vpop.f32.mrb[0].mxu0
      %v5303 = vadd.f32 0.0, %v5302
      %v5304 = vpop.f32.mrb[0].mxu0
      %v5305 = vpop.f32.mrb[0].mxu0
      %v5306 = vadd.f32 0.0, %v5305
      %v5307 = vpop.f32.mrb[0].mxu0
      %5308 = vmatprep.mubr.bf16.mxu0 0
      %5309 = vmatmul.mubr.bf16.gmra.mrb[0].mxu0 %v5204
      %v5310 = vpop.f32.mrb[0].mxu0
      %v5311 = vadd.f32 0.0, %v5310
      %v5312 = vpop.f32.mrb[0].mxu0
      %v5313 = vpop.f32.mrb[0].mxu0
      %v5314 = vadd.f32 0.0, %v5313
      %v5315 = vpop.f32.mrb[0].mxu0
      %5316 = vmatprep.mubr.bf16.mxu0 0
      %5317 = vmatmul.mubr.bf16.gmra.mrb[0].mxu0 %v5207
      %v5318 = vpop.f32.mrb[0].mxu0
      %v5319 = vadd.f32 0.0, %v5318
      %v5320 = vpop.f32.mrb[0].mxu0
      %v5321 = vpop.f32.mrb[0].mxu0
      %v5322 = vadd.f32 0.0, %v5321
      %v5323 = vpop.f32.mrb[0].mxu0
      %5324 = vmatprep.mubr.bf16.mxu0 0
      %5325 = vmatmul.mubr.bf16.gmra.mrb[0].mxu0 %v5210
      %v5326 = vpop.f32.mrb[0].mxu0
      %v5327 = vadd.f32 0.0, %v5326
      %v5328 = vpop.f32.mrb[0].mxu0
      %v5329 = vpop.f32.mrb[0].mxu0
      %v5330 = vadd.f32 0.0, %v5329
      %v5331 = vpop.f32.mrb[0].mxu0
      %5332 = vmatprep.mubr.bf16.mxu0 0
      %5333 = vmatmul.mubr.bf16.gmra.mrb[0].mxu0 %v5213
      %v5334 = vpop.f32.mrb[0].mxu0
      %v5335 = vadd.f32 0.0, %v5334
      %v5336 = vpop.f32.mrb[0].mxu0
      %v5337 = vpop.f32.mrb[0].mxu0
      %v5338 = vadd.f32 0.0, %v5337
      %v5339 = vpop.f32.mrb[0].mxu0
      %5340 = vmatprep.mubr.bf16.mxu0 0
      %5341 = vmatmul.mubr.bf16.gmra.mrb[0].mxu0 %v5216
      %v5342 = vpop.f32.mrb[0].mxu0
      %v5343 = vadd.f32 0.0, %v5342
      %v5344 = vpop.f32.mrb[0].mxu0
      %v5345 = vpop.f32.mrb[0].mxu0
      %v5346 = vadd.f32 0.0, %v5345
      %v5347 = vpop.f32.mrb[0].mxu0
      %5348 = vmatprep.mubr.bf16.mxu0 0
      %5349 = vmatmul.mubr.bf16.gmra.mrb[0].mxu0 %v5219
      %v5350 = vpop.f32.mrb[0].mxu0
      %v5351 = vadd.f32 0.0, %v5350
      %v5352 = vpop.f32.mrb[0].mxu0
      %v5353 = vpop.f32.mrb[0].mxu0
      %v5354 = vadd.f32 0.0, %v5353
      %v5355 = vpop.f32.mrb[0].mxu0
      %5356 = vmatprep.mubr.bf16.mxu0 0
      %5357 = vmatmul.mubr.bf16.gmra.mrb[0].mxu0 %v5222
      %v5358 = vpop.f32.mrb[0].mxu0
      %v5359 = vadd.f32 0.0, %v5358
      %v5360 = vpop.f32.mrb[0].mxu0
      %v5361 = vpop.f32.mrb[0].mxu0
      %v5362 = vadd.f32 0.0, %v5361
      %v5363 = vpop.f32.mrb[0].mxu0
      %5364 = vmatprep.mubr.bf16.mxu0 0
      %5365 = vmatmul.mubr.bf16.gmra.mrb[0].mxu0 %v5225
      %v5366 = vpop.f32.mrb[0].mxu0
      %v5367 = vadd.f32 0.0, %v5366
      %v5368 = vpop.f32.mrb[0].mxu0
      %v5369 = vpop.f32.mrb[0].mxu0
      %v5370 = vadd.f32 0.0, %v5369
      %v5371 = vpop.f32.mrb[0].mxu0
      %5372 = vmatprep.mubr.bf16.mxu0 0
      %5373 = vmatmul.mubr.bf16.gmra.mrb[0].mxu0 %v5228
      %v5374 = vpop.f32.mrb[0].mxu0
      %v5375 = vadd.f32 0.0, %v5374
      %v5376 = vpop.f32.mrb[0].mxu0
      %v5377 = vpop.f32.mrb[0].mxu0
      %v5378 = vadd.f32 0.0, %v5377
      %v5379 = vpop.f32.mrb[0].mxu0
      %5380 = vmatprep.mubr.bf16.mxu0 0
      %5381 = vmatmul.mubr.bf16.gmra.mrb[0].mxu0 %v5231
      %v5382 = vpop.f32.mrb[0].mxu0
      %v5383 = vadd.f32 0.0, %v5382
      %v5384 = vpop.f32.mrb[0].mxu0
      %v5385 = vpop.f32.mrb[0].mxu0
      %v5386 = vadd.f32 0.0, %v5385
      %v5387 = vpop.f32.mrb[0].mxu0
      %5388 = vmatprep.mubr.bf16.mxu0 0
      %5389 = vmatmul.mubr.bf16.gmra.mrb[0].mxu0 %v5234
      %v5390 = vpop.f32.mrb[0].mxu0
      %v5391 = vadd.f32 0.0, %v5390
      %v5392 = vpop.f32.mrb[0].mxu0
      %v5393 = vpop.f32.mrb[0].mxu0
      %v5394 = vadd.f32 0.0, %v5393
      %v5395 = vpop.f32.mrb[0].mxu0
      %5396 = vdwg.mxu0
      %v5397 = vadd.f32 %v5035, %v5271
      %v5398 = vadd.f32 %v5036, %v5274
      %v5399 = vadd.f32 %v5037, %v5279
      %v5400 = vadd.f32 %v5038, %v5282
      %v5401 = vadd.f32 %v5039, %v5287
      %v5402 = vadd.f32 %v5040, %v5290
      %v5403 = vadd.f32 %v5041, %v5295
      %v5404 = vadd.f32 %v5042, %v5298
      %v5405 = vadd.f32 %v5043, %v5303
      %v5406 = vadd.f32 %v5044, %v5306
      %v5407 = vadd.f32 %v5045, %v5311
      %v5408 = vadd.f32 %v5046, %v5314
      %v5409 = vadd.f32 %v5047, %v5319
      %v5410 = vadd.f32 %v5048, %v5322
      %v5411 = vadd.f32 %v5049, %v5327
      %v5412 = vadd.f32 %v5050, %v5330
      %v5413 = vadd.f32 %v5051, %v5335
      %v5414 = vadd.f32 %v5052, %v5338
      %v5415 = vadd.f32 %v5053, %v5343
      %v5416 = vadd.f32 %v5054, %v5346
      %v5417 = vadd.f32 %v5055, %v5351
      %v5418 = vadd.f32 %v5056, %v5354
      %v5419 = vadd.f32 %v5057, %v5359
      %v5420 = vadd.f32 %v5058, %v5362
      %v5421 = vadd.f32 %v5059, %v5367
      %v5422 = vadd.f32 %v5060, %v5370
      %v5423 = vadd.f32 %v5061, %v5375
      %v5424 = vadd.f32 %v5062, %v5378
      %v5425 = vadd.f32 %v5063, %v5383
      %v5426 = vadd.f32 %v5064, %v5386
      %v5427 = vadd.f32 %v5065, %v5391
      %v5428 = vadd.f32 %v5066, %v5394
      %v5429 = vld [vmem:[%s5067] sm:$0xf]
      %v5430 = vld [vmem:[%s5067 + $0x4] sm:$0xf]
      %v5431 = vld [vmem:[%s5067 + $0x8] sm:$0x1]
      %v5432 = vld [vmem:[%s5067 + $0xc] sm:$0xf]
      %v5433 = vld [vmem:[%s5067 + $0x10] sm:$0xf]
      %v5434 = vld [vmem:[%s5067 + $0x14] sm:$0x1]
      %v5435 = vld [vmem:[%s5067 + $0x18] sm:$0xf]
      %v5436 = vld [vmem:[%s5067 + $0x1c] sm:$0xf]
      %v5437 = vld [vmem:[%s5067 + $0x20] sm:$0x1]
      %v5438 = vld [vmem:[%s5067 + $0x24] sm:$0xf]
      %v5439 = vld [vmem:[%s5067 + $0x28] sm:$0xf]
      %v5440 = vld [vmem:[%s5067 + $0x2c] sm:$0x1]
      %v5441 = vld [vmem:[%s5067 + $0x30] sm:$0xf]
      %v5442 = vld [vmem:[%s5067 + $0x34] sm:$0xf]
      %v5443 = vld [vmem:[%s5067 + $0x38] sm:$0x1]
      %v5444 = vld [vmem:[%s5067 + $0x3c] sm:$0xf]
      %v5445 = vld [vmem:[%s5067 + $0x40] sm:$0xf]
      %v5446 = vld [vmem:[%s5067 + $0x44] sm:$0x1]
      %v5447 = vld [vmem:[%s5067 + $0x48] sm:$0xf]
      %v5448 = vld [vmem:[%s5067 + $0x4c] sm:$0xf]
      %v5449 = vld [vmem:[%s5067 + $0x50] sm:$0x1]
      %v5450 = vld [vmem:[%s5067 + $0x54] sm:$0xf]
      %v5451 = vld [vmem:[%s5067 + $0x58] sm:$0xf]
      %v5452 = vld [vmem:[%s5067 + $0x5c] sm:$0x1]
      %v5453 = vld [vmem:[%s5067 + $0x60] sm:$0xf]
      %v5454 = vld [vmem:[%s5067 + $0x64] sm:$0xf]
      %v5455 = vld [vmem:[%s5067 + $0x68] sm:$0x1]
      %v5456 = vld [vmem:[%s5067 + $0x6c] sm:$0xf]
      %v5457 = vld [vmem:[%s5067 + $0x70] sm:$0xf]
      %v5458 = vld [vmem:[%s5067 + $0x74] sm:$0x1]
      %v5459 = vld [vmem:[%s5067 + $0x78] sm:$0xf]
      %v5460 = vld [vmem:[%s5067 + $0x7c] sm:$0xf]
      %v5461 = vld [vmem:[%s5067 + $0x80] sm:$0x1]
      %v5462 = vld [vmem:[%s5067 + $0x84] sm:$0xf]
      %v5463 = vld [vmem:[%s5067 + $0x88] sm:$0xf]
      %v5464 = vld [vmem:[%s5067 + $0x8c] sm:$0x1]
      %v5465 = vld [vmem:[%s5067 + $0x90] sm:$0xf]
      %v5466 = vld [vmem:[%s5067 + $0x94] sm:$0xf]
      %v5467 = vld [vmem:[%s5067 + $0x98] sm:$0x1]
      %v5468 = vld [vmem:[%s5067 + $0x9c] sm:$0xf]
      %v5469 = vld [vmem:[%s5067 + $0xa0] sm:$0xf]
      %v5470 = vld [vmem:[%s5067 + $0xa4] sm:$0x1]
      %v5471 = vld [vmem:[%s5067 + $0xa8] sm:$0xf]
      %v5472 = vld [vmem:[%s5067 + $0xac] sm:$0xf]
      %v5473 = vld [vmem:[%s5067 + $0xb0] sm:$0x1]
      %v5474 = vld [vmem:[%s5067 + $0xb4] sm:$0xf]
      %v5475 = vld [vmem:[%s5067 + $0xb8] sm:$0xf]
      %v5476 = vld [vmem:[%s5067 + $0xbc] sm:$0x1]
      %v5478 = vshrl.u32 %v5429, 16
      %v5480 = vrot.slane %v5478, 4
      %v5481 = vshll.u32 %v5429, 16
      %v5483 = vrot.slane %v5481, 5
      %v5484 = vor.u32 %v5480, %v5483
      %v5485 = vrot.slane %v5484, 4
      %v5487 = vshll.u32 %v5430, 16
      %v5489 = vrot.slane %v5487, 5
      %v5490 = vsel %vm2099, %v5485, %v5489
      %v5491 = vshrl.u32 %v5430, 16
      %v5493 = vrot.slane %v5491, 4
      %v5494 = vor.u32 %v5493, %v5489
      %v5495 = vrot.slane %v5494, 4
      %v5497 = vshll.u32 %v5431, 16
      %v5499 = vrot.slane %v5497, 5
      %v5500 = vsel %vm2099, %v5495, %v5499
      %v5502 = vshrl.u32 %v5432, 16
      %v5504 = vrot.slane %v5502, 4
      %v5505 = vshll.u32 %v5432, 16
      %v5507 = vrot.slane %v5505, 5
      %v5508 = vor.u32 %v5504, %v5507
      %v5509 = vrot.slane %v5508, 4
      %v5511 = vshll.u32 %v5433, 16
      %v5513 = vrot.slane %v5511, 5
      %v5514 = vsel %vm2099, %v5509, %v5513
      %v5515 = vshrl.u32 %v5433, 16
      %v5517 = vrot.slane %v5515, 4
      %v5518 = vor.u32 %v5517, %v5513
      %v5519 = vrot.slane %v5518, 4
      %v5521 = vshll.u32 %v5434, 16
      %v5523 = vrot.slane %v5521, 5
      %v5524 = vsel %vm2099, %v5519, %v5523
      %v5526 = vshrl.u32 %v5435, 16
      %v5528 = vrot.slane %v5526, 4
      %v5529 = vshll.u32 %v5435, 16
      %v5531 = vrot.slane %v5529, 5
      %v5532 = vor.u32 %v5528, %v5531
      %v5533 = vrot.slane %v5532, 4
      %v5535 = vshll.u32 %v5436, 16
      %v5537 = vrot.slane %v5535, 5
      %v5538 = vsel %vm2099, %v5533, %v5537
      %v5539 = vshrl.u32 %v5436, 16
      %v5541 = vrot.slane %v5539, 4
      %v5542 = vor.u32 %v5541, %v5537
      %v5543 = vrot.slane %v5542, 4
      %v5545 = vshll.u32 %v5437, 16
      %v5547 = vrot.slane %v5545, 5
      %v5548 = vsel %vm2099, %v5543, %v5547
      %v5550 = vshrl.u32 %v5438, 16
      %v5552 = vrot.slane %v5550, 4
      %v5553 = vshll.u32 %v5438, 16
      %v5555 = vrot.slane %v5553, 5
      %v5556 = vor.u32 %v5552, %v5555
      %v5557 = vrot.slane %v5556, 4
      %v5559 = vshll.u32 %v5439, 16
      %v5561 = vrot.slane %v5559, 5
      %v5562 = vsel %vm2099, %v5557, %v5561
      %v5563 = vshrl.u32 %v5439, 16
      %v5565 = vrot.slane %v5563, 4
      %v5566 = vor.u32 %v5565, %v5561
      %v5567 = vrot.slane %v5566, 4
      %v5569 = vshll.u32 %v5440, 16
      %v5571 = vrot.slane %v5569, 5
      %v5572 = vsel %vm2099, %v5567, %v5571
      %v5574 = vshrl.u32 %v5441, 16
      %v5576 = vrot.slane %v5574, 4
      %v5577 = vshll.u32 %v5441, 16
      %v5579 = vrot.slane %v5577, 5
      %v5580 = vor.u32 %v5576, %v5579
      %v5581 = vrot.slane %v5580, 4
      %v5583 = vshll.u32 %v5442, 16
      %v5585 = vrot.slane %v5583, 5
      %v5586 = vsel %vm2099, %v5581, %v5585
      %v5587 = vshrl.u32 %v5442, 16
      %v5589 = vrot.slane %v5587, 4
      %v5590 = vor.u32 %v5589, %v5585
      %v5591 = vrot.slane %v5590, 4
      %v5593 = vshll.u32 %v5443, 16
      %v5595 = vrot.slane %v5593, 5
      %v5596 = vsel %vm2099, %v5591, %v5595
      %v5598 = vshrl.u32 %v5444, 16
      %v5600 = vrot.slane %v5598, 4
      %v5601 = vshll.u32 %v5444, 16
      %v5603 = vrot.slane %v5601, 5
      %v5604 = vor.u32 %v5600, %v5603
      %v5605 = vrot.slane %v5604, 4
      %v5607 = vshll.u32 %v5445, 16
      %v5609 = vrot.slane %v5607, 5
      %v5610 = vsel %vm2099, %v5605, %v5609
      %v5611 = vshrl.u32 %v5445, 16
      %v5613 = vrot.slane %v5611, 4
      %v5614 = vor.u32 %v5613, %v5609
      %v5615 = vrot.slane %v5614, 4
      %v5617 = vshll.u32 %v5446, 16
      %v5619 = vrot.slane %v5617, 5
      %v5620 = vsel %vm2099, %v5615, %v5619
      %v5622 = vshrl.u32 %v5447, 16
      %v5624 = vrot.slane %v5622, 4
      %v5625 = vshll.u32 %v5447, 16
      %v5627 = vrot.slane %v5625, 5
      %v5628 = vor.u32 %v5624, %v5627
      %v5629 = vrot.slane %v5628, 4
      %v5631 = vshll.u32 %v5448, 16
      %v5633 = vrot.slane %v5631, 5
      %v5634 = vsel %vm2099, %v5629, %v5633
      %v5635 = vshrl.u32 %v5448, 16
      %v5637 = vrot.slane %v5635, 4
      %v5638 = vor.u32 %v5637, %v5633
      %v5639 = vrot.slane %v5638, 4
      %v5641 = vshll.u32 %v5449, 16
      %v5643 = vrot.slane %v5641, 5
      %v5644 = vsel %vm2099, %v5639, %v5643
      %v5646 = vshrl.u32 %v5450, 16
      %v5648 = vrot.slane %v5646, 4
      %v5649 = vshll.u32 %v5450, 16
      %v5651 = vrot.slane %v5649, 5
      %v5652 = vor.u32 %v5648, %v5651
      %v5653 = vrot.slane %v5652, 4
      %v5655 = vshll.u32 %v5451, 16
      %v5657 = vrot.slane %v5655, 5
      %v5658 = vsel %vm2099, %v5653, %v5657
      %v5659 = vshrl.u32 %v5451, 16
      %v5661 = vrot.slane %v5659, 4
      %v5662 = vor.u32 %v5661, %v5657
      %v5663 = vrot.slane %v5662, 4
      %v5665 = vshll.u32 %v5452, 16
      %v5667 = vrot.slane %v5665, 5
      %v5668 = vsel %vm2099, %v5663, %v5667
      %v5670 = vshrl.u32 %v5453, 16
      %v5672 = vrot.slane %v5670, 4
      %v5673 = vshll.u32 %v5453, 16
      %v5675 = vrot.slane %v5673, 5
      %v5676 = vor.u32 %v5672, %v5675
      %v5677 = vrot.slane %v5676, 4
      %v5679 = vshll.u32 %v5454, 16
      %v5681 = vrot.slane %v5679, 5
      %v5682 = vsel %vm2099, %v5677, %v5681
      %v5683 = vshrl.u32 %v5454, 16
      %v5685 = vrot.slane %v5683, 4
      %v5686 = vor.u32 %v5685, %v5681
      %v5687 = vrot.slane %v5686, 4
      %v5689 = vshll.u32 %v5455, 16
      %v5691 = vrot.slane %v5689, 5
      %v5692 = vsel %vm2099, %v5687, %v5691
      %v5694 = vshrl.u32 %v5456, 16
      %v5696 = vrot.slane %v5694, 4
      %v5697 = vshll.u32 %v5456, 16
      %v5699 = vrot.slane %v5697, 5
      %v5700 = vor.u32 %v5696, %v5699
      %v5701 = vrot.slane %v5700, 4
      %v5703 = vshll.u32 %v5457, 16
      %v5705 = vrot.slane %v5703, 5
      %v5706 = vsel %vm2099, %v5701, %v5705
      %v5707 = vshrl.u32 %v5457, 16
      %v5709 = vrot.slane %v5707, 4
      %v5710 = vor.u32 %v5709, %v5705
      %v5711 = vrot.slane %v5710, 4
      %v5713 = vshll.u32 %v5458, 16
      %v5715 = vrot.slane %v5713, 5
      %v5716 = vsel %vm2099, %v5711, %v5715
      %v5718 = vshrl.u32 %v5459, 16
      %v5720 = vrot.slane %v5718, 4
      %v5721 = vshll.u32 %v5459, 16
      %v5723 = vrot.slane %v5721, 5
      %v5724 = vor.u32 %v5720, %v5723
      %v5725 = vrot.slane %v5724, 4
      %v5727 = vshll.u32 %v5460, 16
      %v5729 = vrot.slane %v5727, 5
      %v5730 = vsel %vm2099, %v5725, %v5729
      %v5731 = vshrl.u32 %v5460, 16
      %v5733 = vrot.slane %v5731, 4
      %v5734 = vor.u32 %v5733, %v5729
      %v5735 = vrot.slane %v5734, 4
      %v5737 = vshll.u32 %v5461, 16
      %v5739 = vrot.slane %v5737, 5
      %v5740 = vsel %vm2099, %v5735, %v5739
      %v5742 = vshrl.u32 %v5462, 16
      %v5744 = vrot.slane %v5742, 4
      %v5745 = vshll.u32 %v5462, 16
      %v5747 = vrot.slane %v5745, 5
      %v5748 = vor.u32 %v5744, %v5747
      %v5749 = vrot.slane %v5748, 4
      %v5751 = vshll.u32 %v5463, 16
      %v5753 = vrot.slane %v5751, 5
      %v5754 = vsel %vm2099, %v5749, %v5753
      %v5755 = vshrl.u32 %v5463, 16
      %v5757 = vrot.slane %v5755, 4
      %v5758 = vor.u32 %v5757, %v5753
      %v5759 = vrot.slane %v5758, 4
      %v5761 = vshll.u32 %v5464, 16
      %v5763 = vrot.slane %v5761, 5
      %v5764 = vsel %vm2099, %v5759, %v5763
      %v5766 = vshrl.u32 %v5465, 16
      %v5768 = vrot.slane %v5766, 4
      %v5769 = vshll.u32 %v5465, 16
      %v5771 = vrot.slane %v5769, 5
      %v5772 = vor.u32 %v5768, %v5771
      %v5773 = vrot.slane %v5772, 4
      %v5775 = vshll.u32 %v5466, 16
      %v5777 = vrot.slane %v5775, 5
      %v5778 = vsel %vm2099, %v5773, %v5777
      %v5779 = vshrl.u32 %v5466, 16
      %v5781 = vrot.slane %v5779, 4
      %v5782 = vor.u32 %v5781, %v5777
      %v5783 = vrot.slane %v5782, 4
      %v5785 = vshll.u32 %v5467, 16
      %v5787 = vrot.slane %v5785, 5
      %v5788 = vsel %vm2099, %v5783, %v5787
      %v5790 = vshrl.u32 %v5468, 16
      %v5792 = vrot.slane %v5790, 4
      %v5793 = vshll.u32 %v5468, 16
      %v5795 = vrot.slane %v5793, 5
      %v5796 = vor.u32 %v5792, %v5795
      %v5797 = vrot.slane %v5796, 4
      %v5799 = vshll.u32 %v5469, 16
      %v5801 = vrot.slane %v5799, 5
      %v5802 = vsel %vm2099, %v5797, %v5801
      %v5803 = vshrl.u32 %v5469, 16
      %v5805 = vrot.slane %v5803, 4
      %v5806 = vor.u32 %v5805, %v5801
      %v5807 = vrot.slane %v5806, 4
      %v5809 = vshll.u32 %v5470, 16
      %v5811 = vrot.slane %v5809, 5
      %v5812 = vsel %vm2099, %v5807, %v5811
      %v5814 = vshrl.u32 %v5471, 16
      %v5816 = vrot.slane %v5814, 4
      %v5817 = vshll.u32 %v5471, 16
      %v5819 = vrot.slane %v5817, 5
      %v5820 = vor.u32 %v5816, %v5819
      %v5821 = vrot.slane %v5820, 4
      %v5823 = vshll.u32 %v5472, 16
      %v5825 = vrot.slane %v5823, 5
      %v5826 = vsel %vm2099, %v5821, %v5825
      %v5827 = vshrl.u32 %v5472, 16
      %v5829 = vrot.slane %v5827, 4
      %v5830 = vor.u32 %v5829, %v5825
      %v5831 = vrot.slane %v5830, 4
      %v5833 = vshll.u32 %v5473, 16
      %v5835 = vrot.slane %v5833, 5
      %v5836 = vsel %vm2099, %v5831, %v5835
      %v5838 = vshrl.u32 %v5474, 16
      %v5840 = vrot.slane %v5838, 4
      %v5841 = vshll.u32 %v5474, 16
      %v5843 = vrot.slane %v5841, 5
      %v5844 = vor.u32 %v5840, %v5843
      %v5845 = vrot.slane %v5844, 4
      %v5847 = vshll.u32 %v5475, 16
      %v5849 = vrot.slane %v5847, 5
      %v5850 = vsel %vm2099, %v5845, %v5849
      %v5851 = vshrl.u32 %v5475, 16
      %v5853 = vrot.slane %v5851, 4
      %v5854 = vor.u32 %v5853, %v5849
      %v5855 = vrot.slane %v5854, 4
      %v5857 = vshll.u32 %v5476, 16
      %v5859 = vrot.slane %v5857, 5
      %v5860 = vsel %vm2099, %v5855, %v5859
      %v5861 = vld [vmem:[%s5 + $0x38] sm:$0xf]
      %v5862 = vld [vmem:[%s5 + $0x3c] sm:$0xf]
      %v5863 = vunpack.c.l.b16 %v5490
      %v5864 = vunpack.c.l.b16 %v5500
      %v5865 = vunpack.c.l.b16 %v5514
      %v5866 = vunpack.c.l.b16 %v5524
      %v5867 = vunpack.c.l.b16 %v5538
      %v5868 = vunpack.c.l.b16 %v5548
      %v5869 = vunpack.c.l.b16 %v5562
      %v5870 = vunpack.c.l.b16 %v5572
      %v5871 = vunpack.c.l.b16 %v5586
      %v5872 = vunpack.c.l.b16 %v5596
      %v5873 = vunpack.c.l.b16 %v5610
      %v5874 = vunpack.c.l.b16 %v5620
      %v5875 = vunpack.c.l.b16 %v5634
      %v5876 = vunpack.c.l.b16 %v5644
      %v5877 = vunpack.c.l.b16 %v5658
      %v5878 = vunpack.c.l.b16 %v5668
      %v5879 = vunpack.c.l.b16 %v5682
      %v5880 = vunpack.c.l.b16 %v5692
      %v5881 = vunpack.c.l.b16 %v5706
      %v5882 = vunpack.c.l.b16 %v5716
      %v5883 = vunpack.c.l.b16 %v5730
      %v5884 = vunpack.c.l.b16 %v5740
      %v5885 = vunpack.c.l.b16 %v5754
      %v5886 = vunpack.c.l.b16 %v5764
      %v5887 = vunpack.c.l.b16 %v5778
      %v5888 = vunpack.c.l.b16 %v5788
      %v5889 = vunpack.c.l.b16 %v5802
      %v5890 = vunpack.c.l.b16 %v5812
      %v5891 = vunpack.c.l.b16 %v5826
      %v5892 = vunpack.c.l.b16 %v5836
      %v5893 = vunpack.c.l.b16 %v5850
      %v5894 = vunpack.c.l.b16 %v5860
      %v5895 = vpack.c.b16 %v5864, %v5863
      %v5896 = vpack.c.b16 %v5866, %v5865
      %v5897 = vpack.c.b16 %v5868, %v5867
      %v5898 = vpack.c.b16 %v5870, %v5869
      %v5899 = vpack.c.b16 %v5872, %v5871
      %v5900 = vpack.c.b16 %v5874, %v5873
      %v5901 = vpack.c.b16 %v5876, %v5875
      %v5902 = vpack.c.b16 %v5878, %v5877
      %v5903 = vpack.c.b16 %v5880, %v5879
      %v5904 = vpack.c.b16 %v5882, %v5881
      %v5905 = vpack.c.b16 %v5884, %v5883
      %v5906 = vpack.c.b16 %v5886, %v5885
      %v5907 = vpack.c.b16 %v5888, %v5887
      %v5908 = vpack.c.b16 %v5890, %v5889
      %v5909 = vpack.c.b16 %v5892, %v5891
      %v5910 = vpack.c.b16 %v5894, %v5893
      %v5913 = vunpack.c.l.b16 %v5861
      %v5914 = vunpack.c.l.b16 %v5862
      %v5915 = vpack.c.b16 %v5914, %v5913
      %v5918 = vsel %vm435, %v5895, 0
      %v5921 = vsel %vm435, %v5896, 0
      %v5924 = vsel %vm435, %v5897, 0
      %v5927 = vsel %vm435, %v5898, 0
      %v5930 = vsel %vm435, %v5899, 0
      %v5933 = vsel %vm435, %v5900, 0
      %v5936 = vsel %vm435, %v5901, 0
      %v5939 = vsel %vm435, %v5902, 0
      %v5942 = vsel %vm435, %v5903, 0
      %v5945 = vsel %vm435, %v5904, 0
      %v5948 = vsel %vm435, %v5905, 0
      %v5951 = vsel %vm435, %v5906, 0
      %v5954 = vsel %vm435, %v5907, 0
      %v5957 = vsel %vm435, %v5908, 0
      %v5960 = vsel %vm435, %v5909, 0
      %v5963 = vsel %vm435, %v5910, 0
      %5965 = vmatprep.subr.bf16.mxu0 0
      %5966 = vmatpush1.bf16.msra.mxu0 %v5915
      %5967 = vmatprep.subr.bf16.mxu0 0
      %5968 = vmatpush1.bf16.msra.mxu0 0
      %5969 = vmatprep.subr.bf16.mxu0 0
      %5970 = vmatpush1.bf16.msra.mxu0 0
      %5971 = vmatprep.subr.bf16.mxu0 0
      %5972 = vmatpush1.bf16.msra.mxu0 0
      %5973 = vmatprep.subr.bf16.mxu0 0
      %5974 = vmatpush1.bf16.msra.mxu0 0
      %5975 = vmatprep.subr.bf16.mxu0 0
      %5976 = vmatpush1.bf16.msra.mxu0 0
      %5977 = vmatprep.subr.bf16.mxu0 0
      %5978 = vmatpush1.bf16.msra.mxu0 0
      %5979 = vmatprep.subr.bf16.mxu0 0
      %5980 = vmatpush1.bf16.msra.mxu0 0
      %5981 = vmatprep.subr.bf16.mxu0 0
      %5982 = vmatpush1.bf16.msra.mxu0 0
      %5983 = vmatprep.subr.bf16.mxu0 0
      %5984 = vmatpush1.bf16.msra.mxu0 0
      %5985 = vmatprep.subr.bf16.mxu0 0
      %5986 = vmatpush1.bf16.msra.mxu0 0
      %5987 = vmatprep.subr.bf16.mxu0 0
      %5988 = vmatpush1.bf16.msra.mxu0 0
      %5989 = vmatprep.subr.bf16.mxu0 0
      %5990 = vmatpush1.bf16.msra.mxu0 0
      %5991 = vmatprep.subr.bf16.mxu0 0
      %5992 = vmatpush1.bf16.msra.mxu0 0
      %5993 = vmatprep.subr.bf16.mxu0 0
      %5994 = vmatpush1.bf16.msra.mxu0 0
      %5995 = vmatprep.subr.bf16.mxu0 0
      %5996 = vmatpush1.bf16.msra.mxu0 0
      %5997 = vmatprep.mubr.bf16.mxu0 0
      %5998 = vmatmul.mubr.bf16.gmra.mrb[0].mxu0 %v5918
      %v5999 = vpop.f32.mrb[0].mxu0
      %v6000 = vadd.f32 0.0, %v5999
      %v6001 = vpop.f32.mrb[0].mxu0
      %v6002 = vpop.f32.mrb[0].mxu0
      %v6003 = vadd.f32 0.0, %v6002
      %v6004 = vpop.f32.mrb[0].mxu0
      %6005 = vmatprep.mubr.bf16.mxu0 0
      %6006 = vmatmul.mubr.bf16.gmra.mrb[0].mxu0 %v5921
      %v6007 = vpop.f32.mrb[0].mxu0
      %v6008 = vadd.f32 0.0, %v6007
      %v6009 = vpop.f32.mrb[0].mxu0
      %v6010 = vpop.f32.mrb[0].mxu0
      %v6011 = vadd.f32 0.0, %v6010
      %v6012 = vpop.f32.mrb[0].mxu0
      %6013 = vmatprep.mubr.bf16.mxu0 0
      %6014 = vmatmul.mubr.bf16.gmra.mrb[0].mxu0 %v5924
      %v6015 = vpop.f32.mrb[0].mxu0
      %v6016 = vadd.f32 0.0, %v6015
      %v6017 = vpop.f32.mrb[0].mxu0
      %v6018 = vpop.f32.mrb[0].mxu0
      %v6019 = vadd.f32 0.0, %v6018
      %v6020 = vpop.f32.mrb[0].mxu0
      %6021 = vmatprep.mubr.bf16.mxu0 0
      %6022 = vmatmul.mubr.bf16.gmra.mrb[0].mxu0 %v5927
      %v6023 = vpop.f32.mrb[0].mxu0
      %v6024 = vadd.f32 0.0, %v6023
      %v6025 = vpop.f32.mrb[0].mxu0
      %v6026 = vpop.f32.mrb[0].mxu0
      %v6027 = vadd.f32 0.0, %v6026
      %v6028 = vpop.f32.mrb[0].mxu0
      %6029 = vmatprep.mubr.bf16.mxu0 0
      %6030 = vmatmul.mubr.bf16.gmra.mrb[0].mxu0 %v5930
      %v6031 = vpop.f32.mrb[0].mxu0
      %v6032 = vadd.f32 0.0, %v6031
      %v6033 = vpop.f32.mrb[0].mxu0
      %v6034 = vpop.f32.mrb[0].mxu0
      %v6035 = vadd.f32 0.0, %v6034
      %v6036 = vpop.f32.mrb[0].mxu0
      %6037 = vmatprep.mubr.bf16.mxu0 0
      %6038 = vmatmul.mubr.bf16.gmra.mrb[0].mxu0 %v5933
      %v6039 = vpop.f32.mrb[0].mxu0
      %v6040 = vadd.f32 0.0, %v6039
      %v6041 = vpop.f32.mrb[0].mxu0
      %v6042 = vpop.f32.mrb[0].mxu0
      %v6043 = vadd.f32 0.0, %v6042
      %v6044 = vpop.f32.mrb[0].mxu0
      %6045 = vmatprep.mubr.bf16.mxu0 0
      %6046 = vmatmul.mubr.bf16.gmra.mrb[0].mxu0 %v5936
      %v6047 = vpop.f32.mrb[0].mxu0
      %v6048 = vadd.f32 0.0, %v6047
      %v6049 = vpop.f32.mrb[0].mxu0
      %v6050 = vpop.f32.mrb[0].mxu0
      %v6051 = vadd.f32 0.0, %v6050
      %v6052 = vpop.f32.mrb[0].mxu0
      %6053 = vmatprep.mubr.bf16.mxu0 0
      %6054 = vmatmul.mubr.bf16.gmra.mrb[0].mxu0 %v5939
      %v6055 = vpop.f32.mrb[0].mxu0
      %v6056 = vadd.f32 0.0, %v6055
      %v6057 = vpop.f32.mrb[0].mxu0
      %v6058 = vpop.f32.mrb[0].mxu0
      %v6059 = vadd.f32 0.0, %v6058
      %v6060 = vpop.f32.mrb[0].mxu0
      %6061 = vmatprep.mubr.bf16.mxu0 0
      %6062 = vmatmul.mubr.bf16.gmra.mrb[0].mxu0 %v5942
      %v6063 = vpop.f32.mrb[0].mxu0
      %v6064 = vadd.f32 0.0, %v6063
      %v6065 = vpop.f32.mrb[0].mxu0
      %v6066 = vpop.f32.mrb[0].mxu0
      %v6067 = vadd.f32 0.0, %v6066
      %v6068 = vpop.f32.mrb[0].mxu0
      %6069 = vmatprep.mubr.bf16.mxu0 0
      %6070 = vmatmul.mubr.bf16.gmra.mrb[0].mxu0 %v5945
      %v6071 = vpop.f32.mrb[0].mxu0
      %v6072 = vadd.f32 0.0, %v6071
      %v6073 = vpop.f32.mrb[0].mxu0
      %v6074 = vpop.f32.mrb[0].mxu0
      %v6075 = vadd.f32 0.0, %v6074
      %v6076 = vpop.f32.mrb[0].mxu0
      %6077 = vmatprep.mubr.bf16.mxu0 0
      %6078 = vmatmul.mubr.bf16.gmra.mrb[0].mxu0 %v5948
      %v6079 = vpop.f32.mrb[0].mxu0
      %v6080 = vadd.f32 0.0, %v6079
      %v6081 = vpop.f32.mrb[0].mxu0
      %v6082 = vpop.f32.mrb[0].mxu0
      %v6083 = vadd.f32 0.0, %v6082
      %v6084 = vpop.f32.mrb[0].mxu0
      %6085 = vmatprep.mubr.bf16.mxu0 0
      %6086 = vmatmul.mubr.bf16.gmra.mrb[0].mxu0 %v5951
      %v6087 = vpop.f32.mrb[0].mxu0
      %v6088 = vadd.f32 0.0, %v6087
      %v6089 = vpop.f32.mrb[0].mxu0
      %v6090 = vpop.f32.mrb[0].mxu0
      %v6091 = vadd.f32 0.0, %v6090
      %v6092 = vpop.f32.mrb[0].mxu0
      %6093 = vmatprep.mubr.bf16.mxu0 0
      %6094 = vmatmul.mubr.bf16.gmra.mrb[0].mxu0 %v5954
      %v6095 = vpop.f32.mrb[0].mxu0
      %v6096 = vadd.f32 0.0, %v6095
      %v6097 = vpop.f32.mrb[0].mxu0
      %v6098 = vpop.f32.mrb[0].mxu0
      %v6099 = vadd.f32 0.0, %v6098
      %v6100 = vpop.f32.mrb[0].mxu0
      %6101 = vmatprep.mubr.bf16.mxu0 0
      %6102 = vmatmul.mubr.bf16.gmra.mrb[0].mxu0 %v5957
      %v6103 = vpop.f32.mrb[0].mxu0
      %v6104 = vadd.f32 0.0, %v6103
      %v6105 = vpop.f32.mrb[0].mxu0
      %v6106 = vpop.f32.mrb[0].mxu0
      %v6107 = vadd.f32 0.0, %v6106
      %v6108 = vpop.f32.mrb[0].mxu0
      %6109 = vmatprep.mubr.bf16.mxu0 0
      %6110 = vmatmul.mubr.bf16.gmra.mrb[0].mxu0 %v5960
      %v6111 = vpop.f32.mrb[0].mxu0
      %v6112 = vadd.f32 0.0, %v6111
      %v6113 = vpop.f32.mrb[0].mxu0
      %v6114 = vpop.f32.mrb[0].mxu0
      %v6115 = vadd.f32 0.0, %v6114
      %v6116 = vpop.f32.mrb[0].mxu0
      %6117 = vmatprep.mubr.bf16.mxu0 0
      %6118 = vmatmul.mubr.bf16.gmra.mrb[0].mxu0 %v5963
      %v6119 = vpop.f32.mrb[0].mxu0
      %v6120 = vadd.f32 0.0, %v6119
      %v6121 = vpop.f32.mrb[0].mxu0
      %v6122 = vpop.f32.mrb[0].mxu0
      %v6123 = vadd.f32 0.0, %v6122
      %v6124 = vpop.f32.mrb[0].mxu0
      %6125 = vdwg.mxu0
      %v6126 = vadd.f32 %v5397, %v6000
      %v6127 = vadd.f32 %v5398, %v6003
      %v6128 = vadd.f32 %v5399, %v6008
      %v6129 = vadd.f32 %v5400, %v6011
      %v6130 = vadd.f32 %v5401, %v6016
      %v6131 = vadd.f32 %v5402, %v6019
      %v6132 = vadd.f32 %v5403, %v6024
      %v6133 = vadd.f32 %v5404, %v6027
      %v6134 = vadd.f32 %v5405, %v6032
      %v6135 = vadd.f32 %v5406, %v6035
      %v6136 = vadd.f32 %v5407, %v6040
      %v6137 = vadd.f32 %v5408, %v6043
      %v6138 = vadd.f32 %v5409, %v6048
      %v6139 = vadd.f32 %v5410, %v6051
      %v6140 = vadd.f32 %v5411, %v6056
      %v6141 = vadd.f32 %v5412, %v6059
      %v6142 = vadd.f32 %v5413, %v6064
      %v6143 = vadd.f32 %v5414, %v6067
      %v6144 = vadd.f32 %v5415, %v6072
      %v6145 = vadd.f32 %v5416, %v6075
      %v6146 = vadd.f32 %v5417, %v6080
      %v6147 = vadd.f32 %v5418, %v6083
      %v6148 = vadd.f32 %v5419, %v6088
      %v6149 = vadd.f32 %v5420, %v6091
      %v6150 = vadd.f32 %v5421, %v6096
      %v6151 = vadd.f32 %v5422, %v6099
      %v6152 = vadd.f32 %v5423, %v6104
      %v6153 = vadd.f32 %v5424, %v6107
      %v6154 = vadd.f32 %v5425, %v6112
      %v6155 = vadd.f32 %v5426, %v6115
      %v6156 = vadd.f32 %v5427, %v6120
      %v6157 = vadd.f32 %v5428, %v6123
      %v6158 = vld [vmem:[%s5067] sm:$0xe]
      %v6159 = vld [vmem:[%s5067 + $0xc] sm:$0xe]
      %v6160 = vld [vmem:[%s5067 + $0x18] sm:$0xe]
      %v6161 = vld [vmem:[%s5067 + $0x24] sm:$0xe]
      %v6162 = vld [vmem:[%s5067 + $0x30] sm:$0xe]
      %v6163 = vld [vmem:[%s5067 + $0x3c] sm:$0xe]
      %v6164 = vld [vmem:[%s5067 + $0x48] sm:$0xe]
      %v6165 = vld [vmem:[%s5067 + $0x54] sm:$0xe]
      %v6166 = vld [vmem:[%s5067 + $0x60] sm:$0xe]
      %v6167 = vld [vmem:[%s5067 + $0x6c] sm:$0xe]
      %v6168 = vld [vmem:[%s5067 + $0x78] sm:$0xe]
      %v6169 = vld [vmem:[%s5067 + $0x84] sm:$0xe]
      %v6170 = vld [vmem:[%s5067 + $0x90] sm:$0xe]
      %v6171 = vld [vmem:[%s5067 + $0x9c] sm:$0xe]
      %v6172 = vld [vmem:[%s5067 + $0xa8] sm:$0xe]
      %v6173 = vld [vmem:[%s5067 + $0xb4] sm:$0xe]
      %v6222 = vrot.slane %v6158, 5
      %v6223 = vrot.slane %v6222, 4
      %v6224 = vrot.slane %v5430, 5
      %v6225 = vsel %vm3094, %v6223, %v6224
      %v6226 = vrot.slane %v6224, 4
      %v6227 = vrot.slane %v5431, 5
      %v6228 = vsel %vm3094, %v6226, %v6227
      %v6229 = vrot.slane %v6159, 5
      %v6230 = vrot.slane %v6229, 4
      %v6231 = vrot.slane %v5433, 5
      %v6232 = vsel %vm3094, %v6230, %v6231
      %v6233 = vrot.slane %v6231, 4
      %v6234 = vrot.slane %v5434, 5
      %v6235 = vsel %vm3094, %v6233, %v6234
      %v6236 = vrot.slane %v6160, 5
      %v6237 = vrot.slane %v6236, 4
      %v6238 = vrot.slane %v5436, 5
      %v6239 = vsel %vm3094, %v6237, %v6238
      %v6240 = vrot.slane %v6238, 4
      %v6241 = vrot.slane %v5437, 5
      %v6242 = vsel %vm3094, %v6240, %v6241
      %v6243 = vrot.slane %v6161, 5
      %v6244 = vrot.slane %v6243, 4
      %v6245 = vrot.slane %v5439, 5
      %v6246 = vsel %vm3094, %v6244, %v6245
      %v6247 = vrot.slane %v6245, 4
      %v6248 = vrot.slane %v5440, 5
      %v6249 = vsel %vm3094, %v6247, %v6248
      %v6250 = vrot.slane %v6162, 5
      %v6251 = vrot.slane %v6250, 4
      %v6252 = vrot.slane %v5442, 5
      %v6253 = vsel %vm3094, %v6251, %v6252
      %v6254 = vrot.slane %v6252, 4
      %v6255 = vrot.slane %v5443, 5
      %v6256 = vsel %vm3094, %v6254, %v6255
      %v6257 = vrot.slane %v6163, 5
      %v6258 = vrot.slane %v6257, 4
      %v6259 = vrot.slane %v5445, 5
      %v6260 = vsel %vm3094, %v6258, %v6259
      %v6261 = vrot.slane %v6259, 4
      %v6262 = vrot.slane %v5446, 5
      %v6263 = vsel %vm3094, %v6261, %v6262
      %v6264 = vrot.slane %v6164, 5
      %v6265 = vrot.slane %v6264, 4
      %v6266 = vrot.slane %v5448, 5
      %v6267 = vsel %vm3094, %v6265, %v6266
      %v6268 = vrot.slane %v6266, 4
      %v6269 = vrot.slane %v5449, 5
      %v6270 = vsel %vm3094, %v6268, %v6269
      %v6271 = vrot.slane %v6165, 5
      %v6272 = vrot.slane %v6271, 4
      %v6273 = vrot.slane %v5451, 5
      %v6274 = vsel %vm3094, %v6272, %v6273
      %v6275 = vrot.slane %v6273, 4
      %v6276 = vrot.slane %v5452, 5
      %v6277 = vsel %vm3094, %v6275, %v6276
      %v6278 = vrot.slane %v6166, 5
      %v6279 = vrot.slane %v6278, 4
      %v6280 = vrot.slane %v5454, 5
      %v6281 = vsel %vm3094, %v6279, %v6280
      %v6282 = vrot.slane %v6280, 4
      %v6283 = vrot.slane %v5455, 5
      %v6284 = vsel %vm3094, %v6282, %v6283
      %v6285 = vrot.slane %v6167, 5
      %v6286 = vrot.slane %v6285, 4
      %v6287 = vrot.slane %v5457, 5
      %v6288 = vsel %vm3094, %v6286, %v6287
      %v6289 = vrot.slane %v6287, 4
      %v6290 = vrot.slane %v5458, 5
      %v6291 = vsel %vm3094, %v6289, %v6290
      %v6292 = vrot.slane %v6168, 5
      %v6293 = vrot.slane %v6292, 4
      %v6294 = vrot.slane %v5460, 5
      %v6295 = vsel %vm3094, %v6293, %v6294
      %v6296 = vrot.slane %v6294, 4
      %v6297 = vrot.slane %v5461, 5
      %v6298 = vsel %vm3094, %v6296, %v6297
      %v6299 = vrot.slane %v6169, 5
      %v6300 = vrot.slane %v6299, 4
      %v6301 = vrot.slane %v5463, 5
      %v6302 = vsel %vm3094, %v6300, %v6301
      %v6303 = vrot.slane %v6301, 4
      %v6304 = vrot.slane %v5464, 5
      %v6305 = vsel %vm3094, %v6303, %v6304
      %v6306 = vrot.slane %v6170, 5
      %v6307 = vrot.slane %v6306, 4
      %v6308 = vrot.slane %v5466, 5
      %v6309 = vsel %vm3094, %v6307, %v6308
      %v6310 = vrot.slane %v6308, 4
      %v6311 = vrot.slane %v5467, 5
      %v6312 = vsel %vm3094, %v6310, %v6311
      %v6313 = vrot.slane %v6171, 5
      %v6314 = vrot.slane %v6313, 4
      %v6315 = vrot.slane %v5469, 5
      %v6316 = vsel %vm3094, %v6314, %v6315
      %v6317 = vrot.slane %v6315, 4
      %v6318 = vrot.slane %v5470, 5
      %v6319 = vsel %vm3094, %v6317, %v6318
      %v6320 = vrot.slane %v6172, 5
      %v6321 = vrot.slane %v6320, 4
      %v6322 = vrot.slane %v5472, 5
      %v6323 = vsel %vm3094, %v6321, %v6322
      %v6324 = vrot.slane %v6322, 4
      %v6325 = vrot.slane %v5473, 5
      %v6326 = vsel %vm3094, %v6324, %v6325
      %v6327 = vrot.slane %v6173, 5
      %v6328 = vrot.slane %v6327, 4
      %v6329 = vrot.slane %v5475, 5
      %v6330 = vsel %vm3094, %v6328, %v6329
      %v6331 = vrot.slane %v6329, 4
      %v6332 = vrot.slane %v5476, 5
      %v6333 = vsel %vm3094, %v6331, %v6332
      %v6334 = vld [vmem:[%s5 + $0x40] sm:$0xf]
      %v6335 = vld [vmem:[%s5 + $0x44] sm:$0xf]
      %v6336 = vunpack.c.l.b16 %v6225
      %v6337 = vunpack.c.l.b16 %v6228
      %v6338 = vunpack.c.l.b16 %v6232
      %v6339 = vunpack.c.l.b16 %v6235
      %v6340 = vunpack.c.l.b16 %v6239
      %v6341 = vunpack.c.l.b16 %v6242
      %v6342 = vunpack.c.l.b16 %v6246
      %v6343 = vunpack.c.l.b16 %v6249
      %v6344 = vunpack.c.l.b16 %v6253
      %v6345 = vunpack.c.l.b16 %v6256
      %v6346 = vunpack.c.l.b16 %v6260
      %v6347 = vunpack.c.l.b16 %v6263
      %v6348 = vunpack.c.l.b16 %v6267
      %v6349 = vunpack.c.l.b16 %v6270
      %v6350 = vunpack.c.l.b16 %v6274
      %v6351 = vunpack.c.l.b16 %v6277
      %v6352 = vunpack.c.l.b16 %v6281
      %v6353 = vunpack.c.l.b16 %v6284
      %v6354 = vunpack.c.l.b16 %v6288
      %v6355 = vunpack.c.l.b16 %v6291
      %v6356 = vunpack.c.l.b16 %v6295
      %v6357 = vunpack.c.l.b16 %v6298
      %v6358 = vunpack.c.l.b16 %v6302
      %v6359 = vunpack.c.l.b16 %v6305
      %v6360 = vunpack.c.l.b16 %v6309
      %v6361 = vunpack.c.l.b16 %v6312
      %v6362 = vunpack.c.l.b16 %v6316
      %v6363 = vunpack.c.l.b16 %v6319
      %v6364 = vunpack.c.l.b16 %v6323
      %v6365 = vunpack.c.l.b16 %v6326
      %v6366 = vunpack.c.l.b16 %v6330
      %v6367 = vunpack.c.l.b16 %v6333
      %v6368 = vpack.c.b16 %v6337, %v6336
      %v6369 = vpack.c.b16 %v6339, %v6338
      %v6370 = vpack.c.b16 %v6341, %v6340
      %v6371 = vpack.c.b16 %v6343, %v6342
      %v6372 = vpack.c.b16 %v6345, %v6344
      %v6373 = vpack.c.b16 %v6347, %v6346
      %v6374 = vpack.c.b16 %v6349, %v6348
      %v6375 = vpack.c.b16 %v6351, %v6350
      %v6376 = vpack.c.b16 %v6353, %v6352
      %v6377 = vpack.c.b16 %v6355, %v6354
      %v6378 = vpack.c.b16 %v6357, %v6356
      %v6379 = vpack.c.b16 %v6359, %v6358
      %v6380 = vpack.c.b16 %v6361, %v6360
      %v6381 = vpack.c.b16 %v6363, %v6362
      %v6382 = vpack.c.b16 %v6365, %v6364
      %v6383 = vpack.c.b16 %v6367, %v6366
      %v6386 = vunpack.c.l.b16 %v6334
      %v6387 = vunpack.c.l.b16 %v6335
      %v6388 = vpack.c.b16 %v6387, %v6386
      %v6391 = vsel %vm435, %v6368, 0
      %v6394 = vsel %vm435, %v6369, 0
      %v6397 = vsel %vm435, %v6370, 0
      %v6400 = vsel %vm435, %v6371, 0
      %v6403 = vsel %vm435, %v6372, 0
      %v6406 = vsel %vm435, %v6373, 0
      %v6409 = vsel %vm435, %v6374, 0
      %v6412 = vsel %vm435, %v6375, 0
      %v6415 = vsel %vm435, %v6376, 0
      %v6418 = vsel %vm435, %v6377, 0
      %v6421 = vsel %vm435, %v6378, 0
      %v6424 = vsel %vm435, %v6379, 0
      %v6427 = vsel %vm435, %v6380, 0
      %v6430 = vsel %vm435, %v6381, 0
      %v6433 = vsel %vm435, %v6382, 0
      %v6436 = vsel %vm435, %v6383, 0
      %6438 = vmatprep.subr.bf16.mxu0 0
      %6439 = vmatpush1.bf16.msra.mxu0 %v6388
      %6440 = vmatprep.subr.bf16.mxu0 0
      %6441 = vmatpush1.bf16.msra.mxu0 0
      %6442 = vmatprep.subr.bf16.mxu0 0
      %6443 = vmatpush1.bf16.msra.mxu0 0
      %6444 = vmatprep.subr.bf16.mxu0 0
      %6445 = vmatpush1.bf16.msra.mxu0 0
      %6446 = vmatprep.subr.bf16.mxu0 0
      %6447 = vmatpush1.bf16.msra.mxu0 0
      %6448 = vmatprep.subr.bf16.mxu0 0
      %6449 = vmatpush1.bf16.msra.mxu0 0
      %6450 = vmatprep.subr.bf16.mxu0 0
      %6451 = vmatpush1.bf16.msra.mxu0 0
      %6452 = vmatprep.subr.bf16.mxu0 0
      %6453 = vmatpush1.bf16.msra.mxu0 0
      %6454 = vmatprep.subr.bf16.mxu0 0
      %6455 = vmatpush1.bf16.msra.mxu0 0
      %6456 = vmatprep.subr.bf16.mxu0 0
      %6457 = vmatpush1.bf16.msra.mxu0 0
      %6458 = vmatprep.subr.bf16.mxu0 0
      %6459 = vmatpush1.bf16.msra.mxu0 0
      %6460 = vmatprep.subr.bf16.mxu0 0
      %6461 = vmatpush1.bf16.msra.mxu0 0
      %6462 = vmatprep.subr.bf16.mxu0 0
      %6463 = vmatpush1.bf16.msra.mxu0 0
      %6464 = vmatprep.subr.bf16.mxu0 0
      %6465 = vmatpush1.bf16.msra.mxu0 0
      %6466 = vmatprep.subr.bf16.mxu0 0
      %6467 = vmatpush1.bf16.msra.mxu0 0
      %6468 = vmatprep.subr.bf16.mxu0 0
      %6469 = vmatpush1.bf16.msra.mxu0 0
      %6470 = vmatprep.mubr.bf16.mxu0 0
      %6471 = vmatmul.mubr.bf16.gmra.mrb[0].mxu0 %v6391
      %v6472 = vpop.f32.mrb[0].mxu0
      %v6473 = vadd.f32 0.0, %v6472
      %v6474 = vpop.f32.mrb[0].mxu0
      %v6475 = vpop.f32.mrb[0].mxu0
      %v6476 = vadd.f32 0.0, %v6475
      %v6477 = vpop.f32.mrb[0].mxu0
      %6478 = vmatprep.mubr.bf16.mxu0 0
      %6479 = vmatmul.mubr.bf16.gmra.mrb[0].mxu0 %v6394
      %v6480 = vpop.f32.mrb[0].mxu0
      %v6481 = vadd.f32 0.0, %v6480
      %v6482 = vpop.f32.mrb[0].mxu0
      %v6483 = vpop.f32.mrb[0].mxu0
      %v6484 = vadd.f32 0.0, %v6483
      %v6485 = vpop.f32.mrb[0].mxu0
      %6486 = vmatprep.mubr.bf16.mxu0 0
      %6487 = vmatmul.mubr.bf16.gmra.mrb[0].mxu0 %v6397
      %v6488 = vpop.f32.mrb[0].mxu0
      %v6489 = vadd.f32 0.0, %v6488
      %v6490 = vpop.f32.mrb[0].mxu0
      %v6491 = vpop.f32.mrb[0].mxu0
      %v6492 = vadd.f32 0.0, %v6491
      %v6493 = vpop.f32.mrb[0].mxu0
      %6494 = vmatprep.mubr.bf16.mxu0 0
      %6495 = vmatmul.mubr.bf16.gmra.mrb[0].mxu0 %v6400
      %v6496 = vpop.f32.mrb[0].mxu0
      %v6497 = vadd.f32 0.0, %v6496
      %v6498 = vpop.f32.mrb[0].mxu0
      %v6499 = vpop.f32.mrb[0].mxu0
      %v6500 = vadd.f32 0.0, %v6499
      %v6501 = vpop.f32.mrb[0].mxu0
      %6502 = vmatprep.mubr.bf16.mxu0 0
      %6503 = vmatmul.mubr.bf16.gmra.mrb[0].mxu0 %v6403
      %v6504 = vpop.f32.mrb[0].mxu0
      %v6505 = vadd.f32 0.0, %v6504
      %v6506 = vpop.f32.mrb[0].mxu0
      %v6507 = vpop.f32.mrb[0].mxu0
      %v6508 = vadd.f32 0.0, %v6507
      %v6509 = vpop.f32.mrb[0].mxu0
      %6510 = vmatprep.mubr.bf16.mxu0 0
      %6511 = vmatmul.mubr.bf16.gmra.mrb[0].mxu0 %v6406
      %v6512 = vpop.f32.mrb[0].mxu0
      %v6513 = vadd.f32 0.0, %v6512
      %v6514 = vpop.f32.mrb[0].mxu0
      %v6515 = vpop.f32.mrb[0].mxu0
      %v6516 = vadd.f32 0.0, %v6515
      %v6517 = vpop.f32.mrb[0].mxu0
      %6518 = vmatprep.mubr.bf16.mxu0 0
      %6519 = vmatmul.mubr.bf16.gmra.mrb[0].mxu0 %v6409
      %v6520 = vpop.f32.mrb[0].mxu0
      %v6521 = vadd.f32 0.0, %v6520
      %v6522 = vpop.f32.mrb[0].mxu0
      %v6523 = vpop.f32.mrb[0].mxu0
      %v6524 = vadd.f32 0.0, %v6523
      %v6525 = vpop.f32.mrb[0].mxu0
      %6526 = vmatprep.mubr.bf16.mxu0 0
      %6527 = vmatmul.mubr.bf16.gmra.mrb[0].mxu0 %v6412
      %v6528 = vpop.f32.mrb[0].mxu0
      %v6529 = vadd.f32 0.0, %v6528
      %v6530 = vpop.f32.mrb[0].mxu0
      %v6531 = vpop.f32.mrb[0].mxu0
      %v6532 = vadd.f32 0.0, %v6531
      %v6533 = vpop.f32.mrb[0].mxu0
      %6534 = vmatprep.mubr.bf16.mxu0 0
      %6535 = vmatmul.mubr.bf16.gmra.mrb[0].mxu0 %v6415
      %v6536 = vpop.f32.mrb[0].mxu0
      %v6537 = vadd.f32 0.0, %v6536
      %v6538 = vpop.f32.mrb[0].mxu0
      %v6539 = vpop.f32.mrb[0].mxu0
      %v6540 = vadd.f32 0.0, %v6539
      %v6541 = vpop.f32.mrb[0].mxu0
      %6542 = vmatprep.mubr.bf16.mxu0 0
      %6543 = vmatmul.mubr.bf16.gmra.mrb[0].mxu0 %v6418
      %v6544 = vpop.f32.mrb[0].mxu0
      %v6545 = vadd.f32 0.0, %v6544
      %v6546 = vpop.f32.mrb[0].mxu0
      %v6547 = vpop.f32.mrb[0].mxu0
      %v6548 = vadd.f32 0.0, %v6547
      %v6549 = vpop.f32.mrb[0].mxu0
      %6550 = vmatprep.mubr.bf16.mxu0 0
      %6551 = vmatmul.mubr.bf16.gmra.mrb[0].mxu0 %v6421
      %v6552 = vpop.f32.mrb[0].mxu0
      %v6553 = vadd.f32 0.0, %v6552
      %v6554 = vpop.f32.mrb[0].mxu0
      %v6555 = vpop.f32.mrb[0].mxu0
      %v6556 = vadd.f32 0.0, %v6555
      %v6557 = vpop.f32.mrb[0].mxu0
      %6558 = vmatprep.mubr.bf16.mxu0 0
      %6559 = vmatmul.mubr.bf16.gmra.mrb[0].mxu0 %v6424
      %v6560 = vpop.f32.mrb[0].mxu0
      %v6561 = vadd.f32 0.0, %v6560
      %v6562 = vpop.f32.mrb[0].mxu0
      %v6563 = vpop.f32.mrb[0].mxu0
      %v6564 = vadd.f32 0.0, %v6563
      %v6565 = vpop.f32.mrb[0].mxu0
      %6566 = vmatprep.mubr.bf16.mxu0 0
      %6567 = vmatmul.mubr.bf16.gmra.mrb[0].mxu0 %v6427
      %v6568 = vpop.f32.mrb[0].mxu0
      %v6569 = vadd.f32 0.0, %v6568
      %v6570 = vpop.f32.mrb[0].mxu0
      %v6571 = vpop.f32.mrb[0].mxu0
      %v6572 = vadd.f32 0.0, %v6571
      %v6573 = vpop.f32.mrb[0].mxu0
      %6574 = vmatprep.mubr.bf16.mxu0 0
      %6575 = vmatmul.mubr.bf16.gmra.mrb[0].mxu0 %v6430
      %v6576 = vpop.f32.mrb[0].mxu0
      %v6577 = vadd.f32 0.0, %v6576
      %v6578 = vpop.f32.mrb[0].mxu0
      %v6579 = vpop.f32.mrb[0].mxu0
      %v6580 = vadd.f32 0.0, %v6579
      %v6581 = vpop.f32.mrb[0].mxu0
      %6582 = vmatprep.mubr.bf16.mxu0 0
      %6583 = vmatmul.mubr.bf16.gmra.mrb[0].mxu0 %v6433
      %v6584 = vpop.f32.mrb[0].mxu0
      %v6585 = vadd.f32 0.0, %v6584
      %v6586 = vpop.f32.mrb[0].mxu0
      %v6587 = vpop.f32.mrb[0].mxu0
      %v6588 = vadd.f32 0.0, %v6587
      %v6589 = vpop.f32.mrb[0].mxu0
      %6590 = vmatprep.mubr.bf16.mxu0 0
      %6591 = vmatmul.mubr.bf16.gmra.mrb[0].mxu0 %v6436
      %v6592 = vpop.f32.mrb[0].mxu0
      %v6593 = vadd.f32 0.0, %v6592
      %v6594 = vpop.f32.mrb[0].mxu0
      %v6595 = vpop.f32.mrb[0].mxu0
      %v6596 = vadd.f32 0.0, %v6595
      %v6597 = vpop.f32.mrb[0].mxu0
      %6598 = vdwg.mxu0
      %v6599 = vadd.f32 %v6126, %v6473
      %v6600 = vadd.f32 %v6127, %v6476
      %v6601 = vadd.f32 %v6128, %v6481
      %v6602 = vadd.f32 %v6129, %v6484
      %v6603 = vadd.f32 %v6130, %v6489
      %v6604 = vadd.f32 %v6131, %v6492
      %v6605 = vadd.f32 %v6132, %v6497
      %v6606 = vadd.f32 %v6133, %v6500
      %v6607 = vadd.f32 %v6134, %v6505
      %v6608 = vadd.f32 %v6135, %v6508
      %v6609 = vadd.f32 %v6136, %v6513
      %v6610 = vadd.f32 %v6137, %v6516
      %v6611 = vadd.f32 %v6138, %v6521
      %v6612 = vadd.f32 %v6139, %v6524
      %v6613 = vadd.f32 %v6140, %v6529
      %v6614 = vadd.f32 %v6141, %v6532
      %v6615 = vadd.f32 %v6142, %v6537
      %v6616 = vadd.f32 %v6143, %v6540
      %v6617 = vadd.f32 %v6144, %v6545
      %v6618 = vadd.f32 %v6145, %v6548
      %v6619 = vadd.f32 %v6146, %v6553
      %v6620 = vadd.f32 %v6147, %v6556
      %v6621 = vadd.f32 %v6148, %v6561
      %v6622 = vadd.f32 %v6149, %v6564
      %v6623 = vadd.f32 %v6150, %v6569
      %v6624 = vadd.f32 %v6151, %v6572
      %v6625 = vadd.f32 %v6152, %v6577
      %v6626 = vadd.f32 %v6153, %v6580
      %v6627 = vadd.f32 %v6154, %v6585
      %v6628 = vadd.f32 %v6155, %v6588
      %v6629 = vadd.f32 %v6156, %v6593
      %v6630 = vadd.f32 %v6157, %v6596
      %v6631 = vld [vmem:[%s6] sm:$0x1]
      %v6633 = vlaneseq
      %v6634 = vshrl.u32 %v6633, 7
      %v6635 = vsub.s32 0, %v6634
      %v6636 = vrot.slane %v6631, %v6635
      %v6638 = vmul.f32 %v6599, %v6636
      %v6639 = vmul.f32 %v6600, %v6636
      %v6640 = vmul.f32 %v6601, %v6636
      %v6641 = vmul.f32 %v6602, %v6636
      %v6642 = vmul.f32 %v6603, %v6636
      %v6643 = vmul.f32 %v6604, %v6636
      %v6644 = vmul.f32 %v6605, %v6636
      %v6645 = vmul.f32 %v6606, %v6636
      %v6646 = vmul.f32 %v6607, %v6636
      %v6647 = vmul.f32 %v6608, %v6636
      %v6648 = vmul.f32 %v6609, %v6636
      %v6649 = vmul.f32 %v6610, %v6636
      %v6650 = vmul.f32 %v6611, %v6636
      %v6651 = vmul.f32 %v6612, %v6636
      %v6652 = vmul.f32 %v6613, %v6636
      %v6653 = vmul.f32 %v6614, %v6636
      %v6654 = vmul.f32 %v6615, %v6636
      %v6655 = vmul.f32 %v6616, %v6636
      %v6656 = vmul.f32 %v6617, %v6636
      %v6657 = vmul.f32 %v6618, %v6636
      %v6658 = vmul.f32 %v6619, %v6636
      %v6659 = vmul.f32 %v6620, %v6636
      %v6660 = vmul.f32 %v6621, %v6636
      %v6661 = vmul.f32 %v6622, %v6636
      %v6662 = vmul.f32 %v6623, %v6636
      %v6663 = vmul.f32 %v6624, %v6636
      %v6664 = vmul.f32 %v6625, %v6636
      %v6665 = vmul.f32 %v6626, %v6636
      %v6666 = vmul.f32 %v6627, %v6636
      %v6667 = vmul.f32 %v6628, %v6636
      %v6668 = vmul.f32 %v6629, %v6636
      %v6669 = vmul.f32 %v6630, %v6636
      %v6670 = vld [vmem:[%s7] sm:$0x1]
      %v6672 = vlaneseq
      %v6673 = vshrl.u32 %v6672, 7
      %v6674 = vsub.s32 0, %v6673
      %v6675 = vrot.slane %v6670, %v6674
      %v6677 = vadd.f32 %v6638, %v6675
      %v6678 = vadd.f32 %v6639, %v6675
      %v6679 = vadd.f32 %v6640, %v6675
      %v6680 = vadd.f32 %v6641, %v6675
      %v6681 = vadd.f32 %v6642, %v6675
      %v6682 = vadd.f32 %v6643, %v6675
      %v6683 = vadd.f32 %v6644, %v6675
      %v6684 = vadd.f32 %v6645, %v6675
      %v6685 = vadd.f32 %v6646, %v6675
      %v6686 = vadd.f32 %v6647, %v6675
      %v6687 = vadd.f32 %v6648, %v6675
      %v6688 = vadd.f32 %v6649, %v6675
      %v6689 = vadd.f32 %v6650, %v6675
      %v6690 = vadd.f32 %v6651, %v6675
      %v6691 = vadd.f32 %v6652, %v6675
      %v6692 = vadd.f32 %v6653, %v6675
      %v6693 = vadd.f32 %v6654, %v6675
      %v6694 = vadd.f32 %v6655, %v6675
      %v6695 = vadd.f32 %v6656, %v6675
      %v6696 = vadd.f32 %v6657, %v6675
      %v6697 = vadd.f32 %v6658, %v6675
      %v6698 = vadd.f32 %v6659, %v6675
      %v6699 = vadd.f32 %v6660, %v6675
      %v6700 = vadd.f32 %v6661, %v6675
      %v6701 = vadd.f32 %v6662, %v6675
      %v6702 = vadd.f32 %v6663, %v6675
      %v6703 = vadd.f32 %v6664, %v6675
      %v6704 = vadd.f32 %v6665, %v6675
      %v6705 = vadd.f32 %v6666, %v6675
      %v6706 = vadd.f32 %v6667, %v6675
      %v6707 = vadd.f32 %v6668, %v6675
      %v6708 = vadd.f32 %v6669, %v6675
      %vm6709 = vcmp.ge.f32.partialorder %v6677, 0.0
      %vm6710 = vcmp.ge.f32.partialorder %v6678, 0.0
      %vm6711 = vcmp.ge.f32.partialorder %v6679, 0.0
      %vm6712 = vcmp.ge.f32.partialorder %v6680, 0.0
      %vm6713 = vcmp.ge.f32.partialorder %v6681, 0.0
      %vm6714 = vcmp.ge.f32.partialorder %v6682, 0.0
      %vm6715 = vcmp.ge.f32.partialorder %v6683, 0.0
      %vm6716 = vcmp.ge.f32.partialorder %v6684, 0.0
      %vm6717 = vcmp.ge.f32.partialorder %v6685, 0.0
      %vm6718 = vcmp.ge.f32.partialorder %v6686, 0.0
      %vm6719 = vcmp.ge.f32.partialorder %v6687, 0.0
      %vm6720 = vcmp.ge.f32.partialorder %v6688, 0.0
      %vm6721 = vcmp.ge.f32.partialorder %v6689, 0.0
      %vm6722 = vcmp.ge.f32.partialorder %v6690, 0.0
      %vm6723 = vcmp.ge.f32.partialorder %v6691, 0.0
      %vm6724 = vcmp.ge.f32.partialorder %v6692, 0.0
      %vm6725 = vcmp.ge.f32.partialorder %v6693, 0.0
      %vm6726 = vcmp.ge.f32.partialorder %v6694, 0.0
      %vm6727 = vcmp.ge.f32.partialorder %v6695, 0.0
      %vm6728 = vcmp.ge.f32.partialorder %v6696, 0.0
      %vm6729 = vcmp.ge.f32.partialorder %v6697, 0.0
      %vm6730 = vcmp.ge.f32.partialorder %v6698, 0.0
      %vm6731 = vcmp.ge.f32.partialorder %v6699, 0.0
      %vm6732 = vcmp.ge.f32.partialorder %v6700, 0.0
      %vm6733 = vcmp.ge.f32.partialorder %v6701, 0.0
      %vm6734 = vcmp.ge.f32.partialorder %v6702, 0.0
      %vm6735 = vcmp.ge.f32.partialorder %v6703, 0.0
      %vm6736 = vcmp.ge.f32.partialorder %v6704, 0.0
      %vm6737 = vcmp.ge.f32.partialorder %v6705, 0.0
      %vm6738 = vcmp.ge.f32.partialorder %v6706, 0.0
      %vm6739 = vcmp.ge.f32.partialorder %v6707, 0.0
      %vm6740 = vcmp.ge.f32.partialorder %v6708, 0.0
      %v6741 = vmul.f32 %v6677, 0.01
      %v6742 = vmul.f32 %v6678, 0.01
      %v6743 = vmul.f32 %v6679, 0.01
      %v6744 = vmul.f32 %v6680, 0.01
      %v6745 = vmul.f32 %v6681, 0.01
      %v6746 = vmul.f32 %v6682, 0.01
      %v6747 = vmul.f32 %v6683, 0.01
      %v6748 = vmul.f32 %v6684, 0.01
      %v6749 = vmul.f32 %v6685, 0.01
      %v6750 = vmul.f32 %v6686, 0.01
      %v6751 = vmul.f32 %v6687, 0.01
      %v6752 = vmul.f32 %v6688, 0.01
      %v6753 = vmul.f32 %v6689, 0.01
      %v6754 = vmul.f32 %v6690, 0.01
      %v6755 = vmul.f32 %v6691, 0.01
      %v6756 = vmul.f32 %v6692, 0.01
      %v6757 = vmul.f32 %v6693, 0.01
      %v6758 = vmul.f32 %v6694, 0.01
      %v6759 = vmul.f32 %v6695, 0.01
      %v6760 = vmul.f32 %v6696, 0.01
      %v6761 = vmul.f32 %v6697, 0.01
      %v6762 = vmul.f32 %v6698, 0.01
      %v6763 = vmul.f32 %v6699, 0.01
      %v6764 = vmul.f32 %v6700, 0.01
      %v6765 = vmul.f32 %v6701, 0.01
      %v6766 = vmul.f32 %v6702, 0.01
      %v6767 = vmul.f32 %v6703, 0.01
      %v6768 = vmul.f32 %v6704, 0.01
      %v6769 = vmul.f32 %v6705, 0.01
      %v6770 = vmul.f32 %v6706, 0.01
      %v6771 = vmul.f32 %v6707, 0.01
      %v6772 = vmul.f32 %v6708, 0.01
      %v6773 = vsel %vm6709, %v6677, %v6741
      %v6774 = vsel %vm6710, %v6678, %v6742
      %v6775 = vsel %vm6711, %v6679, %v6743
      %v6776 = vsel %vm6712, %v6680, %v6744
      %v6777 = vsel %vm6713, %v6681, %v6745
      %v6778 = vsel %vm6714, %v6682, %v6746
      %v6779 = vsel %vm6715, %v6683, %v6747
      %v6780 = vsel %vm6716, %v6684, %v6748
      %v6781 = vsel %vm6717, %v6685, %v6749
      %v6782 = vsel %vm6718, %v6686, %v6750
      %v6783 = vsel %vm6719, %v6687, %v6751
      %v6784 = vsel %vm6720, %v6688, %v6752
      %v6785 = vsel %vm6721, %v6689, %v6753
      %v6786 = vsel %vm6722, %v6690, %v6754
      %v6787 = vsel %vm6723, %v6691, %v6755
      %v6788 = vsel %vm6724, %v6692, %v6756
      %v6789 = vsel %vm6725, %v6693, %v6757
      %v6790 = vsel %vm6726, %v6694, %v6758
      %v6791 = vsel %vm6727, %v6695, %v6759
      %v6792 = vsel %vm6728, %v6696, %v6760
      %v6793 = vsel %vm6729, %v6697, %v6761
      %v6794 = vsel %vm6730, %v6698, %v6762
      %v6795 = vsel %vm6731, %v6699, %v6763
      %v6796 = vsel %vm6732, %v6700, %v6764
      %v6797 = vsel %vm6733, %v6701, %v6765
      %v6798 = vsel %vm6734, %v6702, %v6766
      %v6799 = vsel %vm6735, %v6703, %v6767
      %v6800 = vsel %vm6736, %v6704, %v6768
      %v6801 = vsel %vm6737, %v6705, %v6769
      %v6802 = vsel %vm6738, %v6706, %v6770
      %v6803 = vsel %vm6739, %v6707, %v6771
      %v6804 = vsel %vm6740, %v6708, %v6772
      %6805 = vst.msk [vmem:[#allocation3] sm:$0xf] %vm839, 0
      %6806 = vst.msk [vmem:[#allocation3 + $0x4] sm:$0xf] %vm839, 0
      %6807 = vst.msk [vmem:[#allocation3 + $0x8] sm:$0x1] %vm842, 0
      %s6808 = scalar_lea.vmem [#allocation3], 204
      %6809 = vst.msk [vmem:[%s6808] sm:$0xf] %vm839, 0
      %6810 = vst.msk [vmem:[%s6808 + $0x4] sm:$0xf] %vm839, 0
      %6811 = vst.msk [vmem:[%s6808 + $0x8] sm:$0x1] %vm842, 0
      %s6812 = scalar_lea.vmem [#allocation3], 12
      %v6813 = vld [vmem:[%s6812] sm:$0x1]
      %v6814 = vsel %vm851, 0, %v6813
      %6815 = vst [vmem:[%s6812] sm:$0x1] %v6814
      %v6816 = vld [vmem:[%s6812 + $0xc] sm:$0x1]
      %v6817 = vsel %vm851, 0, %v6816
      %6818 = vst [vmem:[%s6812 + $0xc] sm:$0x1] %v6817
      %v6819 = vld [vmem:[%s6812 + $0x18] sm:$0x1]
      %v6820 = vsel %vm851, 0, %v6819
      %6821 = vst [vmem:[%s6812 + $0x18] sm:$0x1] %v6820
      %v6822 = vld [vmem:[%s6812 + $0x24] sm:$0x1]
      %v6823 = vsel %vm851, 0, %v6822
      %6824 = vst [vmem:[%s6812 + $0x24] sm:$0x1] %v6823
      %v6825 = vld [vmem:[%s6812 + $0x30] sm:$0x1]
      %v6826 = vsel %vm851, 0, %v6825
      %6827 = vst [vmem:[%s6812 + $0x30] sm:$0x1] %v6826
      %v6828 = vld [vmem:[%s6812 + $0x3c] sm:$0x1]
      %v6829 = vsel %vm851, 0, %v6828
      %6830 = vst [vmem:[%s6812 + $0x3c] sm:$0x1] %v6829
      %v6831 = vld [vmem:[%s6812 + $0x48] sm:$0x1]
      %v6832 = vsel %vm851, 0, %v6831
      %6833 = vst [vmem:[%s6812 + $0x48] sm:$0x1] %v6832
      %v6834 = vld [vmem:[%s6812 + $0x54] sm:$0x1]
      %v6835 = vsel %vm851, 0, %v6834
      %6836 = vst [vmem:[%s6812 + $0x54] sm:$0x1] %v6835
      %v6837 = vld [vmem:[%s6812 + $0x60] sm:$0x1]
      %v6838 = vsel %vm851, 0, %v6837
      %6839 = vst [vmem:[%s6812 + $0x60] sm:$0x1] %v6838
      %v6840 = vld [vmem:[%s6812 + $0x6c] sm:$0x1]
      %v6841 = vsel %vm851, 0, %v6840
      %6842 = vst [vmem:[%s6812 + $0x6c] sm:$0x1] %v6841
      %v6843 = vld [vmem:[%s6812 + $0x78] sm:$0x1]
      %v6844 = vsel %vm851, 0, %v6843
      %6845 = vst [vmem:[%s6812 + $0x78] sm:$0x1] %v6844
      %v6846 = vld [vmem:[%s6812 + $0x84] sm:$0x1]
      %v6847 = vsel %vm851, 0, %v6846
      %6848 = vst [vmem:[%s6812 + $0x84] sm:$0x1] %v6847
      %v6849 = vld [vmem:[%s6812 + $0x90] sm:$0x1]
      %v6850 = vsel %vm851, 0, %v6849
      %6851 = vst [vmem:[%s6812 + $0x90] sm:$0x1] %v6850
      %v6852 = vld [vmem:[%s6812 + $0x9c] sm:$0x1]
      %v6853 = vsel %vm851, 0, %v6852
      %6854 = vst [vmem:[%s6812 + $0x9c] sm:$0x1] %v6853
      %v6855 = vld [vmem:[%s6812 + $0xa8] sm:$0x1]
      %v6856 = vsel %vm851, 0, %v6855
      %6857 = vst [vmem:[%s6812 + $0xa8] sm:$0x1] %v6856
      %v6858 = vld [vmem:[%s6812 + $0xb4] sm:$0x1]
      %v6859 = vsel %vm851, 0, %v6858
      %6860 = vst [vmem:[%s6812 + $0xb4] sm:$0x1] %v6859
      %v6861 = vld [vmem:[%s6812 + $0x8] sm:$0x1]
      %v6862 = vsel %vm901, 0, %v6861
      %6863 = vst [vmem:[%s6812 + $0x8] sm:$0x1] %v6862
      %v6864 = vld [vmem:[%s6812 + $0x14] sm:$0x1]
      %v6865 = vsel %vm901, 0, %v6864
      %6866 = vst [vmem:[%s6812 + $0x14] sm:$0x1] %v6865
      %v6867 = vld [vmem:[%s6812 + $0x20] sm:$0x1]
      %v6868 = vsel %vm901, 0, %v6867
      %6869 = vst [vmem:[%s6812 + $0x20] sm:$0x1] %v6868
      %v6870 = vld [vmem:[%s6812 + $0x2c] sm:$0x1]
      %v6871 = vsel %vm901, 0, %v6870
      %6872 = vst [vmem:[%s6812 + $0x2c] sm:$0x1] %v6871
      %v6873 = vld [vmem:[%s6812 + $0x38] sm:$0x1]
      %v6874 = vsel %vm901, 0, %v6873
      %6875 = vst [vmem:[%s6812 + $0x38] sm:$0x1] %v6874
      %v6876 = vld [vmem:[%s6812 + $0x44] sm:$0x1]
      %v6877 = vsel %vm901, 0, %v6876
      %6878 = vst [vmem:[%s6812 + $0x44] sm:$0x1] %v6877
      %v6879 = vld [vmem:[%s6812 + $0x50] sm:$0x1]
      %v6880 = vsel %vm901, 0, %v6879
      %6881 = vst [vmem:[%s6812 + $0x50] sm:$0x1] %v6880
      %v6882 = vld [vmem:[%s6812 + $0x5c] sm:$0x1]
      %v6883 = vsel %vm901, 0, %v6882
      %6884 = vst [vmem:[%s6812 + $0x5c] sm:$0x1] %v6883
      %v6885 = vld [vmem:[%s6812 + $0x68] sm:$0x1]
      %v6886 = vsel %vm901, 0, %v6885
      %6887 = vst [vmem:[%s6812 + $0x68] sm:$0x1] %v6886
      %v6888 = vld [vmem:[%s6812 + $0x74] sm:$0x1]
      %v6889 = vsel %vm901, 0, %v6888
      %6890 = vst [vmem:[%s6812 + $0x74] sm:$0x1] %v6889
      %v6891 = vld [vmem:[%s6812 + $0x80] sm:$0x1]
      %v6892 = vsel %vm901, 0, %v6891
      %6893 = vst [vmem:[%s6812 + $0x80] sm:$0x1] %v6892
      %v6894 = vld [vmem:[%s6812 + $0x8c] sm:$0x1]
      %v6895 = vsel %vm901, 0, %v6894
      %6896 = vst [vmem:[%s6812 + $0x8c] sm:$0x1] %v6895
      %v6897 = vld [vmem:[%s6812 + $0x98] sm:$0x1]
      %v6898 = vsel %vm901, 0, %v6897
      %6899 = vst [vmem:[%s6812 + $0x98] sm:$0x1] %v6898
      %v6900 = vld [vmem:[%s6812 + $0xa4] sm:$0x1]
      %v6901 = vsel %vm901, 0, %v6900
      %6902 = vst [vmem:[%s6812 + $0xa4] sm:$0x1] %v6901
      %v6903 = vld [vmem:[%s6812 + $0xb0] sm:$0x1]
      %v6904 = vsel %vm901, 0, %v6903
      %6905 = vst [vmem:[%s6812 + $0xb0] sm:$0x1] %v6904
      %v6906 = vld [vmem:[%s6812 + $0xbc] sm:$0x1]
      %v6907 = vsel %vm901, 0, %v6906
      %6908 = vst [vmem:[%s6812 + $0xbc] sm:$0x1] %v6907
      %v6909 = vpack.c.bf16 %v6774, %v6773
      %v6910 = vpack.c.bf16 %v6776, %v6775
      %v6911 = vpack.c.bf16 %v6778, %v6777
      %v6912 = vpack.c.bf16 %v6780, %v6779
      %v6913 = vpack.c.bf16 %v6782, %v6781
      %v6914 = vpack.c.bf16 %v6784, %v6783
      %v6915 = vpack.c.bf16 %v6786, %v6785
      %v6916 = vpack.c.bf16 %v6788, %v6787
      %v6917 = vpack.c.bf16 %v6790, %v6789
      %v6918 = vpack.c.bf16 %v6792, %v6791
      %v6919 = vpack.c.bf16 %v6794, %v6793
      %v6920 = vpack.c.bf16 %v6796, %v6795
      %v6921 = vpack.c.bf16 %v6798, %v6797
      %v6922 = vpack.c.bf16 %v6800, %v6799
      %v6923 = vpack.c.bf16 %v6802, %v6801
      %v6924 = vpack.c.bf16 %v6804, %v6803
      %v6941 = vunpack.c.l.b16 %v6909
      %v6942 = vunpack.c.h.b16 %v6909
      %v6943 = vunpack.c.l.b16 %v6910
      %v6944 = vunpack.c.h.b16 %v6910
      %v6945 = vunpack.c.l.b16 %v6911
      %v6946 = vunpack.c.h.b16 %v6911
      %v6947 = vunpack.c.l.b16 %v6912
      %v6948 = vunpack.c.h.b16 %v6912
      %v6949 = vunpack.c.l.b16 %v6913
      %v6950 = vunpack.c.h.b16 %v6913
      %v6951 = vunpack.c.l.b16 %v6914
      %v6952 = vunpack.c.h.b16 %v6914
      %v6953 = vunpack.c.l.b16 %v6915
      %v6954 = vunpack.c.h.b16 %v6915
      %v6955 = vunpack.c.l.b16 %v6916
      %v6956 = vunpack.c.h.b16 %v6916
      %v6957 = vunpack.c.l.b16 %v6917
      %v6958 = vunpack.c.h.b16 %v6917
      %v6959 = vunpack.c.l.b16 %v6918
      %v6960 = vunpack.c.h.b16 %v6918
      %v6961 = vunpack.c.l.b16 %v6919
      %v6962 = vunpack.c.h.b16 %v6919
      %v6963 = vunpack.c.l.b16 %v6920
      %v6964 = vunpack.c.h.b16 %v6920
      %v6965 = vunpack.c.l.b16 %v6921
      %v6966 = vunpack.c.h.b16 %v6921
      %v6967 = vunpack.c.l.b16 %v6922
      %v6968 = vunpack.c.h.b16 %v6922
      %v6969 = vunpack.c.l.b16 %v6923
      %v6970 = vunpack.c.h.b16 %v6923
      %v6971 = vunpack.c.l.b16 %v6924
      %v6972 = vunpack.c.h.b16 %v6924
      %v6973 = vpack.c.b16 %v6941, %v6941
      %v6974 = vpack.c.b16 %v6942, %v6942
      %v6975 = vpack.c.b16 %v6943, %v6943
      %v6976 = vpack.c.b16 %v6944, %v6944
      %v6977 = vpack.c.b16 %v6945, %v6945
      %v6978 = vpack.c.b16 %v6946, %v6946
      %v6979 = vpack.c.b16 %v6947, %v6947
      %v6980 = vpack.c.b16 %v6948, %v6948
      %v6981 = vpack.c.b16 %v6949, %v6949
      %v6982 = vpack.c.b16 %v6950, %v6950
      %v6983 = vpack.c.b16 %v6951, %v6951
      %v6984 = vpack.c.b16 %v6952, %v6952
      %v6985 = vpack.c.b16 %v6953, %v6953
      %v6986 = vpack.c.b16 %v6954, %v6954
      %v6987 = vpack.c.b16 %v6955, %v6955
      %v6988 = vpack.c.b16 %v6956, %v6956
      %v6989 = vpack.c.b16 %v6957, %v6957
      %v6990 = vpack.c.b16 %v6958, %v6958
      %v6991 = vpack.c.b16 %v6959, %v6959
      %v6992 = vpack.c.b16 %v6960, %v6960
      %v6993 = vpack.c.b16 %v6961, %v6961
      %v6994 = vpack.c.b16 %v6962, %v6962
      %v6995 = vpack.c.b16 %v6963, %v6963
      %v6996 = vpack.c.b16 %v6964, %v6964
      %v6997 = vpack.c.b16 %v6965, %v6965
      %v6998 = vpack.c.b16 %v6966, %v6966
      %v6999 = vpack.c.b16 %v6967, %v6967
      %v7000 = vpack.c.b16 %v6968, %v6968
      %v7001 = vpack.c.b16 %v6969, %v6969
      %v7002 = vpack.c.b16 %v6970, %v6970
      %v7003 = vpack.c.b16 %v6971, %v6971
      %v7004 = vpack.c.b16 %v6972, %v6972
      %v7006 = vshrl.u32 %v6973, 16
      %v7008 = vrot.slane %v7006, 7
      %v7009 = vshll.u32 %v6973, 16
      %v7011 = vor.u32 %v7008, %v7009
      %v7012 = vrot.slane %v7008, 4
      %v7014 = vshrl.u32 %v6974, 16
      %v7016 = vrot.slane %v7014, 7
      %v7017 = vshll.u32 %v6974, 16
      %v7019 = vor.u32 %v7016, %v7017
      %v7020 = vsel %vm1047, %v7012, %v7019
      %v7021 = vrot.slane %v7016, 4
      %v7023 = vshrl.u32 %v6975, 16
      %v7025 = vrot.slane %v7023, 7
      %v7026 = vshll.u32 %v6975, 16
      %v7028 = vor.u32 %v7025, %v7026
      %v7029 = vrot.slane %v7025, 4
      %v7031 = vshrl.u32 %v6976, 16
      %v7033 = vrot.slane %v7031, 7
      %v7034 = vshll.u32 %v6976, 16
      %v7036 = vor.u32 %v7033, %v7034
      %v7037 = vsel %vm1047, %v7029, %v7036
      %v7038 = vrot.slane %v7033, 4
      %v7040 = vshrl.u32 %v6977, 16
      %v7042 = vrot.slane %v7040, 7
      %v7043 = vshll.u32 %v6977, 16
      %v7045 = vor.u32 %v7042, %v7043
      %v7046 = vrot.slane %v7042, 4
      %v7048 = vshrl.u32 %v6978, 16
      %v7050 = vrot.slane %v7048, 7
      %v7051 = vshll.u32 %v6978, 16
      %v7053 = vor.u32 %v7050, %v7051
      %v7054 = vsel %vm1047, %v7046, %v7053
      %v7055 = vrot.slane %v7050, 4
      %v7057 = vshrl.u32 %v6979, 16
      %v7059 = vrot.slane %v7057, 7
      %v7060 = vshll.u32 %v6979, 16
      %v7062 = vor.u32 %v7059, %v7060
      %v7063 = vrot.slane %v7059, 4
      %v7065 = vshrl.u32 %v6980, 16
      %v7067 = vrot.slane %v7065, 7
      %v7068 = vshll.u32 %v6980, 16
      %v7070 = vor.u32 %v7067, %v7068
      %v7071 = vsel %vm1047, %v7063, %v7070
      %v7072 = vrot.slane %v7067, 4
      %v7074 = vshrl.u32 %v6981, 16
      %v7076 = vrot.slane %v7074, 7
      %v7077 = vshll.u32 %v6981, 16
      %v7079 = vor.u32 %v7076, %v7077
      %v7080 = vrot.slane %v7076, 4
      %v7082 = vshrl.u32 %v6982, 16
      %v7084 = vrot.slane %v7082, 7
      %v7085 = vshll.u32 %v6982, 16
      %v7087 = vor.u32 %v7084, %v7085
      %v7088 = vsel %vm1047, %v7080, %v7087
      %v7089 = vrot.slane %v7084, 4
      %v7091 = vshrl.u32 %v6983, 16
      %v7093 = vrot.slane %v7091, 7
      %v7094 = vshll.u32 %v6983, 16
      %v7096 = vor.u32 %v7093, %v7094
      %v7097 = vrot.slane %v7093, 4
      %v7099 = vshrl.u32 %v6984, 16
      %v7101 = vrot.slane %v7099, 7
      %v7102 = vshll.u32 %v6984, 16
      %v7104 = vor.u32 %v7101, %v7102
      %v7105 = vsel %vm1047, %v7097, %v7104
      %v7106 = vrot.slane %v7101, 4
      %v7108 = vshrl.u32 %v6985, 16
      %v7110 = vrot.slane %v7108, 7
      %v7111 = vshll.u32 %v6985, 16
      %v7113 = vor.u32 %v7110, %v7111
      %v7114 = vrot.slane %v7110, 4
      %v7116 = vshrl.u32 %v6986, 16
      %v7118 = vrot.slane %v7116, 7
      %v7119 = vshll.u32 %v6986, 16
      %v7121 = vor.u32 %v7118, %v7119
      %v7122 = vsel %vm1047, %v7114, %v7121
      %v7123 = vrot.slane %v7118, 4
      %v7125 = vshrl.u32 %v6987, 16
      %v7127 = vrot.slane %v7125, 7
      %v7128 = vshll.u32 %v6987, 16
      %v7130 = vor.u32 %v7127, %v7128
      %v7131 = vrot.slane %v7127, 4
      %v7133 = vshrl.u32 %v6988, 16
      %v7135 = vrot.slane %v7133, 7
      %v7136 = vshll.u32 %v6988, 16
      %v7138 = vor.u32 %v7135, %v7136
      %v7139 = vsel %vm1047, %v7131, %v7138
      %v7140 = vrot.slane %v7135, 4
      %v7142 = vshrl.u32 %v6989, 16
      %v7144 = vrot.slane %v7142, 7
      %v7145 = vshll.u32 %v6989, 16
      %v7147 = vor.u32 %v7144, %v7145
      %v7148 = vrot.slane %v7144, 4
      %v7150 = vshrl.u32 %v6990, 16
      %v7152 = vrot.slane %v7150, 7
      %v7153 = vshll.u32 %v6990, 16
      %v7155 = vor.u32 %v7152, %v7153
      %v7156 = vsel %vm1047, %v7148, %v7155
      %v7157 = vrot.slane %v7152, 4
      %v7159 = vshrl.u32 %v6991, 16
      %v7161 = vrot.slane %v7159, 7
      %v7162 = vshll.u32 %v6991, 16
      %v7164 = vor.u32 %v7161, %v7162
      %v7165 = vrot.slane %v7161, 4
      %v7167 = vshrl.u32 %v6992, 16
      %v7169 = vrot.slane %v7167, 7
      %v7170 = vshll.u32 %v6992, 16
      %v7172 = vor.u32 %v7169, %v7170
      %v7173 = vsel %vm1047, %v7165, %v7172
      %v7174 = vrot.slane %v7169, 4
      %v7176 = vshrl.u32 %v6993, 16
      %v7178 = vrot.slane %v7176, 7
      %v7179 = vshll.u32 %v6993, 16
      %v7181 = vor.u32 %v7178, %v7179
      %v7182 = vrot.slane %v7178, 4
      %v7184 = vshrl.u32 %v6994, 16
      %v7186 = vrot.slane %v7184, 7
      %v7187 = vshll.u32 %v6994, 16
      %v7189 = vor.u32 %v7186, %v7187
      %v7190 = vsel %vm1047, %v7182, %v7189
      %v7191 = vrot.slane %v7186, 4
      %v7193 = vshrl.u32 %v6995, 16
      %v7195 = vrot.slane %v7193, 7
      %v7196 = vshll.u32 %v6995, 16
      %v7198 = vor.u32 %v7195, %v7196
      %v7199 = vrot.slane %v7195, 4
      %v7201 = vshrl.u32 %v6996, 16
      %v7203 = vrot.slane %v7201, 7
      %v7204 = vshll.u32 %v6996, 16
      %v7206 = vor.u32 %v7203, %v7204
      %v7207 = vsel %vm1047, %v7199, %v7206
      %v7208 = vrot.slane %v7203, 4
      %v7210 = vshrl.u32 %v6997, 16
      %v7212 = vrot.slane %v7210, 7
      %v7213 = vshll.u32 %v6997, 16
      %v7215 = vor.u32 %v7212, %v7213
      %v7216 = vrot.slane %v7212, 4
      %v7218 = vshrl.u32 %v6998, 16
      %v7220 = vrot.slane %v7218, 7
      %v7221 = vshll.u32 %v6998, 16
      %v7223 = vor.u32 %v7220, %v7221
      %v7224 = vsel %vm1047, %v7216, %v7223
      %v7225 = vrot.slane %v7220, 4
      %v7227 = vshrl.u32 %v6999, 16
      %v7229 = vrot.slane %v7227, 7
      %v7230 = vshll.u32 %v6999, 16
      %v7232 = vor.u32 %v7229, %v7230
      %v7233 = vrot.slane %v7229, 4
      %v7235 = vshrl.u32 %v7000, 16
      %v7237 = vrot.slane %v7235, 7
      %v7238 = vshll.u32 %v7000, 16
      %v7240 = vor.u32 %v7237, %v7238
      %v7241 = vsel %vm1047, %v7233, %v7240
      %v7242 = vrot.slane %v7237, 4
      %v7244 = vshrl.u32 %v7001, 16
      %v7246 = vrot.slane %v7244, 7
      %v7247 = vshll.u32 %v7001, 16
      %v7249 = vor.u32 %v7246, %v7247
      %v7250 = vrot.slane %v7246, 4
      %v7252 = vshrl.u32 %v7002, 16
      %v7254 = vrot.slane %v7252, 7
      %v7255 = vshll.u32 %v7002, 16
      %v7257 = vor.u32 %v7254, %v7255
      %v7258 = vsel %vm1047, %v7250, %v7257
      %v7259 = vrot.slane %v7254, 4
      %v7261 = vshrl.u32 %v7003, 16
      %v7263 = vrot.slane %v7261, 7
      %v7264 = vshll.u32 %v7003, 16
      %v7266 = vor.u32 %v7263, %v7264
      %v7267 = vrot.slane %v7263, 4
      %v7269 = vshrl.u32 %v7004, 16
      %v7271 = vrot.slane %v7269, 7
      %v7272 = vshll.u32 %v7004, 16
      %v7274 = vor.u32 %v7271, %v7272
      %v7275 = vsel %vm1047, %v7267, %v7274
      %v7276 = vrot.slane %v7271, 4
      %v7325 = vld [vmem:[%s6812] sm:$0xf]
      %v7326 = vsel %vm1369, %v7011, %v7325
      %7327 = vst [vmem:[%s6812] sm:$0xf] %v7326
      %7328 = vst.msk [vmem:[%s6812 + $0x4] sm:$0xf] %vm839, %v7020
      %v7329 = vld [vmem:[%s6812 + $0x8] sm:$0x1]
      %v7330 = vsel %vm851, %v7021, %v7329
      %7331 = vst [vmem:[%s6812 + $0x8] sm:$0x1] %v7330
      %v7332 = vld [vmem:[%s6812 + $0xc] sm:$0xf]
      %v7333 = vsel %vm1369, %v7028, %v7332
      %7334 = vst [vmem:[%s6812 + $0xc] sm:$0xf] %v7333
      %7335 = vst.msk [vmem:[%s6812 + $0x10] sm:$0xf] %vm839, %v7037
      %v7336 = vld [vmem:[%s6812 + $0x14] sm:$0x1]
      %v7337 = vsel %vm851, %v7038, %v7336
      %7338 = vst [vmem:[%s6812 + $0x14] sm:$0x1] %v7337
      %v7339 = vld [vmem:[%s6812 + $0x18] sm:$0xf]
      %v7340 = vsel %vm1369, %v7045, %v7339
      %7341 = vst [vmem:[%s6812 + $0x18] sm:$0xf] %v7340
      %7342 = vst.msk [vmem:[%s6812 + $0x1c] sm:$0xf] %vm839, %v7054
      %v7343 = vld [vmem:[%s6812 + $0x20] sm:$0x1]
      %v7344 = vsel %vm851, %v7055, %v7343
      %7345 = vst [vmem:[%s6812 + $0x20] sm:$0x1] %v7344
      %v7346 = vld [vmem:[%s6812 + $0x24] sm:$0xf]
      %v7347 = vsel %vm1369, %v7062, %v7346
      %7348 = vst [vmem:[%s6812 + $0x24] sm:$0xf] %v7347
      %7349 = vst.msk [vmem:[%s6812 + $0x28] sm:$0xf] %vm839, %v7071
      %v7350 = vld [vmem:[%s6812 + $0x2c] sm:$0x1]
      %v7351 = vsel %vm851, %v7072, %v7350
      %7352 = vst [vmem:[%s6812 + $0x2c] sm:$0x1] %v7351
      %v7353 = vld [vmem:[%s6812 + $0x30] sm:$0xf]
      %v7354 = vsel %vm1369, %v7079, %v7353
      %7355 = vst [vmem:[%s6812 + $0x30] sm:$0xf] %v7354
      %7356 = vst.msk [vmem:[%s6812 + $0x34] sm:$0xf] %vm839, %v7088
      %v7357 = vld [vmem:[%s6812 + $0x38] sm:$0x1]
      %v7358 = vsel %vm851, %v7089, %v7357
      %7359 = vst [vmem:[%s6812 + $0x38] sm:$0x1] %v7358
      %v7360 = vld [vmem:[%s6812 + $0x3c] sm:$0xf]
      %v7361 = vsel %vm1369, %v7096, %v7360
      %7362 = vst [vmem:[%s6812 + $0x3c] sm:$0xf] %v7361
      %7363 = vst.msk [vmem:[%s6812 + $0x40] sm:$0xf] %vm839, %v7105
      %v7364 = vld [vmem:[%s6812 + $0x44] sm:$0x1]
      %v7365 = vsel %vm851, %v7106, %v7364
      %7366 = vst [vmem:[%s6812 + $0x44] sm:$0x1] %v7365
      %v7367 = vld [vmem:[%s6812 + $0x48] sm:$0xf]
      %v7368 = vsel %vm1369, %v7113, %v7367
      %7369 = vst [vmem:[%s6812 + $0x48] sm:$0xf] %v7368
      %7370 = vst.msk [vmem:[%s6812 + $0x4c] sm:$0xf] %vm839, %v7122
      %v7371 = vld [vmem:[%s6812 + $0x50] sm:$0x1]
      %v7372 = vsel %vm851, %v7123, %v7371
      %7373 = vst [vmem:[%s6812 + $0x50] sm:$0x1] %v7372
      %v7374 = vld [vmem:[%s6812 + $0x54] sm:$0xf]
      %v7375 = vsel %vm1369, %v7130, %v7374
      %7376 = vst [vmem:[%s6812 + $0x54] sm:$0xf] %v7375
      %7377 = vst.msk [vmem:[%s6812 + $0x58] sm:$0xf] %vm839, %v7139
      %v7378 = vld [vmem:[%s6812 + $0x5c] sm:$0x1]
      %v7379 = vsel %vm851, %v7140, %v7378
      %7380 = vst [vmem:[%s6812 + $0x5c] sm:$0x1] %v7379
      %v7381 = vld [vmem:[%s6812 + $0x60] sm:$0xf]
      %v7382 = vsel %vm1369, %v7147, %v7381
      %7383 = vst [vmem:[%s6812 + $0x60] sm:$0xf] %v7382
      %7384 = vst.msk [vmem:[%s6812 + $0x64] sm:$0xf] %vm839, %v7156
      %v7385 = vld [vmem:[%s6812 + $0x68] sm:$0x1]
      %v7386 = vsel %vm851, %v7157, %v7385
      %7387 = vst [vmem:[%s6812 + $0x68] sm:$0x1] %v7386
      %v7388 = vld [vmem:[%s6812 + $0x6c] sm:$0xf]
      %v7389 = vsel %vm1369, %v7164, %v7388
      %7390 = vst [vmem:[%s6812 + $0x6c] sm:$0xf] %v7389
      %7391 = vst.msk [vmem:[%s6812 + $0x70] sm:$0xf] %vm839, %v7173
      %v7392 = vld [vmem:[%s6812 + $0x74] sm:$0x1]
      %v7393 = vsel %vm851, %v7174, %v7392
      %7394 = vst [vmem:[%s6812 + $0x74] sm:$0x1] %v7393
      %v7395 = vld [vmem:[%s6812 + $0x78] sm:$0xf]
      %v7396 = vsel %vm1369, %v7181, %v7395
      %7397 = vst [vmem:[%s6812 + $0x78] sm:$0xf] %v7396
      %7398 = vst.msk [vmem:[%s6812 + $0x7c] sm:$0xf] %vm839, %v7190
      %v7399 = vld [vmem:[%s6812 + $0x80] sm:$0x1]
      %v7400 = vsel %vm851, %v7191, %v7399
      %7401 = vst [vmem:[%s6812 + $0x80] sm:$0x1] %v7400
      %v7402 = vld [vmem:[%s6812 + $0x84] sm:$0xf]
      %v7403 = vsel %vm1369, %v7198, %v7402
      %7404 = vst [vmem:[%s6812 + $0x84] sm:$0xf] %v7403
      %7405 = vst.msk [vmem:[%s6812 + $0x88] sm:$0xf] %vm839, %v7207
      %v7406 = vld [vmem:[%s6812 + $0x8c] sm:$0x1]
      %v7407 = vsel %vm851, %v7208, %v7406
      %7408 = vst [vmem:[%s6812 + $0x8c] sm:$0x1] %v7407
      %v7409 = vld [vmem:[%s6812 + $0x90] sm:$0xf]
      %v7410 = vsel %vm1369, %v7215, %v7409
      %7411 = vst [vmem:[%s6812 + $0x90] sm:$0xf] %v7410
      %7412 = vst.msk [vmem:[%s6812 + $0x94] sm:$0xf] %vm839, %v7224
      %v7413 = vld [vmem:[%s6812 + $0x98] sm:$0x1]
      %v7414 = vsel %vm851, %v7225, %v7413
      %7415 = vst [vmem:[%s6812 + $0x98] sm:$0x1] %v7414
      %v7416 = vld [vmem:[%s6812 + $0x9c] sm:$0xf]
      %v7417 = vsel %vm1369, %v7232, %v7416
      %7418 = vst [vmem:[%s6812 + $0x9c] sm:$0xf] %v7417
      %7419 = vst.msk [vmem:[%s6812 + $0xa0] sm:$0xf] %vm839, %v7241
      %v7420 = vld [vmem:[%s6812 + $0xa4] sm:$0x1]
      %v7421 = vsel %vm851, %v7242, %v7420
      %7422 = vst [vmem:[%s6812 + $0xa4] sm:$0x1] %v7421
      %v7423 = vld [vmem:[%s6812 + $0xa8] sm:$0xf]
      %v7424 = vsel %vm1369, %v7249, %v7423
      %7425 = vst [vmem:[%s6812 + $0xa8] sm:$0xf] %v7424
      %7426 = vst.msk [vmem:[%s6812 + $0xac] sm:$0xf] %vm839, %v7258
      %v7427 = vld [vmem:[%s6812 + $0xb0] sm:$0x1]
      %v7428 = vsel %vm851, %v7259, %v7427
      %7429 = vst [vmem:[%s6812 + $0xb0] sm:$0x1] %v7428
      %v7430 = vld [vmem:[%s6812 + $0xb4] sm:$0xf]
      %v7431 = vsel %vm1369, %v7266, %v7430
      %7432 = vst [vmem:[%s6812 + $0xb4] sm:$0xf] %v7431
      %7433 = vst.msk [vmem:[%s6812 + $0xb8] sm:$0xf] %vm839, %v7275
      %v7434 = vld [vmem:[%s6812 + $0xbc] sm:$0x1]
      %v7435 = vsel %vm851, %v7276, %v7434
      %7436 = vst [vmem:[%s6812 + $0xbc] sm:$0x1] %v7435
      %v7437 = vld [vmem:[#allocation3] sm:$0xf]
      %v7438 = vld [vmem:[#allocation3 + $0x4] sm:$0xf]
      %v7439 = vld [vmem:[#allocation3 + $0xc] sm:$0xf]
      %v7440 = vld [vmem:[#allocation3 + $0x10] sm:$0xf]
      %v7441 = vld [vmem:[#allocation3 + $0x18] sm:$0xf]
      %v7442 = vld [vmem:[#allocation3 + $0x1c] sm:$0xf]
      %v7443 = vld [vmem:[#allocation3 + $0x24] sm:$0xf]
      %v7444 = vld [vmem:[#allocation3 + $0x28] sm:$0xf]
      %v7445 = vld [vmem:[#allocation3 + $0x30] sm:$0xf]
      %v7446 = vld [vmem:[#allocation3 + $0x34] sm:$0xf]
      %v7447 = vld [vmem:[#allocation3 + $0x3c] sm:$0xf]
      %v7448 = vld [vmem:[#allocation3 + $0x40] sm:$0xf]
      %v7449 = vld [vmem:[#allocation3 + $0x48] sm:$0xf]
      %v7450 = vld [vmem:[#allocation3 + $0x4c] sm:$0xf]
      %v7451 = vld [vmem:[#allocation3 + $0x54] sm:$0xf]
      %v7452 = vld [vmem:[#allocation3 + $0x58] sm:$0xf]
      %v7453 = vld [vmem:[#allocation3 + $0x60] sm:$0xf]
      %v7454 = vld [vmem:[#allocation3 + $0x64] sm:$0xf]
      %v7455 = vld [vmem:[#allocation3 + $0x6c] sm:$0xf]
      %v7456 = vld [vmem:[#allocation3 + $0x70] sm:$0xf]
      %v7457 = vld [vmem:[#allocation3 + $0x78] sm:$0xf]
      %v7458 = vld [vmem:[#allocation3 + $0x7c] sm:$0xf]
      %v7459 = vld [vmem:[#allocation3 + $0x84] sm:$0xf]
      %v7460 = vld [vmem:[#allocation3 + $0x88] sm:$0xf]
      %v7461 = vld [vmem:[#allocation3 + $0x90] sm:$0xf]
      %v7462 = vld [vmem:[#allocation3 + $0x94] sm:$0xf]
      %v7463 = vld [vmem:[#allocation3 + $0x9c] sm:$0xf]
      %v7464 = vld [vmem:[#allocation3 + $0xa0] sm:$0xf]
      %v7465 = vld [vmem:[#allocation3 + $0xa8] sm:$0xf]
      %v7466 = vld [vmem:[#allocation3 + $0xac] sm:$0xf]
      %v7467 = vld [vmem:[#allocation3 + $0xb4] sm:$0xf]
      %v7468 = vld [vmem:[#allocation3 + $0xb8] sm:$0xf]
      %v7469 = vld [vmem:[%s8] sm:$0xf]
      %v7470 = vld [vmem:[%s8 + $0x4] sm:$0xf]
      %v7471 = vld [vmem:[#allocation3 + $0x8] sm:$0x1]
      %v7472 = vld [vmem:[#allocation3 + $0x14] sm:$0x1]
      %v7473 = vld [vmem:[#allocation3 + $0x20] sm:$0x1]
      %v7474 = vld [vmem:[#allocation3 + $0x2c] sm:$0x1]
      %v7475 = vld [vmem:[#allocation3 + $0x38] sm:$0x1]
      %v7476 = vld [vmem:[#allocation3 + $0x44] sm:$0x1]
      %v7477 = vld [vmem:[#allocation3 + $0x50] sm:$0x1]
      %v7478 = vld [vmem:[#allocation3 + $0x5c] sm:$0x1]
      %v7479 = vld [vmem:[#allocation3 + $0x68] sm:$0x1]
      %v7480 = vld [vmem:[#allocation3 + $0x74] sm:$0x1]
      %v7481 = vld [vmem:[#allocation3 + $0x80] sm:$0x1]
      %v7482 = vld [vmem:[#allocation3 + $0x8c] sm:$0x1]
      %v7483 = vld [vmem:[#allocation3 + $0x98] sm:$0x1]
      %v7484 = vld [vmem:[#allocation3 + $0xa4] sm:$0x1]
      %v7485 = vld [vmem:[#allocation3 + $0xb0] sm:$0x1]
      %v7486 = vld [vmem:[#allocation3 + $0xbc] sm:$0x1]
      %v7488 = vshrl.u32 %v7437, 16
      %v7490 = vrot.slane %v7488, 4
      %v7491 = vshll.u32 %v7437, 16
      %v7493 = vrot.slane %v7491, 5
      %v7494 = vor.u32 %v7490, %v7493
      %v7495 = vrot.slane %v7494, 4
      %v7497 = vshll.u32 %v7438, 16
      %v7499 = vrot.slane %v7497, 5
      %v7500 = vsel %vm2099, %v7495, %v7499
      %v7501 = vshrl.u32 %v7438, 16
      %v7503 = vrot.slane %v7501, 4
      %v7504 = vor.u32 %v7503, %v7499
      %v7505 = vrot.slane %v7504, 4
      %v7507 = vshll.u32 %v7471, 16
      %v7509 = vrot.slane %v7507, 5
      %v7510 = vsel %vm2099, %v7505, %v7509
      %v7512 = vshrl.u32 %v7439, 16
      %v7514 = vrot.slane %v7512, 4
      %v7515 = vshll.u32 %v7439, 16
      %v7517 = vrot.slane %v7515, 5
      %v7518 = vor.u32 %v7514, %v7517
      %v7519 = vrot.slane %v7518, 4
      %v7521 = vshll.u32 %v7440, 16
      %v7523 = vrot.slane %v7521, 5
      %v7524 = vsel %vm2099, %v7519, %v7523
      %v7525 = vshrl.u32 %v7440, 16
      %v7527 = vrot.slane %v7525, 4
      %v7528 = vor.u32 %v7527, %v7523
      %v7529 = vrot.slane %v7528, 4
      %v7531 = vshll.u32 %v7472, 16
      %v7533 = vrot.slane %v7531, 5
      %v7534 = vsel %vm2099, %v7529, %v7533
      %v7536 = vshrl.u32 %v7441, 16
      %v7538 = vrot.slane %v7536, 4
      %v7539 = vshll.u32 %v7441, 16
      %v7541 = vrot.slane %v7539, 5
      %v7542 = vor.u32 %v7538, %v7541
      %v7543 = vrot.slane %v7542, 4
      %v7545 = vshll.u32 %v7442, 16
      %v7547 = vrot.slane %v7545, 5
      %v7548 = vsel %vm2099, %v7543, %v7547
      %v7549 = vshrl.u32 %v7442, 16
      %v7551 = vrot.slane %v7549, 4
      %v7552 = vor.u32 %v7551, %v7547
      %v7553 = vrot.slane %v7552, 4
      %v7555 = vshll.u32 %v7473, 16
      %v7557 = vrot.slane %v7555, 5
      %v7558 = vsel %vm2099, %v7553, %v7557
      %v7560 = vshrl.u32 %v7443, 16
      %v7562 = vrot.slane %v7560, 4
      %v7563 = vshll.u32 %v7443, 16
      %v7565 = vrot.slane %v7563, 5
      %v7566 = vor.u32 %v7562, %v7565
      %v7567 = vrot.slane %v7566, 4
      %v7569 = vshll.u32 %v7444, 16
      %v7571 = vrot.slane %v7569, 5
      %v7572 = vsel %vm2099, %v7567, %v7571
      %v7573 = vshrl.u32 %v7444, 16
      %v7575 = vrot.slane %v7573, 4
      %v7576 = vor.u32 %v7575, %v7571
      %v7577 = vrot.slane %v7576, 4
      %v7579 = vshll.u32 %v7474, 16
      %v7581 = vrot.slane %v7579, 5
      %v7582 = vsel %vm2099, %v7577, %v7581
      %v7584 = vshrl.u32 %v7445, 16
      %v7586 = vrot.slane %v7584, 4
      %v7587 = vshll.u32 %v7445, 16
      %v7589 = vrot.slane %v7587, 5
      %v7590 = vor.u32 %v7586, %v7589
      %v7591 = vrot.slane %v7590, 4
      %v7593 = vshll.u32 %v7446, 16
      %v7595 = vrot.slane %v7593, 5
      %v7596 = vsel %vm2099, %v7591, %v7595
      %v7597 = vshrl.u32 %v7446, 16
      %v7599 = vrot.slane %v7597, 4
      %v7600 = vor.u32 %v7599, %v7595
      %v7601 = vrot.slane %v7600, 4
      %v7603 = vshll.u32 %v7475, 16
      %v7605 = vrot.slane %v7603, 5
      %v7606 = vsel %vm2099, %v7601, %v7605
      %v7608 = vshrl.u32 %v7447, 16
      %v7610 = vrot.slane %v7608, 4
      %v7611 = vshll.u32 %v7447, 16
      %v7613 = vrot.slane %v7611, 5
      %v7614 = vor.u32 %v7610, %v7613
      %v7615 = vrot.slane %v7614, 4
      %v7617 = vshll.u32 %v7448, 16
      %v7619 = vrot.slane %v7617, 5
      %v7620 = vsel %vm2099, %v7615, %v7619
      %v7621 = vshrl.u32 %v7448, 16
      %v7623 = vrot.slane %v7621, 4
      %v7624 = vor.u32 %v7623, %v7619
      %v7625 = vrot.slane %v7624, 4
      %v7627 = vshll.u32 %v7476, 16
      %v7629 = vrot.slane %v7627, 5
      %v7630 = vsel %vm2099, %v7625, %v7629
      %v7632 = vshrl.u32 %v7449, 16
      %v7634 = vrot.slane %v7632, 4
      %v7635 = vshll.u32 %v7449, 16
      %v7637 = vrot.slane %v7635, 5
      %v7638 = vor.u32 %v7634, %v7637
      %v7639 = vrot.slane %v7638, 4
      %v7641 = vshll.u32 %v7450, 16
      %v7643 = vrot.slane %v7641, 5
      %v7644 = vsel %vm2099, %v7639, %v7643
      %v7645 = vshrl.u32 %v7450, 16
      %v7647 = vrot.slane %v7645, 4
      %v7648 = vor.u32 %v7647, %v7643
      %v7649 = vrot.slane %v7648, 4
      %v7651 = vshll.u32 %v7477, 16
      %v7653 = vrot.slane %v7651, 5
      %v7654 = vsel %vm2099, %v7649, %v7653
      %v7656 = vshrl.u32 %v7451, 16
      %v7658 = vrot.slane %v7656, 4
      %v7659 = vshll.u32 %v7451, 16
      %v7661 = vrot.slane %v7659, 5
      %v7662 = vor.u32 %v7658, %v7661
      %v7663 = vrot.slane %v7662, 4
      %v7665 = vshll.u32 %v7452, 16
      %v7667 = vrot.slane %v7665, 5
      %v7668 = vsel %vm2099, %v7663, %v7667
      %v7669 = vshrl.u32 %v7452, 16
      %v7671 = vrot.slane %v7669, 4
      %v7672 = vor.u32 %v7671, %v7667
      %v7673 = vrot.slane %v7672, 4
      %v7675 = vshll.u32 %v7478, 16
      %v7677 = vrot.slane %v7675, 5
      %v7678 = vsel %vm2099, %v7673, %v7677
      %v7680 = vshrl.u32 %v7453, 16
      %v7682 = vrot.slane %v7680, 4
      %v7683 = vshll.u32 %v7453, 16
      %v7685 = vrot.slane %v7683, 5
      %v7686 = vor.u32 %v7682, %v7685
      %v7687 = vrot.slane %v7686, 4
      %v7689 = vshll.u32 %v7454, 16
      %v7691 = vrot.slane %v7689, 5
      %v7692 = vsel %vm2099, %v7687, %v7691
      %v7693 = vshrl.u32 %v7454, 16
      %v7695 = vrot.slane %v7693, 4
      %v7696 = vor.u32 %v7695, %v7691
      %v7697 = vrot.slane %v7696, 4
      %v7699 = vshll.u32 %v7479, 16
      %v7701 = vrot.slane %v7699, 5
      %v7702 = vsel %vm2099, %v7697, %v7701
      %v7704 = vshrl.u32 %v7455, 16
      %v7706 = vrot.slane %v7704, 4
      %v7707 = vshll.u32 %v7455, 16
      %v7709 = vrot.slane %v7707, 5
      %v7710 = vor.u32 %v7706, %v7709
      %v7711 = vrot.slane %v7710, 4
      %v7713 = vshll.u32 %v7456, 16
      %v7715 = vrot.slane %v7713, 5
      %v7716 = vsel %vm2099, %v7711, %v7715
      %v7717 = vshrl.u32 %v7456, 16
      %v7719 = vrot.slane %v7717, 4
      %v7720 = vor.u32 %v7719, %v7715
      %v7721 = vrot.slane %v7720, 4
      %v7723 = vshll.u32 %v7480, 16
      %v7725 = vrot.slane %v7723, 5
      %v7726 = vsel %vm2099, %v7721, %v7725
      %v7728 = vshrl.u32 %v7457, 16
      %v7730 = vrot.slane %v7728, 4
      %v7731 = vshll.u32 %v7457, 16
      %v7733 = vrot.slane %v7731, 5
      %v7734 = vor.u32 %v7730, %v7733
      %v7735 = vrot.slane %v7734, 4
      %v7737 = vshll.u32 %v7458, 16
      %v7739 = vrot.slane %v7737, 5
      %v7740 = vsel %vm2099, %v7735, %v7739
      %v7741 = vshrl.u32 %v7458, 16
      %v7743 = vrot.slane %v7741, 4
      %v7744 = vor.u32 %v7743, %v7739
      %v7745 = vrot.slane %v7744, 4
      %v7747 = vshll.u32 %v7481, 16
      %v7749 = vrot.slane %v7747, 5
      %v7750 = vsel %vm2099, %v7745, %v7749
      %v7752 = vshrl.u32 %v7459, 16
      %v7754 = vrot.slane %v7752, 4
      %v7755 = vshll.u32 %v7459, 16
      %v7757 = vrot.slane %v7755, 5
      %v7758 = vor.u32 %v7754, %v7757
      %v7759 = vrot.slane %v7758, 4
      %v7761 = vshll.u32 %v7460, 16
      %v7763 = vrot.slane %v7761, 5
      %v7764 = vsel %vm2099, %v7759, %v7763
      %v7765 = vshrl.u32 %v7460, 16
      %v7767 = vrot.slane %v7765, 4
      %v7768 = vor.u32 %v7767, %v7763
      %v7769 = vrot.slane %v7768, 4
      %v7771 = vshll.u32 %v7482, 16
      %v7773 = vrot.slane %v7771, 5
      %v7774 = vsel %vm2099, %v7769, %v7773
      %v7776 = vshrl.u32 %v7461, 16
      %v7778 = vrot.slane %v7776, 4
      %v7779 = vshll.u32 %v7461, 16
      %v7781 = vrot.slane %v7779, 5
      %v7782 = vor.u32 %v7778, %v7781
      %v7783 = vrot.slane %v7782, 4
      %v7785 = vshll.u32 %v7462, 16
      %v7787 = vrot.slane %v7785, 5
      %v7788 = vsel %vm2099, %v7783, %v7787
      %v7789 = vshrl.u32 %v7462, 16
      %v7791 = vrot.slane %v7789, 4
      %v7792 = vor.u32 %v7791, %v7787
      %v7793 = vrot.slane %v7792, 4
      %v7795 = vshll.u32 %v7483, 16
      %v7797 = vrot.slane %v7795, 5
      %v7798 = vsel %vm2099, %v7793, %v7797
      %v7800 = vshrl.u32 %v7463, 16
      %v7802 = vrot.slane %v7800, 4
      %v7803 = vshll.u32 %v7463, 16
      %v7805 = vrot.slane %v7803, 5
      %v7806 = vor.u32 %v7802, %v7805
      %v7807 = vrot.slane %v7806, 4
      %v7809 = vshll.u32 %v7464, 16
      %v7811 = vrot.slane %v7809, 5
      %v7812 = vsel %vm2099, %v7807, %v7811
      %v7813 = vshrl.u32 %v7464, 16
      %v7815 = vrot.slane %v7813, 4
      %v7816 = vor.u32 %v7815, %v7811
      %v7817 = vrot.slane %v7816, 4
      %v7819 = vshll.u32 %v7484, 16
      %v7821 = vrot.slane %v7819, 5
      %v7822 = vsel %vm2099, %v7817, %v7821
      %v7824 = vshrl.u32 %v7465, 16
      %v7826 = vrot.slane %v7824, 4
      %v7827 = vshll.u32 %v7465, 16
      %v7829 = vrot.slane %v7827, 5
      %v7830 = vor.u32 %v7826, %v7829
      %v7831 = vrot.slane %v7830, 4
      %v7833 = vshll.u32 %v7466, 16
      %v7835 = vrot.slane %v7833, 5
      %v7836 = vsel %vm2099, %v7831, %v7835
      %v7837 = vshrl.u32 %v7466, 16
      %v7839 = vrot.slane %v7837, 4
      %v7840 = vor.u32 %v7839, %v7835
      %v7841 = vrot.slane %v7840, 4
      %v7843 = vshll.u32 %v7485, 16
      %v7845 = vrot.slane %v7843, 5
      %v7846 = vsel %vm2099, %v7841, %v7845
      %v7848 = vshrl.u32 %v7467, 16
      %v7850 = vrot.slane %v7848, 4
      %v7851 = vshll.u32 %v7467, 16
      %v7853 = vrot.slane %v7851, 5
      %v7854 = vor.u32 %v7850, %v7853
      %v7855 = vrot.slane %v7854, 4
      %v7857 = vshll.u32 %v7468, 16
      %v7859 = vrot.slane %v7857, 5
      %v7860 = vsel %vm2099, %v7855, %v7859
      %v7861 = vshrl.u32 %v7468, 16
      %v7863 = vrot.slane %v7861, 4
      %v7864 = vor.u32 %v7863, %v7859
      %v7865 = vrot.slane %v7864, 4
      %v7867 = vshll.u32 %v7486, 16
      %v7869 = vrot.slane %v7867, 5
      %v7870 = vsel %vm2099, %v7865, %v7869
      %v7871 = vld [vmem:[%s8 + $0x8] sm:$0xf]
      %v7872 = vld [vmem:[%s8 + $0xc] sm:$0xf]
      %v7873 = vunpack.c.l.b16 %v7500
      %v7874 = vunpack.c.l.b16 %v7510
      %v7875 = vunpack.c.l.b16 %v7524
      %v7876 = vunpack.c.l.b16 %v7534
      %v7877 = vunpack.c.l.b16 %v7548
      %v7878 = vunpack.c.l.b16 %v7558
      %v7879 = vunpack.c.l.b16 %v7572
      %v7880 = vunpack.c.l.b16 %v7582
      %v7881 = vunpack.c.l.b16 %v7596
      %v7882 = vunpack.c.l.b16 %v7606
      %v7883 = vunpack.c.l.b16 %v7620
      %v7884 = vunpack.c.l.b16 %v7630
      %v7885 = vunpack.c.l.b16 %v7644
      %v7886 = vunpack.c.l.b16 %v7654
      %v7887 = vunpack.c.l.b16 %v7668
      %v7888 = vunpack.c.l.b16 %v7678
      %v7889 = vunpack.c.l.b16 %v7692
      %v7890 = vunpack.c.l.b16 %v7702
      %v7891 = vunpack.c.l.b16 %v7716
      %v7892 = vunpack.c.l.b16 %v7726
      %v7893 = vunpack.c.l.b16 %v7740
      %v7894 = vunpack.c.l.b16 %v7750
      %v7895 = vunpack.c.l.b16 %v7764
      %v7896 = vunpack.c.l.b16 %v7774
      %v7897 = vunpack.c.l.b16 %v7788
      %v7898 = vunpack.c.l.b16 %v7798
      %v7899 = vunpack.c.l.b16 %v7812
      %v7900 = vunpack.c.l.b16 %v7822
      %v7901 = vunpack.c.l.b16 %v7836
      %v7902 = vunpack.c.l.b16 %v7846
      %v7903 = vunpack.c.l.b16 %v7860
      %v7904 = vunpack.c.l.b16 %v7870
      %v7905 = vpack.c.b16 %v7874, %v7873
      %v7906 = vpack.c.b16 %v7876, %v7875
      %v7907 = vpack.c.b16 %v7878, %v7877
      %v7908 = vpack.c.b16 %v7880, %v7879
      %v7909 = vpack.c.b16 %v7882, %v7881
      %v7910 = vpack.c.b16 %v7884, %v7883
      %v7911 = vpack.c.b16 %v7886, %v7885
      %v7912 = vpack.c.b16 %v7888, %v7887
      %v7913 = vpack.c.b16 %v7890, %v7889
      %v7914 = vpack.c.b16 %v7892, %v7891
      %v7915 = vpack.c.b16 %v7894, %v7893
      %v7916 = vpack.c.b16 %v7896, %v7895
      %v7917 = vpack.c.b16 %v7898, %v7897
      %v7918 = vpack.c.b16 %v7900, %v7899
      %v7919 = vpack.c.b16 %v7902, %v7901
      %v7920 = vpack.c.b16 %v7904, %v7903
      %v7923 = vunpack.c.l.b16 %v7871
      %v7924 = vunpack.c.l.b16 %v7872
      %v7925 = vpack.c.b16 %v7924, %v7923
      %v7928 = vsel %vm435, %v7905, 0
      %v7931 = vsel %vm435, %v7906, 0
      %v7934 = vsel %vm435, %v7907, 0
      %v7937 = vsel %vm435, %v7908, 0
      %v7940 = vsel %vm435, %v7909, 0
      %v7943 = vsel %vm435, %v7910, 0
      %v7946 = vsel %vm435, %v7911, 0
      %v7949 = vsel %vm435, %v7912, 0
      %v7952 = vsel %vm435, %v7913, 0
      %v7955 = vsel %vm435, %v7914, 0
      %v7958 = vsel %vm435, %v7915, 0
      %v7961 = vsel %vm435, %v7916, 0
      %v7964 = vsel %vm435, %v7917, 0
      %v7967 = vsel %vm435, %v7918, 0
      %v7970 = vsel %vm435, %v7919, 0
      %v7973 = vsel %vm435, %v7920, 0
      %7975 = vmatprep.subr.bf16.mxu0 0
      %7976 = vmatpush1.bf16.msra.mxu0 %v7925
      %7977 = vmatprep.subr.bf16.mxu0 0
      %7978 = vmatpush1.bf16.msra.mxu0 0
      %7979 = vmatprep.subr.bf16.mxu0 0
      %7980 = vmatpush1.bf16.msra.mxu0 0
      %7981 = vmatprep.subr.bf16.mxu0 0
      %7982 = vmatpush1.bf16.msra.mxu0 0
      %7983 = vmatprep.subr.bf16.mxu0 0
      %7984 = vmatpush1.bf16.msra.mxu0 0
      %7985 = vmatprep.subr.bf16.mxu0 0
      %7986 = vmatpush1.bf16.msra.mxu0 0
      %7987 = vmatprep.subr.bf16.mxu0 0
      %7988 = vmatpush1.bf16.msra.mxu0 0
      %7989 = vmatprep.subr.bf16.mxu0 0
      %7990 = vmatpush1.bf16.msra.mxu0 0
      %7991 = vmatprep.subr.bf16.mxu0 0
      %7992 = vmatpush1.bf16.msra.mxu0 0
      %7993 = vmatprep.subr.bf16.mxu0 0
      %7994 = vmatpush1.bf16.msra.mxu0 0
      %7995 = vmatprep.subr.bf16.mxu0 0
      %7996 = vmatpush1.bf16.msra.mxu0 0
      %7997 = vmatprep.subr.bf16.mxu0 0
      %7998 = vmatpush1.bf16.msra.mxu0 0
      %7999 = vmatprep.subr.bf16.mxu0 0
      %8000 = vmatpush1.bf16.msra.mxu0 0
      %8001 = vmatprep.subr.bf16.mxu0 0
      %8002 = vmatpush1.bf16.msra.mxu0 0
      %8003 = vmatprep.subr.bf16.mxu0 0
      %8004 = vmatpush1.bf16.msra.mxu0 0
      %8005 = vmatprep.subr.bf16.mxu0 0
      %8006 = vmatpush1.bf16.msra.mxu0 0
      %8007 = vmatprep.mubr.bf16.mxu0 0
      %8008 = vmatmul.mubr.bf16.gmra.mrb[0].mxu0 %v7928
      %v8009 = vpop.f32.mrb[0].mxu0
      %v8010 = vadd.f32 0.0, %v8009
      %v8011 = vpop.f32.mrb[0].mxu0
      %v8012 = vpop.f32.mrb[0].mxu0
      %v8013 = vadd.f32 0.0, %v8012
      %v8014 = vpop.f32.mrb[0].mxu0
      %8015 = vmatprep.mubr.bf16.mxu0 0
      %8016 = vmatmul.mubr.bf16.gmra.mrb[0].mxu0 %v7931
      %v8017 = vpop.f32.mrb[0].mxu0
      %v8018 = vadd.f32 0.0, %v8017
      %v8019 = vpop.f32.mrb[0].mxu0
      %v8020 = vpop.f32.mrb[0].mxu0
      %v8021 = vadd.f32 0.0, %v8020
      %v8022 = vpop.f32.mrb[0].mxu0
      %8023 = vmatprep.mubr.bf16.mxu0 0
      %8024 = vmatmul.mubr.bf16.gmra.mrb[0].mxu0 %v7934
      %v8025 = vpop.f32.mrb[0].mxu0
      %v8026 = vadd.f32 0.0, %v8025
      %v8027 = vpop.f32.mrb[0].mxu0
      %v8028 = vpop.f32.mrb[0].mxu0
      %v8029 = vadd.f32 0.0, %v8028
      %v8030 = vpop.f32.mrb[0].mxu0
      %8031 = vmatprep.mubr.bf16.mxu0 0
      %8032 = vmatmul.mubr.bf16.gmra.mrb[0].mxu0 %v7937
      %v8033 = vpop.f32.mrb[0].mxu0
      %v8034 = vadd.f32 0.0, %v8033
      %v8035 = vpop.f32.mrb[0].mxu0
      %v8036 = vpop.f32.mrb[0].mxu0
      %v8037 = vadd.f32 0.0, %v8036
      %v8038 = vpop.f32.mrb[0].mxu0
      %8039 = vmatprep.mubr.bf16.mxu0 0
      %8040 = vmatmul.mubr.bf16.gmra.mrb[0].mxu0 %v7940
      %v8041 = vpop.f32.mrb[0].mxu0
      %v8042 = vadd.f32 0.0, %v8041
      %v8043 = vpop.f32.mrb[0].mxu0
      %v8044 = vpop.f32.mrb[0].mxu0
      %v8045 = vadd.f32 0.0, %v8044
      %v8046 = vpop.f32.mrb[0].mxu0
      %8047 = vmatprep.mubr.bf16.mxu0 0
      %8048 = vmatmul.mubr.bf16.gmra.mrb[0].mxu0 %v7943
      %v8049 = vpop.f32.mrb[0].mxu0
      %v8050 = vadd.f32 0.0, %v8049
      %v8051 = vpop.f32.mrb[0].mxu0
      %v8052 = vpop.f32.mrb[0].mxu0
      %v8053 = vadd.f32 0.0, %v8052
      %v8054 = vpop.f32.mrb[0].mxu0
      %8055 = vmatprep.mubr.bf16.mxu0 0
      %8056 = vmatmul.mubr.bf16.gmra.mrb[0].mxu0 %v7946
      %v8057 = vpop.f32.mrb[0].mxu0
      %v8058 = vadd.f32 0.0, %v8057
      %v8059 = vpop.f32.mrb[0].mxu0
      %v8060 = vpop.f32.mrb[0].mxu0
      %v8061 = vadd.f32 0.0, %v8060
      %v8062 = vpop.f32.mrb[0].mxu0
      %8063 = vmatprep.mubr.bf16.mxu0 0
      %8064 = vmatmul.mubr.bf16.gmra.mrb[0].mxu0 %v7949
      %v8065 = vpop.f32.mrb[0].mxu0
      %v8066 = vadd.f32 0.0, %v8065
      %v8067 = vpop.f32.mrb[0].mxu0
      %v8068 = vpop.f32.mrb[0].mxu0
      %v8069 = vadd.f32 0.0, %v8068
      %v8070 = vpop.f32.mrb[0].mxu0
      %8071 = vmatprep.mubr.bf16.mxu0 0
      %8072 = vmatmul.mubr.bf16.gmra.mrb[0].mxu0 %v7952
      %v8073 = vpop.f32.mrb[0].mxu0
      %v8074 = vadd.f32 0.0, %v8073
      %v8075 = vpop.f32.mrb[0].mxu0
      %v8076 = vpop.f32.mrb[0].mxu0
      %v8077 = vadd.f32 0.0, %v8076
      %v8078 = vpop.f32.mrb[0].mxu0
      %8079 = vmatprep.mubr.bf16.mxu0 0
      %8080 = vmatmul.mubr.bf16.gmra.mrb[0].mxu0 %v7955
      %v8081 = vpop.f32.mrb[0].mxu0
      %v8082 = vadd.f32 0.0, %v8081
      %v8083 = vpop.f32.mrb[0].mxu0
      %v8084 = vpop.f32.mrb[0].mxu0
      %v8085 = vadd.f32 0.0, %v8084
      %v8086 = vpop.f32.mrb[0].mxu0
      %8087 = vmatprep.mubr.bf16.mxu0 0
      %8088 = vmatmul.mubr.bf16.gmra.mrb[0].mxu0 %v7958
      %v8089 = vpop.f32.mrb[0].mxu0
      %v8090 = vadd.f32 0.0, %v8089
      %v8091 = vpop.f32.mrb[0].mxu0
      %v8092 = vpop.f32.mrb[0].mxu0
      %v8093 = vadd.f32 0.0, %v8092
      %v8094 = vpop.f32.mrb[0].mxu0
      %8095 = vmatprep.mubr.bf16.mxu0 0
      %8096 = vmatmul.mubr.bf16.gmra.mrb[0].mxu0 %v7961
      %v8097 = vpop.f32.mrb[0].mxu0
      %v8098 = vadd.f32 0.0, %v8097
      %v8099 = vpop.f32.mrb[0].mxu0
      %v8100 = vpop.f32.mrb[0].mxu0
      %v8101 = vadd.f32 0.0, %v8100
      %v8102 = vpop.f32.mrb[0].mxu0
      %8103 = vmatprep.mubr.bf16.mxu0 0
      %8104 = vmatmul.mubr.bf16.gmra.mrb[0].mxu0 %v7964
      %v8105 = vpop.f32.mrb[0].mxu0
      %v8106 = vadd.f32 0.0, %v8105
      %v8107 = vpop.f32.mrb[0].mxu0
      %v8108 = vpop.f32.mrb[0].mxu0
      %v8109 = vadd.f32 0.0, %v8108
      %v8110 = vpop.f32.mrb[0].mxu0
      %8111 = vmatprep.mubr.bf16.mxu0 0
      %8112 = vmatmul.mubr.bf16.gmra.mrb[0].mxu0 %v7967
      %v8113 = vpop.f32.mrb[0].mxu0
      %v8114 = vadd.f32 0.0, %v8113
      %v8115 = vpop.f32.mrb[0].mxu0
      %v8116 = vpop.f32.mrb[0].mxu0
      %v8117 = vadd.f32 0.0, %v8116
      %v8118 = vpop.f32.mrb[0].mxu0
      %8119 = vmatprep.mubr.bf16.mxu0 0
      %8120 = vmatmul.mubr.bf16.gmra.mrb[0].mxu0 %v7970
      %v8121 = vpop.f32.mrb[0].mxu0
      %v8122 = vadd.f32 0.0, %v8121
      %v8123 = vpop.f32.mrb[0].mxu0
      %v8124 = vpop.f32.mrb[0].mxu0
      %v8125 = vadd.f32 0.0, %v8124
      %v8126 = vpop.f32.mrb[0].mxu0
      %8127 = vmatprep.mubr.bf16.mxu0 0
      %8128 = vmatmul.mubr.bf16.gmra.mrb[0].mxu0 %v7973
      %v8129 = vpop.f32.mrb[0].mxu0
      %v8130 = vadd.f32 0.0, %v8129
      %v8131 = vpop.f32.mrb[0].mxu0
      %v8132 = vpop.f32.mrb[0].mxu0
      %v8133 = vadd.f32 0.0, %v8132
      %v8134 = vpop.f32.mrb[0].mxu0
      %8135 = vdwg.mxu0
      %v8168 = vunpack.c.l.b16 %v7437
      %v8169 = vunpack.c.l.b16 %v7438
      %v8170 = vunpack.c.l.b16 %v7439
      %v8171 = vunpack.c.l.b16 %v7440
      %v8172 = vunpack.c.l.b16 %v7441
      %v8173 = vunpack.c.l.b16 %v7442
      %v8174 = vunpack.c.l.b16 %v7443
      %v8175 = vunpack.c.l.b16 %v7444
      %v8176 = vunpack.c.l.b16 %v7445
      %v8177 = vunpack.c.l.b16 %v7446
      %v8178 = vunpack.c.l.b16 %v7447
      %v8179 = vunpack.c.l.b16 %v7448
      %v8180 = vunpack.c.l.b16 %v7449
      %v8181 = vunpack.c.l.b16 %v7450
      %v8182 = vunpack.c.l.b16 %v7451
      %v8183 = vunpack.c.l.b16 %v7452
      %v8184 = vunpack.c.l.b16 %v7453
      %v8185 = vunpack.c.l.b16 %v7454
      %v8186 = vunpack.c.l.b16 %v7455
      %v8187 = vunpack.c.l.b16 %v7456
      %v8188 = vunpack.c.l.b16 %v7457
      %v8189 = vunpack.c.l.b16 %v7458
      %v8190 = vunpack.c.l.b16 %v7459
      %v8191 = vunpack.c.l.b16 %v7460
      %v8192 = vunpack.c.l.b16 %v7461
      %v8193 = vunpack.c.l.b16 %v7462
      %v8194 = vunpack.c.l.b16 %v7463
      %v8195 = vunpack.c.l.b16 %v7464
      %v8196 = vunpack.c.l.b16 %v7465
      %v8197 = vunpack.c.l.b16 %v7466
      %v8198 = vunpack.c.l.b16 %v7467
      %v8199 = vunpack.c.l.b16 %v7468
      %v8200 = vpack.c.b16 %v8169, %v8168
      %v8201 = vpack.c.b16 %v8171, %v8170
      %v8202 = vpack.c.b16 %v8173, %v8172
      %v8203 = vpack.c.b16 %v8175, %v8174
      %v8204 = vpack.c.b16 %v8177, %v8176
      %v8205 = vpack.c.b16 %v8179, %v8178
      %v8206 = vpack.c.b16 %v8181, %v8180
      %v8207 = vpack.c.b16 %v8183, %v8182
      %v8208 = vpack.c.b16 %v8185, %v8184
      %v8209 = vpack.c.b16 %v8187, %v8186
      %v8210 = vpack.c.b16 %v8189, %v8188
      %v8211 = vpack.c.b16 %v8191, %v8190
      %v8212 = vpack.c.b16 %v8193, %v8192
      %v8213 = vpack.c.b16 %v8195, %v8194
      %v8214 = vpack.c.b16 %v8197, %v8196
      %v8215 = vpack.c.b16 %v8199, %v8198
      %v8218 = vunpack.c.l.b16 %v7469
      %v8219 = vunpack.c.l.b16 %v7470
      %v8220 = vpack.c.b16 %v8219, %v8218
      %v8223 = vsel %vm435, %v8200, 0
      %v8226 = vsel %vm435, %v8201, 0
      %v8229 = vsel %vm435, %v8202, 0
      %v8232 = vsel %vm435, %v8203, 0
      %v8235 = vsel %vm435, %v8204, 0
      %v8238 = vsel %vm435, %v8205, 0
      %v8241 = vsel %vm435, %v8206, 0
      %v8244 = vsel %vm435, %v8207, 0
      %v8247 = vsel %vm435, %v8208, 0
      %v8250 = vsel %vm435, %v8209, 0
      %v8253 = vsel %vm435, %v8210, 0
      %v8256 = vsel %vm435, %v8211, 0
      %v8259 = vsel %vm435, %v8212, 0
      %v8262 = vsel %vm435, %v8213, 0
      %v8265 = vsel %vm435, %v8214, 0
      %v8268 = vsel %vm435, %v8215, 0
      %8270 = vmatprep.subr.bf16.mxu0 0
      %8271 = vmatpush1.bf16.msra.mxu0 %v8220
      %8272 = vmatprep.subr.bf16.mxu0 0
      %8273 = vmatpush1.bf16.msra.mxu0 0
      %8274 = vmatprep.subr.bf16.mxu0 0
      %8275 = vmatpush1.bf16.msra.mxu0 0
      %8276 = vmatprep.subr.bf16.mxu0 0
      %8277 = vmatpush1.bf16.msra.mxu0 0
      %8278 = vmatprep.subr.bf16.mxu0 0
      %8279 = vmatpush1.bf16.msra.mxu0 0
      %8280 = vmatprep.subr.bf16.mxu0 0
      %8281 = vmatpush1.bf16.msra.mxu0 0
      %8282 = vmatprep.subr.bf16.mxu0 0
      %8283 = vmatpush1.bf16.msra.mxu0 0
      %8284 = vmatprep.subr.bf16.mxu0 0
      %8285 = vmatpush1.bf16.msra.mxu0 0
      %8286 = vmatprep.subr.bf16.mxu0 0
      %8287 = vmatpush1.bf16.msra.mxu0 0
      %8288 = vmatprep.subr.bf16.mxu0 0
      %8289 = vmatpush1.bf16.msra.mxu0 0
      %8290 = vmatprep.subr.bf16.mxu0 0
      %8291 = vmatpush1.bf16.msra.mxu0 0
      %8292 = vmatprep.subr.bf16.mxu0 0
      %8293 = vmatpush1.bf16.msra.mxu0 0
      %8294 = vmatprep.subr.bf16.mxu0 0
      %8295 = vmatpush1.bf16.msra.mxu0 0
      %8296 = vmatprep.subr.bf16.mxu0 0
      %8297 = vmatpush1.bf16.msra.mxu0 0
      %8298 = vmatprep.subr.bf16.mxu0 0
      %8299 = vmatpush1.bf16.msra.mxu0 0
      %8300 = vmatprep.subr.bf16.mxu0 0
      %8301 = vmatpush1.bf16.msra.mxu0 0
      %8302 = vmatprep.mubr.bf16.mxu0 0
      %8303 = vmatmul.mubr.bf16.gmra.mrb[0].mxu0 %v8223
      %v8304 = vpop.f32.mrb[0].mxu0
      %v8305 = vadd.f32 %v8010, %v8304
      %v8306 = vpop.f32.mrb[0].mxu0
      %v8307 = vpop.f32.mrb[0].mxu0
      %v8308 = vadd.f32 %v8013, %v8307
      %v8309 = vpop.f32.mrb[0].mxu0
      %8310 = vmatprep.mubr.bf16.mxu0 0
      %8311 = vmatmul.mubr.bf16.gmra.mrb[0].mxu0 %v8226
      %v8312 = vpop.f32.mrb[0].mxu0
      %v8313 = vadd.f32 %v8018, %v8312
      %v8314 = vpop.f32.mrb[0].mxu0
      %v8315 = vpop.f32.mrb[0].mxu0
      %v8316 = vadd.f32 %v8021, %v8315
      %v8317 = vpop.f32.mrb[0].mxu0
      %8318 = vmatprep.mubr.bf16.mxu0 0
      %8319 = vmatmul.mubr.bf16.gmra.mrb[0].mxu0 %v8229
      %v8320 = vpop.f32.mrb[0].mxu0
      %v8321 = vadd.f32 %v8026, %v8320
      %v8322 = vpop.f32.mrb[0].mxu0
      %v8323 = vpop.f32.mrb[0].mxu0
      %v8324 = vadd.f32 %v8029, %v8323
      %v8325 = vpop.f32.mrb[0].mxu0
      %8326 = vmatprep.mubr.bf16.mxu0 0
      %8327 = vmatmul.mubr.bf16.gmra.mrb[0].mxu0 %v8232
      %v8328 = vpop.f32.mrb[0].mxu0
      %v8329 = vadd.f32 %v8034, %v8328
      %v8330 = vpop.f32.mrb[0].mxu0
      %v8331 = vpop.f32.mrb[0].mxu0
      %v8332 = vadd.f32 %v8037, %v8331
      %v8333 = vpop.f32.mrb[0].mxu0
      %8334 = vmatprep.mubr.bf16.mxu0 0
      %8335 = vmatmul.mubr.bf16.gmra.mrb[0].mxu0 %v8235
      %v8336 = vpop.f32.mrb[0].mxu0
      %v8337 = vadd.f32 %v8042, %v8336
      %v8338 = vpop.f32.mrb[0].mxu0
      %v8339 = vpop.f32.mrb[0].mxu0
      %v8340 = vadd.f32 %v8045, %v8339
      %v8341 = vpop.f32.mrb[0].mxu0
      %8342 = vmatprep.mubr.bf16.mxu0 0
      %8343 = vmatmul.mubr.bf16.gmra.mrb[0].mxu0 %v8238
      %v8344 = vpop.f32.mrb[0].mxu0
      %v8345 = vadd.f32 %v8050, %v8344
      %v8346 = vpop.f32.mrb[0].mxu0
      %v8347 = vpop.f32.mrb[0].mxu0
      %v8348 = vadd.f32 %v8053, %v8347
      %v8349 = vpop.f32.mrb[0].mxu0
      %8350 = vmatprep.mubr.bf16.mxu0 0
      %8351 = vmatmul.mubr.bf16.gmra.mrb[0].mxu0 %v8241
      %v8352 = vpop.f32.mrb[0].mxu0
      %v8353 = vadd.f32 %v8058, %v8352
      %v8354 = vpop.f32.mrb[0].mxu0
      %v8355 = vpop.f32.mrb[0].mxu0
      %v8356 = vadd.f32 %v8061, %v8355
      %v8357 = vpop.f32.mrb[0].mxu0
      %8358 = vmatprep.mubr.bf16.mxu0 0
      %8359 = vmatmul.mubr.bf16.gmra.mrb[0].mxu0 %v8244
      %v8360 = vpop.f32.mrb[0].mxu0
      %v8361 = vadd.f32 %v8066, %v8360
      %v8362 = vpop.f32.mrb[0].mxu0
      %v8363 = vpop.f32.mrb[0].mxu0
      %v8364 = vadd.f32 %v8069, %v8363
      %v8365 = vpop.f32.mrb[0].mxu0
      %8366 = vmatprep.mubr.bf16.mxu0 0
      %8367 = vmatmul.mubr.bf16.gmra.mrb[0].mxu0 %v8247
      %v8368 = vpop.f32.mrb[0].mxu0
      %v8369 = vadd.f32 %v8074, %v8368
      %v8370 = vpop.f32.mrb[0].mxu0
      %v8371 = vpop.f32.mrb[0].mxu0
      %v8372 = vadd.f32 %v8077, %v8371
      %v8373 = vpop.f32.mrb[0].mxu0
      %8374 = vmatprep.mubr.bf16.mxu0 0
      %8375 = vmatmul.mubr.bf16.gmra.mrb[0].mxu0 %v8250
      %v8376 = vpop.f32.mrb[0].mxu0
      %v8377 = vadd.f32 %v8082, %v8376
      %v8378 = vpop.f32.mrb[0].mxu0
      %v8379 = vpop.f32.mrb[0].mxu0
      %v8380 = vadd.f32 %v8085, %v8379
      %v8381 = vpop.f32.mrb[0].mxu0
      %8382 = vmatprep.mubr.bf16.mxu0 0
      %8383 = vmatmul.mubr.bf16.gmra.mrb[0].mxu0 %v8253
      %v8384 = vpop.f32.mrb[0].mxu0
      %v8385 = vadd.f32 %v8090, %v8384
      %v8386 = vpop.f32.mrb[0].mxu0
      %v8387 = vpop.f32.mrb[0].mxu0
      %v8388 = vadd.f32 %v8093, %v8387
      %v8389 = vpop.f32.mrb[0].mxu0
      %8390 = vmatprep.mubr.bf16.mxu0 0
      %8391 = vmatmul.mubr.bf16.gmra.mrb[0].mxu0 %v8256
      %v8392 = vpop.f32.mrb[0].mxu0
      %v8393 = vadd.f32 %v8098, %v8392
      %v8394 = vpop.f32.mrb[0].mxu0
      %v8395 = vpop.f32.mrb[0].mxu0
      %v8396 = vadd.f32 %v8101, %v8395
      %v8397 = vpop.f32.mrb[0].mxu0
      %8398 = vmatprep.mubr.bf16.mxu0 0
      %8399 = vmatmul.mubr.bf16.gmra.mrb[0].mxu0 %v8259
      %v8400 = vpop.f32.mrb[0].mxu0
      %v8401 = vadd.f32 %v8106, %v8400
      %v8402 = vpop.f32.mrb[0].mxu0
      %v8403 = vpop.f32.mrb[0].mxu0
      %v8404 = vadd.f32 %v8109, %v8403
      %v8405 = vpop.f32.mrb[0].mxu0
      %8406 = vmatprep.mubr.bf16.mxu0 0
      %8407 = vmatmul.mubr.bf16.gmra.mrb[0].mxu0 %v8262
      %v8408 = vpop.f32.mrb[0].mxu0
      %v8409 = vadd.f32 %v8114, %v8408
      %v8410 = vpop.f32.mrb[0].mxu0
      %v8411 = vpop.f32.mrb[0].mxu0
      %v8412 = vadd.f32 %v8117, %v8411
      %v8413 = vpop.f32.mrb[0].mxu0
      %8414 = vmatprep.mubr.bf16.mxu0 0
      %8415 = vmatmul.mubr.bf16.gmra.mrb[0].mxu0 %v8265
      %v8416 = vpop.f32.mrb[0].mxu0
      %v8417 = vadd.f32 %v8122, %v8416
      %v8418 = vpop.f32.mrb[0].mxu0
      %v8419 = vpop.f32.mrb[0].mxu0
      %v8420 = vadd.f32 %v8125, %v8419
      %v8421 = vpop.f32.mrb[0].mxu0
      %8422 = vmatprep.mubr.bf16.mxu0 0
      %8423 = vmatmul.mubr.bf16.gmra.mrb[0].mxu0 %v8268
      %v8424 = vpop.f32.mrb[0].mxu0
      %v8425 = vadd.f32 %v8130, %v8424
      %v8426 = vpop.f32.mrb[0].mxu0
      %v8427 = vpop.f32.mrb[0].mxu0
      %v8428 = vadd.f32 %v8133, %v8427
      %v8429 = vpop.f32.mrb[0].mxu0
      %8430 = vdwg.mxu0
      %v8431 = vld [vmem:[#allocation3] sm:$0xe]
      %v8432 = vld [vmem:[#allocation3 + $0xc] sm:$0xe]
      %v8433 = vld [vmem:[#allocation3 + $0x18] sm:$0xe]
      %v8434 = vld [vmem:[#allocation3 + $0x24] sm:$0xe]
      %v8435 = vld [vmem:[#allocation3 + $0x30] sm:$0xe]
      %v8436 = vld [vmem:[#allocation3 + $0x3c] sm:$0xe]
      %v8437 = vld [vmem:[#allocation3 + $0x48] sm:$0xe]
      %v8438 = vld [vmem:[#allocation3 + $0x54] sm:$0xe]
      %v8439 = vld [vmem:[#allocation3 + $0x60] sm:$0xe]
      %v8440 = vld [vmem:[#allocation3 + $0x6c] sm:$0xe]
      %v8441 = vld [vmem:[#allocation3 + $0x78] sm:$0xe]
      %v8442 = vld [vmem:[#allocation3 + $0x84] sm:$0xe]
      %v8443 = vld [vmem:[#allocation3 + $0x90] sm:$0xe]
      %v8444 = vld [vmem:[#allocation3 + $0x9c] sm:$0xe]
      %v8445 = vld [vmem:[#allocation3 + $0xa8] sm:$0xe]
      %v8446 = vld [vmem:[#allocation3 + $0xb4] sm:$0xe]
      %v8479 = vrot.slane %v8431, 5
      %v8480 = vrot.slane %v8479, 4
      %v8481 = vrot.slane %v7438, 5
      %v8482 = vsel %vm3094, %v8480, %v8481
      %v8483 = vrot.slane %v8481, 4
      %v8484 = vrot.slane %v7471, 5
      %v8485 = vsel %vm3094, %v8483, %v8484
      %v8486 = vrot.slane %v8432, 5
      %v8487 = vrot.slane %v8486, 4
      %v8488 = vrot.slane %v7440, 5
      %v8489 = vsel %vm3094, %v8487, %v8488
      %v8490 = vrot.slane %v8488, 4
      %v8491 = vrot.slane %v7472, 5
      %v8492 = vsel %vm3094, %v8490, %v8491
      %v8493 = vrot.slane %v8433, 5
      %v8494 = vrot.slane %v8493, 4
      %v8495 = vrot.slane %v7442, 5
      %v8496 = vsel %vm3094, %v8494, %v8495
      %v8497 = vrot.slane %v8495, 4
      %v8498 = vrot.slane %v7473, 5
      %v8499 = vsel %vm3094, %v8497, %v8498
      %v8500 = vrot.slane %v8434, 5
      %v8501 = vrot.slane %v8500, 4
      %v8502 = vrot.slane %v7444, 5
      %v8503 = vsel %vm3094, %v8501, %v8502
      %v8504 = vrot.slane %v8502, 4
      %v8505 = vrot.slane %v7474, 5
      %v8506 = vsel %vm3094, %v8504, %v8505
      %v8507 = vrot.slane %v8435, 5
      %v8508 = vrot.slane %v8507, 4
      %v8509 = vrot.slane %v7446, 5
      %v8510 = vsel %vm3094, %v8508, %v8509
      %v8511 = vrot.slane %v8509, 4
      %v8512 = vrot.slane %v7475, 5
      %v8513 = vsel %vm3094, %v8511, %v8512
      %v8514 = vrot.slane %v8436, 5
      %v8515 = vrot.slane %v8514, 4
      %v8516 = vrot.slane %v7448, 5
      %v8517 = vsel %vm3094, %v8515, %v8516
      %v8518 = vrot.slane %v8516, 4
      %v8519 = vrot.slane %v7476, 5
      %v8520 = vsel %vm3094, %v8518, %v8519
      %v8521 = vrot.slane %v8437, 5
      %v8522 = vrot.slane %v8521, 4
      %v8523 = vrot.slane %v7450, 5
      %v8524 = vsel %vm3094, %v8522, %v8523
      %v8525 = vrot.slane %v8523, 4
      %v8526 = vrot.slane %v7477, 5
      %v8527 = vsel %vm3094, %v8525, %v8526
      %v8528 = vrot.slane %v8438, 5
      %v8529 = vrot.slane %v8528, 4
      %v8530 = vrot.slane %v7452, 5
      %v8531 = vsel %vm3094, %v8529, %v8530
      %v8532 = vrot.slane %v8530, 4
      %v8533 = vrot.slane %v7478, 5
      %v8534 = vsel %vm3094, %v8532, %v8533
      %v8535 = vrot.slane %v8439, 5
      %v8536 = vrot.slane %v8535, 4
      %v8537 = vrot.slane %v7454, 5
      %v8538 = vsel %vm3094, %v8536, %v8537
      %v8539 = vrot.slane %v8537, 4
      %v8540 = vrot.slane %v7479, 5
      %v8541 = vsel %vm3094, %v8539, %v8540
      %v8542 = vrot.slane %v8440, 5
      %v8543 = vrot.slane %v8542, 4
      %v8544 = vrot.slane %v7456, 5
      %v8545 = vsel %vm3094, %v8543, %v8544
      %v8546 = vrot.slane %v8544, 4
      %v8547 = vrot.slane %v7480, 5
      %v8548 = vsel %vm3094, %v8546, %v8547
      %v8549 = vrot.slane %v8441, 5
      %v8550 = vrot.slane %v8549, 4
      %v8551 = vrot.slane %v7458, 5
      %v8552 = vsel %vm3094, %v8550, %v8551
      %v8553 = vrot.slane %v8551, 4
      %v8554 = vrot.slane %v7481, 5
      %v8555 = vsel %vm3094, %v8553, %v8554
      %v8556 = vrot.slane %v8442, 5
      %v8557 = vrot.slane %v8556, 4
      %v8558 = vrot.slane %v7460, 5
      %v8559 = vsel %vm3094, %v8557, %v8558
      %v8560 = vrot.slane %v8558, 4
      %v8561 = vrot.slane %v7482, 5
      %v8562 = vsel %vm3094, %v8560, %v8561
      %v8563 = vrot.slane %v8443, 5
      %v8564 = vrot.slane %v8563, 4
      %v8565 = vrot.slane %v7462, 5
      %v8566 = vsel %vm3094, %v8564, %v8565
      %v8567 = vrot.slane %v8565, 4
      %v8568 = vrot.slane %v7483, 5
      %v8569 = vsel %vm3094, %v8567, %v8568
      %v8570 = vrot.slane %v8444, 5
      %v8571 = vrot.slane %v8570, 4
      %v8572 = vrot.slane %v7464, 5
      %v8573 = vsel %vm3094, %v8571, %v8572
      %v8574 = vrot.slane %v8572, 4
      %v8575 = vrot.slane %v7484, 5
      %v8576 = vsel %vm3094, %v8574, %v8575
      %v8577 = vrot.slane %v8445, 5
      %v8578 = vrot.slane %v8577, 4
      %v8579 = vrot.slane %v7466, 5
      %v8580 = vsel %vm3094, %v8578, %v8579
      %v8581 = vrot.slane %v8579, 4
      %v8582 = vrot.slane %v7485, 5
      %v8583 = vsel %vm3094, %v8581, %v8582
      %v8584 = vrot.slane %v8446, 5
      %v8585 = vrot.slane %v8584, 4
      %v8586 = vrot.slane %v7468, 5
      %v8587 = vsel %vm3094, %v8585, %v8586
      %v8588 = vrot.slane %v8586, 4
      %v8589 = vrot.slane %v7486, 5
      %v8590 = vsel %vm3094, %v8588, %v8589
      %v8591 = vld [vmem:[%s8 + $0x10] sm:$0xf]
      %v8592 = vld [vmem:[%s8 + $0x14] sm:$0xf]
      %v8593 = vunpack.c.l.b16 %v8482
      %v8594 = vunpack.c.l.b16 %v8485
      %v8595 = vunpack.c.l.b16 %v8489
      %v8596 = vunpack.c.l.b16 %v8492
      %v8597 = vunpack.c.l.b16 %v8496
      %v8598 = vunpack.c.l.b16 %v8499
      %v8599 = vunpack.c.l.b16 %v8503
      %v8600 = vunpack.c.l.b16 %v8506
      %v8601 = vunpack.c.l.b16 %v8510
      %v8602 = vunpack.c.l.b16 %v8513
      %v8603 = vunpack.c.l.b16 %v8517
      %v8604 = vunpack.c.l.b16 %v8520
      %v8605 = vunpack.c.l.b16 %v8524
      %v8606 = vunpack.c.l.b16 %v8527
      %v8607 = vunpack.c.l.b16 %v8531
      %v8608 = vunpack.c.l.b16 %v8534
      %v8609 = vunpack.c.l.b16 %v8538
      %v8610 = vunpack.c.l.b16 %v8541
      %v8611 = vunpack.c.l.b16 %v8545
      %v8612 = vunpack.c.l.b16 %v8548
      %v8613 = vunpack.c.l.b16 %v8552
      %v8614 = vunpack.c.l.b16 %v8555
      %v8615 = vunpack.c.l.b16 %v8559
      %v8616 = vunpack.c.l.b16 %v8562
      %v8617 = vunpack.c.l.b16 %v8566
      %v8618 = vunpack.c.l.b16 %v8569
      %v8619 = vunpack.c.l.b16 %v8573
      %v8620 = vunpack.c.l.b16 %v8576
      %v8621 = vunpack.c.l.b16 %v8580
      %v8622 = vunpack.c.l.b16 %v8583
      %v8623 = vunpack.c.l.b16 %v8587
      %v8624 = vunpack.c.l.b16 %v8590
      %v8625 = vpack.c.b16 %v8594, %v8593
      %v8626 = vpack.c.b16 %v8596, %v8595
      %v8627 = vpack.c.b16 %v8598, %v8597
      %v8628 = vpack.c.b16 %v8600, %v8599
      %v8629 = vpack.c.b16 %v8602, %v8601
      %v8630 = vpack.c.b16 %v8604, %v8603
      %v8631 = vpack.c.b16 %v8606, %v8605
      %v8632 = vpack.c.b16 %v8608, %v8607
      %v8633 = vpack.c.b16 %v8610, %v8609
      %v8634 = vpack.c.b16 %v8612, %v8611
      %v8635 = vpack.c.b16 %v8614, %v8613
      %v8636 = vpack.c.b16 %v8616, %v8615
      %v8637 = vpack.c.b16 %v8618, %v8617
      %v8638 = vpack.c.b16 %v8620, %v8619
      %v8639 = vpack.c.b16 %v8622, %v8621
      %v8640 = vpack.c.b16 %v8624, %v8623
      %v8643 = vunpack.c.l.b16 %v8591
      %v8644 = vunpack.c.l.b16 %v8592
      %v8645 = vpack.c.b16 %v8644, %v8643
      %v8648 = vsel %vm435, %v8625, 0
      %v8651 = vsel %vm435, %v8626, 0
      %v8654 = vsel %vm435, %v8627, 0
      %v8657 = vsel %vm435, %v8628, 0
      %v8660 = vsel %vm435, %v8629, 0
      %v8663 = vsel %vm435, %v8630, 0
      %v8666 = vsel %vm435, %v8631, 0
      %v8669 = vsel %vm435, %v8632, 0
      %v8672 = vsel %vm435, %v8633, 0
      %v8675 = vsel %vm435, %v8634, 0
      %v8678 = vsel %vm435, %v8635, 0
      %v8681 = vsel %vm435, %v8636, 0
      %v8684 = vsel %vm435, %v8637, 0
      %v8687 = vsel %vm435, %v8638, 0
      %v8690 = vsel %vm435, %v8639, 0
      %v8693 = vsel %vm435, %v8640, 0
      %8695 = vmatprep.subr.bf16.mxu0 0
      %8696 = vmatpush1.bf16.msra.mxu0 %v8645
      %8697 = vmatprep.subr.bf16.mxu0 0
      %8698 = vmatpush1.bf16.msra.mxu0 0
      %8699 = vmatprep.subr.bf16.mxu0 0
      %8700 = vmatpush1.bf16.msra.mxu0 0
      %8701 = vmatprep.subr.bf16.mxu0 0
      %8702 = vmatpush1.bf16.msra.mxu0 0
      %8703 = vmatprep.subr.bf16.mxu0 0
      %8704 = vmatpush1.bf16.msra.mxu0 0
      %8705 = vmatprep.subr.bf16.mxu0 0
      %8706 = vmatpush1.bf16.msra.mxu0 0
      %8707 = vmatprep.subr.bf16.mxu0 0
      %8708 = vmatpush1.bf16.msra.mxu0 0
      %8709 = vmatprep.subr.bf16.mxu0 0
      %8710 = vmatpush1.bf16.msra.mxu0 0
      %8711 = vmatprep.subr.bf16.mxu0 0
      %8712 = vmatpush1.bf16.msra.mxu0 0
      %8713 = vmatprep.subr.bf16.mxu0 0
      %8714 = vmatpush1.bf16.msra.mxu0 0
      %8715 = vmatprep.subr.bf16.mxu0 0
      %8716 = vmatpush1.bf16.msra.mxu0 0
      %8717 = vmatprep.subr.bf16.mxu0 0
      %8718 = vmatpush1.bf16.msra.mxu0 0
      %8719 = vmatprep.subr.bf16.mxu0 0
      %8720 = vmatpush1.bf16.msra.mxu0 0
      %8721 = vmatprep.subr.bf16.mxu0 0
      %8722 = vmatpush1.bf16.msra.mxu0 0
      %8723 = vmatprep.subr.bf16.mxu0 0
      %8724 = vmatpush1.bf16.msra.mxu0 0
      %8725 = vmatprep.subr.bf16.mxu0 0
      %8726 = vmatpush1.bf16.msra.mxu0 0
      %8727 = vmatprep.mubr.bf16.mxu0 0
      %8728 = vmatmul.mubr.bf16.gmra.mrb[0].mxu0 %v8648
      %v8729 = vpop.f32.mrb[0].mxu0
      %v8730 = vadd.f32 0.0, %v8729
      %v8731 = vpop.f32.mrb[0].mxu0
      %v8732 = vpop.f32.mrb[0].mxu0
      %v8733 = vadd.f32 0.0, %v8732
      %v8734 = vpop.f32.mrb[0].mxu0
      %8735 = vmatprep.mubr.bf16.mxu0 0
      %8736 = vmatmul.mubr.bf16.gmra.mrb[0].mxu0 %v8651
      %v8737 = vpop.f32.mrb[0].mxu0
      %v8738 = vadd.f32 0.0, %v8737
      %v8739 = vpop.f32.mrb[0].mxu0
      %v8740 = vpop.f32.mrb[0].mxu0
      %v8741 = vadd.f32 0.0, %v8740
      %v8742 = vpop.f32.mrb[0].mxu0
      %8743 = vmatprep.mubr.bf16.mxu0 0
      %8744 = vmatmul.mubr.bf16.gmra.mrb[0].mxu0 %v8654
      %v8745 = vpop.f32.mrb[0].mxu0
      %v8746 = vadd.f32 0.0, %v8745
      %v8747 = vpop.f32.mrb[0].mxu0
      %v8748 = vpop.f32.mrb[0].mxu0
      %v8749 = vadd.f32 0.0, %v8748
      %v8750 = vpop.f32.mrb[0].mxu0
      %8751 = vmatprep.mubr.bf16.mxu0 0
      %8752 = vmatmul.mubr.bf16.gmra.mrb[0].mxu0 %v8657
      %v8753 = vpop.f32.mrb[0].mxu0
      %v8754 = vadd.f32 0.0, %v8753
      %v8755 = vpop.f32.mrb[0].mxu0
      %v8756 = vpop.f32.mrb[0].mxu0
      %v8757 = vadd.f32 0.0, %v8756
      %v8758 = vpop.f32.mrb[0].mxu0
      %8759 = vmatprep.mubr.bf16.mxu0 0
      %8760 = vmatmul.mubr.bf16.gmra.mrb[0].mxu0 %v8660
      %v8761 = vpop.f32.mrb[0].mxu0
      %v8762 = vadd.f32 0.0, %v8761
      %v8763 = vpop.f32.mrb[0].mxu0
      %v8764 = vpop.f32.mrb[0].mxu0
      %v8765 = vadd.f32 0.0, %v8764
      %v8766 = vpop.f32.mrb[0].mxu0
      %8767 = vmatprep.mubr.bf16.mxu0 0
      %8768 = vmatmul.mubr.bf16.gmra.mrb[0].mxu0 %v8663
      %v8769 = vpop.f32.mrb[0].mxu0
      %v8770 = vadd.f32 0.0, %v8769
      %v8771 = vpop.f32.mrb[0].mxu0
      %v8772 = vpop.f32.mrb[0].mxu0
      %v8773 = vadd.f32 0.0, %v8772
      %v8774 = vpop.f32.mrb[0].mxu0
      %8775 = vmatprep.mubr.bf16.mxu0 0
      %8776 = vmatmul.mubr.bf16.gmra.mrb[0].mxu0 %v8666
      %v8777 = vpop.f32.mrb[0].mxu0
      %v8778 = vadd.f32 0.0, %v8777
      %v8779 = vpop.f32.mrb[0].mxu0
      %v8780 = vpop.f32.mrb[0].mxu0
      %v8781 = vadd.f32 0.0, %v8780
      %v8782 = vpop.f32.mrb[0].mxu0
      %8783 = vmatprep.mubr.bf16.mxu0 0
      %8784 = vmatmul.mubr.bf16.gmra.mrb[0].mxu0 %v8669
      %v8785 = vpop.f32.mrb[0].mxu0
      %v8786 = vadd.f32 0.0, %v8785
      %v8787 = vpop.f32.mrb[0].mxu0
      %v8788 = vpop.f32.mrb[0].mxu0
      %v8789 = vadd.f32 0.0, %v8788
      %v8790 = vpop.f32.mrb[0].mxu0
      %8791 = vmatprep.mubr.bf16.mxu0 0
      %8792 = vmatmul.mubr.bf16.gmra.mrb[0].mxu0 %v8672
      %v8793 = vpop.f32.mrb[0].mxu0
      %v8794 = vadd.f32 0.0, %v8793
      %v8795 = vpop.f32.mrb[0].mxu0
      %v8796 = vpop.f32.mrb[0].mxu0
      %v8797 = vadd.f32 0.0, %v8796
      %v8798 = vpop.f32.mrb[0].mxu0
      %8799 = vmatprep.mubr.bf16.mxu0 0
      %8800 = vmatmul.mubr.bf16.gmra.mrb[0].mxu0 %v8675
      %v8801 = vpop.f32.mrb[0].mxu0
      %v8802 = vadd.f32 0.0, %v8801
      %v8803 = vpop.f32.mrb[0].mxu0
      %v8804 = vpop.f32.mrb[0].mxu0
      %v8805 = vadd.f32 0.0, %v8804
      %v8806 = vpop.f32.mrb[0].mxu0
      %8807 = vmatprep.mubr.bf16.mxu0 0
      %8808 = vmatmul.mubr.bf16.gmra.mrb[0].mxu0 %v8678
      %v8809 = vpop.f32.mrb[0].mxu0
      %v8810 = vadd.f32 0.0, %v8809
      %v8811 = vpop.f32.mrb[0].mxu0
      %v8812 = vpop.f32.mrb[0].mxu0
      %v8813 = vadd.f32 0.0, %v8812
      %v8814 = vpop.f32.mrb[0].mxu0
      %8815 = vmatprep.mubr.bf16.mxu0 0
      %8816 = vmatmul.mubr.bf16.gmra.mrb[0].mxu0 %v8681
      %v8817 = vpop.f32.mrb[0].mxu0
      %v8818 = vadd.f32 0.0, %v8817
      %v8819 = vpop.f32.mrb[0].mxu0
      %v8820 = vpop.f32.mrb[0].mxu0
      %v8821 = vadd.f32 0.0, %v8820
      %v8822 = vpop.f32.mrb[0].mxu0
      %8823 = vmatprep.mubr.bf16.mxu0 0
      %8824 = vmatmul.mubr.bf16.gmra.mrb[0].mxu0 %v8684
      %v8825 = vpop.f32.mrb[0].mxu0
      %v8826 = vadd.f32 0.0, %v8825
      %v8827 = vpop.f32.mrb[0].mxu0
      %v8828 = vpop.f32.mrb[0].mxu0
      %v8829 = vadd.f32 0.0, %v8828
      %v8830 = vpop.f32.mrb[0].mxu0
      %8831 = vmatprep.mubr.bf16.mxu0 0
      %8832 = vmatmul.mubr.bf16.gmra.mrb[0].mxu0 %v8687
      %v8833 = vpop.f32.mrb[0].mxu0
      %v8834 = vadd.f32 0.0, %v8833
      %v8835 = vpop.f32.mrb[0].mxu0
      %v8836 = vpop.f32.mrb[0].mxu0
      %v8837 = vadd.f32 0.0, %v8836
      %v8838 = vpop.f32.mrb[0].mxu0
      %8839 = vmatprep.mubr.bf16.mxu0 0
      %8840 = vmatmul.mubr.bf16.gmra.mrb[0].mxu0 %v8690
      %v8841 = vpop.f32.mrb[0].mxu0
      %v8842 = vadd.f32 0.0, %v8841
      %v8843 = vpop.f32.mrb[0].mxu0
      %v8844 = vpop.f32.mrb[0].mxu0
      %v8845 = vadd.f32 0.0, %v8844
      %v8846 = vpop.f32.mrb[0].mxu0
      %8847 = vmatprep.mubr.bf16.mxu0 0
      %8848 = vmatmul.mubr.bf16.gmra.mrb[0].mxu0 %v8693
      %v8849 = vpop.f32.mrb[0].mxu0
      %v8850 = vadd.f32 0.0, %v8849
      %v8851 = vpop.f32.mrb[0].mxu0
      %v8852 = vpop.f32.mrb[0].mxu0
      %v8853 = vadd.f32 0.0, %v8852
      %v8854 = vpop.f32.mrb[0].mxu0
      %8855 = vdwg.mxu0
      %v8856 = vadd.f32 %v8305, %v8730
      %v8857 = vadd.f32 %v8308, %v8733
      %v8858 = vadd.f32 %v8313, %v8738
      %v8859 = vadd.f32 %v8316, %v8741
      %v8860 = vadd.f32 %v8321, %v8746
      %v8861 = vadd.f32 %v8324, %v8749
      %v8862 = vadd.f32 %v8329, %v8754
      %v8863 = vadd.f32 %v8332, %v8757
      %v8864 = vadd.f32 %v8337, %v8762
      %v8865 = vadd.f32 %v8340, %v8765
      %v8866 = vadd.f32 %v8345, %v8770
      %v8867 = vadd.f32 %v8348, %v8773
      %v8868 = vadd.f32 %v8353, %v8778
      %v8869 = vadd.f32 %v8356, %v8781
      %v8870 = vadd.f32 %v8361, %v8786
      %v8871 = vadd.f32 %v8364, %v8789
      %v8872 = vadd.f32 %v8369, %v8794
      %v8873 = vadd.f32 %v8372, %v8797
      %v8874 = vadd.f32 %v8377, %v8802
      %v8875 = vadd.f32 %v8380, %v8805
      %v8876 = vadd.f32 %v8385, %v8810
      %v8877 = vadd.f32 %v8388, %v8813
      %v8878 = vadd.f32 %v8393, %v8818
      %v8879 = vadd.f32 %v8396, %v8821
      %v8880 = vadd.f32 %v8401, %v8826
      %v8881 = vadd.f32 %v8404, %v8829
      %v8882 = vadd.f32 %v8409, %v8834
      %v8883 = vadd.f32 %v8412, %v8837
      %v8884 = vadd.f32 %v8417, %v8842
      %v8885 = vadd.f32 %v8420, %v8845
      %v8886 = vadd.f32 %v8425, %v8850
      %v8887 = vadd.f32 %v8428, %v8853
      %v8888 = vld [vmem:[%s6812] sm:$0xf]
      %v8889 = vld [vmem:[%s6812 + $0x4] sm:$0xf]
      %v8890 = vld [vmem:[%s6812 + $0xc] sm:$0xf]
      %v8891 = vld [vmem:[%s6812 + $0x10] sm:$0xf]
      %v8892 = vld [vmem:[%s6812 + $0x18] sm:$0xf]
      %v8893 = vld [vmem:[%s6812 + $0x1c] sm:$0xf]
      %v8894 = vld [vmem:[%s6812 + $0x24] sm:$0xf]
      %v8895 = vld [vmem:[%s6812 + $0x28] sm:$0xf]
      %v8896 = vld [vmem:[%s6812 + $0x30] sm:$0xf]
      %v8897 = vld [vmem:[%s6812 + $0x34] sm:$0xf]
      %v8898 = vld [vmem:[%s6812 + $0x3c] sm:$0xf]
      %v8899 = vld [vmem:[%s6812 + $0x40] sm:$0xf]
      %v8900 = vld [vmem:[%s6812 + $0x48] sm:$0xf]
      %v8901 = vld [vmem:[%s6812 + $0x4c] sm:$0xf]
      %v8902 = vld [vmem:[%s6812 + $0x54] sm:$0xf]
      %v8903 = vld [vmem:[%s6812 + $0x58] sm:$0xf]
      %v8904 = vld [vmem:[%s6812 + $0x60] sm:$0xf]
      %v8905 = vld [vmem:[%s6812 + $0x64] sm:$0xf]
      %v8906 = vld [vmem:[%s6812 + $0x6c] sm:$0xf]
      %v8907 = vld [vmem:[%s6812 + $0x70] sm:$0xf]
      %v8908 = vld [vmem:[%s6812 + $0x78] sm:$0xf]
      %v8909 = vld [vmem:[%s6812 + $0x7c] sm:$0xf]
      %v8910 = vld [vmem:[%s6812 + $0x84] sm:$0xf]
      %v8911 = vld [vmem:[%s6812 + $0x88] sm:$0xf]
      %v8912 = vld [vmem:[%s6812 + $0x90] sm:$0xf]
      %v8913 = vld [vmem:[%s6812 + $0x94] sm:$0xf]
      %v8914 = vld [vmem:[%s6812 + $0x9c] sm:$0xf]
      %v8915 = vld [vmem:[%s6812 + $0xa0] sm:$0xf]
      %v8916 = vld [vmem:[%s6812 + $0xa8] sm:$0xf]
      %v8917 = vld [vmem:[%s6812 + $0xac] sm:$0xf]
      %v8918 = vld [vmem:[%s6812 + $0xb4] sm:$0xf]
      %v8919 = vld [vmem:[%s6812 + $0xb8] sm:$0xf]
      %v8920 = vld [vmem:[%s8 + $0x18] sm:$0xf]
      %v8921 = vld [vmem:[%s8 + $0x1c] sm:$0xf]
      %v8954 = vunpack.c.l.b16 %v8888
      %v8955 = vunpack.c.l.b16 %v8889
      %v8956 = vunpack.c.l.b16 %v8890
      %v8957 = vunpack.c.l.b16 %v8891
      %v8958 = vunpack.c.l.b16 %v8892
      %v8959 = vunpack.c.l.b16 %v8893
      %v8960 = vunpack.c.l.b16 %v8894
      %v8961 = vunpack.c.l.b16 %v8895
      %v8962 = vunpack.c.l.b16 %v8896
      %v8963 = vunpack.c.l.b16 %v8897
      %v8964 = vunpack.c.l.b16 %v8898
      %v8965 = vunpack.c.l.b16 %v8899
      %v8966 = vunpack.c.l.b16 %v8900
      %v8967 = vunpack.c.l.b16 %v8901
      %v8968 = vunpack.c.l.b16 %v8902
      %v8969 = vunpack.c.l.b16 %v8903
      %v8970 = vunpack.c.l.b16 %v8904
      %v8971 = vunpack.c.l.b16 %v8905
      %v8972 = vunpack.c.l.b16 %v8906
      %v8973 = vunpack.c.l.b16 %v8907
      %v8974 = vunpack.c.l.b16 %v8908
      %v8975 = vunpack.c.l.b16 %v8909
      %v8976 = vunpack.c.l.b16 %v8910
      %v8977 = vunpack.c.l.b16 %v8911
      %v8978 = vunpack.c.l.b16 %v8912
      %v8979 = vunpack.c.l.b16 %v8913
      %v8980 = vunpack.c.l.b16 %v8914
      %v8981 = vunpack.c.l.b16 %v8915
      %v8982 = vunpack.c.l.b16 %v8916
      %v8983 = vunpack.c.l.b16 %v8917
      %v8984 = vunpack.c.l.b16 %v8918
      %v8985 = vunpack.c.l.b16 %v8919
      %v8986 = vpack.c.b16 %v8955, %v8954
      %v8987 = vpack.c.b16 %v8957, %v8956
      %v8988 = vpack.c.b16 %v8959, %v8958
      %v8989 = vpack.c.b16 %v8961, %v8960
      %v8990 = vpack.c.b16 %v8963, %v8962
      %v8991 = vpack.c.b16 %v8965, %v8964
      %v8992 = vpack.c.b16 %v8967, %v8966
      %v8993 = vpack.c.b16 %v8969, %v8968
      %v8994 = vpack.c.b16 %v8971, %v8970
      %v8995 = vpack.c.b16 %v8973, %v8972
      %v8996 = vpack.c.b16 %v8975, %v8974
      %v8997 = vpack.c.b16 %v8977, %v8976
      %v8998 = vpack.c.b16 %v8979, %v8978
      %v8999 = vpack.c.b16 %v8981, %v8980
      %v9000 = vpack.c.b16 %v8983, %v8982
      %v9001 = vpack.c.b16 %v8985, %v8984
      %v9004 = vunpack.c.l.b16 %v8920
      %v9005 = vunpack.c.l.b16 %v8921
      %v9006 = vpack.c.b16 %v9005, %v9004
      %v9009 = vsel %vm435, %v8986, 0
      %v9012 = vsel %vm435, %v8987, 0
      %v9015 = vsel %vm435, %v8988, 0
      %v9018 = vsel %vm435, %v8989, 0
      %v9021 = vsel %vm435, %v8990, 0
      %v9024 = vsel %vm435, %v8991, 0
      %v9027 = vsel %vm435, %v8992, 0
      %v9030 = vsel %vm435, %v8993, 0
      %v9033 = vsel %vm435, %v8994, 0
      %v9036 = vsel %vm435, %v8995, 0
      %v9039 = vsel %vm435, %v8996, 0
      %v9042 = vsel %vm435, %v8997, 0
      %v9045 = vsel %vm435, %v8998, 0
      %v9048 = vsel %vm435, %v8999, 0
      %v9051 = vsel %vm435, %v9000, 0
      %v9054 = vsel %vm435, %v9001, 0
      %9056 = vmatprep.subr.bf16.mxu0 0
      %9057 = vmatpush1.bf16.msra.mxu0 %v9006
      %9058 = vmatprep.subr.bf16.mxu0 0
      %9059 = vmatpush1.bf16.msra.mxu0 0
      %9060 = vmatprep.subr.bf16.mxu0 0
      %9061 = vmatpush1.bf16.msra.mxu0 0
      %9062 = vmatprep.subr.bf16.mxu0 0
      %9063 = vmatpush1.bf16.msra.mxu0 0
      %9064 = vmatprep.subr.bf16.mxu0 0
      %9065 = vmatpush1.bf16.msra.mxu0 0
      %9066 = vmatprep.subr.bf16.mxu0 0
      %9067 = vmatpush1.bf16.msra.mxu0 0
      %9068 = vmatprep.subr.bf16.mxu0 0
      %9069 = vmatpush1.bf16.msra.mxu0 0
      %9070 = vmatprep.subr.bf16.mxu0 0
      %9071 = vmatpush1.bf16.msra.mxu0 0
      %9072 = vmatprep.subr.bf16.mxu0 0
      %9073 = vmatpush1.bf16.msra.mxu0 0
      %9074 = vmatprep.subr.bf16.mxu0 0
      %9075 = vmatpush1.bf16.msra.mxu0 0
      %9076 = vmatprep.subr.bf16.mxu0 0
      %9077 = vmatpush1.bf16.msra.mxu0 0
      %9078 = vmatprep.subr.bf16.mxu0 0
      %9079 = vmatpush1.bf16.msra.mxu0 0
      %9080 = vmatprep.subr.bf16.mxu0 0
      %9081 = vmatpush1.bf16.msra.mxu0 0
      %9082 = vmatprep.subr.bf16.mxu0 0
      %9083 = vmatpush1.bf16.msra.mxu0 0
      %9084 = vmatprep.subr.bf16.mxu0 0
      %9085 = vmatpush1.bf16.msra.mxu0 0
      %9086 = vmatprep.subr.bf16.mxu0 0
      %9087 = vmatpush1.bf16.msra.mxu0 0
      %9088 = vmatprep.mubr.bf16.mxu0 0
      %9089 = vmatmul.mubr.bf16.gmra.mrb[0].mxu0 %v9009
      %v9090 = vpop.f32.mrb[0].mxu0
      %v9091 = vadd.f32 0.0, %v9090
      %v9092 = vpop.f32.mrb[0].mxu0
      %v9093 = vpop.f32.mrb[0].mxu0
      %v9094 = vadd.f32 0.0, %v9093
      %v9095 = vpop.f32.mrb[0].mxu0
      %9096 = vmatprep.mubr.bf16.mxu0 0
      %9097 = vmatmul.mubr.bf16.gmra.mrb[0].mxu0 %v9012
      %v9098 = vpop.f32.mrb[0].mxu0
      %v9099 = vadd.f32 0.0, %v9098
      %v9100 = vpop.f32.mrb[0].mxu0
      %v9101 = vpop.f32.mrb[0].mxu0
      %v9102 = vadd.f32 0.0, %v9101
      %v9103 = vpop.f32.mrb[0].mxu0
      %9104 = vmatprep.mubr.bf16.mxu0 0
      %9105 = vmatmul.mubr.bf16.gmra.mrb[0].mxu0 %v9015
      %v9106 = vpop.f32.mrb[0].mxu0
      %v9107 = vadd.f32 0.0, %v9106
      %v9108 = vpop.f32.mrb[0].mxu0
      %v9109 = vpop.f32.mrb[0].mxu0
      %v9110 = vadd.f32 0.0, %v9109
      %v9111 = vpop.f32.mrb[0].mxu0
      %9112 = vmatprep.mubr.bf16.mxu0 0
      %9113 = vmatmul.mubr.bf16.gmra.mrb[0].mxu0 %v9018
      %v9114 = vpop.f32.mrb[0].mxu0
      %v9115 = vadd.f32 0.0, %v9114
      %v9116 = vpop.f32.mrb[0].mxu0
      %v9117 = vpop.f32.mrb[0].mxu0
      %v9118 = vadd.f32 0.0, %v9117
      %v9119 = vpop.f32.mrb[0].mxu0
      %9120 = vmatprep.mubr.bf16.mxu0 0
      %9121 = vmatmul.mubr.bf16.gmra.mrb[0].mxu0 %v9021
      %v9122 = vpop.f32.mrb[0].mxu0
      %v9123 = vadd.f32 0.0, %v9122
      %v9124 = vpop.f32.mrb[0].mxu0
      %v9125 = vpop.f32.mrb[0].mxu0
      %v9126 = vadd.f32 0.0, %v9125
      %v9127 = vpop.f32.mrb[0].mxu0
      %9128 = vmatprep.mubr.bf16.mxu0 0
      %9129 = vmatmul.mubr.bf16.gmra.mrb[0].mxu0 %v9024
      %v9130 = vpop.f32.mrb[0].mxu0
      %v9131 = vadd.f32 0.0, %v9130
      %v9132 = vpop.f32.mrb[0].mxu0
      %v9133 = vpop.f32.mrb[0].mxu0
      %v9134 = vadd.f32 0.0, %v9133
      %v9135 = vpop.f32.mrb[0].mxu0
      %9136 = vmatprep.mubr.bf16.mxu0 0
      %9137 = vmatmul.mubr.bf16.gmra.mrb[0].mxu0 %v9027
      %v9138 = vpop.f32.mrb[0].mxu0
      %v9139 = vadd.f32 0.0, %v9138
      %v9140 = vpop.f32.mrb[0].mxu0
      %v9141 = vpop.f32.mrb[0].mxu0
      %v9142 = vadd.f32 0.0, %v9141
      %v9143 = vpop.f32.mrb[0].mxu0
      %9144 = vmatprep.mubr.bf16.mxu0 0
      %9145 = vmatmul.mubr.bf16.gmra.mrb[0].mxu0 %v9030
      %v9146 = vpop.f32.mrb[0].mxu0
      %v9147 = vadd.f32 0.0, %v9146
      %v9148 = vpop.f32.mrb[0].mxu0
      %v9149 = vpop.f32.mrb[0].mxu0
      %v9150 = vadd.f32 0.0, %v9149
      %v9151 = vpop.f32.mrb[0].mxu0
      %9152 = vmatprep.mubr.bf16.mxu0 0
      %9153 = vmatmul.mubr.bf16.gmra.mrb[0].mxu0 %v9033
      %v9154 = vpop.f32.mrb[0].mxu0
      %v9155 = vadd.f32 0.0, %v9154
      %v9156 = vpop.f32.mrb[0].mxu0
      %v9157 = vpop.f32.mrb[0].mxu0
      %v9158 = vadd.f32 0.0, %v9157
      %v9159 = vpop.f32.mrb[0].mxu0
      %9160 = vmatprep.mubr.bf16.mxu0 0
      %9161 = vmatmul.mubr.bf16.gmra.mrb[0].mxu0 %v9036
      %v9162 = vpop.f32.mrb[0].mxu0
      %v9163 = vadd.f32 0.0, %v9162
      %v9164 = vpop.f32.mrb[0].mxu0
      %v9165 = vpop.f32.mrb[0].mxu0
      %v9166 = vadd.f32 0.0, %v9165
      %v9167 = vpop.f32.mrb[0].mxu0
      %9168 = vmatprep.mubr.bf16.mxu0 0
      %9169 = vmatmul.mubr.bf16.gmra.mrb[0].mxu0 %v9039
      %v9170 = vpop.f32.mrb[0].mxu0
      %v9171 = vadd.f32 0.0, %v9170
      %v9172 = vpop.f32.mrb[0].mxu0
      %v9173 = vpop.f32.mrb[0].mxu0
      %v9174 = vadd.f32 0.0, %v9173
      %v9175 = vpop.f32.mrb[0].mxu0
      %9176 = vmatprep.mubr.bf16.mxu0 0
      %9177 = vmatmul.mubr.bf16.gmra.mrb[0].mxu0 %v9042
      %v9178 = vpop.f32.mrb[0].mxu0
      %v9179 = vadd.f32 0.0, %v9178
      %v9180 = vpop.f32.mrb[0].mxu0
      %v9181 = vpop.f32.mrb[0].mxu0
      %v9182 = vadd.f32 0.0, %v9181
      %v9183 = vpop.f32.mrb[0].mxu0
      %9184 = vmatprep.mubr.bf16.mxu0 0
      %9185 = vmatmul.mubr.bf16.gmra.mrb[0].mxu0 %v9045
      %v9186 = vpop.f32.mrb[0].mxu0
      %v9187 = vadd.f32 0.0, %v9186
      %v9188 = vpop.f32.mrb[0].mxu0
      %v9189 = vpop.f32.mrb[0].mxu0
      %v9190 = vadd.f32 0.0, %v9189
      %v9191 = vpop.f32.mrb[0].mxu0
      %9192 = vmatprep.mubr.bf16.mxu0 0
      %9193 = vmatmul.mubr.bf16.gmra.mrb[0].mxu0 %v9048
      %v9194 = vpop.f32.mrb[0].mxu0
      %v9195 = vadd.f32 0.0, %v9194
      %v9196 = vpop.f32.mrb[0].mxu0
      %v9197 = vpop.f32.mrb[0].mxu0
      %v9198 = vadd.f32 0.0, %v9197
      %v9199 = vpop.f32.mrb[0].mxu0
      %9200 = vmatprep.mubr.bf16.mxu0 0
      %9201 = vmatmul.mubr.bf16.gmra.mrb[0].mxu0 %v9051
      %v9202 = vpop.f32.mrb[0].mxu0
      %v9203 = vadd.f32 0.0, %v9202
      %v9204 = vpop.f32.mrb[0].mxu0
      %v9205 = vpop.f32.mrb[0].mxu0
      %v9206 = vadd.f32 0.0, %v9205
      %v9207 = vpop.f32.mrb[0].mxu0
      %9208 = vmatprep.mubr.bf16.mxu0 0
      %9209 = vmatmul.mubr.bf16.gmra.mrb[0].mxu0 %v9054
      %v9210 = vpop.f32.mrb[0].mxu0
      %v9211 = vadd.f32 0.0, %v9210
      %v9212 = vpop.f32.mrb[0].mxu0
      %v9213 = vpop.f32.mrb[0].mxu0
      %v9214 = vadd.f32 0.0, %v9213
      %v9215 = vpop.f32.mrb[0].mxu0
      %9216 = vdwg.mxu0
      %v9217 = vadd.f32 %v8856, %v9091
      %v9218 = vadd.f32 %v8857, %v9094
      %v9219 = vadd.f32 %v8858, %v9099
      %v9220 = vadd.f32 %v8859, %v9102
      %v9221 = vadd.f32 %v8860, %v9107
      %v9222 = vadd.f32 %v8861, %v9110
      %v9223 = vadd.f32 %v8862, %v9115
      %v9224 = vadd.f32 %v8863, %v9118
      %v9225 = vadd.f32 %v8864, %v9123
      %v9226 = vadd.f32 %v8865, %v9126
      %v9227 = vadd.f32 %v8866, %v9131
      %v9228 = vadd.f32 %v8867, %v9134
      %v9229 = vadd.f32 %v8868, %v9139
      %v9230 = vadd.f32 %v8869, %v9142
      %v9231 = vadd.f32 %v8870, %v9147
      %v9232 = vadd.f32 %v8871, %v9150
      %v9233 = vadd.f32 %v8872, %v9155
      %v9234 = vadd.f32 %v8873, %v9158
      %v9235 = vadd.f32 %v8874, %v9163
      %v9236 = vadd.f32 %v8875, %v9166
      %v9237 = vadd.f32 %v8876, %v9171
      %v9238 = vadd.f32 %v8877, %v9174
      %v9239 = vadd.f32 %v8878, %v9179
      %v9240 = vadd.f32 %v8879, %v9182
      %v9241 = vadd.f32 %v8880, %v9187
      %v9242 = vadd.f32 %v8881, %v9190
      %v9243 = vadd.f32 %v8882, %v9195
      %v9244 = vadd.f32 %v8883, %v9198
      %v9245 = vadd.f32 %v8884, %v9203
      %v9246 = vadd.f32 %v8885, %v9206
      %v9247 = vadd.f32 %v8886, %v9211
      %v9248 = vadd.f32 %v8887, %v9214
      %v9249 = vld [vmem:[%s6812] sm:$0xf]
      %v9250 = vld [vmem:[%s6812 + $0x4] sm:$0xf]
      %v9251 = vld [vmem:[%s6812 + $0x8] sm:$0x1]
      %v9252 = vld [vmem:[%s6812 + $0xc] sm:$0xf]
      %v9253 = vld [vmem:[%s6812 + $0x10] sm:$0xf]
      %v9254 = vld [vmem:[%s6812 + $0x14] sm:$0x1]
      %v9255 = vld [vmem:[%s6812 + $0x18] sm:$0xf]
      %v9256 = vld [vmem:[%s6812 + $0x1c] sm:$0xf]
      %v9257 = vld [vmem:[%s6812 + $0x20] sm:$0x1]
      %v9258 = vld [vmem:[%s6812 + $0x24] sm:$0xf]
      %v9259 = vld [vmem:[%s6812 + $0x28] sm:$0xf]
      %v9260 = vld [vmem:[%s6812 + $0x2c] sm:$0x1]
      %v9261 = vld [vmem:[%s6812 + $0x30] sm:$0xf]
      %v9262 = vld [vmem:[%s6812 + $0x34] sm:$0xf]
      %v9263 = vld [vmem:[%s6812 + $0x38] sm:$0x1]
      %v9264 = vld [vmem:[%s6812 + $0x3c] sm:$0xf]
      %v9265 = vld [vmem:[%s6812 + $0x40] sm:$0xf]
      %v9266 = vld [vmem:[%s6812 + $0x44] sm:$0x1]
      %v9267 = vld [vmem:[%s6812 + $0x48] sm:$0xf]
      %v9268 = vld [vmem:[%s6812 + $0x4c] sm:$0xf]
      %v9269 = vld [vmem:[%s6812 + $0x50] sm:$0x1]
      %v9270 = vld [vmem:[%s6812 + $0x54] sm:$0xf]
      %v9271 = vld [vmem:[%s6812 + $0x58] sm:$0xf]
      %v9272 = vld [vmem:[%s6812 + $0x5c] sm:$0x1]
      %v9273 = vld [vmem:[%s6812 + $0x60] sm:$0xf]
      %v9274 = vld [vmem:[%s6812 + $0x64] sm:$0xf]
      %v9275 = vld [vmem:[%s6812 + $0x68] sm:$0x1]
      %v9276 = vld [vmem:[%s6812 + $0x6c] sm:$0xf]
      %v9277 = vld [vmem:[%s6812 + $0x70] sm:$0xf]
      %v9278 = vld [vmem:[%s6812 + $0x74] sm:$0x1]
      %v9279 = vld [vmem:[%s6812 + $0x78] sm:$0xf]
      %v9280 = vld [vmem:[%s6812 + $0x7c] sm:$0xf]
      %v9281 = vld [vmem:[%s6812 + $0x80] sm:$0x1]
      %v9282 = vld [vmem:[%s6812 + $0x84] sm:$0xf]
      %v9283 = vld [vmem:[%s6812 + $0x88] sm:$0xf]
      %v9284 = vld [vmem:[%s6812 + $0x8c] sm:$0x1]
      %v9285 = vld [vmem:[%s6812 + $0x90] sm:$0xf]
      %v9286 = vld [vmem:[%s6812 + $0x94] sm:$0xf]
      %v9287 = vld [vmem:[%s6812 + $0x98] sm:$0x1]
      %v9288 = vld [vmem:[%s6812 + $0x9c] sm:$0xf]
      %v9289 = vld [vmem:[%s6812 + $0xa0] sm:$0xf]
      %v9290 = vld [vmem:[%s6812 + $0xa4] sm:$0x1]
      %v9291 = vld [vmem:[%s6812 + $0xa8] sm:$0xf]
      %v9292 = vld [vmem:[%s6812 + $0xac] sm:$0xf]
      %v9293 = vld [vmem:[%s6812 + $0xb0] sm:$0x1]
      %v9294 = vld [vmem:[%s6812 + $0xb4] sm:$0xf]
      %v9295 = vld [vmem:[%s6812 + $0xb8] sm:$0xf]
      %v9296 = vld [vmem:[%s6812 + $0xbc] sm:$0x1]
      %v9298 = vshrl.u32 %v9249, 16
      %v9300 = vrot.slane %v9298, 4
      %v9301 = vshll.u32 %v9249, 16
      %v9303 = vrot.slane %v9301, 5
      %v9304 = vor.u32 %v9300, %v9303
      %v9305 = vrot.slane %v9304, 4
      %v9307 = vshll.u32 %v9250, 16
      %v9309 = vrot.slane %v9307, 5
      %v9310 = vsel %vm2099, %v9305, %v9309
      %v9311 = vshrl.u32 %v9250, 16
      %v9313 = vrot.slane %v9311, 4
      %v9314 = vor.u32 %v9313, %v9309
      %v9315 = vrot.slane %v9314, 4
      %v9317 = vshll.u32 %v9251, 16
      %v9319 = vrot.slane %v9317, 5
      %v9320 = vsel %vm2099, %v9315, %v9319
      %v9322 = vshrl.u32 %v9252, 16
      %v9324 = vrot.slane %v9322, 4
      %v9325 = vshll.u32 %v9252, 16
      %v9327 = vrot.slane %v9325, 5
      %v9328 = vor.u32 %v9324, %v9327
      %v9329 = vrot.slane %v9328, 4
      %v9331 = vshll.u32 %v9253, 16
      %v9333 = vrot.slane %v9331, 5
      %v9334 = vsel %vm2099, %v9329, %v9333
      %v9335 = vshrl.u32 %v9253, 16
      %v9337 = vrot.slane %v9335, 4
      %v9338 = vor.u32 %v9337, %v9333
      %v9339 = vrot.slane %v9338, 4
      %v9341 = vshll.u32 %v9254, 16
      %v9343 = vrot.slane %v9341, 5
      %v9344 = vsel %vm2099, %v9339, %v9343
      %v9346 = vshrl.u32 %v9255, 16
      %v9348 = vrot.slane %v9346, 4
      %v9349 = vshll.u32 %v9255, 16
      %v9351 = vrot.slane %v9349, 5
      %v9352 = vor.u32 %v9348, %v9351
      %v9353 = vrot.slane %v9352, 4
      %v9355 = vshll.u32 %v9256, 16
      %v9357 = vrot.slane %v9355, 5
      %v9358 = vsel %vm2099, %v9353, %v9357
      %v9359 = vshrl.u32 %v9256, 16
      %v9361 = vrot.slane %v9359, 4
      %v9362 = vor.u32 %v9361, %v9357
      %v9363 = vrot.slane %v9362, 4
      %v9365 = vshll.u32 %v9257, 16
      %v9367 = vrot.slane %v9365, 5
      %v9368 = vsel %vm2099, %v9363, %v9367
      %v9370 = vshrl.u32 %v9258, 16
      %v9372 = vrot.slane %v9370, 4
      %v9373 = vshll.u32 %v9258, 16
      %v9375 = vrot.slane %v9373, 5
      %v9376 = vor.u32 %v9372, %v9375
      %v9377 = vrot.slane %v9376, 4
      %v9379 = vshll.u32 %v9259, 16
      %v9381 = vrot.slane %v9379, 5
      %v9382 = vsel %vm2099, %v9377, %v9381
      %v9383 = vshrl.u32 %v9259, 16
      %v9385 = vrot.slane %v9383, 4
      %v9386 = vor.u32 %v9385, %v9381
      %v9387 = vrot.slane %v9386, 4
      %v9389 = vshll.u32 %v9260, 16
      %v9391 = vrot.slane %v9389, 5
      %v9392 = vsel %vm2099, %v9387, %v9391
      %v9394 = vshrl.u32 %v9261, 16
      %v9396 = vrot.slane %v9394, 4
      %v9397 = vshll.u32 %v9261, 16
      %v9399 = vrot.slane %v9397, 5
      %v9400 = vor.u32 %v9396, %v9399
      %v9401 = vrot.slane %v9400, 4
      %v9403 = vshll.u32 %v9262, 16
      %v9405 = vrot.slane %v9403, 5
      %v9406 = vsel %vm2099, %v9401, %v9405
      %v9407 = vshrl.u32 %v9262, 16
      %v9409 = vrot.slane %v9407, 4
      %v9410 = vor.u32 %v9409, %v9405
      %v9411 = vrot.slane %v9410, 4
      %v9413 = vshll.u32 %v9263, 16
      %v9415 = vrot.slane %v9413, 5
      %v9416 = vsel %vm2099, %v9411, %v9415
      %v9418 = vshrl.u32 %v9264, 16
      %v9420 = vrot.slane %v9418, 4
      %v9421 = vshll.u32 %v9264, 16
      %v9423 = vrot.slane %v9421, 5
      %v9424 = vor.u32 %v9420, %v9423
      %v9425 = vrot.slane %v9424, 4
      %v9427 = vshll.u32 %v9265, 16
      %v9429 = vrot.slane %v9427, 5
      %v9430 = vsel %vm2099, %v9425, %v9429
      %v9431 = vshrl.u32 %v9265, 16
      %v9433 = vrot.slane %v9431, 4
      %v9434 = vor.u32 %v9433, %v9429
      %v9435 = vrot.slane %v9434, 4
      %v9437 = vshll.u32 %v9266, 16
      %v9439 = vrot.slane %v9437, 5
      %v9440 = vsel %vm2099, %v9435, %v9439
      %v9442 = vshrl.u32 %v9267, 16
      %v9444 = vrot.slane %v9442, 4
      %v9445 = vshll.u32 %v9267, 16
      %v9447 = vrot.slane %v9445, 5
      %v9448 = vor.u32 %v9444, %v9447
      %v9449 = vrot.slane %v9448, 4
      %v9451 = vshll.u32 %v9268, 16
      %v9453 = vrot.slane %v9451, 5
      %v9454 = vsel %vm2099, %v9449, %v9453
      %v9455 = vshrl.u32 %v9268, 16
      %v9457 = vrot.slane %v9455, 4
      %v9458 = vor.u32 %v9457, %v9453
      %v9459 = vrot.slane %v9458, 4
      %v9461 = vshll.u32 %v9269, 16
      %v9463 = vrot.slane %v9461, 5
      %v9464 = vsel %vm2099, %v9459, %v9463
      %v9466 = vshrl.u32 %v9270, 16
      %v9468 = vrot.slane %v9466, 4
      %v9469 = vshll.u32 %v9270, 16
      %v9471 = vrot.slane %v9469, 5
      %v9472 = vor.u32 %v9468, %v9471
      %v9473 = vrot.slane %v9472, 4
      %v9475 = vshll.u32 %v9271, 16
      %v9477 = vrot.slane %v9475, 5
      %v9478 = vsel %vm2099, %v9473, %v9477
      %v9479 = vshrl.u32 %v9271, 16
      %v9481 = vrot.slane %v9479, 4
      %v9482 = vor.u32 %v9481, %v9477
      %v9483 = vrot.slane %v9482, 4
      %v9485 = vshll.u32 %v9272, 16
      %v9487 = vrot.slane %v9485, 5
      %v9488 = vsel %vm2099, %v9483, %v9487
      %v9490 = vshrl.u32 %v9273, 16
      %v9492 = vrot.slane %v9490, 4
      %v9493 = vshll.u32 %v9273, 16
      %v9495 = vrot.slane %v9493, 5
      %v9496 = vor.u32 %v9492, %v9495
      %v9497 = vrot.slane %v9496, 4
      %v9499 = vshll.u32 %v9274, 16
      %v9501 = vrot.slane %v9499, 5
      %v9502 = vsel %vm2099, %v9497, %v9501
      %v9503 = vshrl.u32 %v9274, 16
      %v9505 = vrot.slane %v9503, 4
      %v9506 = vor.u32 %v9505, %v9501
      %v9507 = vrot.slane %v9506, 4
      %v9509 = vshll.u32 %v9275, 16
      %v9511 = vrot.slane %v9509, 5
      %v9512 = vsel %vm2099, %v9507, %v9511
      %v9514 = vshrl.u32 %v9276, 16
      %v9516 = vrot.slane %v9514, 4
      %v9517 = vshll.u32 %v9276, 16
      %v9519 = vrot.slane %v9517, 5
      %v9520 = vor.u32 %v9516, %v9519
      %v9521 = vrot.slane %v9520, 4
      %v9523 = vshll.u32 %v9277, 16
      %v9525 = vrot.slane %v9523, 5
      %v9526 = vsel %vm2099, %v9521, %v9525
      %v9527 = vshrl.u32 %v9277, 16
      %v9529 = vrot.slane %v9527, 4
      %v9530 = vor.u32 %v9529, %v9525
      %v9531 = vrot.slane %v9530, 4
      %v9533 = vshll.u32 %v9278, 16
      %v9535 = vrot.slane %v9533, 5
      %v9536 = vsel %vm2099, %v9531, %v9535
      %v9538 = vshrl.u32 %v9279, 16
      %v9540 = vrot.slane %v9538, 4
      %v9541 = vshll.u32 %v9279, 16
      %v9543 = vrot.slane %v9541, 5
      %v9544 = vor.u32 %v9540, %v9543
      %v9545 = vrot.slane %v9544, 4
      %v9547 = vshll.u32 %v9280, 16
      %v9549 = vrot.slane %v9547, 5
      %v9550 = vsel %vm2099, %v9545, %v9549
      %v9551 = vshrl.u32 %v9280, 16
      %v9553 = vrot.slane %v9551, 4
      %v9554 = vor.u32 %v9553, %v9549
      %v9555 = vrot.slane %v9554, 4
      %v9557 = vshll.u32 %v9281, 16
      %v9559 = vrot.slane %v9557, 5
      %v9560 = vsel %vm2099, %v9555, %v9559
      %v9562 = vshrl.u32 %v9282, 16
      %v9564 = vrot.slane %v9562, 4
      %v9565 = vshll.u32 %v9282, 16
      %v9567 = vrot.slane %v9565, 5
      %v9568 = vor.u32 %v9564, %v9567
      %v9569 = vrot.slane %v9568, 4
      %v9571 = vshll.u32 %v9283, 16
      %v9573 = vrot.slane %v9571, 5
      %v9574 = vsel %vm2099, %v9569, %v9573
      %v9575 = vshrl.u32 %v9283, 16
      %v9577 = vrot.slane %v9575, 4
      %v9578 = vor.u32 %v9577, %v9573
      %v9579 = vrot.slane %v9578, 4
      %v9581 = vshll.u32 %v9284, 16
      %v9583 = vrot.slane %v9581, 5
      %v9584 = vsel %vm2099, %v9579, %v9583
      %v9586 = vshrl.u32 %v9285, 16
      %v9588 = vrot.slane %v9586, 4
      %v9589 = vshll.u32 %v9285, 16
      %v9591 = vrot.slane %v9589, 5
      %v9592 = vor.u32 %v9588, %v9591
      %v9593 = vrot.slane %v9592, 4
      %v9595 = vshll.u32 %v9286, 16
      %v9597 = vrot.slane %v9595, 5
      %v9598 = vsel %vm2099, %v9593, %v9597
      %v9599 = vshrl.u32 %v9286, 16
      %v9601 = vrot.slane %v9599, 4
      %v9602 = vor.u32 %v9601, %v9597
      %v9603 = vrot.slane %v9602, 4
      %v9605 = vshll.u32 %v9287, 16
      %v9607 = vrot.slane %v9605, 5
      %v9608 = vsel %vm2099, %v9603, %v9607
      %v9610 = vshrl.u32 %v9288, 16
      %v9612 = vrot.slane %v9610, 4
      %v9613 = vshll.u32 %v9288, 16
      %v9615 = vrot.slane %v9613, 5
      %v9616 = vor.u32 %v9612, %v9615
      %v9617 = vrot.slane %v9616, 4
      %v9619 = vshll.u32 %v9289, 16
      %v9621 = vrot.slane %v9619, 5
      %v9622 = vsel %vm2099, %v9617, %v9621
      %v9623 = vshrl.u32 %v9289, 16
      %v9625 = vrot.slane %v9623, 4
      %v9626 = vor.u32 %v9625, %v9621
      %v9627 = vrot.slane %v9626, 4
      %v9629 = vshll.u32 %v9290, 16
      %v9631 = vrot.slane %v9629, 5
      %v9632 = vsel %vm2099, %v9627, %v9631
      %v9634 = vshrl.u32 %v9291, 16
      %v9636 = vrot.slane %v9634, 4
      %v9637 = vshll.u32 %v9291, 16
      %v9639 = vrot.slane %v9637, 5
      %v9640 = vor.u32 %v9636, %v9639
      %v9641 = vrot.slane %v9640, 4
      %v9643 = vshll.u32 %v9292, 16
      %v9645 = vrot.slane %v9643, 5
      %v9646 = vsel %vm2099, %v9641, %v9645
      %v9647 = vshrl.u32 %v9292, 16
      %v9649 = vrot.slane %v9647, 4
      %v9650 = vor.u32 %v9649, %v9645
      %v9651 = vrot.slane %v9650, 4
      %v9653 = vshll.u32 %v9293, 16
      %v9655 = vrot.slane %v9653, 5
      %v9656 = vsel %vm2099, %v9651, %v9655
      %v9658 = vshrl.u32 %v9294, 16
      %v9660 = vrot.slane %v9658, 4
      %v9661 = vshll.u32 %v9294, 16
      %v9663 = vrot.slane %v9661, 5
      %v9664 = vor.u32 %v9660, %v9663
      %v9665 = vrot.slane %v9664, 4
      %v9667 = vshll.u32 %v9295, 16
      %v9669 = vrot.slane %v9667, 5
      %v9670 = vsel %vm2099, %v9665, %v9669
      %v9671 = vshrl.u32 %v9295, 16
      %v9673 = vrot.slane %v9671, 4
      %v9674 = vor.u32 %v9673, %v9669
      %v9675 = vrot.slane %v9674, 4
      %v9677 = vshll.u32 %v9296, 16
      %v9679 = vrot.slane %v9677, 5
      %v9680 = vsel %vm2099, %v9675, %v9679
      %v9681 = vld [vmem:[%s8 + $0x20] sm:$0xf]
      %v9682 = vld [vmem:[%s8 + $0x24] sm:$0xf]
      %v9683 = vunpack.c.l.b16 %v9310
      %v9684 = vunpack.c.l.b16 %v9320
      %v9685 = vunpack.c.l.b16 %v9334
      %v9686 = vunpack.c.l.b16 %v9344
      %v9687 = vunpack.c.l.b16 %v9358
      %v9688 = vunpack.c.l.b16 %v9368
      %v9689 = vunpack.c.l.b16 %v9382
      %v9690 = vunpack.c.l.b16 %v9392
      %v9691 = vunpack.c.l.b16 %v9406
      %v9692 = vunpack.c.l.b16 %v9416
      %v9693 = vunpack.c.l.b16 %v9430
      %v9694 = vunpack.c.l.b16 %v9440
      %v9695 = vunpack.c.l.b16 %v9454
      %v9696 = vunpack.c.l.b16 %v9464
      %v9697 = vunpack.c.l.b16 %v9478
      %v9698 = vunpack.c.l.b16 %v9488
      %v9699 = vunpack.c.l.b16 %v9502
      %v9700 = vunpack.c.l.b16 %v9512
      %v9701 = vunpack.c.l.b16 %v9526
      %v9702 = vunpack.c.l.b16 %v9536
      %v9703 = vunpack.c.l.b16 %v9550
      %v9704 = vunpack.c.l.b16 %v9560
      %v9705 = vunpack.c.l.b16 %v9574
      %v9706 = vunpack.c.l.b16 %v9584
      %v9707 = vunpack.c.l.b16 %v9598
      %v9708 = vunpack.c.l.b16 %v9608
      %v9709 = vunpack.c.l.b16 %v9622
      %v9710 = vunpack.c.l.b16 %v9632
      %v9711 = vunpack.c.l.b16 %v9646
      %v9712 = vunpack.c.l.b16 %v9656
      %v9713 = vunpack.c.l.b16 %v9670
      %v9714 = vunpack.c.l.b16 %v9680
      %v9715 = vpack.c.b16 %v9684, %v9683
      %v9716 = vpack.c.b16 %v9686, %v9685
      %v9717 = vpack.c.b16 %v9688, %v9687
      %v9718 = vpack.c.b16 %v9690, %v9689
      %v9719 = vpack.c.b16 %v9692, %v9691
      %v9720 = vpack.c.b16 %v9694, %v9693
      %v9721 = vpack.c.b16 %v9696, %v9695
      %v9722 = vpack.c.b16 %v9698, %v9697
      %v9723 = vpack.c.b16 %v9700, %v9699
      %v9724 = vpack.c.b16 %v9702, %v9701
      %v9725 = vpack.c.b16 %v9704, %v9703
      %v9726 = vpack.c.b16 %v9706, %v9705
      %v9727 = vpack.c.b16 %v9708, %v9707
      %v9728 = vpack.c.b16 %v9710, %v9709
      %v9729 = vpack.c.b16 %v9712, %v9711
      %v9730 = vpack.c.b16 %v9714, %v9713
      %v9733 = vunpack.c.l.b16 %v9681
      %v9734 = vunpack.c.l.b16 %v9682
      %v9735 = vpack.c.b16 %v9734, %v9733
      %v9738 = vsel %vm435, %v9715, 0
      %v9741 = vsel %vm435, %v9716, 0
      %v9744 = vsel %vm435, %v9717, 0
      %v9747 = vsel %vm435, %v9718, 0
      %v9750 = vsel %vm435, %v9719, 0
      %v9753 = vsel %vm435, %v9720, 0
      %v9756 = vsel %vm435, %v9721, 0
      %v9759 = vsel %vm435, %v9722, 0
      %v9762 = vsel %vm435, %v9723, 0
      %v9765 = vsel %vm435, %v9724, 0
      %v9768 = vsel %vm435, %v9725, 0
      %v9771 = vsel %vm435, %v9726, 0
      %v9774 = vsel %vm435, %v9727, 0
      %v9777 = vsel %vm435, %v9728, 0
      %v9780 = vsel %vm435, %v9729, 0
      %v9783 = vsel %vm435, %v9730, 0
      %9785 = vmatprep.subr.bf16.mxu0 0
      %9786 = vmatpush1.bf16.msra.mxu0 %v9735
      %9787 = vmatprep.subr.bf16.mxu0 0
      %9788 = vmatpush1.bf16.msra.mxu0 0
      %9789 = vmatprep.subr.bf16.mxu0 0
      %9790 = vmatpush1.bf16.msra.mxu0 0
      %9791 = vmatprep.subr.bf16.mxu0 0
      %9792 = vmatpush1.bf16.msra.mxu0 0
      %9793 = vmatprep.subr.bf16.mxu0 0
      %9794 = vmatpush1.bf16.msra.mxu0 0
      %9795 = vmatprep.subr.bf16.mxu0 0
      %9796 = vmatpush1.bf16.msra.mxu0 0
      %9797 = vmatprep.subr.bf16.mxu0 0
      %9798 = vmatpush1.bf16.msra.mxu0 0
      %9799 = vmatprep.subr.bf16.mxu0 0
      %9800 = vmatpush1.bf16.msra.mxu0 0
      %9801 = vmatprep.subr.bf16.mxu0 0
      %9802 = vmatpush1.bf16.msra.mxu0 0
      %9803 = vmatprep.subr.bf16.mxu0 0
      %9804 = vmatpush1.bf16.msra.mxu0 0
      %9805 = vmatprep.subr.bf16.mxu0 0
      %9806 = vmatpush1.bf16.msra.mxu0 0
      %9807 = vmatprep.subr.bf16.mxu0 0
      %9808 = vmatpush1.bf16.msra.mxu0 0
      %9809 = vmatprep.subr.bf16.mxu0 0
      %9810 = vmatpush1.bf16.msra.mxu0 0
      %9811 = vmatprep.subr.bf16.mxu0 0
      %9812 = vmatpush1.bf16.msra.mxu0 0
      %9813 = vmatprep.subr.bf16.mxu0 0
      %9814 = vmatpush1.bf16.msra.mxu0 0
      %9815 = vmatprep.subr.bf16.mxu0 0
      %9816 = vmatpush1.bf16.msra.mxu0 0
      %9817 = vmatprep.mubr.bf16.mxu0 0
      %9818 = vmatmul.mubr.bf16.gmra.mrb[0].mxu0 %v9738
      %v9819 = vpop.f32.mrb[0].mxu0
      %v9820 = vadd.f32 0.0, %v9819
      %v9821 = vpop.f32.mrb[0].mxu0
      %v9822 = vpop.f32.mrb[0].mxu0
      %v9823 = vadd.f32 0.0, %v9822
      %v9824 = vpop.f32.mrb[0].mxu0
      %9825 = vmatprep.mubr.bf16.mxu0 0
      %9826 = vmatmul.mubr.bf16.gmra.mrb[0].mxu0 %v9741
      %v9827 = vpop.f32.mrb[0].mxu0
      %v9828 = vadd.f32 0.0, %v9827
      %v9829 = vpop.f32.mrb[0].mxu0
      %v9830 = vpop.f32.mrb[0].mxu0
      %v9831 = vadd.f32 0.0, %v9830
      %v9832 = vpop.f32.mrb[0].mxu0
      %9833 = vmatprep.mubr.bf16.mxu0 0
      %9834 = vmatmul.mubr.bf16.gmra.mrb[0].mxu0 %v9744
      %v9835 = vpop.f32.mrb[0].mxu0
      %v9836 = vadd.f32 0.0, %v9835
      %v9837 = vpop.f32.mrb[0].mxu0
      %v9838 = vpop.f32.mrb[0].mxu0
      %v9839 = vadd.f32 0.0, %v9838
      %v9840 = vpop.f32.mrb[0].mxu0
      %9841 = vmatprep.mubr.bf16.mxu0 0
      %9842 = vmatmul.mubr.bf16.gmra.mrb[0].mxu0 %v9747
      %v9843 = vpop.f32.mrb[0].mxu0
      %v9844 = vadd.f32 0.0, %v9843
      %v9845 = vpop.f32.mrb[0].mxu0
      %v9846 = vpop.f32.mrb[0].mxu0
      %v9847 = vadd.f32 0.0, %v9846
      %v9848 = vpop.f32.mrb[0].mxu0
      %9849 = vmatprep.mubr.bf16.mxu0 0
      %9850 = vmatmul.mubr.bf16.gmra.mrb[0].mxu0 %v9750
      %v9851 = vpop.f32.mrb[0].mxu0
      %v9852 = vadd.f32 0.0, %v9851
      %v9853 = vpop.f32.mrb[0].mxu0
      %v9854 = vpop.f32.mrb[0].mxu0
      %v9855 = vadd.f32 0.0, %v9854
      %v9856 = vpop.f32.mrb[0].mxu0
      %9857 = vmatprep.mubr.bf16.mxu0 0
      %9858 = vmatmul.mubr.bf16.gmra.mrb[0].mxu0 %v9753
      %v9859 = vpop.f32.mrb[0].mxu0
      %v9860 = vadd.f32 0.0, %v9859
      %v9861 = vpop.f32.mrb[0].mxu0
      %v9862 = vpop.f32.mrb[0].mxu0
      %v9863 = vadd.f32 0.0, %v9862
      %v9864 = vpop.f32.mrb[0].mxu0
      %9865 = vmatprep.mubr.bf16.mxu0 0
      %9866 = vmatmul.mubr.bf16.gmra.mrb[0].mxu0 %v9756
      %v9867 = vpop.f32.mrb[0].mxu0
      %v9868 = vadd.f32 0.0, %v9867
      %v9869 = vpop.f32.mrb[0].mxu0
      %v9870 = vpop.f32.mrb[0].mxu0
      %v9871 = vadd.f32 0.0, %v9870
      %v9872 = vpop.f32.mrb[0].mxu0
      %9873 = vmatprep.mubr.bf16.mxu0 0
      %9874 = vmatmul.mubr.bf16.gmra.mrb[0].mxu0 %v9759
      %v9875 = vpop.f32.mrb[0].mxu0
      %v9876 = vadd.f32 0.0, %v9875
      %v9877 = vpop.f32.mrb[0].mxu0
      %v9878 = vpop.f32.mrb[0].mxu0
      %v9879 = vadd.f32 0.0, %v9878
      %v9880 = vpop.f32.mrb[0].mxu0
      %9881 = vmatprep.mubr.bf16.mxu0 0
      %9882 = vmatmul.mubr.bf16.gmra.mrb[0].mxu0 %v9762
      %v9883 = vpop.f32.mrb[0].mxu0
      %v9884 = vadd.f32 0.0, %v9883
      %v9885 = vpop.f32.mrb[0].mxu0
      %v9886 = vpop.f32.mrb[0].mxu0
      %v9887 = vadd.f32 0.0, %v9886
      %v9888 = vpop.f32.mrb[0].mxu0
      %9889 = vmatprep.mubr.bf16.mxu0 0
      %9890 = vmatmul.mubr.bf16.gmra.mrb[0].mxu0 %v9765
      %v9891 = vpop.f32.mrb[0].mxu0
      %v9892 = vadd.f32 0.0, %v9891
      %v9893 = vpop.f32.mrb[0].mxu0
      %v9894 = vpop.f32.mrb[0].mxu0
      %v9895 = vadd.f32 0.0, %v9894
      %v9896 = vpop.f32.mrb[0].mxu0
      %9897 = vmatprep.mubr.bf16.mxu0 0
      %9898 = vmatmul.mubr.bf16.gmra.mrb[0].mxu0 %v9768
      %v9899 = vpop.f32.mrb[0].mxu0
      %v9900 = vadd.f32 0.0, %v9899
      %v9901 = vpop.f32.mrb[0].mxu0
      %v9902 = vpop.f32.mrb[0].mxu0
      %v9903 = vadd.f32 0.0, %v9902
      %v9904 = vpop.f32.mrb[0].mxu0
      %9905 = vmatprep.mubr.bf16.mxu0 0
      %9906 = vmatmul.mubr.bf16.gmra.mrb[0].mxu0 %v9771
      %v9907 = vpop.f32.mrb[0].mxu0
      %v9908 = vadd.f32 0.0, %v9907
      %v9909 = vpop.f32.mrb[0].mxu0
      %v9910 = vpop.f32.mrb[0].mxu0
      %v9911 = vadd.f32 0.0, %v9910
      %v9912 = vpop.f32.mrb[0].mxu0
      %9913 = vmatprep.mubr.bf16.mxu0 0
      %9914 = vmatmul.mubr.bf16.gmra.mrb[0].mxu0 %v9774
      %v9915 = vpop.f32.mrb[0].mxu0
      %v9916 = vadd.f32 0.0, %v9915
      %v9917 = vpop.f32.mrb[0].mxu0
      %v9918 = vpop.f32.mrb[0].mxu0
      %v9919 = vadd.f32 0.0, %v9918
      %v9920 = vpop.f32.mrb[0].mxu0
      %9921 = vmatprep.mubr.bf16.mxu0 0
      %9922 = vmatmul.mubr.bf16.gmra.mrb[0].mxu0 %v9777
      %v9923 = vpop.f32.mrb[0].mxu0
      %v9924 = vadd.f32 0.0, %v9923
      %v9925 = vpop.f32.mrb[0].mxu0
      %v9926 = vpop.f32.mrb[0].mxu0
      %v9927 = vadd.f32 0.0, %v9926
      %v9928 = vpop.f32.mrb[0].mxu0
      %9929 = vmatprep.mubr.bf16.mxu0 0
      %9930 = vmatmul.mubr.bf16.gmra.mrb[0].mxu0 %v9780
      %v9931 = vpop.f32.mrb[0].mxu0
      %v9932 = vadd.f32 0.0, %v9931
      %v9933 = vpop.f32.mrb[0].mxu0
      %v9934 = vpop.f32.mrb[0].mxu0
      %v9935 = vadd.f32 0.0, %v9934
      %v9936 = vpop.f32.mrb[0].mxu0
      %9937 = vmatprep.mubr.bf16.mxu0 0
      %9938 = vmatmul.mubr.bf16.gmra.mrb[0].mxu0 %v9783
      %v9939 = vpop.f32.mrb[0].mxu0
      %v9940 = vadd.f32 0.0, %v9939
      %v9941 = vpop.f32.mrb[0].mxu0
      %v9942 = vpop.f32.mrb[0].mxu0
      %v9943 = vadd.f32 0.0, %v9942
      %v9944 = vpop.f32.mrb[0].mxu0
      %9945 = vdwg.mxu0
      %v9946 = vadd.f32 %v9217, %v9820
      %v9947 = vadd.f32 %v9218, %v9823
      %v9948 = vadd.f32 %v9219, %v9828
      %v9949 = vadd.f32 %v9220, %v9831
      %v9950 = vadd.f32 %v9221, %v9836
      %v9951 = vadd.f32 %v9222, %v9839
      %v9952 = vadd.f32 %v9223, %v9844
      %v9953 = vadd.f32 %v9224, %v9847
      %v9954 = vadd.f32 %v9225, %v9852
      %v9955 = vadd.f32 %v9226, %v9855
      %v9956 = vadd.f32 %v9227, %v9860
      %v9957 = vadd.f32 %v9228, %v9863
      %v9958 = vadd.f32 %v9229, %v9868
      %v9959 = vadd.f32 %v9230, %v9871
      %v9960 = vadd.f32 %v9231, %v9876
      %v9961 = vadd.f32 %v9232, %v9879
      %v9962 = vadd.f32 %v9233, %v9884
      %v9963 = vadd.f32 %v9234, %v9887
      %v9964 = vadd.f32 %v9235, %v9892
      %v9965 = vadd.f32 %v9236, %v9895
      %v9966 = vadd.f32 %v9237, %v9900
      %v9967 = vadd.f32 %v9238, %v9903
      %v9968 = vadd.f32 %v9239, %v9908
      %v9969 = vadd.f32 %v9240, %v9911
      %v9970 = vadd.f32 %v9241, %v9916
      %v9971 = vadd.f32 %v9242, %v9919
      %v9972 = vadd.f32 %v9243, %v9924
      %v9973 = vadd.f32 %v9244, %v9927
      %v9974 = vadd.f32 %v9245, %v9932
      %v9975 = vadd.f32 %v9246, %v9935
      %v9976 = vadd.f32 %v9247, %v9940
      %v9977 = vadd.f32 %v9248, %v9943
      %v9978 = vld [vmem:[%s6812] sm:$0xe]
      %v9979 = vld [vmem:[%s6812 + $0xc] sm:$0xe]
      %v9980 = vld [vmem:[%s6812 + $0x18] sm:$0xe]
      %v9981 = vld [vmem:[%s6812 + $0x24] sm:$0xe]
      %v9982 = vld [vmem:[%s6812 + $0x30] sm:$0xe]
      %v9983 = vld [vmem:[%s6812 + $0x3c] sm:$0xe]
      %v9984 = vld [vmem:[%s6812 + $0x48] sm:$0xe]
      %v9985 = vld [vmem:[%s6812 + $0x54] sm:$0xe]
      %v9986 = vld [vmem:[%s6812 + $0x60] sm:$0xe]
      %v9987 = vld [vmem:[%s6812 + $0x6c] sm:$0xe]
      %v9988 = vld [vmem:[%s6812 + $0x78] sm:$0xe]
      %v9989 = vld [vmem:[%s6812 + $0x84] sm:$0xe]
      %v9990 = vld [vmem:[%s6812 + $0x90] sm:$0xe]
      %v9991 = vld [vmem:[%s6812 + $0x9c] sm:$0xe]
      %v9992 = vld [vmem:[%s6812 + $0xa8] sm:$0xe]
      %v9993 = vld [vmem:[%s6812 + $0xb4] sm:$0xe]
      %v10042 = vrot.slane %v9978, 5
      %v10043 = vrot.slane %v10042, 4
      %v10044 = vrot.slane %v9250, 5
      %v10045 = vsel %vm3094, %v10043, %v10044
      %v10046 = vrot.slane %v10044, 4
      %v10047 = vrot.slane %v9251, 5
      %v10048 = vsel %vm3094, %v10046, %v10047
      %v10049 = vrot.slane %v9979, 5
      %v10050 = vrot.slane %v10049, 4
      %v10051 = vrot.slane %v9253, 5
      %v10052 = vsel %vm3094, %v10050, %v10051
      %v10053 = vrot.slane %v10051, 4
      %v10054 = vrot.slane %v9254, 5
      %v10055 = vsel %vm3094, %v10053, %v10054
      %v10056 = vrot.slane %v9980, 5
      %v10057 = vrot.slane %v10056, 4
      %v10058 = vrot.slane %v9256, 5
      %v10059 = vsel %vm3094, %v10057, %v10058
      %v10060 = vrot.slane %v10058, 4
      %v10061 = vrot.slane %v9257, 5
      %v10062 = vsel %vm3094, %v10060, %v10061
      %v10063 = vrot.slane %v9981, 5
      %v10064 = vrot.slane %v10063, 4
      %v10065 = vrot.slane %v9259, 5
      %v10066 = vsel %vm3094, %v10064, %v10065
      %v10067 = vrot.slane %v10065, 4
      %v10068 = vrot.slane %v9260, 5
      %v10069 = vsel %vm3094, %v10067, %v10068
      %v10070 = vrot.slane %v9982, 5
      %v10071 = vrot.slane %v10070, 4
      %v10072 = vrot.slane %v9262, 5
      %v10073 = vsel %vm3094, %v10071, %v10072
      %v10074 = vrot.slane %v10072, 4
      %v10075 = vrot.slane %v9263, 5
      %v10076 = vsel %vm3094, %v10074, %v10075
      %v10077 = vrot.slane %v9983, 5
      %v10078 = vrot.slane %v10077, 4
      %v10079 = vrot.slane %v9265, 5
      %v10080 = vsel %vm3094, %v10078, %v10079
      %v10081 = vrot.slane %v10079, 4
      %v10082 = vrot.slane %v9266, 5
      %v10083 = vsel %vm3094, %v10081, %v10082
      %v10084 = vrot.slane %v9984, 5
      %v10085 = vrot.slane %v10084, 4
      %v10086 = vrot.slane %v9268, 5
      %v10087 = vsel %vm3094, %v10085, %v10086
      %v10088 = vrot.slane %v10086, 4
      %v10089 = vrot.slane %v9269, 5
      %v10090 = vsel %vm3094, %v10088, %v10089
      %v10091 = vrot.slane %v9985, 5
      %v10092 = vrot.slane %v10091, 4
      %v10093 = vrot.slane %v9271, 5
      %v10094 = vsel %vm3094, %v10092, %v10093
      %v10095 = vrot.slane %v10093, 4
      %v10096 = vrot.slane %v9272, 5
      %v10097 = vsel %vm3094, %v10095, %v10096
      %v10098 = vrot.slane %v9986, 5
      %v10099 = vrot.slane %v10098, 4
      %v10100 = vrot.slane %v9274, 5
      %v10101 = vsel %vm3094, %v10099, %v10100
      %v10102 = vrot.slane %v10100, 4
      %v10103 = vrot.slane %v9275, 5
      %v10104 = vsel %vm3094, %v10102, %v10103
      %v10105 = vrot.slane %v9987, 5
      %v10106 = vrot.slane %v10105, 4
      %v10107 = vrot.slane %v9277, 5
      %v10108 = vsel %vm3094, %v10106, %v10107
      %v10109 = vrot.slane %v10107, 4
      %v10110 = vrot.slane %v9278, 5
      %v10111 = vsel %vm3094, %v10109, %v10110
      %v10112 = vrot.slane %v9988, 5
      %v10113 = vrot.slane %v10112, 4
      %v10114 = vrot.slane %v9280, 5
      %v10115 = vsel %vm3094, %v10113, %v10114
      %v10116 = vrot.slane %v10114, 4
      %v10117 = vrot.slane %v9281, 5
      %v10118 = vsel %vm3094, %v10116, %v10117
      %v10119 = vrot.slane %v9989, 5
      %v10120 = vrot.slane %v10119, 4
      %v10121 = vrot.slane %v9283, 5
      %v10122 = vsel %vm3094, %v10120, %v10121
      %v10123 = vrot.slane %v10121, 4
      %v10124 = vrot.slane %v9284, 5
      %v10125 = vsel %vm3094, %v10123, %v10124
      %v10126 = vrot.slane %v9990, 5
      %v10127 = vrot.slane %v10126, 4
      %v10128 = vrot.slane %v9286, 5
      %v10129 = vsel %vm3094, %v10127, %v10128
      %v10130 = vrot.slane %v10128, 4
      %v10131 = vrot.slane %v9287, 5
      %v10132 = vsel %vm3094, %v10130, %v10131
      %v10133 = vrot.slane %v9991, 5
      %v10134 = vrot.slane %v10133, 4
      %v10135 = vrot.slane %v9289, 5
      %v10136 = vsel %vm3094, %v10134, %v10135
      %v10137 = vrot.slane %v10135, 4
      %v10138 = vrot.slane %v9290, 5
      %v10139 = vsel %vm3094, %v10137, %v10138
      %v10140 = vrot.slane %v9992, 5
      %v10141 = vrot.slane %v10140, 4
      %v10142 = vrot.slane %v9292, 5
      %v10143 = vsel %vm3094, %v10141, %v10142
      %v10144 = vrot.slane %v10142, 4
      %v10145 = vrot.slane %v9293, 5
      %v10146 = vsel %vm3094, %v10144, %v10145
      %v10147 = vrot.slane %v9993, 5
      %v10148 = vrot.slane %v10147, 4
      %v10149 = vrot.slane %v9295, 5
      %v10150 = vsel %vm3094, %v10148, %v10149
      %v10151 = vrot.slane %v10149, 4
      %v10152 = vrot.slane %v9296, 5
      %v10153 = vsel %vm3094, %v10151, %v10152
      %v10154 = vld [vmem:[%s8 + $0x28] sm:$0xf]
      %v10155 = vld [vmem:[%s8 + $0x2c] sm:$0xf]
      %v10156 = vunpack.c.l.b16 %v10045
      %v10157 = vunpack.c.l.b16 %v10048
      %v10158 = vunpack.c.l.b16 %v10052
      %v10159 = vunpack.c.l.b16 %v10055
      %v10160 = vunpack.c.l.b16 %v10059
      %v10161 = vunpack.c.l.b16 %v10062
      %v10162 = vunpack.c.l.b16 %v10066
      %v10163 = vunpack.c.l.b16 %v10069
      %v10164 = vunpack.c.l.b16 %v10073
      %v10165 = vunpack.c.l.b16 %v10076
      %v10166 = vunpack.c.l.b16 %v10080
      %v10167 = vunpack.c.l.b16 %v10083
      %v10168 = vunpack.c.l.b16 %v10087
      %v10169 = vunpack.c.l.b16 %v10090
      %v10170 = vunpack.c.l.b16 %v10094
      %v10171 = vunpack.c.l.b16 %v10097
      %v10172 = vunpack.c.l.b16 %v10101
      %v10173 = vunpack.c.l.b16 %v10104
      %v10174 = vunpack.c.l.b16 %v10108
      %v10175 = vunpack.c.l.b16 %v10111
      %v10176 = vunpack.c.l.b16 %v10115
      %v10177 = vunpack.c.l.b16 %v10118
      %v10178 = vunpack.c.l.b16 %v10122
      %v10179 = vunpack.c.l.b16 %v10125
      %v10180 = vunpack.c.l.b16 %v10129
      %v10181 = vunpack.c.l.b16 %v10132
      %v10182 = vunpack.c.l.b16 %v10136
      %v10183 = vunpack.c.l.b16 %v10139
      %v10184 = vunpack.c.l.b16 %v10143
      %v10185 = vunpack.c.l.b16 %v10146
      %v10186 = vunpack.c.l.b16 %v10150
      %v10187 = vunpack.c.l.b16 %v10153
      %v10188 = vpack.c.b16 %v10157, %v10156
      %v10189 = vpack.c.b16 %v10159, %v10158
      %v10190 = vpack.c.b16 %v10161, %v10160
      %v10191 = vpack.c.b16 %v10163, %v10162
      %v10192 = vpack.c.b16 %v10165, %v10164
      %v10193 = vpack.c.b16 %v10167, %v10166
      %v10194 = vpack.c.b16 %v10169, %v10168
      %v10195 = vpack.c.b16 %v10171, %v10170
      %v10196 = vpack.c.b16 %v10173, %v10172
      %v10197 = vpack.c.b16 %v10175, %v10174
      %v10198 = vpack.c.b16 %v10177, %v10176
      %v10199 = vpack.c.b16 %v10179, %v10178
      %v10200 = vpack.c.b16 %v10181, %v10180
      %v10201 = vpack.c.b16 %v10183, %v10182
      %v10202 = vpack.c.b16 %v10185, %v10184
      %v10203 = vpack.c.b16 %v10187, %v10186
      %v10206 = vunpack.c.l.b16 %v10154
      %v10207 = vunpack.c.l.b16 %v10155
      %v10208 = vpack.c.b16 %v10207, %v10206
      %v10211 = vsel %vm435, %v10188, 0
      %v10214 = vsel %vm435, %v10189, 0
      %v10217 = vsel %vm435, %v10190, 0
      %v10220 = vsel %vm435, %v10191, 0
      %v10223 = vsel %vm435, %v10192, 0
      %v10226 = vsel %vm435, %v10193, 0
      %v10229 = vsel %vm435, %v10194, 0
      %v10232 = vsel %vm435, %v10195, 0
      %v10235 = vsel %vm435, %v10196, 0
      %v10238 = vsel %vm435, %v10197, 0
      %v10241 = vsel %vm435, %v10198, 0
      %v10244 = vsel %vm435, %v10199, 0
      %v10247 = vsel %vm435, %v10200, 0
      %v10250 = vsel %vm435, %v10201, 0
      %v10253 = vsel %vm435, %v10202, 0
      %v10256 = vsel %vm435, %v10203, 0
      %10258 = vmatprep.subr.bf16.mxu0 0
      %10259 = vmatpush1.bf16.msra.mxu0 %v10208
      %10260 = vmatprep.subr.bf16.mxu0 0
      %10261 = vmatpush1.bf16.msra.mxu0 0
      %10262 = vmatprep.subr.bf16.mxu0 0
      %10263 = vmatpush1.bf16.msra.mxu0 0
      %10264 = vmatprep.subr.bf16.mxu0 0
      %10265 = vmatpush1.bf16.msra.mxu0 0
      %10266 = vmatprep.subr.bf16.mxu0 0
      %10267 = vmatpush1.bf16.msra.mxu0 0
      %10268 = vmatprep.subr.bf16.mxu0 0
      %10269 = vmatpush1.bf16.msra.mxu0 0
      %10270 = vmatprep.subr.bf16.mxu0 0
      %10271 = vmatpush1.bf16.msra.mxu0 0
      %10272 = vmatprep.subr.bf16.mxu0 0
      %10273 = vmatpush1.bf16.msra.mxu0 0
      %10274 = vmatprep.subr.bf16.mxu0 0
      %10275 = vmatpush1.bf16.msra.mxu0 0
      %10276 = vmatprep.subr.bf16.mxu0 0
      %10277 = vmatpush1.bf16.msra.mxu0 0
      %10278 = vmatprep.subr.bf16.mxu0 0
      %10279 = vmatpush1.bf16.msra.mxu0 0
      %10280 = vmatprep.subr.bf16.mxu0 0
      %10281 = vmatpush1.bf16.msra.mxu0 0
      %10282 = vmatprep.subr.bf16.mxu0 0
      %10283 = vmatpush1.bf16.msra.mxu0 0
      %10284 = vmatprep.subr.bf16.mxu0 0
      %10285 = vmatpush1.bf16.msra.mxu0 0
      %10286 = vmatprep.subr.bf16.mxu0 0
      %10287 = vmatpush1.bf16.msra.mxu0 0
      %10288 = vmatprep.subr.bf16.mxu0 0
      %10289 = vmatpush1.bf16.msra.mxu0 0
      %10290 = vmatprep.mubr.bf16.mxu0 0
      %10291 = vmatmul.mubr.bf16.gmra.mrb[0].mxu0 %v10211
      %v10292 = vpop.f32.mrb[0].mxu0
      %v10293 = vadd.f32 0.0, %v10292
      %v10294 = vpop.f32.mrb[0].mxu0
      %v10295 = vpop.f32.mrb[0].mxu0
      %v10296 = vadd.f32 0.0, %v10295
      %v10297 = vpop.f32.mrb[0].mxu0
      %10298 = vmatprep.mubr.bf16.mxu0 0
      %10299 = vmatmul.mubr.bf16.gmra.mrb[0].mxu0 %v10214
      %v10300 = vpop.f32.mrb[0].mxu0
      %v10301 = vadd.f32 0.0, %v10300
      %v10302 = vpop.f32.mrb[0].mxu0
      %v10303 = vpop.f32.mrb[0].mxu0
      %v10304 = vadd.f32 0.0, %v10303
      %v10305 = vpop.f32.mrb[0].mxu0
      %10306 = vmatprep.mubr.bf16.mxu0 0
      %10307 = vmatmul.mubr.bf16.gmra.mrb[0].mxu0 %v10217
      %v10308 = vpop.f32.mrb[0].mxu0
      %v10309 = vadd.f32 0.0, %v10308
      %v10310 = vpop.f32.mrb[0].mxu0
      %v10311 = vpop.f32.mrb[0].mxu0
      %v10312 = vadd.f32 0.0, %v10311
      %v10313 = vpop.f32.mrb[0].mxu0
      %10314 = vmatprep.mubr.bf16.mxu0 0
      %10315 = vmatmul.mubr.bf16.gmra.mrb[0].mxu0 %v10220
      %v10316 = vpop.f32.mrb[0].mxu0
      %v10317 = vadd.f32 0.0, %v10316
      %v10318 = vpop.f32.mrb[0].mxu0
      %v10319 = vpop.f32.mrb[0].mxu0
      %v10320 = vadd.f32 0.0, %v10319
      %v10321 = vpop.f32.mrb[0].mxu0
      %10322 = vmatprep.mubr.bf16.mxu0 0
      %10323 = vmatmul.mubr.bf16.gmra.mrb[0].mxu0 %v10223
      %v10324 = vpop.f32.mrb[0].mxu0
      %v10325 = vadd.f32 0.0, %v10324
      %v10326 = vpop.f32.mrb[0].mxu0
      %v10327 = vpop.f32.mrb[0].mxu0
      %v10328 = vadd.f32 0.0, %v10327
      %v10329 = vpop.f32.mrb[0].mxu0
      %10330 = vmatprep.mubr.bf16.mxu0 0
      %10331 = vmatmul.mubr.bf16.gmra.mrb[0].mxu0 %v10226
      %v10332 = vpop.f32.mrb[0].mxu0
      %v10333 = vadd.f32 0.0, %v10332
      %v10334 = vpop.f32.mrb[0].mxu0
      %v10335 = vpop.f32.mrb[0].mxu0
      %v10336 = vadd.f32 0.0, %v10335
      %v10337 = vpop.f32.mrb[0].mxu0
      %10338 = vmatprep.mubr.bf16.mxu0 0
      %10339 = vmatmul.mubr.bf16.gmra.mrb[0].mxu0 %v10229
      %v10340 = vpop.f32.mrb[0].mxu0
      %v10341 = vadd.f32 0.0, %v10340
      %v10342 = vpop.f32.mrb[0].mxu0
      %v10343 = vpop.f32.mrb[0].mxu0
      %v10344 = vadd.f32 0.0, %v10343
      %v10345 = vpop.f32.mrb[0].mxu0
      %10346 = vmatprep.mubr.bf16.mxu0 0
      %10347 = vmatmul.mubr.bf16.gmra.mrb[0].mxu0 %v10232
      %v10348 = vpop.f32.mrb[0].mxu0
      %v10349 = vadd.f32 0.0, %v10348
      %v10350 = vpop.f32.mrb[0].mxu0
      %v10351 = vpop.f32.mrb[0].mxu0
      %v10352 = vadd.f32 0.0, %v10351
      %v10353 = vpop.f32.mrb[0].mxu0
      %10354 = vmatprep.mubr.bf16.mxu0 0
      %10355 = vmatmul.mubr.bf16.gmra.mrb[0].mxu0 %v10235
      %v10356 = vpop.f32.mrb[0].mxu0
      %v10357 = vadd.f32 0.0, %v10356
      %v10358 = vpop.f32.mrb[0].mxu0
      %v10359 = vpop.f32.mrb[0].mxu0
      %v10360 = vadd.f32 0.0, %v10359
      %v10361 = vpop.f32.mrb[0].mxu0
      %10362 = vmatprep.mubr.bf16.mxu0 0
      %10363 = vmatmul.mubr.bf16.gmra.mrb[0].mxu0 %v10238
      %v10364 = vpop.f32.mrb[0].mxu0
      %v10365 = vadd.f32 0.0, %v10364
      %v10366 = vpop.f32.mrb[0].mxu0
      %v10367 = vpop.f32.mrb[0].mxu0
      %v10368 = vadd.f32 0.0, %v10367
      %v10369 = vpop.f32.mrb[0].mxu0
      %10370 = vmatprep.mubr.bf16.mxu0 0
      %10371 = vmatmul.mubr.bf16.gmra.mrb[0].mxu0 %v10241
      %v10372 = vpop.f32.mrb[0].mxu0
      %v10373 = vadd.f32 0.0, %v10372
      %v10374 = vpop.f32.mrb[0].mxu0
      %v10375 = vpop.f32.mrb[0].mxu0
      %v10376 = vadd.f32 0.0, %v10375
      %v10377 = vpop.f32.mrb[0].mxu0
      %10378 = vmatprep.mubr.bf16.mxu0 0
      %10379 = vmatmul.mubr.bf16.gmra.mrb[0].mxu0 %v10244
      %v10380 = vpop.f32.mrb[0].mxu0
      %v10381 = vadd.f32 0.0, %v10380
      %v10382 = vpop.f32.mrb[0].mxu0
      %v10383 = vpop.f32.mrb[0].mxu0
      %v10384 = vadd.f32 0.0, %v10383
      %v10385 = vpop.f32.mrb[0].mxu0
      %10386 = vmatprep.mubr.bf16.mxu0 0
      %10387 = vmatmul.mubr.bf16.gmra.mrb[0].mxu0 %v10247
      %v10388 = vpop.f32.mrb[0].mxu0
      %v10389 = vadd.f32 0.0, %v10388
      %v10390 = vpop.f32.mrb[0].mxu0
      %v10391 = vpop.f32.mrb[0].mxu0
      %v10392 = vadd.f32 0.0, %v10391
      %v10393 = vpop.f32.mrb[0].mxu0
      %10394 = vmatprep.mubr.bf16.mxu0 0
      %10395 = vmatmul.mubr.bf16.gmra.mrb[0].mxu0 %v10250
      %v10396 = vpop.f32.mrb[0].mxu0
      %v10397 = vadd.f32 0.0, %v10396
      %v10398 = vpop.f32.mrb[0].mxu0
      %v10399 = vpop.f32.mrb[0].mxu0
      %v10400 = vadd.f32 0.0, %v10399
      %v10401 = vpop.f32.mrb[0].mxu0
      %10402 = vmatprep.mubr.bf16.mxu0 0
      %10403 = vmatmul.mubr.bf16.gmra.mrb[0].mxu0 %v10253
      %v10404 = vpop.f32.mrb[0].mxu0
      %v10405 = vadd.f32 0.0, %v10404
      %v10406 = vpop.f32.mrb[0].mxu0
      %v10407 = vpop.f32.mrb[0].mxu0
      %v10408 = vadd.f32 0.0, %v10407
      %v10409 = vpop.f32.mrb[0].mxu0
      %10410 = vmatprep.mubr.bf16.mxu0 0
      %10411 = vmatmul.mubr.bf16.gmra.mrb[0].mxu0 %v10256
      %v10412 = vpop.f32.mrb[0].mxu0
      %v10413 = vadd.f32 0.0, %v10412
      %v10414 = vpop.f32.mrb[0].mxu0
      %v10415 = vpop.f32.mrb[0].mxu0
      %v10416 = vadd.f32 0.0, %v10415
      %v10417 = vpop.f32.mrb[0].mxu0
      %10418 = vdwg.mxu0
      %v10419 = vadd.f32 %v9946, %v10293
      %v10420 = vadd.f32 %v9947, %v10296
      %v10421 = vadd.f32 %v9948, %v10301
      %v10422 = vadd.f32 %v9949, %v10304
      %v10423 = vadd.f32 %v9950, %v10309
      %v10424 = vadd.f32 %v9951, %v10312
      %v10425 = vadd.f32 %v9952, %v10317
      %v10426 = vadd.f32 %v9953, %v10320
      %v10427 = vadd.f32 %v9954, %v10325
      %v10428 = vadd.f32 %v9955, %v10328
      %v10429 = vadd.f32 %v9956, %v10333
      %v10430 = vadd.f32 %v9957, %v10336
      %v10431 = vadd.f32 %v9958, %v10341
      %v10432 = vadd.f32 %v9959, %v10344
      %v10433 = vadd.f32 %v9960, %v10349
      %v10434 = vadd.f32 %v9961, %v10352
      %v10435 = vadd.f32 %v9962, %v10357
      %v10436 = vadd.f32 %v9963, %v10360
      %v10437 = vadd.f32 %v9964, %v10365
      %v10438 = vadd.f32 %v9965, %v10368
      %v10439 = vadd.f32 %v9966, %v10373
      %v10440 = vadd.f32 %v9967, %v10376
      %v10441 = vadd.f32 %v9968, %v10381
      %v10442 = vadd.f32 %v9969, %v10384
      %v10443 = vadd.f32 %v9970, %v10389
      %v10444 = vadd.f32 %v9971, %v10392
      %v10445 = vadd.f32 %v9972, %v10397
      %v10446 = vadd.f32 %v9973, %v10400
      %v10447 = vadd.f32 %v9974, %v10405
      %v10448 = vadd.f32 %v9975, %v10408
      %v10449 = vadd.f32 %v9976, %v10413
      %v10450 = vadd.f32 %v9977, %v10416
      %s10451 = scalar_lea.vmem [#allocation3], 24
      %v10452 = vld [vmem:[%s10451] sm:$0xf]
      %v10453 = vld [vmem:[%s10451 + $0x4] sm:$0xf]
      %v10454 = vld [vmem:[%s10451 + $0xc] sm:$0xf]
      %v10455 = vld [vmem:[%s10451 + $0x10] sm:$0xf]
      %v10456 = vld [vmem:[%s10451 + $0x18] sm:$0xf]
      %v10457 = vld [vmem:[%s10451 + $0x1c] sm:$0xf]
      %v10458 = vld [vmem:[%s10451 + $0x24] sm:$0xf]
      %v10459 = vld [vmem:[%s10451 + $0x28] sm:$0xf]
      %v10460 = vld [vmem:[%s10451 + $0x30] sm:$0xf]
      %v10461 = vld [vmem:[%s10451 + $0x34] sm:$0xf]
      %v10462 = vld [vmem:[%s10451 + $0x3c] sm:$0xf]
      %v10463 = vld [vmem:[%s10451 + $0x40] sm:$0xf]
      %v10464 = vld [vmem:[%s10451 + $0x48] sm:$0xf]
      %v10465 = vld [vmem:[%s10451 + $0x4c] sm:$0xf]
      %v10466 = vld [vmem:[%s10451 + $0x54] sm:$0xf]
      %v10467 = vld [vmem:[%s10451 + $0x58] sm:$0xf]
      %v10468 = vld [vmem:[%s10451 + $0x60] sm:$0xf]
      %v10469 = vld [vmem:[%s10451 + $0x64] sm:$0xf]
      %v10470 = vld [vmem:[%s10451 + $0x6c] sm:$0xf]
      %v10471 = vld [vmem:[%s10451 + $0x70] sm:$0xf]
      %v10472 = vld [vmem:[%s10451 + $0x78] sm:$0xf]
      %v10473 = vld [vmem:[%s10451 + $0x7c] sm:$0xf]
      %v10474 = vld [vmem:[%s10451 + $0x84] sm:$0xf]
      %v10475 = vld [vmem:[%s10451 + $0x88] sm:$0xf]
      %v10476 = vld [vmem:[%s10451 + $0x90] sm:$0xf]
      %v10477 = vld [vmem:[%s10451 + $0x94] sm:$0xf]
      %v10478 = vld [vmem:[%s10451 + $0x9c] sm:$0xf]
      %v10479 = vld [vmem:[%s10451 + $0xa0] sm:$0xf]
      %v10480 = vld [vmem:[%s10451 + $0xa8] sm:$0xf]
      %v10481 = vld [vmem:[%s10451 + $0xac] sm:$0xf]
      %v10482 = vld [vmem:[%s10451 + $0xb4] sm:$0xf]
      %v10483 = vld [vmem:[%s10451 + $0xb8] sm:$0xf]
      %v10484 = vld [vmem:[%s8 + $0x30] sm:$0xf]
      %v10485 = vld [vmem:[%s8 + $0x34] sm:$0xf]
      %v10518 = vunpack.c.l.b16 %v10452
      %v10519 = vunpack.c.l.b16 %v10453
      %v10520 = vunpack.c.l.b16 %v10454
      %v10521 = vunpack.c.l.b16 %v10455
      %v10522 = vunpack.c.l.b16 %v10456
      %v10523 = vunpack.c.l.b16 %v10457
      %v10524 = vunpack.c.l.b16 %v10458
      %v10525 = vunpack.c.l.b16 %v10459
      %v10526 = vunpack.c.l.b16 %v10460
      %v10527 = vunpack.c.l.b16 %v10461
      %v10528 = vunpack.c.l.b16 %v10462
      %v10529 = vunpack.c.l.b16 %v10463
      %v10530 = vunpack.c.l.b16 %v10464
      %v10531 = vunpack.c.l.b16 %v10465
      %v10532 = vunpack.c.l.b16 %v10466
      %v10533 = vunpack.c.l.b16 %v10467
      %v10534 = vunpack.c.l.b16 %v10468
      %v10535 = vunpack.c.l.b16 %v10469
      %v10536 = vunpack.c.l.b16 %v10470
      %v10537 = vunpack.c.l.b16 %v10471
      %v10538 = vunpack.c.l.b16 %v10472
      %v10539 = vunpack.c.l.b16 %v10473
      %v10540 = vunpack.c.l.b16 %v10474
      %v10541 = vunpack.c.l.b16 %v10475
      %v10542 = vunpack.c.l.b16 %v10476
      %v10543 = vunpack.c.l.b16 %v10477
      %v10544 = vunpack.c.l.b16 %v10478
      %v10545 = vunpack.c.l.b16 %v10479
      %v10546 = vunpack.c.l.b16 %v10480
      %v10547 = vunpack.c.l.b16 %v10481
      %v10548 = vunpack.c.l.b16 %v10482
      %v10549 = vunpack.c.l.b16 %v10483
      %v10550 = vpack.c.b16 %v10519, %v10518
      %v10551 = vpack.c.b16 %v10521, %v10520
      %v10552 = vpack.c.b16 %v10523, %v10522
      %v10553 = vpack.c.b16 %v10525, %v10524
      %v10554 = vpack.c.b16 %v10527, %v10526
      %v10555 = vpack.c.b16 %v10529, %v10528
      %v10556 = vpack.c.b16 %v10531, %v10530
      %v10557 = vpack.c.b16 %v10533, %v10532
      %v10558 = vpack.c.b16 %v10535, %v10534
      %v10559 = vpack.c.b16 %v10537, %v10536
      %v10560 = vpack.c.b16 %v10539, %v10538
      %v10561 = vpack.c.b16 %v10541, %v10540
      %v10562 = vpack.c.b16 %v10543, %v10542
      %v10563 = vpack.c.b16 %v10545, %v10544
      %v10564 = vpack.c.b16 %v10547, %v10546
      %v10565 = vpack.c.b16 %v10549, %v10548
      %v10568 = vunpack.c.l.b16 %v10484
      %v10569 = vunpack.c.l.b16 %v10485
      %v10570 = vpack.c.b16 %v10569, %v10568
      %v10573 = vsel %vm435, %v10550, 0
      %v10576 = vsel %vm435, %v10551, 0
      %v10579 = vsel %vm435, %v10552, 0
      %v10582 = vsel %vm435, %v10553, 0
      %v10585 = vsel %vm435, %v10554, 0
      %v10588 = vsel %vm435, %v10555, 0
      %v10591 = vsel %vm435, %v10556, 0
      %v10594 = vsel %vm435, %v10557, 0
      %v10597 = vsel %vm435, %v10558, 0
      %v10600 = vsel %vm435, %v10559, 0
      %v10603 = vsel %vm435, %v10560, 0
      %v10606 = vsel %vm435, %v10561, 0
      %v10609 = vsel %vm435, %v10562, 0
      %v10612 = vsel %vm435, %v10563, 0
      %v10615 = vsel %vm435, %v10564, 0
      %v10618 = vsel %vm435, %v10565, 0
      %10620 = vmatprep.subr.bf16.mxu0 0
      %10621 = vmatpush1.bf16.msra.mxu0 %v10570
      %10622 = vmatprep.subr.bf16.mxu0 0
      %10623 = vmatpush1.bf16.msra.mxu0 0
      %10624 = vmatprep.subr.bf16.mxu0 0
      %10625 = vmatpush1.bf16.msra.mxu0 0
      %10626 = vmatprep.subr.bf16.mxu0 0
      %10627 = vmatpush1.bf16.msra.mxu0 0
      %10628 = vmatprep.subr.bf16.mxu0 0
      %10629 = vmatpush1.bf16.msra.mxu0 0
      %10630 = vmatprep.subr.bf16.mxu0 0
      %10631 = vmatpush1.bf16.msra.mxu0 0
      %10632 = vmatprep.subr.bf16.mxu0 0
      %10633 = vmatpush1.bf16.msra.mxu0 0
      %10634 = vmatprep.subr.bf16.mxu0 0
      %10635 = vmatpush1.bf16.msra.mxu0 0
      %10636 = vmatprep.subr.bf16.mxu0 0
      %10637 = vmatpush1.bf16.msra.mxu0 0
      %10638 = vmatprep.subr.bf16.mxu0 0
      %10639 = vmatpush1.bf16.msra.mxu0 0
      %10640 = vmatprep.subr.bf16.mxu0 0
      %10641 = vmatpush1.bf16.msra.mxu0 0
      %10642 = vmatprep.subr.bf16.mxu0 0
      %10643 = vmatpush1.bf16.msra.mxu0 0
      %10644 = vmatprep.subr.bf16.mxu0 0
      %10645 = vmatpush1.bf16.msra.mxu0 0
      %10646 = vmatprep.subr.bf16.mxu0 0
      %10647 = vmatpush1.bf16.msra.mxu0 0
      %10648 = vmatprep.subr.bf16.mxu0 0
      %10649 = vmatpush1.bf16.msra.mxu0 0
      %10650 = vmatprep.subr.bf16.mxu0 0
      %10651 = vmatpush1.bf16.msra.mxu0 0
      %10652 = vmatprep.mubr.bf16.mxu0 0
      %10653 = vmatmul.mubr.bf16.gmra.mrb[0].mxu0 %v10573
      %v10654 = vpop.f32.mrb[0].mxu0
      %v10655 = vadd.f32 0.0, %v10654
      %v10656 = vpop.f32.mrb[0].mxu0
      %v10657 = vpop.f32.mrb[0].mxu0
      %v10658 = vadd.f32 0.0, %v10657
      %v10659 = vpop.f32.mrb[0].mxu0
      %10660 = vmatprep.mubr.bf16.mxu0 0
      %10661 = vmatmul.mubr.bf16.gmra.mrb[0].mxu0 %v10576
      %v10662 = vpop.f32.mrb[0].mxu0
      %v10663 = vadd.f32 0.0, %v10662
      %v10664 = vpop.f32.mrb[0].mxu0
      %v10665 = vpop.f32.mrb[0].mxu0
      %v10666 = vadd.f32 0.0, %v10665
      %v10667 = vpop.f32.mrb[0].mxu0
      %10668 = vmatprep.mubr.bf16.mxu0 0
      %10669 = vmatmul.mubr.bf16.gmra.mrb[0].mxu0 %v10579
      %v10670 = vpop.f32.mrb[0].mxu0
      %v10671 = vadd.f32 0.0, %v10670
      %v10672 = vpop.f32.mrb[0].mxu0
      %v10673 = vpop.f32.mrb[0].mxu0
      %v10674 = vadd.f32 0.0, %v10673
      %v10675 = vpop.f32.mrb[0].mxu0
      %10676 = vmatprep.mubr.bf16.mxu0 0
      %10677 = vmatmul.mubr.bf16.gmra.mrb[0].mxu0 %v10582
      %v10678 = vpop.f32.mrb[0].mxu0
      %v10679 = vadd.f32 0.0, %v10678
      %v10680 = vpop.f32.mrb[0].mxu0
      %v10681 = vpop.f32.mrb[0].mxu0
      %v10682 = vadd.f32 0.0, %v10681
      %v10683 = vpop.f32.mrb[0].mxu0
      %10684 = vmatprep.mubr.bf16.mxu0 0
      %10685 = vmatmul.mubr.bf16.gmra.mrb[0].mxu0 %v10585
      %v10686 = vpop.f32.mrb[0].mxu0
      %v10687 = vadd.f32 0.0, %v10686
      %v10688 = vpop.f32.mrb[0].mxu0
      %v10689 = vpop.f32.mrb[0].mxu0
      %v10690 = vadd.f32 0.0, %v10689
      %v10691 = vpop.f32.mrb[0].mxu0
      %10692 = vmatprep.mubr.bf16.mxu0 0
      %10693 = vmatmul.mubr.bf16.gmra.mrb[0].mxu0 %v10588
      %v10694 = vpop.f32.mrb[0].mxu0
      %v10695 = vadd.f32 0.0, %v10694
      %v10696 = vpop.f32.mrb[0].mxu0
      %v10697 = vpop.f32.mrb[0].mxu0
      %v10698 = vadd.f32 0.0, %v10697
      %v10699 = vpop.f32.mrb[0].mxu0
      %10700 = vmatprep.mubr.bf16.mxu0 0
      %10701 = vmatmul.mubr.bf16.gmra.mrb[0].mxu0 %v10591
      %v10702 = vpop.f32.mrb[0].mxu0
      %v10703 = vadd.f32 0.0, %v10702
      %v10704 = vpop.f32.mrb[0].mxu0
      %v10705 = vpop.f32.mrb[0].mxu0
      %v10706 = vadd.f32 0.0, %v10705
      %v10707 = vpop.f32.mrb[0].mxu0
      %10708 = vmatprep.mubr.bf16.mxu0 0
      %10709 = vmatmul.mubr.bf16.gmra.mrb[0].mxu0 %v10594
      %v10710 = vpop.f32.mrb[0].mxu0
      %v10711 = vadd.f32 0.0, %v10710
      %v10712 = vpop.f32.mrb[0].mxu0
      %v10713 = vpop.f32.mrb[0].mxu0
      %v10714 = vadd.f32 0.0, %v10713
      %v10715 = vpop.f32.mrb[0].mxu0
      %10716 = vmatprep.mubr.bf16.mxu0 0
      %10717 = vmatmul.mubr.bf16.gmra.mrb[0].mxu0 %v10597
      %v10718 = vpop.f32.mrb[0].mxu0
      %v10719 = vadd.f32 0.0, %v10718
      %v10720 = vpop.f32.mrb[0].mxu0
      %v10721 = vpop.f32.mrb[0].mxu0
      %v10722 = vadd.f32 0.0, %v10721
      %v10723 = vpop.f32.mrb[0].mxu0
      %10724 = vmatprep.mubr.bf16.mxu0 0
      %10725 = vmatmul.mubr.bf16.gmra.mrb[0].mxu0 %v10600
      %v10726 = vpop.f32.mrb[0].mxu0
      %v10727 = vadd.f32 0.0, %v10726
      %v10728 = vpop.f32.mrb[0].mxu0
      %v10729 = vpop.f32.mrb[0].mxu0
      %v10730 = vadd.f32 0.0, %v10729
      %v10731 = vpop.f32.mrb[0].mxu0
      %10732 = vmatprep.mubr.bf16.mxu0 0
      %10733 = vmatmul.mubr.bf16.gmra.mrb[0].mxu0 %v10603
      %v10734 = vpop.f32.mrb[0].mxu0
      %v10735 = vadd.f32 0.0, %v10734
      %v10736 = vpop.f32.mrb[0].mxu0
      %v10737 = vpop.f32.mrb[0].mxu0
      %v10738 = vadd.f32 0.0, %v10737
      %v10739 = vpop.f32.mrb[0].mxu0
      %10740 = vmatprep.mubr.bf16.mxu0 0
      %10741 = vmatmul.mubr.bf16.gmra.mrb[0].mxu0 %v10606
      %v10742 = vpop.f32.mrb[0].mxu0
      %v10743 = vadd.f32 0.0, %v10742
      %v10744 = vpop.f32.mrb[0].mxu0
      %v10745 = vpop.f32.mrb[0].mxu0
      %v10746 = vadd.f32 0.0, %v10745
      %v10747 = vpop.f32.mrb[0].mxu0
      %10748 = vmatprep.mubr.bf16.mxu0 0
      %10749 = vmatmul.mubr.bf16.gmra.mrb[0].mxu0 %v10609
      %v10750 = vpop.f32.mrb[0].mxu0
      %v10751 = vadd.f32 0.0, %v10750
      %v10752 = vpop.f32.mrb[0].mxu0
      %v10753 = vpop.f32.mrb[0].mxu0
      %v10754 = vadd.f32 0.0, %v10753
      %v10755 = vpop.f32.mrb[0].mxu0
      %10756 = vmatprep.mubr.bf16.mxu0 0
      %10757 = vmatmul.mubr.bf16.gmra.mrb[0].mxu0 %v10612
      %v10758 = vpop.f32.mrb[0].mxu0
      %v10759 = vadd.f32 0.0, %v10758
      %v10760 = vpop.f32.mrb[0].mxu0
      %v10761 = vpop.f32.mrb[0].mxu0
      %v10762 = vadd.f32 0.0, %v10761
      %v10763 = vpop.f32.mrb[0].mxu0
      %10764 = vmatprep.mubr.bf16.mxu0 0
      %10765 = vmatmul.mubr.bf16.gmra.mrb[0].mxu0 %v10615
      %v10766 = vpop.f32.mrb[0].mxu0
      %v10767 = vadd.f32 0.0, %v10766
      %v10768 = vpop.f32.mrb[0].mxu0
      %v10769 = vpop.f32.mrb[0].mxu0
      %v10770 = vadd.f32 0.0, %v10769
      %v10771 = vpop.f32.mrb[0].mxu0
      %10772 = vmatprep.mubr.bf16.mxu0 0
      %10773 = vmatmul.mubr.bf16.gmra.mrb[0].mxu0 %v10618
      %v10774 = vpop.f32.mrb[0].mxu0
      %v10775 = vadd.f32 0.0, %v10774
      %v10776 = vpop.f32.mrb[0].mxu0
      %v10777 = vpop.f32.mrb[0].mxu0
      %v10778 = vadd.f32 0.0, %v10777
      %v10779 = vpop.f32.mrb[0].mxu0
      %10780 = vdwg.mxu0
      %v10781 = vadd.f32 %v10419, %v10655
      %v10782 = vadd.f32 %v10420, %v10658
      %v10783 = vadd.f32 %v10421, %v10663
      %v10784 = vadd.f32 %v10422, %v10666
      %v10785 = vadd.f32 %v10423, %v10671
      %v10786 = vadd.f32 %v10424, %v10674
      %v10787 = vadd.f32 %v10425, %v10679
      %v10788 = vadd.f32 %v10426, %v10682
      %v10789 = vadd.f32 %v10427, %v10687
      %v10790 = vadd.f32 %v10428, %v10690
      %v10791 = vadd.f32 %v10429, %v10695
      %v10792 = vadd.f32 %v10430, %v10698
      %v10793 = vadd.f32 %v10431, %v10703
      %v10794 = vadd.f32 %v10432, %v10706
      %v10795 = vadd.f32 %v10433, %v10711
      %v10796 = vadd.f32 %v10434, %v10714
      %v10797 = vadd.f32 %v10435, %v10719
      %v10798 = vadd.f32 %v10436, %v10722
      %v10799 = vadd.f32 %v10437, %v10727
      %v10800 = vadd.f32 %v10438, %v10730
      %v10801 = vadd.f32 %v10439, %v10735
      %v10802 = vadd.f32 %v10440, %v10738
      %v10803 = vadd.f32 %v10441, %v10743
      %v10804 = vadd.f32 %v10442, %v10746
      %v10805 = vadd.f32 %v10443, %v10751
      %v10806 = vadd.f32 %v10444, %v10754
      %v10807 = vadd.f32 %v10445, %v10759
      %v10808 = vadd.f32 %v10446, %v10762
      %v10809 = vadd.f32 %v10447, %v10767
      %v10810 = vadd.f32 %v10448, %v10770
      %v10811 = vadd.f32 %v10449, %v10775
      %v10812 = vadd.f32 %v10450, %v10778
      %v10813 = vld [vmem:[%s10451] sm:$0xf]
      %v10814 = vld [vmem:[%s10451 + $0x4] sm:$0xf]
      %v10815 = vld [vmem:[%s10451 + $0x8] sm:$0x1]
      %v10816 = vld [vmem:[%s10451 + $0xc] sm:$0xf]
      %v10817 = vld [vmem:[%s10451 + $0x10] sm:$0xf]
      %v10818 = vld [vmem:[%s10451 + $0x14] sm:$0x1]
      %v10819 = vld [vmem:[%s10451 + $0x18] sm:$0xf]
      %v10820 = vld [vmem:[%s10451 + $0x1c] sm:$0xf]
      %v10821 = vld [vmem:[%s10451 + $0x20] sm:$0x1]
      %v10822 = vld [vmem:[%s10451 + $0x24] sm:$0xf]
      %v10823 = vld [vmem:[%s10451 + $0x28] sm:$0xf]
      %v10824 = vld [vmem:[%s10451 + $0x2c] sm:$0x1]
      %v10825 = vld [vmem:[%s10451 + $0x30] sm:$0xf]
      %v10826 = vld [vmem:[%s10451 + $0x34] sm:$0xf]
      %v10827 = vld [vmem:[%s10451 + $0x38] sm:$0x1]
      %v10828 = vld [vmem:[%s10451 + $0x3c] sm:$0xf]
      %v10829 = vld [vmem:[%s10451 + $0x40] sm:$0xf]
      %v10830 = vld [vmem:[%s10451 + $0x44] sm:$0x1]
      %v10831 = vld [vmem:[%s10451 + $0x48] sm:$0xf]
      %v10832 = vld [vmem:[%s10451 + $0x4c] sm:$0xf]
      %v10833 = vld [vmem:[%s10451 + $0x50] sm:$0x1]
      %v10834 = vld [vmem:[%s10451 + $0x54] sm:$0xf]
      %v10835 = vld [vmem:[%s10451 + $0x58] sm:$0xf]
      %v10836 = vld [vmem:[%s10451 + $0x5c] sm:$0x1]
      %v10837 = vld [vmem:[%s10451 + $0x60] sm:$0xf]
      %v10838 = vld [vmem:[%s10451 + $0x64] sm:$0xf]
      %v10839 = vld [vmem:[%s10451 + $0x68] sm:$0x1]
      %v10840 = vld [vmem:[%s10451 + $0x6c] sm:$0xf]
      %v10841 = vld [vmem:[%s10451 + $0x70] sm:$0xf]
      %v10842 = vld [vmem:[%s10451 + $0x74] sm:$0x1]
      %v10843 = vld [vmem:[%s10451 + $0x78] sm:$0xf]
      %v10844 = vld [vmem:[%s10451 + $0x7c] sm:$0xf]
      %v10845 = vld [vmem:[%s10451 + $0x80] sm:$0x1]
      %v10846 = vld [vmem:[%s10451 + $0x84] sm:$0xf]
      %v10847 = vld [vmem:[%s10451 + $0x88] sm:$0xf]
      %v10848 = vld [vmem:[%s10451 + $0x8c] sm:$0x1]
      %v10849 = vld [vmem:[%s10451 + $0x90] sm:$0xf]
      %v10850 = vld [vmem:[%s10451 + $0x94] sm:$0xf]
      %v10851 = vld [vmem:[%s10451 + $0x98] sm:$0x1]
      %v10852 = vld [vmem:[%s10451 + $0x9c] sm:$0xf]
      %v10853 = vld [vmem:[%s10451 + $0xa0] sm:$0xf]
      %v10854 = vld [vmem:[%s10451 + $0xa4] sm:$0x1]
      %v10855 = vld [vmem:[%s10451 + $0xa8] sm:$0xf]
      %v10856 = vld [vmem:[%s10451 + $0xac] sm:$0xf]
      %v10857 = vld [vmem:[%s10451 + $0xb0] sm:$0x1]
      %v10858 = vld [vmem:[%s10451 + $0xb4] sm:$0xf]
      %v10859 = vld [vmem:[%s10451 + $0xb8] sm:$0xf]
      %v10860 = vld [vmem:[%s10451 + $0xbc] sm:$0x1]
      %v10862 = vshrl.u32 %v10813, 16
      %v10864 = vrot.slane %v10862, 4
      %v10865 = vshll.u32 %v10813, 16
      %v10867 = vrot.slane %v10865, 5
      %v10868 = vor.u32 %v10864, %v10867
      %v10869 = vrot.slane %v10868, 4
      %v10871 = vshll.u32 %v10814, 16
      %v10873 = vrot.slane %v10871, 5
      %v10874 = vsel %vm2099, %v10869, %v10873
      %v10875 = vshrl.u32 %v10814, 16
      %v10877 = vrot.slane %v10875, 4
      %v10878 = vor.u32 %v10877, %v10873
      %v10879 = vrot.slane %v10878, 4
      %v10881 = vshll.u32 %v10815, 16
      %v10883 = vrot.slane %v10881, 5
      %v10884 = vsel %vm2099, %v10879, %v10883
      %v10886 = vshrl.u32 %v10816, 16
      %v10888 = vrot.slane %v10886, 4
      %v10889 = vshll.u32 %v10816, 16
      %v10891 = vrot.slane %v10889, 5
      %v10892 = vor.u32 %v10888, %v10891
      %v10893 = vrot.slane %v10892, 4
      %v10895 = vshll.u32 %v10817, 16
      %v10897 = vrot.slane %v10895, 5
      %v10898 = vsel %vm2099, %v10893, %v10897
      %v10899 = vshrl.u32 %v10817, 16
      %v10901 = vrot.slane %v10899, 4
      %v10902 = vor.u32 %v10901, %v10897
      %v10903 = vrot.slane %v10902, 4
      %v10905 = vshll.u32 %v10818, 16
      %v10907 = vrot.slane %v10905, 5
      %v10908 = vsel %vm2099, %v10903, %v10907
      %v10910 = vshrl.u32 %v10819, 16
      %v10912 = vrot.slane %v10910, 4
      %v10913 = vshll.u32 %v10819, 16
      %v10915 = vrot.slane %v10913, 5
      %v10916 = vor.u32 %v10912, %v10915
      %v10917 = vrot.slane %v10916, 4
      %v10919 = vshll.u32 %v10820, 16
      %v10921 = vrot.slane %v10919, 5
      %v10922 = vsel %vm2099, %v10917, %v10921
      %v10923 = vshrl.u32 %v10820, 16
      %v10925 = vrot.slane %v10923, 4
      %v10926 = vor.u32 %v10925, %v10921
      %v10927 = vrot.slane %v10926, 4
      %v10929 = vshll.u32 %v10821, 16
      %v10931 = vrot.slane %v10929, 5
      %v10932 = vsel %vm2099, %v10927, %v10931
      %v10934 = vshrl.u32 %v10822, 16
      %v10936 = vrot.slane %v10934, 4
      %v10937 = vshll.u32 %v10822, 16
      %v10939 = vrot.slane %v10937, 5
      %v10940 = vor.u32 %v10936, %v10939
      %v10941 = vrot.slane %v10940, 4
      %v10943 = vshll.u32 %v10823, 16
      %v10945 = vrot.slane %v10943, 5
      %v10946 = vsel %vm2099, %v10941, %v10945
      %v10947 = vshrl.u32 %v10823, 16
      %v10949 = vrot.slane %v10947, 4
      %v10950 = vor.u32 %v10949, %v10945
      %v10951 = vrot.slane %v10950, 4
      %v10953 = vshll.u32 %v10824, 16
      %v10955 = vrot.slane %v10953, 5
      %v10956 = vsel %vm2099, %v10951, %v10955
      %v10958 = vshrl.u32 %v10825, 16
      %v10960 = vrot.slane %v10958, 4
      %v10961 = vshll.u32 %v10825, 16
      %v10963 = vrot.slane %v10961, 5
      %v10964 = vor.u32 %v10960, %v10963
      %v10965 = vrot.slane %v10964, 4
      %v10967 = vshll.u32 %v10826, 16
      %v10969 = vrot.slane %v10967, 5
      %v10970 = vsel %vm2099, %v10965, %v10969
      %v10971 = vshrl.u32 %v10826, 16
      %v10973 = vrot.slane %v10971, 4
      %v10974 = vor.u32 %v10973, %v10969
      %v10975 = vrot.slane %v10974, 4
      %v10977 = vshll.u32 %v10827, 16
      %v10979 = vrot.slane %v10977, 5
      %v10980 = vsel %vm2099, %v10975, %v10979
      %v10982 = vshrl.u32 %v10828, 16
      %v10984 = vrot.slane %v10982, 4
      %v10985 = vshll.u32 %v10828, 16
      %v10987 = vrot.slane %v10985, 5
      %v10988 = vor.u32 %v10984, %v10987
      %v10989 = vrot.slane %v10988, 4
      %v10991 = vshll.u32 %v10829, 16
      %v10993 = vrot.slane %v10991, 5
      %v10994 = vsel %vm2099, %v10989, %v10993
      %v10995 = vshrl.u32 %v10829, 16
      %v10997 = vrot.slane %v10995, 4
      %v10998 = vor.u32 %v10997, %v10993
      %v10999 = vrot.slane %v10998, 4
      %v11001 = vshll.u32 %v10830, 16
      %v11003 = vrot.slane %v11001, 5
      %v11004 = vsel %vm2099, %v10999, %v11003
      %v11006 = vshrl.u32 %v10831, 16
      %v11008 = vrot.slane %v11006, 4
      %v11009 = vshll.u32 %v10831, 16
      %v11011 = vrot.slane %v11009, 5
      %v11012 = vor.u32 %v11008, %v11011
      %v11013 = vrot.slane %v11012, 4
      %v11015 = vshll.u32 %v10832, 16
      %v11017 = vrot.slane %v11015, 5
      %v11018 = vsel %vm2099, %v11013, %v11017
      %v11019 = vshrl.u32 %v10832, 16
      %v11021 = vrot.slane %v11019, 4
      %v11022 = vor.u32 %v11021, %v11017
      %v11023 = vrot.slane %v11022, 4
      %v11025 = vshll.u32 %v10833, 16
      %v11027 = vrot.slane %v11025, 5
      %v11028 = vsel %vm2099, %v11023, %v11027
      %v11030 = vshrl.u32 %v10834, 16
      %v11032 = vrot.slane %v11030, 4
      %v11033 = vshll.u32 %v10834, 16
      %v11035 = vrot.slane %v11033, 5
      %v11036 = vor.u32 %v11032, %v11035
      %v11037 = vrot.slane %v11036, 4
      %v11039 = vshll.u32 %v10835, 16
      %v11041 = vrot.slane %v11039, 5
      %v11042 = vsel %vm2099, %v11037, %v11041
      %v11043 = vshrl.u32 %v10835, 16
      %v11045 = vrot.slane %v11043, 4
      %v11046 = vor.u32 %v11045, %v11041
      %v11047 = vrot.slane %v11046, 4
      %v11049 = vshll.u32 %v10836, 16
      %v11051 = vrot.slane %v11049, 5
      %v11052 = vsel %vm2099, %v11047, %v11051
      %v11054 = vshrl.u32 %v10837, 16
      %v11056 = vrot.slane %v11054, 4
      %v11057 = vshll.u32 %v10837, 16
      %v11059 = vrot.slane %v11057, 5
      %v11060 = vor.u32 %v11056, %v11059
      %v11061 = vrot.slane %v11060, 4
      %v11063 = vshll.u32 %v10838, 16
      %v11065 = vrot.slane %v11063, 5
      %v11066 = vsel %vm2099, %v11061, %v11065
      %v11067 = vshrl.u32 %v10838, 16
      %v11069 = vrot.slane %v11067, 4
      %v11070 = vor.u32 %v11069, %v11065
      %v11071 = vrot.slane %v11070, 4
      %v11073 = vshll.u32 %v10839, 16
      %v11075 = vrot.slane %v11073, 5
      %v11076 = vsel %vm2099, %v11071, %v11075
      %v11078 = vshrl.u32 %v10840, 16
      %v11080 = vrot.slane %v11078, 4
      %v11081 = vshll.u32 %v10840, 16
      %v11083 = vrot.slane %v11081, 5
      %v11084 = vor.u32 %v11080, %v11083
      %v11085 = vrot.slane %v11084, 4
      %v11087 = vshll.u32 %v10841, 16
      %v11089 = vrot.slane %v11087, 5
      %v11090 = vsel %vm2099, %v11085, %v11089
      %v11091 = vshrl.u32 %v10841, 16
      %v11093 = vrot.slane %v11091, 4
      %v11094 = vor.u32 %v11093, %v11089
      %v11095 = vrot.slane %v11094, 4
      %v11097 = vshll.u32 %v10842, 16
      %v11099 = vrot.slane %v11097, 5
      %v11100 = vsel %vm2099, %v11095, %v11099
      %v11102 = vshrl.u32 %v10843, 16
      %v11104 = vrot.slane %v11102, 4
      %v11105 = vshll.u32 %v10843, 16
      %v11107 = vrot.slane %v11105, 5
      %v11108 = vor.u32 %v11104, %v11107
      %v11109 = vrot.slane %v11108, 4
      %v11111 = vshll.u32 %v10844, 16
      %v11113 = vrot.slane %v11111, 5
      %v11114 = vsel %vm2099, %v11109, %v11113
      %v11115 = vshrl.u32 %v10844, 16
      %v11117 = vrot.slane %v11115, 4
      %v11118 = vor.u32 %v11117, %v11113
      %v11119 = vrot.slane %v11118, 4
      %v11121 = vshll.u32 %v10845, 16
      %v11123 = vrot.slane %v11121, 5
      %v11124 = vsel %vm2099, %v11119, %v11123
      %v11126 = vshrl.u32 %v10846, 16
      %v11128 = vrot.slane %v11126, 4
      %v11129 = vshll.u32 %v10846, 16
      %v11131 = vrot.slane %v11129, 5
      %v11132 = vor.u32 %v11128, %v11131
      %v11133 = vrot.slane %v11132, 4
      %v11135 = vshll.u32 %v10847, 16
      %v11137 = vrot.slane %v11135, 5
      %v11138 = vsel %vm2099, %v11133, %v11137
      %v11139 = vshrl.u32 %v10847, 16
      %v11141 = vrot.slane %v11139, 4
      %v11142 = vor.u32 %v11141, %v11137
      %v11143 = vrot.slane %v11142, 4
      %v11145 = vshll.u32 %v10848, 16
      %v11147 = vrot.slane %v11145, 5
      %v11148 = vsel %vm2099, %v11143, %v11147
      %v11150 = vshrl.u32 %v10849, 16
      %v11152 = vrot.slane %v11150, 4
      %v11153 = vshll.u32 %v10849, 16
      %v11155 = vrot.slane %v11153, 5
      %v11156 = vor.u32 %v11152, %v11155
      %v11157 = vrot.slane %v11156, 4
      %v11159 = vshll.u32 %v10850, 16
      %v11161 = vrot.slane %v11159, 5
      %v11162 = vsel %vm2099, %v11157, %v11161
      %v11163 = vshrl.u32 %v10850, 16
      %v11165 = vrot.slane %v11163, 4
      %v11166 = vor.u32 %v11165, %v11161
      %v11167 = vrot.slane %v11166, 4
      %v11169 = vshll.u32 %v10851, 16
      %v11171 = vrot.slane %v11169, 5
      %v11172 = vsel %vm2099, %v11167, %v11171
      %v11174 = vshrl.u32 %v10852, 16
      %v11176 = vrot.slane %v11174, 4
      %v11177 = vshll.u32 %v10852, 16
      %v11179 = vrot.slane %v11177, 5
      %v11180 = vor.u32 %v11176, %v11179
      %v11181 = vrot.slane %v11180, 4
      %v11183 = vshll.u32 %v10853, 16
      %v11185 = vrot.slane %v11183, 5
      %v11186 = vsel %vm2099, %v11181, %v11185
      %v11187 = vshrl.u32 %v10853, 16
      %v11189 = vrot.slane %v11187, 4
      %v11190 = vor.u32 %v11189, %v11185
      %v11191 = vrot.slane %v11190, 4
      %v11193 = vshll.u32 %v10854, 16
      %v11195 = vrot.slane %v11193, 5
      %v11196 = vsel %vm2099, %v11191, %v11195
      %v11198 = vshrl.u32 %v10855, 16
      %v11200 = vrot.slane %v11198, 4
      %v11201 = vshll.u32 %v10855, 16
      %v11203 = vrot.slane %v11201, 5
      %v11204 = vor.u32 %v11200, %v11203
      %v11205 = vrot.slane %v11204, 4
      %v11207 = vshll.u32 %v10856, 16
      %v11209 = vrot.slane %v11207, 5
      %v11210 = vsel %vm2099, %v11205, %v11209
      %v11211 = vshrl.u32 %v10856, 16
      %v11213 = vrot.slane %v11211, 4
      %v11214 = vor.u32 %v11213, %v11209
      %v11215 = vrot.slane %v11214, 4
      %v11217 = vshll.u32 %v10857, 16
      %v11219 = vrot.slane %v11217, 5
      %v11220 = vsel %vm2099, %v11215, %v11219
      %v11222 = vshrl.u32 %v10858, 16
      %v11224 = vrot.slane %v11222, 4
      %v11225 = vshll.u32 %v10858, 16
      %v11227 = vrot.slane %v11225, 5
      %v11228 = vor.u32 %v11224, %v11227
      %v11229 = vrot.slane %v11228, 4
      %v11231 = vshll.u32 %v10859, 16
      %v11233 = vrot.slane %v11231, 5
      %v11234 = vsel %vm2099, %v11229, %v11233
      %v11235 = vshrl.u32 %v10859, 16
      %v11237 = vrot.slane %v11235, 4
      %v11238 = vor.u32 %v11237, %v11233
      %v11239 = vrot.slane %v11238, 4
      %v11241 = vshll.u32 %v10860, 16
      %v11243 = vrot.slane %v11241, 5
      %v11244 = vsel %vm2099, %v11239, %v11243
      %v11245 = vld [vmem:[%s8 + $0x38] sm:$0xf]
      %v11246 = vld [vmem:[%s8 + $0x3c] sm:$0xf]
      %v11247 = vunpack.c.l.b16 %v10874
      %v11248 = vunpack.c.l.b16 %v10884
      %v11249 = vunpack.c.l.b16 %v10898
      %v11250 = vunpack.c.l.b16 %v10908
      %v11251 = vunpack.c.l.b16 %v10922
      %v11252 = vunpack.c.l.b16 %v10932
      %v11253 = vunpack.c.l.b16 %v10946
      %v11254 = vunpack.c.l.b16 %v10956
      %v11255 = vunpack.c.l.b16 %v10970
      %v11256 = vunpack.c.l.b16 %v10980
      %v11257 = vunpack.c.l.b16 %v10994
      %v11258 = vunpack.c.l.b16 %v11004
      %v11259 = vunpack.c.l.b16 %v11018
      %v11260 = vunpack.c.l.b16 %v11028
      %v11261 = vunpack.c.l.b16 %v11042
      %v11262 = vunpack.c.l.b16 %v11052
      %v11263 = vunpack.c.l.b16 %v11066
      %v11264 = vunpack.c.l.b16 %v11076
      %v11265 = vunpack.c.l.b16 %v11090
      %v11266 = vunpack.c.l.b16 %v11100
      %v11267 = vunpack.c.l.b16 %v11114
      %v11268 = vunpack.c.l.b16 %v11124
      %v11269 = vunpack.c.l.b16 %v11138
      %v11270 = vunpack.c.l.b16 %v11148
      %v11271 = vunpack.c.l.b16 %v11162
      %v11272 = vunpack.c.l.b16 %v11172
      %v11273 = vunpack.c.l.b16 %v11186
      %v11274 = vunpack.c.l.b16 %v11196
      %v11275 = vunpack.c.l.b16 %v11210
      %v11276 = vunpack.c.l.b16 %v11220
      %v11277 = vunpack.c.l.b16 %v11234
      %v11278 = vunpack.c.l.b16 %v11244
      %v11279 = vpack.c.b16 %v11248, %v11247
      %v11280 = vpack.c.b16 %v11250, %v11249
      %v11281 = vpack.c.b16 %v11252, %v11251
      %v11282 = vpack.c.b16 %v11254, %v11253
      %v11283 = vpack.c.b16 %v11256, %v11255
      %v11284 = vpack.c.b16 %v11258, %v11257
      %v11285 = vpack.c.b16 %v11260, %v11259
      %v11286 = vpack.c.b16 %v11262, %v11261
      %v11287 = vpack.c.b16 %v11264, %v11263
      %v11288 = vpack.c.b16 %v11266, %v11265
      %v11289 = vpack.c.b16 %v11268, %v11267
      %v11290 = vpack.c.b16 %v11270, %v11269
      %v11291 = vpack.c.b16 %v11272, %v11271
      %v11292 = vpack.c.b16 %v11274, %v11273
      %v11293 = vpack.c.b16 %v11276, %v11275
      %v11294 = vpack.c.b16 %v11278, %v11277
      %v11297 = vunpack.c.l.b16 %v11245
      %v11298 = vunpack.c.l.b16 %v11246
      %v11299 = vpack.c.b16 %v11298, %v11297
      %v11302 = vsel %vm435, %v11279, 0
      %v11305 = vsel %vm435, %v11280, 0
      %v11308 = vsel %vm435, %v11281, 0
      %v11311 = vsel %vm435, %v11282, 0
      %v11314 = vsel %vm435, %v11283, 0
      %v11317 = vsel %vm435, %v11284, 0
      %v11320 = vsel %vm435, %v11285, 0
      %v11323 = vsel %vm435, %v11286, 0
      %v11326 = vsel %vm435, %v11287, 0
      %v11329 = vsel %vm435, %v11288, 0
      %v11332 = vsel %vm435, %v11289, 0
      %v11335 = vsel %vm435, %v11290, 0
      %v11338 = vsel %vm435, %v11291, 0
      %v11341 = vsel %vm435, %v11292, 0
      %v11344 = vsel %vm435, %v11293, 0
      %v11347 = vsel %vm435, %v11294, 0
      %11349 = vmatprep.subr.bf16.mxu0 0
      %11350 = vmatpush1.bf16.msra.mxu0 %v11299
      %11351 = vmatprep.subr.bf16.mxu0 0
      %11352 = vmatpush1.bf16.msra.mxu0 0
      %11353 = vmatprep.subr.bf16.mxu0 0
      %11354 = vmatpush1.bf16.msra.mxu0 0
      %11355 = vmatprep.subr.bf16.mxu0 0
      %11356 = vmatpush1.bf16.msra.mxu0 0
      %11357 = vmatprep.subr.bf16.mxu0 0
      %11358 = vmatpush1.bf16.msra.mxu0 0
      %11359 = vmatprep.subr.bf16.mxu0 0
      %11360 = vmatpush1.bf16.msra.mxu0 0
      %11361 = vmatprep.subr.bf16.mxu0 0
      %11362 = vmatpush1.bf16.msra.mxu0 0
      %11363 = vmatprep.subr.bf16.mxu0 0
      %11364 = vmatpush1.bf16.msra.mxu0 0
      %11365 = vmatprep.subr.bf16.mxu0 0
      %11366 = vmatpush1.bf16.msra.mxu0 0
      %11367 = vmatprep.subr.bf16.mxu0 0
      %11368 = vmatpush1.bf16.msra.mxu0 0
      %11369 = vmatprep.subr.bf16.mxu0 0
      %11370 = vmatpush1.bf16.msra.mxu0 0
      %11371 = vmatprep.subr.bf16.mxu0 0
      %11372 = vmatpush1.bf16.msra.mxu0 0
      %11373 = vmatprep.subr.bf16.mxu0 0
      %11374 = vmatpush1.bf16.msra.mxu0 0
      %11375 = vmatprep.subr.bf16.mxu0 0
      %11376 = vmatpush1.bf16.msra.mxu0 0
      %11377 = vmatprep.subr.bf16.mxu0 0
      %11378 = vmatpush1.bf16.msra.mxu0 0
      %11379 = vmatprep.subr.bf16.mxu0 0
      %11380 = vmatpush1.bf16.msra.mxu0 0
      %11381 = vmatprep.mubr.bf16.mxu0 0
      %11382 = vmatmul.mubr.bf16.gmra.mrb[0].mxu0 %v11302
      %v11383 = vpop.f32.mrb[0].mxu0
      %v11384 = vadd.f32 0.0, %v11383
      %v11385 = vpop.f32.mrb[0].mxu0
      %v11386 = vpop.f32.mrb[0].mxu0
      %v11387 = vadd.f32 0.0, %v11386
      %v11388 = vpop.f32.mrb[0].mxu0
      %11389 = vmatprep.mubr.bf16.mxu0 0
      %11390 = vmatmul.mubr.bf16.gmra.mrb[0].mxu0 %v11305
      %v11391 = vpop.f32.mrb[0].mxu0
      %v11392 = vadd.f32 0.0, %v11391
      %v11393 = vpop.f32.mrb[0].mxu0
      %v11394 = vpop.f32.mrb[0].mxu0
      %v11395 = vadd.f32 0.0, %v11394
      %v11396 = vpop.f32.mrb[0].mxu0
      %11397 = vmatprep.mubr.bf16.mxu0 0
      %11398 = vmatmul.mubr.bf16.gmra.mrb[0].mxu0 %v11308
      %v11399 = vpop.f32.mrb[0].mxu0
      %v11400 = vadd.f32 0.0, %v11399
      %v11401 = vpop.f32.mrb[0].mxu0
      %v11402 = vpop.f32.mrb[0].mxu0
      %v11403 = vadd.f32 0.0, %v11402
      %v11404 = vpop.f32.mrb[0].mxu0
      %11405 = vmatprep.mubr.bf16.mxu0 0
      %11406 = vmatmul.mubr.bf16.gmra.mrb[0].mxu0 %v11311
      %v11407 = vpop.f32.mrb[0].mxu0
      %v11408 = vadd.f32 0.0, %v11407
      %v11409 = vpop.f32.mrb[0].mxu0
      %v11410 = vpop.f32.mrb[0].mxu0
      %v11411 = vadd.f32 0.0, %v11410
      %v11412 = vpop.f32.mrb[0].mxu0
      %11413 = vmatprep.mubr.bf16.mxu0 0
      %11414 = vmatmul.mubr.bf16.gmra.mrb[0].mxu0 %v11314
      %v11415 = vpop.f32.mrb[0].mxu0
      %v11416 = vadd.f32 0.0, %v11415
      %v11417 = vpop.f32.mrb[0].mxu0
      %v11418 = vpop.f32.mrb[0].mxu0
      %v11419 = vadd.f32 0.0, %v11418
      %v11420 = vpop.f32.mrb[0].mxu0
      %11421 = vmatprep.mubr.bf16.mxu0 0
      %11422 = vmatmul.mubr.bf16.gmra.mrb[0].mxu0 %v11317
      %v11423 = vpop.f32.mrb[0].mxu0
      %v11424 = vadd.f32 0.0, %v11423
      %v11425 = vpop.f32.mrb[0].mxu0
      %v11426 = vpop.f32.mrb[0].mxu0
      %v11427 = vadd.f32 0.0, %v11426
      %v11428 = vpop.f32.mrb[0].mxu0
      %11429 = vmatprep.mubr.bf16.mxu0 0
      %11430 = vmatmul.mubr.bf16.gmra.mrb[0].mxu0 %v11320
      %v11431 = vpop.f32.mrb[0].mxu0
      %v11432 = vadd.f32 0.0, %v11431
      %v11433 = vpop.f32.mrb[0].mxu0
      %v11434 = vpop.f32.mrb[0].mxu0
      %v11435 = vadd.f32 0.0, %v11434
      %v11436 = vpop.f32.mrb[0].mxu0
      %11437 = vmatprep.mubr.bf16.mxu0 0
      %11438 = vmatmul.mubr.bf16.gmra.mrb[0].mxu0 %v11323
      %v11439 = vpop.f32.mrb[0].mxu0
      %v11440 = vadd.f32 0.0, %v11439
      %v11441 = vpop.f32.mrb[0].mxu0
      %v11442 = vpop.f32.mrb[0].mxu0
      %v11443 = vadd.f32 0.0, %v11442
      %v11444 = vpop.f32.mrb[0].mxu0
      %11445 = vmatprep.mubr.bf16.mxu0 0
      %11446 = vmatmul.mubr.bf16.gmra.mrb[0].mxu0 %v11326
      %v11447 = vpop.f32.mrb[0].mxu0
      %v11448 = vadd.f32 0.0, %v11447
      %v11449 = vpop.f32.mrb[0].mxu0
      %v11450 = vpop.f32.mrb[0].mxu0
      %v11451 = vadd.f32 0.0, %v11450
      %v11452 = vpop.f32.mrb[0].mxu0
      %11453 = vmatprep.mubr.bf16.mxu0 0
      %11454 = vmatmul.mubr.bf16.gmra.mrb[0].mxu0 %v11329
      %v11455 = vpop.f32.mrb[0].mxu0
      %v11456 = vadd.f32 0.0, %v11455
      %v11457 = vpop.f32.mrb[0].mxu0
      %v11458 = vpop.f32.mrb[0].mxu0
      %v11459 = vadd.f32 0.0, %v11458
      %v11460 = vpop.f32.mrb[0].mxu0
      %11461 = vmatprep.mubr.bf16.mxu0 0
      %11462 = vmatmul.mubr.bf16.gmra.mrb[0].mxu0 %v11332
      %v11463 = vpop.f32.mrb[0].mxu0
      %v11464 = vadd.f32 0.0, %v11463
      %v11465 = vpop.f32.mrb[0].mxu0
      %v11466 = vpop.f32.mrb[0].mxu0
      %v11467 = vadd.f32 0.0, %v11466
      %v11468 = vpop.f32.mrb[0].mxu0
      %11469 = vmatprep.mubr.bf16.mxu0 0
      %11470 = vmatmul.mubr.bf16.gmra.mrb[0].mxu0 %v11335
      %v11471 = vpop.f32.mrb[0].mxu0
      %v11472 = vadd.f32 0.0, %v11471
      %v11473 = vpop.f32.mrb[0].mxu0
      %v11474 = vpop.f32.mrb[0].mxu0
      %v11475 = vadd.f32 0.0, %v11474
      %v11476 = vpop.f32.mrb[0].mxu0
      %11477 = vmatprep.mubr.bf16.mxu0 0
      %11478 = vmatmul.mubr.bf16.gmra.mrb[0].mxu0 %v11338
      %v11479 = vpop.f32.mrb[0].mxu0
      %v11480 = vadd.f32 0.0, %v11479
      %v11481 = vpop.f32.mrb[0].mxu0
      %v11482 = vpop.f32.mrb[0].mxu0
      %v11483 = vadd.f32 0.0, %v11482
      %v11484 = vpop.f32.mrb[0].mxu0
      %11485 = vmatprep.mubr.bf16.mxu0 0
      %11486 = vmatmul.mubr.bf16.gmra.mrb[0].mxu0 %v11341
      %v11487 = vpop.f32.mrb[0].mxu0
      %v11488 = vadd.f32 0.0, %v11487
      %v11489 = vpop.f32.mrb[0].mxu0
      %v11490 = vpop.f32.mrb[0].mxu0
      %v11491 = vadd.f32 0.0, %v11490
      %v11492 = vpop.f32.mrb[0].mxu0
      %11493 = vmatprep.mubr.bf16.mxu0 0
      %11494 = vmatmul.mubr.bf16.gmra.mrb[0].mxu0 %v11344
      %v11495 = vpop.f32.mrb[0].mxu0
      %v11496 = vadd.f32 0.0, %v11495
      %v11497 = vpop.f32.mrb[0].mxu0
      %v11498 = vpop.f32.mrb[0].mxu0
      %v11499 = vadd.f32 0.0, %v11498
      %v11500 = vpop.f32.mrb[0].mxu0
      %11501 = vmatprep.mubr.bf16.mxu0 0
      %11502 = vmatmul.mubr.bf16.gmra.mrb[0].mxu0 %v11347
      %v11503 = vpop.f32.mrb[0].mxu0
      %v11504 = vadd.f32 0.0, %v11503
      %v11505 = vpop.f32.mrb[0].mxu0
      %v11506 = vpop.f32.mrb[0].mxu0
      %v11507 = vadd.f32 0.0, %v11506
      %v11508 = vpop.f32.mrb[0].mxu0
      %11509 = vdwg.mxu0
      %v11510 = vadd.f32 %v10781, %v11384
      %v11511 = vadd.f32 %v10782, %v11387
      %v11512 = vadd.f32 %v10783, %v11392
      %v11513 = vadd.f32 %v10784, %v11395
      %v11514 = vadd.f32 %v10785, %v11400
      %v11515 = vadd.f32 %v10786, %v11403
      %v11516 = vadd.f32 %v10787, %v11408
      %v11517 = vadd.f32 %v10788, %v11411
      %v11518 = vadd.f32 %v10789, %v11416
      %v11519 = vadd.f32 %v10790, %v11419
      %v11520 = vadd.f32 %v10791, %v11424
      %v11521 = vadd.f32 %v10792, %v11427
      %v11522 = vadd.f32 %v10793, %v11432
      %v11523 = vadd.f32 %v10794, %v11435
      %v11524 = vadd.f32 %v10795, %v11440
      %v11525 = vadd.f32 %v10796, %v11443
      %v11526 = vadd.f32 %v10797, %v11448
      %v11527 = vadd.f32 %v10798, %v11451
      %v11528 = vadd.f32 %v10799, %v11456
      %v11529 = vadd.f32 %v10800, %v11459
      %v11530 = vadd.f32 %v10801, %v11464
      %v11531 = vadd.f32 %v10802, %v11467
      %v11532 = vadd.f32 %v10803, %v11472
      %v11533 = vadd.f32 %v10804, %v11475
      %v11534 = vadd.f32 %v10805, %v11480
      %v11535 = vadd.f32 %v10806, %v11483
      %v11536 = vadd.f32 %v10807, %v11488
      %v11537 = vadd.f32 %v10808, %v11491
      %v11538 = vadd.f32 %v10809, %v11496
      %v11539 = vadd.f32 %v10810, %v11499
      %v11540 = vadd.f32 %v10811, %v11504
      %v11541 = vadd.f32 %v10812, %v11507
      %v11542 = vld [vmem:[%s10451] sm:$0xe]
      %v11543 = vld [vmem:[%s10451 + $0xc] sm:$0xe]
      %v11544 = vld [vmem:[%s10451 + $0x18] sm:$0xe]
      %v11545 = vld [vmem:[%s10451 + $0x24] sm:$0xe]
      %v11546 = vld [vmem:[%s10451 + $0x30] sm:$0xe]
      %v11547 = vld [vmem:[%s10451 + $0x3c] sm:$0xe]
      %v11548 = vld [vmem:[%s10451 + $0x48] sm:$0xe]
      %v11549 = vld [vmem:[%s10451 + $0x54] sm:$0xe]
      %v11550 = vld [vmem:[%s10451 + $0x60] sm:$0xe]
      %v11551 = vld [vmem:[%s10451 + $0x6c] sm:$0xe]
      %v11552 = vld [vmem:[%s10451 + $0x78] sm:$0xe]
      %v11553 = vld [vmem:[%s10451 + $0x84] sm:$0xe]
      %v11554 = vld [vmem:[%s10451 + $0x90] sm:$0xe]
      %v11555 = vld [vmem:[%s10451 + $0x9c] sm:$0xe]
      %v11556 = vld [vmem:[%s10451 + $0xa8] sm:$0xe]
      %v11557 = vld [vmem:[%s10451 + $0xb4] sm:$0xe]
      %v11606 = vrot.slane %v11542, 5
      %v11607 = vrot.slane %v11606, 4
      %v11608 = vrot.slane %v10814, 5
      %v11609 = vsel %vm3094, %v11607, %v11608
      %v11610 = vrot.slane %v11608, 4
      %v11611 = vrot.slane %v10815, 5
      %v11612 = vsel %vm3094, %v11610, %v11611
      %v11613 = vrot.slane %v11543, 5
      %v11614 = vrot.slane %v11613, 4
      %v11615 = vrot.slane %v10817, 5
      %v11616 = vsel %vm3094, %v11614, %v11615
      %v11617 = vrot.slane %v11615, 4
      %v11618 = vrot.slane %v10818, 5
      %v11619 = vsel %vm3094, %v11617, %v11618
      %v11620 = vrot.slane %v11544, 5
      %v11621 = vrot.slane %v11620, 4
      %v11622 = vrot.slane %v10820, 5
      %v11623 = vsel %vm3094, %v11621, %v11622
      %v11624 = vrot.slane %v11622, 4
      %v11625 = vrot.slane %v10821, 5
      %v11626 = vsel %vm3094, %v11624, %v11625
      %v11627 = vrot.slane %v11545, 5
      %v11628 = vrot.slane %v11627, 4
      %v11629 = vrot.slane %v10823, 5
      %v11630 = vsel %vm3094, %v11628, %v11629
      %v11631 = vrot.slane %v11629, 4
      %v11632 = vrot.slane %v10824, 5
      %v11633 = vsel %vm3094, %v11631, %v11632
      %v11634 = vrot.slane %v11546, 5
      %v11635 = vrot.slane %v11634, 4
      %v11636 = vrot.slane %v10826, 5
      %v11637 = vsel %vm3094, %v11635, %v11636
      %v11638 = vrot.slane %v11636, 4
      %v11639 = vrot.slane %v10827, 5
      %v11640 = vsel %vm3094, %v11638, %v11639
      %v11641 = vrot.slane %v11547, 5
      %v11642 = vrot.slane %v11641, 4
      %v11643 = vrot.slane %v10829, 5
      %v11644 = vsel %vm3094, %v11642, %v11643
      %v11645 = vrot.slane %v11643, 4
      %v11646 = vrot.slane %v10830, 5
      %v11647 = vsel %vm3094, %v11645, %v11646
      %v11648 = vrot.slane %v11548, 5
      %v11649 = vrot.slane %v11648, 4
      %v11650 = vrot.slane %v10832, 5
      %v11651 = vsel %vm3094, %v11649, %v11650
      %v11652 = vrot.slane %v11650, 4
      %v11653 = vrot.slane %v10833, 5
      %v11654 = vsel %vm3094, %v11652, %v11653
      %v11655 = vrot.slane %v11549, 5
      %v11656 = vrot.slane %v11655, 4
      %v11657 = vrot.slane %v10835, 5
      %v11658 = vsel %vm3094, %v11656, %v11657
      %v11659 = vrot.slane %v11657, 4
      %v11660 = vrot.slane %v10836, 5
      %v11661 = vsel %vm3094, %v11659, %v11660
      %v11662 = vrot.slane %v11550, 5
      %v11663 = vrot.slane %v11662, 4
      %v11664 = vrot.slane %v10838, 5
      %v11665 = vsel %vm3094, %v11663, %v11664
      %v11666 = vrot.slane %v11664, 4
      %v11667 = vrot.slane %v10839, 5
      %v11668 = vsel %vm3094, %v11666, %v11667
      %v11669 = vrot.slane %v11551, 5
      %v11670 = vrot.slane %v11669, 4
      %v11671 = vrot.slane %v10841, 5
      %v11672 = vsel %vm3094, %v11670, %v11671
      %v11673 = vrot.slane %v11671, 4
      %v11674 = vrot.slane %v10842, 5
      %v11675 = vsel %vm3094, %v11673, %v11674
      %v11676 = vrot.slane %v11552, 5
      %v11677 = vrot.slane %v11676, 4
      %v11678 = vrot.slane %v10844, 5
      %v11679 = vsel %vm3094, %v11677, %v11678
      %v11680 = vrot.slane %v11678, 4
      %v11681 = vrot.slane %v10845, 5
      %v11682 = vsel %vm3094, %v11680, %v11681
      %v11683 = vrot.slane %v11553, 5
      %v11684 = vrot.slane %v11683, 4
      %v11685 = vrot.slane %v10847, 5
      %v11686 = vsel %vm3094, %v11684, %v11685
      %v11687 = vrot.slane %v11685, 4
      %v11688 = vrot.slane %v10848, 5
      %v11689 = vsel %vm3094, %v11687, %v11688
      %v11690 = vrot.slane %v11554, 5
      %v11691 = vrot.slane %v11690, 4
      %v11692 = vrot.slane %v10850, 5
      %v11693 = vsel %vm3094, %v11691, %v11692
      %v11694 = vrot.slane %v11692, 4
      %v11695 = vrot.slane %v10851, 5
      %v11696 = vsel %vm3094, %v11694, %v11695
      %v11697 = vrot.slane %v11555, 5
      %v11698 = vrot.slane %v11697, 4
      %v11699 = vrot.slane %v10853, 5
      %v11700 = vsel %vm3094, %v11698, %v11699
      %v11701 = vrot.slane %v11699, 4
      %v11702 = vrot.slane %v10854, 5
      %v11703 = vsel %vm3094, %v11701, %v11702
      %v11704 = vrot.slane %v11556, 5
      %v11705 = vrot.slane %v11704, 4
      %v11706 = vrot.slane %v10856, 5
      %v11707 = vsel %vm3094, %v11705, %v11706
      %v11708 = vrot.slane %v11706, 4
      %v11709 = vrot.slane %v10857, 5
      %v11710 = vsel %vm3094, %v11708, %v11709
      %v11711 = vrot.slane %v11557, 5
      %v11712 = vrot.slane %v11711, 4
      %v11713 = vrot.slane %v10859, 5
      %v11714 = vsel %vm3094, %v11712, %v11713
      %v11715 = vrot.slane %v11713, 4
      %v11716 = vrot.slane %v10860, 5
      %v11717 = vsel %vm3094, %v11715, %v11716
      %v11718 = vld [vmem:[%s8 + $0x40] sm:$0xf]
      %v11719 = vld [vmem:[%s8 + $0x44] sm:$0xf]
      %v11720 = vunpack.c.l.b16 %v11609
      %v11721 = vunpack.c.l.b16 %v11612
      %v11722 = vunpack.c.l.b16 %v11616
      %v11723 = vunpack.c.l.b16 %v11619
      %v11724 = vunpack.c.l.b16 %v11623
      %v11725 = vunpack.c.l.b16 %v11626
      %v11726 = vunpack.c.l.b16 %v11630
      %v11727 = vunpack.c.l.b16 %v11633
      %v11728 = vunpack.c.l.b16 %v11637
      %v11729 = vunpack.c.l.b16 %v11640
      %v11730 = vunpack.c.l.b16 %v11644
      %v11731 = vunpack.c.l.b16 %v11647
      %v11732 = vunpack.c.l.b16 %v11651
      %v11733 = vunpack.c.l.b16 %v11654
      %v11734 = vunpack.c.l.b16 %v11658
      %v11735 = vunpack.c.l.b16 %v11661
      %v11736 = vunpack.c.l.b16 %v11665
      %v11737 = vunpack.c.l.b16 %v11668
      %v11738 = vunpack.c.l.b16 %v11672
      %v11739 = vunpack.c.l.b16 %v11675
      %v11740 = vunpack.c.l.b16 %v11679
      %v11741 = vunpack.c.l.b16 %v11682
      %v11742 = vunpack.c.l.b16 %v11686
      %v11743 = vunpack.c.l.b16 %v11689
      %v11744 = vunpack.c.l.b16 %v11693
      %v11745 = vunpack.c.l.b16 %v11696
      %v11746 = vunpack.c.l.b16 %v11700
      %v11747 = vunpack.c.l.b16 %v11703
      %v11748 = vunpack.c.l.b16 %v11707
      %v11749 = vunpack.c.l.b16 %v11710
      %v11750 = vunpack.c.l.b16 %v11714
      %v11751 = vunpack.c.l.b16 %v11717
      %v11752 = vpack.c.b16 %v11721, %v11720
      %v11753 = vpack.c.b16 %v11723, %v11722
      %v11754 = vpack.c.b16 %v11725, %v11724
      %v11755 = vpack.c.b16 %v11727, %v11726
      %v11756 = vpack.c.b16 %v11729, %v11728
      %v11757 = vpack.c.b16 %v11731, %v11730
      %v11758 = vpack.c.b16 %v11733, %v11732
      %v11759 = vpack.c.b16 %v11735, %v11734
      %v11760 = vpack.c.b16 %v11737, %v11736
      %v11761 = vpack.c.b16 %v11739, %v11738
      %v11762 = vpack.c.b16 %v11741, %v11740
      %v11763 = vpack.c.b16 %v11743, %v11742
      %v11764 = vpack.c.b16 %v11745, %v11744
      %v11765 = vpack.c.b16 %v11747, %v11746
      %v11766 = vpack.c.b16 %v11749, %v11748
      %v11767 = vpack.c.b16 %v11751, %v11750
      %v11770 = vunpack.c.l.b16 %v11718
      %v11771 = vunpack.c.l.b16 %v11719
      %v11772 = vpack.c.b16 %v11771, %v11770
      %v11775 = vsel %vm435, %v11752, 0
      %v11778 = vsel %vm435, %v11753, 0
      %v11781 = vsel %vm435, %v11754, 0
      %v11784 = vsel %vm435, %v11755, 0
      %v11787 = vsel %vm435, %v11756, 0
      %v11790 = vsel %vm435, %v11757, 0
      %v11793 = vsel %vm435, %v11758, 0
      %v11796 = vsel %vm435, %v11759, 0
      %v11799 = vsel %vm435, %v11760, 0
      %v11802 = vsel %vm435, %v11761, 0
      %v11805 = vsel %vm435, %v11762, 0
      %v11808 = vsel %vm435, %v11763, 0
      %v11811 = vsel %vm435, %v11764, 0
      %v11814 = vsel %vm435, %v11765, 0
      %v11817 = vsel %vm435, %v11766, 0
      %v11820 = vsel %vm435, %v11767, 0
      %11822 = vmatprep.subr.bf16.mxu0 0
      %11823 = vmatpush1.bf16.msra.mxu0 %v11772
      %11824 = vmatprep.subr.bf16.mxu0 0
      %11825 = vmatpush1.bf16.msra.mxu0 0
      %11826 = vmatprep.subr.bf16.mxu0 0
      %11827 = vmatpush1.bf16.msra.mxu0 0
      %11828 = vmatprep.subr.bf16.mxu0 0
      %11829 = vmatpush1.bf16.msra.mxu0 0
      %11830 = vmatprep.subr.bf16.mxu0 0
      %11831 = vmatpush1.bf16.msra.mxu0 0
      %11832 = vmatprep.subr.bf16.mxu0 0
      %11833 = vmatpush1.bf16.msra.mxu0 0
      %11834 = vmatprep.subr.bf16.mxu0 0
      %11835 = vmatpush1.bf16.msra.mxu0 0
      %11836 = vmatprep.subr.bf16.mxu0 0
      %11837 = vmatpush1.bf16.msra.mxu0 0
      %11838 = vmatprep.subr.bf16.mxu0 0
      %11839 = vmatpush1.bf16.msra.mxu0 0
      %11840 = vmatprep.subr.bf16.mxu0 0
      %11841 = vmatpush1.bf16.msra.mxu0 0
      %11842 = vmatprep.subr.bf16.mxu0 0
      %11843 = vmatpush1.bf16.msra.mxu0 0
      %11844 = vmatprep.subr.bf16.mxu0 0
      %11845 = vmatpush1.bf16.msra.mxu0 0
      %11846 = vmatprep.subr.bf16.mxu0 0
      %11847 = vmatpush1.bf16.msra.mxu0 0
      %11848 = vmatprep.subr.bf16.mxu0 0
      %11849 = vmatpush1.bf16.msra.mxu0 0
      %11850 = vmatprep.subr.bf16.mxu0 0
      %11851 = vmatpush1.bf16.msra.mxu0 0
      %11852 = vmatprep.subr.bf16.mxu0 0
      %11853 = vmatpush1.bf16.msra.mxu0 0
      %11854 = vmatprep.mubr.bf16.mxu0 0
      %11855 = vmatmul.mubr.bf16.gmra.mrb[0].mxu0 %v11775
      %v11856 = vpop.f32.mrb[0].mxu0
      %v11857 = vadd.f32 0.0, %v11856
      %v11858 = vpop.f32.mrb[0].mxu0
      %v11859 = vpop.f32.mrb[0].mxu0
      %v11860 = vadd.f32 0.0, %v11859
      %v11861 = vpop.f32.mrb[0].mxu0
      %11862 = vmatprep.mubr.bf16.mxu0 0
      %11863 = vmatmul.mubr.bf16.gmra.mrb[0].mxu0 %v11778
      %v11864 = vpop.f32.mrb[0].mxu0
      %v11865 = vadd.f32 0.0, %v11864
      %v11866 = vpop.f32.mrb[0].mxu0
      %v11867 = vpop.f32.mrb[0].mxu0
      %v11868 = vadd.f32 0.0, %v11867
      %v11869 = vpop.f32.mrb[0].mxu0
      %11870 = vmatprep.mubr.bf16.mxu0 0
      %11871 = vmatmul.mubr.bf16.gmra.mrb[0].mxu0 %v11781
      %v11872 = vpop.f32.mrb[0].mxu0
      %v11873 = vadd.f32 0.0, %v11872
      %v11874 = vpop.f32.mrb[0].mxu0
      %v11875 = vpop.f32.mrb[0].mxu0
      %v11876 = vadd.f32 0.0, %v11875
      %v11877 = vpop.f32.mrb[0].mxu0
      %11878 = vmatprep.mubr.bf16.mxu0 0
      %11879 = vmatmul.mubr.bf16.gmra.mrb[0].mxu0 %v11784
      %v11880 = vpop.f32.mrb[0].mxu0
      %v11881 = vadd.f32 0.0, %v11880
      %v11882 = vpop.f32.mrb[0].mxu0
      %v11883 = vpop.f32.mrb[0].mxu0
      %v11884 = vadd.f32 0.0, %v11883
      %v11885 = vpop.f32.mrb[0].mxu0
      %11886 = vmatprep.mubr.bf16.mxu0 0
      %11887 = vmatmul.mubr.bf16.gmra.mrb[0].mxu0 %v11787
      %v11888 = vpop.f32.mrb[0].mxu0
      %v11889 = vadd.f32 0.0, %v11888
      %v11890 = vpop.f32.mrb[0].mxu0
      %v11891 = vpop.f32.mrb[0].mxu0
      %v11892 = vadd.f32 0.0, %v11891
      %v11893 = vpop.f32.mrb[0].mxu0
      %11894 = vmatprep.mubr.bf16.mxu0 0
      %11895 = vmatmul.mubr.bf16.gmra.mrb[0].mxu0 %v11790
      %v11896 = vpop.f32.mrb[0].mxu0
      %v11897 = vadd.f32 0.0, %v11896
      %v11898 = vpop.f32.mrb[0].mxu0
      %v11899 = vpop.f32.mrb[0].mxu0
      %v11900 = vadd.f32 0.0, %v11899
      %v11901 = vpop.f32.mrb[0].mxu0
      %11902 = vmatprep.mubr.bf16.mxu0 0
      %11903 = vmatmul.mubr.bf16.gmra.mrb[0].mxu0 %v11793
      %v11904 = vpop.f32.mrb[0].mxu0
      %v11905 = vadd.f32 0.0, %v11904
      %v11906 = vpop.f32.mrb[0].mxu0
      %v11907 = vpop.f32.mrb[0].mxu0
      %v11908 = vadd.f32 0.0, %v11907
      %v11909 = vpop.f32.mrb[0].mxu0
      %11910 = vmatprep.mubr.bf16.mxu0 0
      %11911 = vmatmul.mubr.bf16.gmra.mrb[0].mxu0 %v11796
      %v11912 = vpop.f32.mrb[0].mxu0
      %v11913 = vadd.f32 0.0, %v11912
      %v11914 = vpop.f32.mrb[0].mxu0
      %v11915 = vpop.f32.mrb[0].mxu0
      %v11916 = vadd.f32 0.0, %v11915
      %v11917 = vpop.f32.mrb[0].mxu0
      %11918 = vmatprep.mubr.bf16.mxu0 0
      %11919 = vmatmul.mubr.bf16.gmra.mrb[0].mxu0 %v11799
      %v11920 = vpop.f32.mrb[0].mxu0
      %v11921 = vadd.f32 0.0, %v11920
      %v11922 = vpop.f32.mrb[0].mxu0
      %v11923 = vpop.f32.mrb[0].mxu0
      %v11924 = vadd.f32 0.0, %v11923
      %v11925 = vpop.f32.mrb[0].mxu0
      %11926 = vmatprep.mubr.bf16.mxu0 0
      %11927 = vmatmul.mubr.bf16.gmra.mrb[0].mxu0 %v11802
      %v11928 = vpop.f32.mrb[0].mxu0
      %v11929 = vadd.f32 0.0, %v11928
      %v11930 = vpop.f32.mrb[0].mxu0
      %v11931 = vpop.f32.mrb[0].mxu0
      %v11932 = vadd.f32 0.0, %v11931
      %v11933 = vpop.f32.mrb[0].mxu0
      %11934 = vmatprep.mubr.bf16.mxu0 0
      %11935 = vmatmul.mubr.bf16.gmra.mrb[0].mxu0 %v11805
      %v11936 = vpop.f32.mrb[0].mxu0
      %v11937 = vadd.f32 0.0, %v11936
      %v11938 = vpop.f32.mrb[0].mxu0
      %v11939 = vpop.f32.mrb[0].mxu0
      %v11940 = vadd.f32 0.0, %v11939
      %v11941 = vpop.f32.mrb[0].mxu0
      %11942 = vmatprep.mubr.bf16.mxu0 0
      %11943 = vmatmul.mubr.bf16.gmra.mrb[0].mxu0 %v11808
      %v11944 = vpop.f32.mrb[0].mxu0
      %v11945 = vadd.f32 0.0, %v11944
      %v11946 = vpop.f32.mrb[0].mxu0
      %v11947 = vpop.f32.mrb[0].mxu0
      %v11948 = vadd.f32 0.0, %v11947
      %v11949 = vpop.f32.mrb[0].mxu0
      %11950 = vmatprep.mubr.bf16.mxu0 0
      %11951 = vmatmul.mubr.bf16.gmra.mrb[0].mxu0 %v11811
      %v11952 = vpop.f32.mrb[0].mxu0
      %v11953 = vadd.f32 0.0, %v11952
      %v11954 = vpop.f32.mrb[0].mxu0
      %v11955 = vpop.f32.mrb[0].mxu0
      %v11956 = vadd.f32 0.0, %v11955
      %v11957 = vpop.f32.mrb[0].mxu0
      %11958 = vmatprep.mubr.bf16.mxu0 0
      %11959 = vmatmul.mubr.bf16.gmra.mrb[0].mxu0 %v11814
      %v11960 = vpop.f32.mrb[0].mxu0
      %v11961 = vadd.f32 0.0, %v11960
      %v11962 = vpop.f32.mrb[0].mxu0
      %v11963 = vpop.f32.mrb[0].mxu0
      %v11964 = vadd.f32 0.0, %v11963
      %v11965 = vpop.f32.mrb[0].mxu0
      %11966 = vmatprep.mubr.bf16.mxu0 0
      %11967 = vmatmul.mubr.bf16.gmra.mrb[0].mxu0 %v11817
      %v11968 = vpop.f32.mrb[0].mxu0
      %v11969 = vadd.f32 0.0, %v11968
      %v11970 = vpop.f32.mrb[0].mxu0
      %v11971 = vpop.f32.mrb[0].mxu0
      %v11972 = vadd.f32 0.0, %v11971
      %v11973 = vpop.f32.mrb[0].mxu0
      %11974 = vmatprep.mubr.bf16.mxu0 0
      %11975 = vmatmul.mubr.bf16.gmra.mrb[0].mxu0 %v11820
      %v11976 = vpop.f32.mrb[0].mxu0
      %v11977 = vadd.f32 0.0, %v11976
      %v11978 = vpop.f32.mrb[0].mxu0
      %v11979 = vpop.f32.mrb[0].mxu0
      %v11980 = vadd.f32 0.0, %v11979
      %v11981 = vpop.f32.mrb[0].mxu0
      %11982 = vdwg.mxu0
      %v11983 = vadd.f32 %v11510, %v11857
      %v11984 = vadd.f32 %v11511, %v11860
      %v11985 = vadd.f32 %v11512, %v11865
      %v11986 = vadd.f32 %v11513, %v11868
      %v11987 = vadd.f32 %v11514, %v11873
      %v11988 = vadd.f32 %v11515, %v11876
      %v11989 = vadd.f32 %v11516, %v11881
      %v11990 = vadd.f32 %v11517, %v11884
      %v11991 = vadd.f32 %v11518, %v11889
      %v11992 = vadd.f32 %v11519, %v11892
      %v11993 = vadd.f32 %v11520, %v11897
      %v11994 = vadd.f32 %v11521, %v11900
      %v11995 = vadd.f32 %v11522, %v11905
      %v11996 = vadd.f32 %v11523, %v11908
      %v11997 = vadd.f32 %v11524, %v11913
      %v11998 = vadd.f32 %v11525, %v11916
      %v11999 = vadd.f32 %v11526, %v11921
      %v12000 = vadd.f32 %v11527, %v11924
      %v12001 = vadd.f32 %v11528, %v11929
      %v12002 = vadd.f32 %v11529, %v11932
      %v12003 = vadd.f32 %v11530, %v11937
      %v12004 = vadd.f32 %v11531, %v11940
      %v12005 = vadd.f32 %v11532, %v11945
      %v12006 = vadd.f32 %v11533, %v11948
      %v12007 = vadd.f32 %v11534, %v11953
      %v12008 = vadd.f32 %v11535, %v11956
      %v12009 = vadd.f32 %v11536, %v11961
      %v12010 = vadd.f32 %v11537, %v11964
      %v12011 = vadd.f32 %v11538, %v11969
      %v12012 = vadd.f32 %v11539, %v11972
      %v12013 = vadd.f32 %v11540, %v11977
      %v12014 = vadd.f32 %v11541, %v11980
      %v12015 = vld [vmem:[%s9] sm:$0x1]
      %v12017 = vlaneseq
      %v12018 = vshrl.u32 %v12017, 7
      %v12019 = vsub.s32 0, %v12018
      %v12020 = vrot.slane %v12015, %v12019
      %v12022 = vmul.f32 %v11983, %v12020
      %v12023 = vmul.f32 %v11984, %v12020
      %v12024 = vmul.f32 %v11985, %v12020
      %v12025 = vmul.f32 %v11986, %v12020
      %v12026 = vmul.f32 %v11987, %v12020
      %v12027 = vmul.f32 %v11988, %v12020
      %v12028 = vmul.f32 %v11989, %v12020
      %v12029 = vmul.f32 %v11990, %v12020
      %v12030 = vmul.f32 %v11991, %v12020
      %v12031 = vmul.f32 %v11992, %v12020
      %v12032 = vmul.f32 %v11993, %v12020
      %v12033 = vmul.f32 %v11994, %v12020
      %v12034 = vmul.f32 %v11995, %v12020
      %v12035 = vmul.f32 %v11996, %v12020
      %v12036 = vmul.f32 %v11997, %v12020
      %v12037 = vmul.f32 %v11998, %v12020
      %v12038 = vmul.f32 %v11999, %v12020
      %v12039 = vmul.f32 %v12000, %v12020
      %v12040 = vmul.f32 %v12001, %v12020
      %v12041 = vmul.f32 %v12002, %v12020
      %v12042 = vmul.f32 %v12003, %v12020
      %v12043 = vmul.f32 %v12004, %v12020
      %v12044 = vmul.f32 %v12005, %v12020
      %v12045 = vmul.f32 %v12006, %v12020
      %v12046 = vmul.f32 %v12007, %v12020
      %v12047 = vmul.f32 %v12008, %v12020
      %v12048 = vmul.f32 %v12009, %v12020
      %v12049 = vmul.f32 %v12010, %v12020
      %v12050 = vmul.f32 %v12011, %v12020
      %v12051 = vmul.f32 %v12012, %v12020
      %v12052 = vmul.f32 %v12013, %v12020
      %v12053 = vmul.f32 %v12014, %v12020
      %v12054 = vld [vmem:[%s10] sm:$0x1]
      %v12056 = vlaneseq
      %v12057 = vshrl.u32 %v12056, 7
      %v12058 = vsub.s32 0, %v12057
      %v12059 = vrot.slane %v12054, %v12058
      %v12061 = vadd.f32 %v12022, %v12059
      %v12062 = vadd.f32 %v12023, %v12059
      %v12063 = vadd.f32 %v12024, %v12059
      %v12064 = vadd.f32 %v12025, %v12059
      %v12065 = vadd.f32 %v12026, %v12059
      %v12066 = vadd.f32 %v12027, %v12059
      %v12067 = vadd.f32 %v12028, %v12059
      %v12068 = vadd.f32 %v12029, %v12059
      %v12069 = vadd.f32 %v12030, %v12059
      %v12070 = vadd.f32 %v12031, %v12059
      %v12071 = vadd.f32 %v12032, %v12059
      %v12072 = vadd.f32 %v12033, %v12059
      %v12073 = vadd.f32 %v12034, %v12059
      %v12074 = vadd.f32 %v12035, %v12059
      %v12075 = vadd.f32 %v12036, %v12059
      %v12076 = vadd.f32 %v12037, %v12059
      %v12077 = vadd.f32 %v12038, %v12059
      %v12078 = vadd.f32 %v12039, %v12059
      %v12079 = vadd.f32 %v12040, %v12059
      %v12080 = vadd.f32 %v12041, %v12059
      %v12081 = vadd.f32 %v12042, %v12059
      %v12082 = vadd.f32 %v12043, %v12059
      %v12083 = vadd.f32 %v12044, %v12059
      %v12084 = vadd.f32 %v12045, %v12059
      %v12085 = vadd.f32 %v12046, %v12059
      %v12086 = vadd.f32 %v12047, %v12059
      %v12087 = vadd.f32 %v12048, %v12059
      %v12088 = vadd.f32 %v12049, %v12059
      %v12089 = vadd.f32 %v12050, %v12059
      %v12090 = vadd.f32 %v12051, %v12059
      %v12091 = vadd.f32 %v12052, %v12059
      %v12092 = vadd.f32 %v12053, %v12059
      %vm12093 = vcmp.ge.f32.partialorder %v12061, 0.0
      %vm12094 = vcmp.ge.f32.partialorder %v12062, 0.0
      %vm12095 = vcmp.ge.f32.partialorder %v12063, 0.0
      %vm12096 = vcmp.ge.f32.partialorder %v12064, 0.0
      %vm12097 = vcmp.ge.f32.partialorder %v12065, 0.0
      %vm12098 = vcmp.ge.f32.partialorder %v12066, 0.0
      %vm12099 = vcmp.ge.f32.partialorder %v12067, 0.0
      %vm12100 = vcmp.ge.f32.partialorder %v12068, 0.0
      %vm12101 = vcmp.ge.f32.partialorder %v12069, 0.0
      %vm12102 = vcmp.ge.f32.partialorder %v12070, 0.0
      %vm12103 = vcmp.ge.f32.partialorder %v12071, 0.0
      %vm12104 = vcmp.ge.f32.partialorder %v12072, 0.0
      %vm12105 = vcmp.ge.f32.partialorder %v12073, 0.0
      %vm12106 = vcmp.ge.f32.partialorder %v12074, 0.0
      %vm12107 = vcmp.ge.f32.partialorder %v12075, 0.0
      %vm12108 = vcmp.ge.f32.partialorder %v12076, 0.0
      %vm12109 = vcmp.ge.f32.partialorder %v12077, 0.0
      %vm12110 = vcmp.ge.f32.partialorder %v12078, 0.0
      %vm12111 = vcmp.ge.f32.partialorder %v12079, 0.0
      %vm12112 = vcmp.ge.f32.partialorder %v12080, 0.0
      %vm12113 = vcmp.ge.f32.partialorder %v12081, 0.0
      %vm12114 = vcmp.ge.f32.partialorder %v12082, 0.0
      %vm12115 = vcmp.ge.f32.partialorder %v12083, 0.0
      %vm12116 = vcmp.ge.f32.partialorder %v12084, 0.0
      %vm12117 = vcmp.ge.f32.partialorder %v12085, 0.0
      %vm12118 = vcmp.ge.f32.partialorder %v12086, 0.0
      %vm12119 = vcmp.ge.f32.partialorder %v12087, 0.0
      %vm12120 = vcmp.ge.f32.partialorder %v12088, 0.0
      %vm12121 = vcmp.ge.f32.partialorder %v12089, 0.0
      %vm12122 = vcmp.ge.f32.partialorder %v12090, 0.0
      %vm12123 = vcmp.ge.f32.partialorder %v12091, 0.0
      %vm12124 = vcmp.ge.f32.partialorder %v12092, 0.0
      %v12125 = vmul.f32 %v12061, 0.01
      %v12126 = vmul.f32 %v12062, 0.01
      %v12127 = vmul.f32 %v12063, 0.01
      %v12128 = vmul.f32 %v12064, 0.01
      %v12129 = vmul.f32 %v12065, 0.01
      %v12130 = vmul.f32 %v12066, 0.01
      %v12131 = vmul.f32 %v12067, 0.01
      %v12132 = vmul.f32 %v12068, 0.01
      %v12133 = vmul.f32 %v12069, 0.01
      %v12134 = vmul.f32 %v12070, 0.01
      %v12135 = vmul.f32 %v12071, 0.01
      %v12136 = vmul.f32 %v12072, 0.01
      %v12137 = vmul.f32 %v12073, 0.01
      %v12138 = vmul.f32 %v12074, 0.01
      %v12139 = vmul.f32 %v12075, 0.01
      %v12140 = vmul.f32 %v12076, 0.01
      %v12141 = vmul.f32 %v12077, 0.01
      %v12142 = vmul.f32 %v12078, 0.01
      %v12143 = vmul.f32 %v12079, 0.01
      %v12144 = vmul.f32 %v12080, 0.01
      %v12145 = vmul.f32 %v12081, 0.01
      %v12146 = vmul.f32 %v12082, 0.01
      %v12147 = vmul.f32 %v12083, 0.01
      %v12148 = vmul.f32 %v12084, 0.01
      %v12149 = vmul.f32 %v12085, 0.01
      %v12150 = vmul.f32 %v12086, 0.01
      %v12151 = vmul.f32 %v12087, 0.01
      %v12152 = vmul.f32 %v12088, 0.01
      %v12153 = vmul.f32 %v12089, 0.01
      %v12154 = vmul.f32 %v12090, 0.01
      %v12155 = vmul.f32 %v12091, 0.01
      %v12156 = vmul.f32 %v12092, 0.01
      %v12157 = vsel %vm12093, %v12061, %v12125
      %v12158 = vsel %vm12094, %v12062, %v12126
      %v12159 = vsel %vm12095, %v12063, %v12127
      %v12160 = vsel %vm12096, %v12064, %v12128
      %v12161 = vsel %vm12097, %v12065, %v12129
      %v12162 = vsel %vm12098, %v12066, %v12130
      %v12163 = vsel %vm12099, %v12067, %v12131
      %v12164 = vsel %vm12100, %v12068, %v12132
      %v12165 = vsel %vm12101, %v12069, %v12133
      %v12166 = vsel %vm12102, %v12070, %v12134
      %v12167 = vsel %vm12103, %v12071, %v12135
      %v12168 = vsel %vm12104, %v12072, %v12136
      %v12169 = vsel %vm12105, %v12073, %v12137
      %v12170 = vsel %vm12106, %v12074, %v12138
      %v12171 = vsel %vm12107, %v12075, %v12139
      %v12172 = vsel %vm12108, %v12076, %v12140
      %v12173 = vsel %vm12109, %v12077, %v12141
      %v12174 = vsel %vm12110, %v12078, %v12142
      %v12175 = vsel %vm12111, %v12079, %v12143
      %v12176 = vsel %vm12112, %v12080, %v12144
      %v12177 = vsel %vm12113, %v12081, %v12145
      %v12178 = vsel %vm12114, %v12082, %v12146
      %v12179 = vsel %vm12115, %v12083, %v12147
      %v12180 = vsel %vm12116, %v12084, %v12148
      %v12181 = vsel %vm12117, %v12085, %v12149
      %v12182 = vsel %vm12118, %v12086, %v12150
      %v12183 = vsel %vm12119, %v12087, %v12151
      %v12184 = vsel %vm12120, %v12088, %v12152
      %v12185 = vsel %vm12121, %v12089, %v12153
      %v12186 = vsel %vm12122, %v12090, %v12154
      %v12187 = vsel %vm12123, %v12091, %v12155
      %v12188 = vsel %vm12124, %v12092, %v12156
      %12189 = vxpose.xlu0.b32.start [1/16] %v12157, 128
      %12190 = vxpose.xlu0.b32.cont [2/16] %v12158, 128
      %12191 = vxpose.xlu0.b32.cont [3/16] %v12159, 128
      %12192 = vxpose.xlu0.b32.cont [4/16] %v12160, 128
      %12193 = vxpose.xlu0.b32.cont [5/16] %v12161, 128
      %12194 = vxpose.xlu0.b32.cont [6/16] %v12162, 128
      %12195 = vxpose.xlu0.b32.cont [7/16] %v12163, 128
      %12196 = vxpose.xlu0.b32.cont [8/16] %v12164, 128
      %12197 = vxpose.xlu0.b32.cont [9/16] %v12165, 128
      %12198 = vxpose.xlu0.b32.cont [10/16] %v12166, 128
      %12199 = vxpose.xlu0.b32.cont [11/16] %v12167, 128
      %12200 = vxpose.xlu0.b32.cont [12/16] %v12168, 128
      %12201 = vxpose.xlu0.b32.cont [13/16] %v12169, 128
      %12202 = vxpose.xlu0.b32.cont [14/16] %v12170, 128
      %12203 = vxpose.xlu0.b32.cont [15/16] %v12171, 128
      %12204 = vxpose.xlu0.b32.end [16/16] %v12172, 128
      %v12205 = vpop.trf.xlu0
      %v12206 = vpop.trf.xlu0
      %v12207 = vpop.trf.xlu0
      %v12208 = vpop.trf.xlu0
      %v12209 = vpop.trf.xlu0
      %v12210 = vpop.trf.xlu0
      %v12211 = vpop.trf.xlu0
      %v12212 = vpop.trf.xlu0
      %v12213 = vpop.trf.xlu0
      %v12214 = vpop.trf.xlu0
      %v12215 = vpop.trf.xlu0
      %v12216 = vpop.trf.xlu0
      %v12217 = vpop.trf.xlu0
      %v12218 = vpop.trf.xlu0
      %v12219 = vpop.trf.xlu0
      %v12220 = vpop.trf.xlu0
      %12221 = vxpose.xlu0.b32.start [1/16] %v12173, 128
      %12222 = vxpose.xlu0.b32.cont [2/16] %v12174, 128
      %12223 = vxpose.xlu0.b32.cont [3/16] %v12175, 128
      %12224 = vxpose.xlu0.b32.cont [4/16] %v12176, 128
      %12225 = vxpose.xlu0.b32.cont [5/16] %v12177, 128
      %12226 = vxpose.xlu0.b32.cont [6/16] %v12178, 128
      %12227 = vxpose.xlu0.b32.cont [7/16] %v12179, 128
      %12228 = vxpose.xlu0.b32.cont [8/16] %v12180, 128
      %12229 = vxpose.xlu0.b32.cont [9/16] %v12181, 128
      %12230 = vxpose.xlu0.b32.cont [10/16] %v12182, 128
      %12231 = vxpose.xlu0.b32.cont [11/16] %v12183, 128
      %12232 = vxpose.xlu0.b32.cont [12/16] %v12184, 128
      %12233 = vxpose.xlu0.b32.cont [13/16] %v12185, 128
      %12234 = vxpose.xlu0.b32.cont [14/16] %v12186, 128
      %12235 = vxpose.xlu0.b32.cont [15/16] %v12187, 128
      %12236 = vxpose.xlu0.b32.end [16/16] %v12188, 128
      %v12237 = vpop.trf.xlu0
      %v12238 = vpop.trf.xlu0
      %v12239 = vpop.trf.xlu0
      %v12240 = vpop.trf.xlu0
      %v12241 = vpop.trf.xlu0
      %v12242 = vpop.trf.xlu0
      %v12243 = vpop.trf.xlu0
      %v12244 = vpop.trf.xlu0
      %v12245 = vpop.trf.xlu0
      %v12246 = vpop.trf.xlu0
      %v12247 = vpop.trf.xlu0
      %v12248 = vpop.trf.xlu0
      %v12249 = vpop.trf.xlu0
      %v12250 = vpop.trf.xlu0
      %v12251 = vpop.trf.xlu0
      %v12252 = vpop.trf.xlu0
      %12253 = vst [vmem:[%s406] sm:$0xff] %v12205
      %12254 = vst [vmem:[%s406 + $0x8] sm:$0xff] %v12237
      %12255 = vst [vmem:[%s406 + $0x10] sm:$0xff] %v12206
      %12256 = vst [vmem:[%s406 + $0x18] sm:$0xff] %v12238
      %p12257 = scmp.lt.s32.totalorder %s22, 1
      %s12258 = scalar_select %p12257, %s22, 1
      %s12259 = smul.addr %s12258, 4
      %s12260 = smul.addr %s12259, 8
      %s12261 = scalar_lea.vmem %s11, %s12260
      // Predicated region
      $region65: #{upblock_fba_forward.1} parent=63 // pred_check
        %p12262 = pneg %p281
      $region66: #{upblock_fba_forward.1} parent=63 // pred_check_branch
        %12264 = sbr.rel (%p12262) target = $region68
      $region67: #{upblock_fba_forward.1} parent=63 // pred_region
        _
      $region68: #{upblock_fba_forward.1} parent=63 // pred_fallthru
        _
    $region64: #{upblock_fba_forward.1} parent=5 // pred_fallthru
      _
    %p12265 = scmp.le.s32.totalorder 2, %s17
    // Predicated region
    $region69: #{upblock_fba_forward.1} parent=5 // pred_check
      %p12266 = pneg %p12265
    $region70: #{upblock_fba_forward.1} parent=5 // pred_check_branch
      %12268 = sbr.rel (%p12266) target = $region72
    $region71: #{upblock_fba_forward.1} parent=5 // pred_region
      %s12269 = ssub.s32 %s17, 2
      // Predicated region
      $region73: #{upblock_fba_forward.1} parent=71 // pred_check
        %p12270 = pneg %p287
      $region74: #{upblock_fba_forward.1} parent=71 // pred_check_branch
        %12272 = sbr.rel (%p12270) target = $region76
      $region75: #{upblock_fba_forward.1} parent=71 // pred_region
        %p12273 = scmp.lt.s32.totalorder %s23, 1
        %s12274 = scalar_select %p12273, %s23, 1
        %s12275 = smul.addr %s12274, 4
        %s12276 = smul.addr %s12275, 8
        %s12277 = scalar_lea.vmem %s11, %s12276
      $region76: #{upblock_fba_forward.1} parent=71 // pred_fallthru
        _
    $region72: #{upblock_fba_forward.1} parent=5 // pred_fallthru
      _
  $region6: #{upblock_fba_forward.1} parent=0 // loop_footer
    %s21 = sadd.s32 1, %s17
  $region7: #{upblock_fba_forward.1} parent=0 // loop_footer_branch
    %16 = sbr.rel target = $region3
  $region8: #{upblock_fba_forward.1} parent=0 // loop_exit
    _

</llo_original>
